<compile_context>
chip_gen: v6e
topology: v6e:2x2x1
jax: 0.10.0
libtpu: 0.0.40
codegen_flags: <defaults>
</compile_context>

<pallas_src>
import functools
import math

import jax
import jax.numpy as jnp
from jax import lax
from jax.experimental import pallas as pl
from jax.experimental.pallas import tpu as pltpu


# -----------------------------------------------------------------------------
# In-kernel helpers (uint8 semantics emulated in float32).
# -----------------------------------------------------------------------------
def _u8_to_f32(x):
    return x.astype(jnp.int32).astype(jnp.float32)


def _f32_to_u8(x):
    # values are already integral and in [0, 255]
    return x.astype(jnp.int32).astype(jnp.uint8)


def _blend(img1, img2, ratio):
    # torchvision _blend for uint8: clamp(0, 255) then truncating cast.
    return jnp.floor(jnp.clip(ratio * img1 + (1.0 - ratio) * img2, 0.0, 255.0))


def _rgb_to_gray(x):
    # torchvision rgb_to_grayscale truncates back to the integer dtype.
    return jnp.floor(0.2989 * x[0:1] + 0.587 * x[1:2] + 0.114 * x[2:3])


def _smem_spec():
    return pl.BlockSpec(memory_space=pltpu.MemorySpace.SMEM)


def _pick_tile(n, cap):
    # cap is a multiple of 128; a full-extent block is always legal.
    return n if n <= cap else cap


# -----------------------------------------------------------------------------
# Pointwise kernels: operate on lane-dense (C, TILE_N) uint8 blocks.
# Scalar parameter arrives through a (1,) f32 SMEM ref (no recompile per magnitude).
# -----------------------------------------------------------------------------
def _identity_kernel(p_ref, x_ref, o_ref):
    o_ref[...] = x_ref[...]


def _invert_kernel(p_ref, x_ref, o_ref):
    o_ref[...] = (255 - x_ref[...].astype(jnp.int32)).astype(jnp.uint8)


def _brightness_kernel(p_ref, x_ref, o_ref):
    x = _u8_to_f32(x_ref[...])
    o_ref[...] = _f32_to_u8(_blend(x, 0.0, p_ref[0]))


def _color_kernel(p_ref, x_ref, o_ref):
    x = _u8_to_f32(x_ref[...])
    o_ref[...] = _f32_to_u8(_blend(x, _rgb_to_gray(x), p_ref[0]))


def _solarize_kernel(p_ref, x_ref, o_ref):
    x = _u8_to_f32(x_ref[...])
    o_ref[...] = _f32_to_u8(jnp.where(x >= p_ref[0], 255.0 - x, x))


def _posterize_kernel(p_ref, x_ref, o_ref):
    x = _u8_to_f32(x_ref[...])
    q = p_ref[0]                              # q = 2**(8-bits), power of two -> exact
    o_ref[...] = _f32_to_u8(jnp.floor(x / q) * q)


_POINTWISE = {
    'Identity': _identity_kernel,
    'Invert': _invert_kernel,
    'Brightness': _brightness_kernel,
    'Color': _color_kernel,
    'Solarize': _solarize_kernel,
    'Posterize': _posterize_kernel,
}


# -----------------------------------------------------------------------------
# Whole-image kernels (need a global reduction or 2-D structure).
# -----------------------------------------------------------------------------
def make_contrast_kernel(N):
    def kernel(p_ref, x_ref, o_ref):                      # (3, N) uint8 block
        f = p_ref[0]
        x = _u8_to_f32(x_ref[...])
        g = _rgb_to_gray(x)                                # (1, N)
        mean = jnp.sum(g) / N
        o_ref[...] = _f32_to_u8(_blend(x, mean, f))
    return kernel


def make_autocontrast_kernel():
    def kernel(p_ref, x_ref, o_ref):                      # (C, N) uint8 block
        x = _u8_to_f32(x_ref[...])
        mn = jnp.min(x, axis=1, keepdims=True)
        mx = jnp.max(x, axis=1, keepdims=True)
        flat = mx == mn
        minimum = jnp.where(flat, 0.0, mn)
        scale = jnp.where(flat, 1.0, 255.0 / jnp.where(flat, 1.0, mx - mn))
        o_ref[...] = _f32_to_u8(jnp.floor(jnp.clip((x - minimum) * scale, 0.0, 255.0)))
    return kernel


def make_equalize_kernel(C, N):
    # Histogram + cumulative count on the MXU; single (256, N) one-hot per channel.
    def kernel(p_ref, x_ref, o_ref):                      # (C, N) uint8 block
        x_all = x_ref[...].astype(jnp.int32)              # (C, N)
        # hoisted per-image constants (shared by every channel)
        v = lax.broadcasted_iota(jnp.int32, (256, N), 0)  # pixel-value bins down sublanes
        ones_col = jnp.ones((N, 1), jnp.bfloat16)
        tri = (lax.broadcasted_iota(jnp.int32, (256, 256), 0)
               > lax.broadcasted_iota(jnp.int32, (256, 256), 1)).astype(jnp.float32)
        outs = []
        for c in range(C):
            xi = x_all[c:c + 1]                           # (1, N)
            eq = xi == v                                  # (256, N) one-hot (bool)
            hist = jnp.dot(eq.astype(jnp.float32).astype(jnp.bfloat16), ones_col,
                           preferred_element_type=jnp.float32)          # (256, 1) exact counts
            cnt_less = jnp.dot(tri, hist, preferred_element_type=jnp.float32,
                               precision=jax.lax.Precision.HIGHEST)     # cumsum on MXU
            maxv = jnp.max(xi)
            cnt_max = jnp.sum((xi == maxv).astype(jnp.float32))
            step = jnp.floor((N - cnt_max) / 255.0)       # nonzero_hist[:-1].sum() // 255
            step_safe = jnp.maximum(step, 1.0)
            half = jnp.floor(step_safe / 2.0)
            lut = jnp.clip(jnp.floor((cnt_less + half) / step_safe), 0.0, 255.0)  # (256, 1)
            mapped = jnp.sum(jnp.where(eq, lut, 0.0), axis=0, keepdims=True)      # lut[img]
            outs.append(jnp.where(step > 0.0, mapped, xi.astype(jnp.float32)))
        o_ref[...] = _f32_to_u8(jnp.concatenate(outs, axis=0))
    return kernel


def make_sharpness_kernel(C, H, W):
    # 3x3 blur ( [[1,1,1],[1,5,1],[1,1,1]] / 13 ) as two banded matmuls on the MXU:
    # neighbourhood-sum = band_h @ x @ band_w, then + 4*x, /13.
    def kernel(p_ref, x_ref, o_ref):                      # (C, H, W) uint8 block
        f = p_ref[0]
        x = _u8_to_f32(x_ref[...])
        band_h = (jnp.abs(lax.broadcasted_iota(jnp.int32, (H, H), 0)
                          - lax.broadcasted_iota(jnp.int32, (H, H), 1)) <= 1).astype(jnp.float32)
        band_w = (jnp.abs(lax.broadcasted_iota(jnp.int32, (W, W), 0)
                          - lax.broadcasted_iota(jnp.int32, (W, W), 1)) <= 1).astype(jnp.float32)
        row = lax.broadcasted_iota(jnp.int32, (H, W), 0)
        col = lax.broadcasted_iota(jnp.int32, (H, W), 1)
        interior = (row >= 1) & (row <= H - 2) & (col >= 1) & (col <= W - 2)
        hp = jax.lax.Precision.HIGHEST
        outs = []
        for c in range(C):
            xc = x[c]                                     # (H, W)
            s = jnp.dot(band_h, xc, preferred_element_type=jnp.float32, precision=hp)
            s = jnp.dot(s, band_w, preferred_element_type=jnp.float32, precision=hp)
            blurred = jnp.round((s + 4.0 * xc) / 13.0)    # conv result rounded to uint8
            degenerate = jnp.where(interior, blurred, xc) # border kept from original
            outs.append(_blend(xc, degenerate, f)[None])
        o_ref[...] = _f32_to_u8(jnp.concatenate(outs, axis=0))
    return kernel


# -----------------------------------------------------------------------------
# Fused image+label affine / rotate (nearest neighbour), tiled gather on the MXU.
# Grid = (output-pixel tiles, source-pixel tiles); the one-hot is only
# (TILE_SRC, TILE_OUT), accumulated into an f32 VMEM scratch.
# -----------------------------------------------------------------------------
def make_affine_nearest_kernel(H, W, tile_out, tile_src):
    def kernel(theta_ref, fill_ref, x_ref, o_ref, acc_ref):
        i = pl.program_id(0)
        j = pl.program_id(1)

        @pl.when(j == 0)
        def _():
            acc_ref[...] = jnp.zeros_like(acc_ref)

        t00 = theta_ref[0]
        t01 = theta_ref[1]
        t02 = theta_ref[2]
        t10 = theta_ref[3]
        t11 = theta_ref[4]
        t12 = theta_ref[5]

        # output pixel coordinates for this tile
        p = lax.broadcasted_iota(jnp.int32, (1, tile_out), 1) + i * tile_out
        oy = p // W
        ox = p - oy * W
        xg = ox.astype(jnp.float32) - (W - 1) * 0.5
        yg = oy.astype(jnp.float32) - (H - 1) * 0.5
        sx = jnp.round(t00 * xg + t01 * yg + t02 + (W - 1) * 0.5)   # round-half-even
        sy = jnp.round(t10 * xg + t11 * yg + t12 + (H - 1) * 0.5)
        src = (sy * W + sx).astype(jnp.int32)                       # (1, tile_out)

        # one-hot over the current source-pixel tile only
        q = lax.broadcasted_iota(jnp.int32, (tile_src, tile_out), 0) + j * tile_src
        onehot = (q == src).astype(jnp.float32).astype(jnp.bfloat16)
        xb = _u8_to_f32(x_ref[...]).astype(jnp.bfloat16)            # (C_total, tile_src)
        acc_ref[...] += jnp.dot(xb, onehot, preferred_element_type=jnp.float32)

        @pl.when(j == pl.num_programs(1) - 1)
        def _():
            inb = (sx >= 0) & (sx <= W - 1) & (sy >= 0) & (sy <= H - 1)
            fill = fill_ref[...]                                    # (C_total, 1)
            res = jnp.where(inb, acc_ref[...], fill)
            o_ref[...] = _f32_to_u8(res)
    return kernel


# -----------------------------------------------------------------------------
# Cached, jitted pallas_call builders (one compile per op / shape).
# -----------------------------------------------------------------------------
@functools.lru_cache(maxsize=None)
def _pointwise_fn(op_name, C, N):
    kernel = _POINTWISE[op_name]
    tile = _pick_tile(N, 2048)
    grid = (pl.cdiv(N, tile),)
    f = pl.pallas_call(
        kernel,
        out_shape=jax.ShapeDtypeStruct((C, N), jnp.uint8),
        grid=grid,
        in_specs=[_smem_spec(),
                  pl.BlockSpec((C, tile), lambda i: (0, i))],
        out_specs=pl.BlockSpec((C, tile), lambda i: (0, i)),
        compiler_params=pltpu.CompilerParams(dimension_semantics=("parallel",)),
    )
    return jax.jit(f)


@functools.lru_cache(maxsize=None)
def _whole_fn(op_name, shape):
    if op_name == 'Contrast':
        kernel = make_contrast_kernel(shape[1])
    elif op_name == 'AutoContrast':
        kernel = make_autocontrast_kernel()
    elif op_name == 'Equalize':
        kernel = make_equalize_kernel(shape[0], shape[1])
    elif op_name == 'Sharpness':
        kernel = make_sharpness_kernel(*shape)
    else:
        raise ValueError(op_name)
    nd = len(shape)
    f = pl.pallas_call(
        kernel,
        out_shape=jax.ShapeDtypeStruct(shape, jnp.uint8),
        grid=(1,),
        in_specs=[_smem_spec(),
                  pl.BlockSpec(shape, lambda i: (0,) * nd)],
        out_specs=pl.BlockSpec(shape, lambda i: (0,) * nd),
        compiler_params=pltpu.CompilerParams(dimension_semantics=("arbitrary",)),
    )
    return jax.jit(f)


@functools.lru_cache(maxsize=None)
def _affine_fn(C_total, H, W):
    N = H * W
    tile_out = _pick_tile(N, 512)
    tile_src = _pick_tile(N, 512)
    grid = (pl.cdiv(N, tile_out), pl.cdiv(N, tile_src))
    kernel = make_affine_nearest_kernel(H, W, tile_out, tile_src)
    f = pl.pallas_call(
        kernel,
        out_shape=jax.ShapeDtypeStruct((C_total, N), jnp.uint8),
        grid=grid,
        in_specs=[_smem_spec(),                                         # theta (8,) f32
                  pl.BlockSpec((C_total, 1), lambda i, j: (0, 0)),       # fill values
                  pl.BlockSpec((C_total, tile_src), lambda i, j: (0, j))],  # source pixels
        out_specs=pl.BlockSpec((C_total, tile_out), lambda i, j: (0, i)),
        scratch_shapes=[pltpu.VMEM((C_total, tile_out), jnp.float32)],
        compiler_params=pltpu.CompilerParams(
            dimension_semantics=("parallel", "arbitrary")),
    )
    return jax.jit(f)


# -----------------------------------------------------------------------------
# Host-side affine matrix setup (mirrors torchvision F.affine / F.rotate glue).
# -----------------------------------------------------------------------------
def _get_inverse_affine_matrix(center, angle, translate, scale, shear):
    rot = math.radians(angle)
    sx = math.radians(shear[0])
    sy = math.radians(shear[1])
    cx, cy = center
    tx, ty = translate
    a = math.cos(rot - sy) / math.cos(sy)
    b = -math.cos(rot - sy) * math.tan(sx) / math.cos(sy) - math.sin(rot)
    c = math.sin(rot - sy) / math.cos(sy)
    d = -math.sin(rot - sy) * math.tan(sx) / math.cos(sy) + math.cos(rot)
    matrix = [d, -b, 0.0, -c, a, 0.0]
    matrix = [x / scale for x in matrix]
    matrix[2] += matrix[0] * (-cx - tx) + matrix[1] * (-cy - ty)
    matrix[5] += matrix[3] * (-cx - tx) + matrix[4] * (-cy - ty)
    matrix[2] += cx
    matrix[5] += cy
    return matrix


def _affine_theta(H, W, angle, translate, scale, shear, center):
    if center is not None:
        center_f = [1.0 * (c - s * 0.5) for c, s in zip(center, [W, H])]
    else:
        center_f = [0.0, 0.0]
    translate_f = [1.0 * t for t in translate]
    return _get_inverse_affine_matrix(center_f, angle, translate_f, scale, shear)


def _rotate_theta(angle):
    return _get_inverse_affine_matrix([0.0, 0.0], -angle, [0.0, 0.0], 1.0, [0.0, 0.0])


def _as_fill_list(fill, channels):
    if fill is None:
        return [0.0] * channels
    if isinstance(fill, (int, float)):
        return [float(fill)] * channels
    fill = [float(f) for f in fill]
    if len(fill) == 1:
        fill = fill * channels
    return fill


_GEOMETRIC = ('ShearX', 'ShearY', 'TranslateX', 'TranslateY', 'Rotate')


def _ext_apply_op(img, lbl, op_name, magnitude, fill_img, fill_lbl):
    C, H, W = img.shape
    CL = lbl.shape[0]
    N = H * W

    if op_name in _GEOMETRIC:
        if op_name == 'ShearX':
            theta = _affine_theta(H, W, 0.0, [0, 0], 1.0,
                                  [math.degrees(math.atan(magnitude)), 0.0], [0, 0])
        elif op_name == 'ShearY':
            theta = _affine_theta(H, W, 0.0, [0, 0], 1.0,
                                  [0.0, math.degrees(math.atan(magnitude))], [0, 0])
        elif op_name == 'TranslateX':
            theta = _affine_theta(H, W, 0.0, [int(magnitude), 0], 1.0, [0.0, 0.0], None)
        elif op_name == 'TranslateY':
            theta = _affine_theta(H, W, 0.0, [0, int(magnitude)], 1.0, [0.0, 0.0], None)
        else:  # Rotate
            theta = _rotate_theta(magnitude)
        # fused image + label gather (one kernel, one src-index computation)
        x = jnp.concatenate([img.reshape(C, N), lbl.reshape(CL, N)], axis=0)
        fills = _as_fill_list(fill_img, C) + _as_fill_list(fill_lbl, CL)
        fill_arr = jnp.asarray(fills, dtype=jnp.float32).reshape(-1, 1)
        theta_arr = jnp.asarray(list(theta) + [0.0, 0.0], dtype=jnp.float32)
        out = _affine_fn(C + CL, H, W)(theta_arr, fill_arr, x)
        img_o = out[:C].reshape(C, H, W)
        lbl_o = out[C:].reshape(CL, H, W)
        return img_o, lbl_o

    flat = img.reshape(C, N)
    zero = jnp.zeros((1,), jnp.float32)

    if op_name == 'Identity':
        out = _pointwise_fn('Identity', C, N)(zero, flat)
    elif op_name == 'Invert':
        out = _pointwise_fn('Invert', C, N)(zero, flat)
    elif op_name == 'Brightness':
        out = _pointwise_fn('Brightness', C, N)(jnp.asarray([1.0 + magnitude], jnp.float32), flat)
    elif op_name == 'Color':
        out = _pointwise_fn('Color', C, N)(jnp.asarray([1.0 + magnitude], jnp.float32), flat)
    elif op_name == 'Solarize':
        out = _pointwise_fn('Solarize', C, N)(jnp.asarray([float(magnitude)], jnp.float32), flat)
    elif op_name == 'Posterize':
        q = float(2 ** (8 - int(magnitude)))
        out = _pointwise_fn('Posterize', C, N)(jnp.asarray([q], jnp.float32), flat)
    elif op_name == 'Contrast':
        out = _whole_fn('Contrast', (C, N))(jnp.asarray([1.0 + magnitude], jnp.float32), flat)
    elif op_name == 'AutoContrast':
        out = _whole_fn('AutoContrast', (C, N))(zero, flat)
    elif op_name == 'Equalize':
        out = _whole_fn('Equalize', (C, N))(zero, flat)
    elif op_name == 'Sharpness':
        if H <= 2 or W <= 2:
            return img, lbl
        out = _whole_fn('Sharpness', (C, H, W))(jnp.asarray([1.0 + magnitude], jnp.float32), img)
        return out, lbl
    else:
        raise ValueError(f'The provided operator {op_name} is not recognized.')
    return out.reshape(C, H, W), lbl


# -----------------------------------------------------------------------------
# Module port.
# -----------------------------------------------------------------------------
class ExtTrivialAugmentWide:
    """JAX/Pallas port of ExtTrivialAugmentWide (NEAREST interpolation)."""

    def __init__(self, num_magnitude_bins=31, fill_img=0, fill_lbl=255):
        self.num_magnitude_bins = num_magnitude_bins
        self.fill_img = fill_img
        self.fill_lbl = fill_lbl

    @staticmethod
    def _linspace(a, b, n):
        return [a + i * (b - a) / (n - 1) for i in range(n)]

    def _augmentation_space(self, num_bins):
        return {
            'Identity': (None, False),
            'ShearX': (self._linspace(0.0, 0.99, num_bins), True),
            'ShearY': (self._linspace(0.0, 0.99, num_bins), True),
            'TranslateX': (self._linspace(0.0, 32.0, num_bins), True),
            'TranslateY': (self._linspace(0.0, 32.0, num_bins), True),
            'Rotate': (self._linspace(0.0, 135.0, num_bins), True),
            'Brightness': (self._linspace(0.0, 0.99, num_bins), True),
            'Color': (self._linspace(0.0, 0.99, num_bins), True),
            'Contrast': (self._linspace(0.0, 0.99, num_bins), True),
            'Sharpness': (self._linspace(0.0, 0.99, num_bins), True),
            'Posterize': ([8 - round(i / ((num_bins - 1) / 6)) for i in range(num_bins)], False),
            'Solarize': (self._linspace(255.0, 0.0, num_bins), False),
            'AutoContrast': (None, False),
            'Equalize': (None, False),
        }

    def forward(self, img, lbl, key):
        channels = img.shape[0]
        fill_img = self.fill_img
        if isinstance(fill_img, (int, float)):
            fill_img = [float(fill_img)] * channels
        elif fill_img is not None:
            fill_img = [float(f) for f in fill_img]

        op_meta = self._augmentation_space(self.num_magnitude_bins)
        k_op, k_mag, k_sign = jax.random.split(key, 3)
        op_index = int(jax.random.randint(k_op, (), 0, len(op_meta)))
        op_name = list(op_meta.keys())[op_index]
        magnitudes, signed = op_meta[op_name]
        if magnitudes is not None:
            mag_index = int(jax.random.randint(k_mag, (), 0, len(magnitudes)))
            magnitude = float(magnitudes[mag_index])
        else:
            magnitude = 0.0
        if signed and int(jax.random.randint(k_sign, (), 0, 2)):
            magnitude *= -1.0
        return _ext_apply_op(img, lbl, op_name, magnitude, fill_img, self.fill_lbl)

    __call__ = forward


if __name__ == "__main__":
    key = jax.random.PRNGKey(0)
    k_img, k_lbl, k_aug = jax.random.split(key, 3)
    C, H, W = 3, 16, 16
    img = jax.random.randint(k_img, (C, H, W), 0, 256, dtype=jnp.int32).astype(jnp.uint8)
    lbl = jax.random.randint(k_lbl, (1, H, W), 0, 21, dtype=jnp.int32).astype(jnp.uint8)

    aug = ExtTrivialAugmentWide(num_magnitude_bins=31, fill_img=0, fill_lbl=255)
    out_img, out_lbl = aug(img, lbl, k_aug)
    jax.block_until_ready((out_img, out_lbl))

    assert out_img.shape == img.shape and out_img.dtype == jnp.uint8
    assert out_lbl.shape == lbl.shape and out_lbl.dtype == jnp.uint8
    print("KERNEL_OK")
</pallas_src>

<mosaic_0001>
module attributes {stable_mosaic.version = 11 : i64} {
  func.func @kernel(%arg0: i32, %arg1: memref<1xf32, #tpu.memory_space<smem>>, %arg2: memref<3x256xi8, #tpu.memory_space<vmem>>, %arg3: memref<3x256xi8, #tpu.memory_space<vmem>>) attributes {dimension_semantics = [#tpu.dimension_semantics<arbitrary>], iteration_bounds = array<i64: 1>, scalar_prefetch = 0 : i64, scratch_operands = 0 : i64, tpu.core_type = #tpu.core_type<tc>, window_params = [{transform_indices = @transform_0, window_bounds = array<i64: 1>}, {pipeline_mode = #tpu.pipeline_mode<synchronous>, transform_indices = @transform_1, window_bounds = array<i64: 3, 256>}, {pipeline_mode = #tpu.pipeline_mode<synchronous>, transform_indices = @transform_2, window_bounds = array<i64: 3, 256>}]} {
    %c0 = arith.constant 0 : index
    %c0_0 = arith.constant 0 : index
    %0 = vector.load %arg2[%c0, %c0_0] : memref<3x256xi8, #tpu.memory_space<vmem>>, vector<3x256xi8>
    %1 = arith.extui %0 : vector<3x256xi8> to vector<3x256xi32>
    %2 = tpu.iota {dimensions = array<i32: 0>} : vector<256x256xi32>
    %cst = arith.constant 1.000000e+00 : bf16
    %3 = vector.broadcast %cst : bf16 to vector<256x1xbf16>
    %4 = tpu.iota {dimensions = array<i32: 0>} : vector<256x256xi32>
    %5 = tpu.iota {dimensions = array<i32: 1>} : vector<256x256xi32>
    %6 = arith.cmpi sgt, %4, %5 : vector<256x256xi32>
    %7 = arith.extui %6 : vector<256x256xi1> to vector<256x256xi32>
    %8 = arith.sitofp %7 : vector<256x256xi32> to vector<256x256xf32>
    %9 = vector.extract_strided_slice %1 {offsets = [0, 0], sizes = [1, 256], strides = [1, 1]} : vector<3x256xi32> to vector<1x256xi32>
    %10 = vector.broadcast %9 : vector<1x256xi32> to vector<256x256xi32>
    %11 = arith.cmpi eq, %10, %2 : vector<256x256xi32>
    %12 = arith.extui %11 : vector<256x256xi1> to vector<256x256xi32>
    %13 = arith.sitofp %12 : vector<256x256xi32> to vector<256x256xf32>
    %14 = arith.truncf %13 : vector<256x256xf32> to vector<256x256xbf16>
    %cst_1 = arith.constant dense<0.000000e+00> : vector<256x1xf32>
    %15 = tpu.matmul %14, %3, %cst_1 {dimension_numbers = #tpu.dot_dimension_numbers<[1], [0], [0], [1], [0, 0, 1, 1], [], []>} : vector<256x256xbf16>, vector<256x1xbf16>, vector<256x1xf32> -> vector<256x1xf32>
    %cst_2 = arith.constant dense<0.000000e+00> : vector<256x1xf32>
    %16 = tpu.matmul %8, %15, %cst_2 {dimension_numbers = #tpu.dot_dimension_numbers<[1], [0], [0], [1], [0, 0, 1, 1], [], []>, precision = #tpu.contract_precision<fp32>} : vector<256x256xf32>, vector<256x1xf32>, vector<256x1xf32> -> vector<256x1xf32>
    %17 = vector.shape_cast %9 : vector<1x256xi32> to vector<1x1x256xi32>
    %cst_3 = arith.constant dense<-2147483648> : vector<1xi32>
    %18 = vector.multi_reduction <maxsi>, %17, %cst_3 [1, 2] : vector<1x1x256xi32> to vector<1xi32>
    %19 = vector.shape_cast %18 : vector<1xi32> to vector<1x1x1xi32>
    %20 = vector.extract %19[0, 0, 0] : i32 from vector<1x1x1xi32>
    %21 = vector.broadcast %20 : i32 to vector<1x256xi32>
    %22 = arith.cmpi eq, %9, %21 : vector<1x256xi32>
    %23 = arith.extui %22 : vector<1x256xi1> to vector<1x256xi32>
    %24 = arith.sitofp %23 : vector<1x256xi32> to vector<1x256xf32>
    %25 = vector.shape_cast %24 : vector<1x256xf32> to vector<1x1x256xf32>
    %cst_4 = arith.constant dense<0.000000e+00> : vector<1xf32>
    %26 = vector.multi_reduction <add>, %25, %cst_4 [1, 2] : vector<1x1x256xf32> to vector<1xf32>
    %27 = vector.shape_cast %26 : vector<1xf32> to vector<1x1x1xf32>
    %28 = vector.extract %27[0, 0, 0] : f32 from vector<1x1x1xf32>
    %cst_5 = arith.constant 2.560000e+02 : f32
    %29 = arith.subf %cst_5, %28 : f32
    %cst_6 = arith.constant 2.550000e+02 : f32
    %30 = arith.divf %29, %cst_6 : f32
    %31 = math.floor %30 : f32
    %cst_7 = arith.constant 1.000000e+00 : f32
    %32 = arith.maximumf %31, %cst_7 : f32
    %cst_8 = arith.constant 2.000000e+00 : f32
    %33 = arith.divf %32, %cst_8 : f32
    %34 = math.floor %33 : f32
    %35 = vector.broadcast %34 : f32 to vector<256x1xf32>
    %36 = arith.addf %16, %35 : vector<256x1xf32>
    %37 = vector.broadcast %32 : f32 to vector<256x1xf32>
    %38 = arith.divf %36, %37 : vector<256x1xf32>
    %39 = math.floor %38 : vector<256x1xf32>
    %cst_9 = arith.constant 0.000000e+00 : f32
    %cst_10 = arith.constant 2.550000e+02 : f32
    %40 = vector.broadcast %cst_9 : f32 to vector<256x1xf32>
    %41 = arith.maximumf %40, %39 : vector<256x1xf32>
    %42 = vector.broadcast %cst_10 : f32 to vector<256x1xf32>
    %43 = arith.minimumf %42, %41 : vector<256x1xf32>
    %cst_11 = arith.constant 0.000000e+00 : f32
    %44 = vector.shape_cast %43 : vector<256x1xf32> to vector<256x1xf32>
    %45 = vector.broadcast %44 : vector<256x1xf32> to vector<256x256xf32>
    %46 = vector.broadcast %cst_11 : f32 to vector<256x256xf32>
    %47 = arith.select %11, %45, %46 : vector<256x256xi1>, vector<256x256xf32>
    %cst_12 = arith.constant dense<0.000000e+00> : vector<256xf32>
    %48 = vector.multi_reduction <add>, %47, %cst_12 [0] : vector<256x256xf32> to vector<256xf32>
    %49 = vector.shape_cast %48 : vector<256xf32> to vector<1x256xf32>
    %cst_13 = arith.constant 0.000000e+00 : f32
    %50 = arith.cmpf ogt, %31, %cst_13 : f32
    %51 = arith.sitofp %9 : vector<1x256xi32> to vector<1x256xf32>
    %52 = arith.select %50, %49, %51 : vector<1x256xf32>
    %53 = vector.extract_strided_slice %1 {offsets = [1, 0], sizes = [1, 256], strides = [1, 1]} : vector<3x256xi32> to vector<1x256xi32>
    %54 = vector.broadcast %53 : vector<1x256xi32> to vector<256x256xi32>
    %55 = arith.cmpi eq, %54, %2 : vector<256x256xi32>
    %56 = arith.extui %55 : vector<256x256xi1> to vector<256x256xi32>
    %57 = arith.sitofp %56 : vector<256x256xi32> to vector<256x256xf32>
    %58 = arith.truncf %57 : vector<256x256xf32> to vector<256x256xbf16>
    %cst_14 = arith.constant dense<0.000000e+00> : vector<256x1xf32>
    %59 = tpu.matmul %58, %3, %cst_14 {dimension_numbers = #tpu.dot_dimension_numbers<[1], [0], [0], [1], [0, 0, 1, 1], [], []>} : vector<256x256xbf16>, vector<256x1xbf16>, vector<256x1xf32> -> vector<256x1xf32>
    %cst_15 = arith.constant dense<0.000000e+00> : vector<256x1xf32>
    %60 = tpu.matmul %8, %59, %cst_15 {dimension_numbers = #tpu.dot_dimension_numbers<[1], [0], [0], [1], [0, 0, 1, 1], [], []>, precision = #tpu.contract_precision<fp32>} : vector<256x256xf32>, vector<256x1xf32>, vector<256x1xf32> -> vector<256x1xf32>
    %61 = vector.shape_cast %53 : vector<1x256xi32> to vector<1x1x256xi32>
    %cst_16 = arith.constant dense<-2147483648> : vector<1xi32>
    %62 = vector.multi_reduction <maxsi>, %61, %cst_16 [1, 2] : vector<1x1x256xi32> to vector<1xi32>
    %63 = vector.shape_cast %62 : vector<1xi32> to vector<1x1x1xi32>
    %64 = vector.extract %63[0, 0, 0] : i32 from vector<1x1x1xi32>
    %65 = vector.broadcast %64 : i32 to vector<1x256xi32>
    %66 = arith.cmpi eq, %53, %65 : vector<1x256xi32>
    %67 = arith.extui %66 : vector<1x256xi1> to vector<1x256xi32>
    %68 = arith.sitofp %67 : vector<1x256xi32> to vector<1x256xf32>
    %69 = vector.shape_cast %68 : vector<1x256xf32> to vector<1x1x256xf32>
    %cst_17 = arith.constant dense<0.000000e+00> : vector<1xf32>
    %70 = vector.multi_reduction <add>, %69, %cst_17 [1, 2] : vector<1x1x256xf32> to vector<1xf32>
    %71 = vector.shape_cast %70 : vector<1xf32> to vector<1x1x1xf32>
    %72 = vector.extract %71[0, 0, 0] : f32 from vector<1x1x1xf32>
    %cst_18 = arith.constant 2.560000e+02 : f32
    %73 = arith.subf %cst_18, %72 : f32
    %cst_19 = arith.constant 2.550000e+02 : f32
    %74 = arith.divf %73, %cst_19 : f32
    %75 = math.floor %74 : f32
    %cst_20 = arith.constant 1.000000e+00 : f32
    %76 = arith.maximumf %75, %cst_20 : f32
    %cst_21 = arith.constant 2.000000e+00 : f32
    %77 = arith.divf %76, %cst_21 : f32
    %78 = math.floor %77 : f32
    %79 = vector.broadcast %78 : f32 to vector<256x1xf32>
    %80 = arith.addf %60, %79 : vector<256x1xf32>
    %81 = vector.broadcast %76 : f32 to vector<256x1xf32>
    %82 = arith.divf %80, %81 : vector<256x1xf32>
    %83 = math.floor %82 : vector<256x1xf32>
    %cst_22 = arith.constant 0.000000e+00 : f32
    %cst_23 = arith.constant 2.550000e+02 : f32
    %84 = vector.broadcast %cst_22 : f32 to vector<256x1xf32>
    %85 = arith.maximumf %84, %83 : vector<256x1xf32>
    %86 = vector.broadcast %cst_23 : f32 to vector<256x1xf32>
    %87 = arith.minimumf %86, %85 : vector<256x1xf32>
    %cst_24 = arith.constant 0.000000e+00 : f32
    %88 = vector.shape_cast %87 : vector<256x1xf32> to vector<256x1xf32>
    %89 = vector.broadcast %88 : vector<256x1xf32> to vector<256x256xf32>
    %90 = vector.broadcast %cst_24 : f32 to vector<256x256xf32>
    %91 = arith.select %55, %89, %90 : vector<256x256xi1>, vector<256x256xf32>
    %cst_25 = arith.constant dense<0.000000e+00> : vector<256xf32>
    %92 = vector.multi_reduction <add>, %91, %cst_25 [0] : vector<256x256xf32> to vector<256xf32>
    %93 = vector.shape_cast %92 : vector<256xf32> to vector<1x256xf32>
    %cst_26 = arith.constant 0.000000e+00 : f32
    %94 = arith.cmpf ogt, %75, %cst_26 : f32
    %95 = arith.sitofp %53 : vector<1x256xi32> to vector<1x256xf32>
    %96 = arith.select %94, %93, %95 : vector<1x256xf32>
    %97 = vector.extract_strided_slice %1 {offsets = [2, 0], sizes = [1, 256], strides = [1, 1]} : vector<3x256xi32> to vector<1x256xi32>
    %98 = vector.broadcast %97 : vector<1x256xi32> to vector<256x256xi32>
    %99 = arith.cmpi eq, %98, %2 : vector<256x256xi32>
    %100 = arith.extui %99 : vector<256x256xi1> to vector<256x256xi32>
    %101 = arith.sitofp %100 : vector<256x256xi32> to vector<256x256xf32>
    %102 = arith.truncf %101 : vector<256x256xf32> to vector<256x256xbf16>
    %cst_27 = arith.constant dense<0.000000e+00> : vector<256x1xf32>
    %103 = tpu.matmul %102, %3, %cst_27 {dimension_numbers = #tpu.dot_dimension_numbers<[1], [0], [0], [1], [0, 0, 1, 1], [], []>} : vector<256x256xbf16>, vector<256x1xbf16>, vector<256x1xf32> -> vector<256x1xf32>
    %cst_28 = arith.constant dense<0.000000e+00> : vector<256x1xf32>
    %104 = tpu.matmul %8, %103, %cst_28 {dimension_numbers = #tpu.dot_dimension_numbers<[1], [0], [0], [1], [0, 0, 1, 1], [], []>, precision = #tpu.contract_precision<fp32>} : vector<256x256xf32>, vector<256x1xf32>, vector<256x1xf32> -> vector<256x1xf32>
    %105 = vector.shape_cast %97 : vector<1x256xi32> to vector<1x1x256xi32>
    %cst_29 = arith.constant dense<-2147483648> : vector<1xi32>
    %106 = vector.multi_reduction <maxsi>, %105, %cst_29 [1, 2] : vector<1x1x256xi32> to vector<1xi32>
    %107 = vector.shape_cast %106 : vector<1xi32> to vector<1x1x1xi32>
    %108 = vector.extract %107[0, 0, 0] : i32 from vector<1x1x1xi32>
    %109 = vector.broadcast %108 : i32 to vector<1x256xi32>
    %110 = arith.cmpi eq, %97, %109 : vector<1x256xi32>
    %111 = arith.extui %110 : vector<1x256xi1> to vector<1x256xi32>
    %112 = arith.sitofp %111 : vector<1x256xi32> to vector<1x256xf32>
    %113 = vector.shape_cast %112 : vector<1x256xf32> to vector<1x1x256xf32>
    %cst_30 = arith.constant dense<0.000000e+00> : vector<1xf32>
    %114 = vector.multi_reduction <add>, %113, %cst_30 [1, 2] : vector<1x1x256xf32> to vector<1xf32>
    %115 = vector.shape_cast %114 : vector<1xf32> to vector<1x1x1xf32>
    %116 = vector.extract %115[0, 0, 0] : f32 from vector<1x1x1xf32>
    %cst_31 = arith.constant 2.560000e+02 : f32
    %117 = arith.subf %cst_31, %116 : f32
    %cst_32 = arith.constant 2.550000e+02 : f32
    %118 = arith.divf %117, %cst_32 : f32
    %119 = math.floor %118 : f32
    %cst_33 = arith.constant 1.000000e+00 : f32
    %120 = arith.maximumf %119, %cst_33 : f32
    %cst_34 = arith.constant 2.000000e+00 : f32
    %121 = arith.divf %120, %cst_34 : f32
    %122 = math.floor %121 : f32
    %123 = vector.broadcast %122 : f32 to vector<256x1xf32>
    %124 = arith.addf %104, %123 : vector<256x1xf32>
    %125 = vector.broadcast %120 : f32 to vector<256x1xf32>
    %126 = arith.divf %124, %125 : vector<256x1xf32>
    %127 = math.floor %126 : vector<256x1xf32>
    %cst_35 = arith.constant 0.000000e+00 : f32
    %cst_36 = arith.constant 2.550000e+02 : f32
    %128 = vector.broadcast %cst_35 : f32 to vector<256x1xf32>
    %129 = arith.maximumf %128, %127 : vector<256x1xf32>
    %130 = vector.broadcast %cst_36 : f32 to vector<256x1xf32>
    %131 = arith.minimumf %130, %129 : vector<256x1xf32>
    %cst_37 = arith.constant 0.000000e+00 : f32
    %132 = vector.shape_cast %131 : vector<256x1xf32> to vector<256x1xf32>
    %133 = vector.broadcast %132 : vector<256x1xf32> to vector<256x256xf32>
    %134 = vector.broadcast %cst_37 : f32 to vector<256x256xf32>
    %135 = arith.select %99, %133, %134 : vector<256x256xi1>, vector<256x256xf32>
    %cst_38 = arith.constant dense<0.000000e+00> : vector<256xf32>
    %136 = vector.multi_reduction <add>, %135, %cst_38 [0] : vector<256x256xf32> to vector<256xf32>
    %137 = vector.shape_cast %136 : vector<256xf32> to vector<1x256xf32>
    %cst_39 = arith.constant 0.000000e+00 : f32
    %138 = arith.cmpf ogt, %119, %cst_39 : f32
    %139 = arith.sitofp %97 : vector<1x256xi32> to vector<1x256xf32>
    %140 = arith.select %138, %137, %139 : vector<1x256xf32>
    %141 = tpu.concatenate %52, %96, %140 in 0 : vector<1x256xf32>, vector<1x256xf32>, vector<1x256xf32> -> vector<3x256xf32>
    %142 = arith.fptosi %141 : vector<3x256xf32> to vector<3x256xi32>
    %143 = arith.trunci %142 : vector<3x256xi32> to vector<3x256xi8>
    %c0_40 = arith.constant 0 : index
    %c0_41 = arith.constant 0 : index
    %144 = vector.load %arg3[%c0_40, %c0_41] : memref<3x256xi8, #tpu.memory_space<vmem>>, vector<3x256xi8>
    tpu.vector_store %arg3[%c0_40, %c0_41], %143 {strides = array<i32>} : memref<3x256xi8, #tpu.memory_space<vmem>>, vector<3x256xi8>,
    return
  }
  func.func @transform_0(%arg0: i32) -> i32 {
    %c0_i32 = arith.constant 0 : i32
    %c0_i32_0 = arith.constant 0 : i32
    return %c0_i32 : i32
  }
  func.func @transform_1(%arg0: i32) -> (i32, i32) {
    %c0_i32 = arith.constant 0 : i32
    %c0_i32_0 = arith.constant 0 : i32
    %c0_i32_1 = arith.constant 0 : i32
    return %c0_i32, %c0_i32_0 : i32, i32
  }
  func.func @transform_2(%arg0: i32) -> (i32, i32) {
    %c0_i32 = arith.constant 0 : i32
    %c0_i32_0 = arith.constant 0 : i32
    %c0_i32_1 = arith.constant 0 : i32
    return %c0_i32, %c0_i32_0 : i32, i32
  }
}

</mosaic_0001>

<llo_original>
// kernel: tpu_custom_call.1
$region0: #{tpu_custom_call.1}
  #allocation0 [shape = 'u32[]', space=smem, size = 0x4, offset = 0x4, fixed_abs, tag = 'smem constant byte address 0x4 - core index']
  #allocation1 [shape = 'u32[144,128]{1,0:T(1,128)}', space=vmem, size = 0x12000, scoped, tag = 'internal scratch']
  #allocation2 [shape = 'f32[1]{0:T(128)S(6)}', space=smem, size = 0x200, scoped, tag = 'scoped memory for tpu_custom_call.1']
  %s0 = inlined_call_operand.<no memory space> [shape: f32[1], index: 0, kind: input, shape index: {}]
  %s1 = inlined_call_operand.vmem [shape: u8[3,256], index: 1, kind: input, shape index: {}]
  %s2 = inlined_call_operand.hbm [shape: u8[3,256], index: 2, kind: output, shape index: {}]
  %s3 = sld [smem:[#allocation0]]
  $region18: #{tpu_custom_call.1} parent=0
    _
  %s5 = ssub.s32 1, %s3
  %s6 = scalar_select 0, %s5, %s3
  %7 = sst [smem:[#allocation2]] %s0
  $region1: #{tpu_custom_call.1} parent=0
    #allocation3 [shape = 'u8[1024]{0}', space=vmem, size = 0x400, scoped, tag = 'output window, operand 0, single buffered']
    #allocation4 [shape = 's32[1]{0}', space=sflag, size = 0x4, scoped, tag = 'scoped memory for tpu_custom_call.1']
    %8 = vsyncpa [#allocation4], 0
    // Predicated region
    $region2: #{tpu_custom_call.1} parent=1 // pred_check
      _
    $region3: #{tpu_custom_call.1} parent=1 // pred_check_branch
      %10 = sbr.rel (0) target = $region5
    $region4: #{tpu_custom_call.1} parent=1 // pred_region
      _
    $region5: #{tpu_custom_call.1} parent=1 // pred_fallthru
      _
    // Predicated region
    $region6: #{tpu_custom_call.1} parent=1 // pred_check
      _
    $region7: #{tpu_custom_call.1} parent=1 // pred_check_branch
      %12 = sbr.rel (0) target = $region9
    $region8: #{tpu_custom_call.1} parent=1 // pred_region
      _
    $region9: #{tpu_custom_call.1} parent=1 // pred_fallthru
      _
    %v15 = vld [vmem:[%s1] sm:$0x3]
    %v16 = vunpack.c.0.s8 %v15
    %v17 = vand.u32 %v16, 255
    %v18 = vlaneseq
    %v19 = vshrl.u32 %v18, 7
    %v20 = vadd.s32 %v19, 8
    %v21 = vadd.s32 %v19, 16
    %v22 = vadd.s32 %v19, 24
    %v23 = vadd.s32 %v19, 32
    %v24 = vadd.s32 %v19, 40
    %v25 = vadd.s32 %v19, 48
    %v26 = vadd.s32 %v19, 56
    %v27 = vadd.s32 %v19, 64
    %v28 = vadd.s32 %v19, 72
    %v29 = vadd.s32 %v19, 80
    %v30 = vadd.s32 %v19, 88
    %v31 = vadd.s32 %v19, 96
    %v32 = vadd.s32 %v19, 104
    %v33 = vadd.s32 %v19, 112
    %v34 = vadd.s32 %v19, 120
    %v35 = vadd.s32 %v19, 128
    %v36 = vadd.s32 %v19, 136
    %v37 = vadd.s32 %v19, 144
    %v38 = vadd.s32 %v19, 152
    %v39 = vadd.s32 %v19, 160
    %v40 = vadd.s32 %v19, 168
    %v41 = vadd.s32 %v19, 176
    %v42 = vadd.s32 %v19, 184
    %v43 = vadd.s32 %v19, 192
    %v44 = vadd.s32 %v19, 200
    %v45 = vadd.s32 %v19, 208
    %v46 = vadd.s32 %v19, 216
    %v47 = vadd.s32 %v19, 224
    %v48 = vadd.s32 %v19, 232
    %v49 = vadd.s32 %v19, 240
    %v50 = vadd.s32 %v19, 248
    %v51 = vlaneseq
    %v52 = vand.u32 %v51, 127
    %v53 = vadd.s32 %v52, 128
    %vm54 = vcmp.gt.s32.totalorder %v19, %v52
    %vm55 = vcmp.gt.s32.totalorder %v19, %v53
    %vm56 = vcmp.gt.s32.totalorder %v20, %v52
    %vm57 = vcmp.gt.s32.totalorder %v20, %v53
    %vm58 = vcmp.gt.s32.totalorder %v21, %v52
    %vm59 = vcmp.gt.s32.totalorder %v21, %v53
    %vm60 = vcmp.gt.s32.totalorder %v22, %v52
    %vm61 = vcmp.gt.s32.totalorder %v22, %v53
    %vm62 = vcmp.gt.s32.totalorder %v23, %v52
    %vm63 = vcmp.gt.s32.totalorder %v23, %v53
    %vm64 = vcmp.gt.s32.totalorder %v24, %v52
    %vm65 = vcmp.gt.s32.totalorder %v24, %v53
    %vm66 = vcmp.gt.s32.totalorder %v25, %v52
    %vm67 = vcmp.gt.s32.totalorder %v25, %v53
    %vm68 = vcmp.gt.s32.totalorder %v26, %v52
    %vm69 = vcmp.gt.s32.totalorder %v26, %v53
    %vm70 = vcmp.gt.s32.totalorder %v27, %v52
    %vm71 = vcmp.gt.s32.totalorder %v27, %v53
    %vm72 = vcmp.gt.s32.totalorder %v28, %v52
    %vm73 = vcmp.gt.s32.totalorder %v28, %v53
    %vm74 = vcmp.gt.s32.totalorder %v29, %v52
    %vm75 = vcmp.gt.s32.totalorder %v29, %v53
    %vm76 = vcmp.gt.s32.totalorder %v30, %v52
    %vm77 = vcmp.gt.s32.totalorder %v30, %v53
    %vm78 = vcmp.gt.s32.totalorder %v31, %v52
    %vm79 = vcmp.gt.s32.totalorder %v31, %v53
    %vm80 = vcmp.gt.s32.totalorder %v32, %v52
    %vm81 = vcmp.gt.s32.totalorder %v32, %v53
    %vm82 = vcmp.gt.s32.totalorder %v33, %v52
    %vm83 = vcmp.gt.s32.totalorder %v33, %v53
    %vm84 = vcmp.gt.s32.totalorder %v34, %v52
    %vm85 = vcmp.gt.s32.totalorder %v34, %v53
    %vm86 = vcmp.gt.s32.totalorder %v35, %v52
    %vm87 = vcmp.gt.s32.totalorder %v35, %v53
    %vm88 = vcmp.gt.s32.totalorder %v36, %v52
    %vm89 = vcmp.gt.s32.totalorder %v36, %v53
    %vm90 = vcmp.gt.s32.totalorder %v37, %v52
    %vm91 = vcmp.gt.s32.totalorder %v37, %v53
    %vm92 = vcmp.gt.s32.totalorder %v38, %v52
    %vm93 = vcmp.gt.s32.totalorder %v38, %v53
    %vm94 = vcmp.gt.s32.totalorder %v39, %v52
    %vm95 = vcmp.gt.s32.totalorder %v39, %v53
    %vm96 = vcmp.gt.s32.totalorder %v40, %v52
    %vm97 = vcmp.gt.s32.totalorder %v40, %v53
    %vm98 = vcmp.gt.s32.totalorder %v41, %v52
    %vm99 = vcmp.gt.s32.totalorder %v41, %v53
    %vm100 = vcmp.gt.s32.totalorder %v42, %v52
    %vm101 = vcmp.gt.s32.totalorder %v42, %v53
    %vm102 = vcmp.gt.s32.totalorder %v43, %v52
    %vm103 = vcmp.gt.s32.totalorder %v43, %v53
    %vm104 = vcmp.gt.s32.totalorder %v44, %v52
    %vm105 = vcmp.gt.s32.totalorder %v44, %v53
    %vm106 = vcmp.gt.s32.totalorder %v45, %v52
    %vm107 = vcmp.gt.s32.totalorder %v45, %v53
    %vm108 = vcmp.gt.s32.totalorder %v46, %v52
    %vm109 = vcmp.gt.s32.totalorder %v46, %v53
    %vm110 = vcmp.gt.s32.totalorder %v47, %v52
    %vm111 = vcmp.gt.s32.totalorder %v47, %v53
    %vm112 = vcmp.gt.s32.totalorder %v48, %v52
    %vm113 = vcmp.gt.s32.totalorder %v48, %v53
    %vm114 = vcmp.gt.s32.totalorder %v49, %v52
    %vm115 = vcmp.gt.s32.totalorder %v49, %v53
    %vm116 = vcmp.gt.s32.totalorder %v50, %v52
    %vm117 = vcmp.gt.s32.totalorder %v50, %v53
    %v118 = vsel %vm54, 1, 0
    %v119 = vsel %vm55, 1, 0
    %v120 = vsel %vm56, 1, 0
    %v121 = vsel %vm57, 1, 0
    %v122 = vsel %vm58, 1, 0
    %v123 = vsel %vm59, 1, 0
    %v124 = vsel %vm60, 1, 0
    %v125 = vsel %vm61, 1, 0
    %v126 = vsel %vm62, 1, 0
    %v127 = vsel %vm63, 1, 0
    %v128 = vsel %vm64, 1, 0
    %v129 = vsel %vm65, 1, 0
    %v130 = vsel %vm66, 1, 0
    %v131 = vsel %vm67, 1, 0
    %v132 = vsel %vm68, 1, 0
    %v133 = vsel %vm69, 1, 0
    %v134 = vsel %vm70, 1, 0
    %v135 = vsel %vm71, 1, 0
    %v136 = vsel %vm72, 1, 0
    %v137 = vsel %vm73, 1, 0
    %v138 = vsel %vm74, 1, 0
    %v139 = vsel %vm75, 1, 0
    %v140 = vsel %vm76, 1, 0
    %v141 = vsel %vm77, 1, 0
    %v142 = vsel %vm78, 1, 0
    %v143 = vsel %vm79, 1, 0
    %v144 = vsel %vm80, 1, 0
    %v145 = vsel %vm81, 1, 0
    %v146 = vsel %vm82, 1, 0
    %v147 = vsel %vm83, 1, 0
    %v148 = vsel %vm84, 1, 0
    %v149 = vsel %vm85, 1, 0
    %v150 = vsel %vm86, 1, 0
    %v151 = vsel %vm87, 1, 0
    %v152 = vsel %vm88, 1, 0
    %v153 = vsel %vm89, 1, 0
    %v154 = vsel %vm90, 1, 0
    %v155 = vsel %vm91, 1, 0
    %v156 = vsel %vm92, 1, 0
    %v157 = vsel %vm93, 1, 0
    %v158 = vsel %vm94, 1, 0
    %v159 = vsel %vm95, 1, 0
    %v160 = vsel %vm96, 1, 0
    %v161 = vsel %vm97, 1, 0
    %v162 = vsel %vm98, 1, 0
    %v163 = vsel %vm99, 1, 0
    %v164 = vsel %vm100, 1, 0
    %v165 = vsel %vm101, 1, 0
    %v166 = vsel %vm102, 1, 0
    %v167 = vsel %vm103, 1, 0
    %v168 = vsel %vm104, 1, 0
    %v169 = vsel %vm105, 1, 0
    %v170 = vsel %vm106, 1, 0
    %v171 = vsel %vm107, 1, 0
    %v172 = vsel %vm108, 1, 0
    %v173 = vsel %vm109, 1, 0
    %v174 = vsel %vm110, 1, 0
    %v175 = vsel %vm111, 1, 0
    %v176 = vsel %vm112, 1, 0
    %v177 = vsel %vm113, 1, 0
    %v178 = vsel %vm114, 1, 0
    %v179 = vsel %vm115, 1, 0
    %v180 = vsel %vm116, 1, 0
    %v181 = vsel %vm117, 1, 0
    %v182 = vcvt.s32.f32 %v118
    %v183 = vcvt.s32.f32 %v119
    %v184 = vcvt.s32.f32 %v120
    %v185 = vcvt.s32.f32 %v121
    %v186 = vcvt.s32.f32 %v122
    %v187 = vcvt.s32.f32 %v123
    %v188 = vcvt.s32.f32 %v124
    %v189 = vcvt.s32.f32 %v125
    %v190 = vcvt.s32.f32 %v126
    %v191 = vcvt.s32.f32 %v127
    %v192 = vcvt.s32.f32 %v128
    %v193 = vcvt.s32.f32 %v129
    %v194 = vcvt.s32.f32 %v130
    %v195 = vcvt.s32.f32 %v131
    %v196 = vcvt.s32.f32 %v132
    %v197 = vcvt.s32.f32 %v133
    %v198 = vcvt.s32.f32 %v134
    %v199 = vcvt.s32.f32 %v135
    %v200 = vcvt.s32.f32 %v136
    %v201 = vcvt.s32.f32 %v137
    %v202 = vcvt.s32.f32 %v138
    %v203 = vcvt.s32.f32 %v139
    %v204 = vcvt.s32.f32 %v140
    %v205 = vcvt.s32.f32 %v141
    %v206 = vcvt.s32.f32 %v142
    %v207 = vcvt.s32.f32 %v143
    %v208 = vcvt.s32.f32 %v144
    %v209 = vcvt.s32.f32 %v145
    %v210 = vcvt.s32.f32 %v146
    %v211 = vcvt.s32.f32 %v147
    %v212 = vcvt.s32.f32 %v148
    %v213 = vcvt.s32.f32 %v149
    %v214 = vcvt.s32.f32 %v150
    %v215 = vcvt.s32.f32 %v151
    %v216 = vcvt.s32.f32 %v152
    %v217 = vcvt.s32.f32 %v153
    %v218 = vcvt.s32.f32 %v154
    %v219 = vcvt.s32.f32 %v155
    %v220 = vcvt.s32.f32 %v156
    %v221 = vcvt.s32.f32 %v157
    %v222 = vcvt.s32.f32 %v158
    %v223 = vcvt.s32.f32 %v159
    %v224 = vcvt.s32.f32 %v160
    %v225 = vcvt.s32.f32 %v161
    %v226 = vcvt.s32.f32 %v162
    %v227 = vcvt.s32.f32 %v163
    %v228 = vcvt.s32.f32 %v164
    %v229 = vcvt.s32.f32 %v165
    %v230 = vcvt.s32.f32 %v166
    %v231 = vcvt.s32.f32 %v167
    %v232 = vcvt.s32.f32 %v168
    %v233 = vcvt.s32.f32 %v169
    %v234 = vcvt.s32.f32 %v170
    %v235 = vcvt.s32.f32 %v171
    %v236 = vcvt.s32.f32 %v172
    %v237 = vcvt.s32.f32 %v173
    %v238 = vcvt.s32.f32 %v174
    %v239 = vcvt.s32.f32 %v175
    %v240 = vcvt.s32.f32 %v176
    %v241 = vcvt.s32.f32 %v177
    %v242 = vcvt.s32.f32 %v178
    %v243 = vcvt.s32.f32 %v179
    %v244 = vcvt.s32.f32 %v180
    %v245 = vcvt.s32.f32 %v181
    %v246 = vlaneseq
    %v247 = vshrl.u32 %v246, 7
    %v248 = vsub.s32 0, %v247
    %v249 = vrot.slane %v17, %v248
    %v250 = vlaneseq
    %v251 = vshrl.u32 %v250, 7
    %v252 = vsub.s32 4, %v251
    %v253 = vrot.slane %v17, %v252
    %v254 = vlaneseq
    %v255 = vshrl.u32 %v254, 7
    %v256 = vsub.s32 0, %v255
    %v257 = vrot.slane %v249, %v256
    %v258 = vlaneseq
    %v259 = vshrl.u32 %v258, 7
    %v260 = vsub.s32 0, %v259
    %v261 = vrot.slane %v253, %v260
    %vm262 = vcmp.eq.s32.totalorder %v257, %v19
    %vm263 = vcmp.eq.s32.totalorder %v261, %v19
    %vm264 = vcmp.eq.s32.totalorder %v257, %v20
    %vm265 = vcmp.eq.s32.totalorder %v261, %v20
    %vm266 = vcmp.eq.s32.totalorder %v257, %v21
    %vm267 = vcmp.eq.s32.totalorder %v261, %v21
    %vm268 = vcmp.eq.s32.totalorder %v257, %v22
    %vm269 = vcmp.eq.s32.totalorder %v261, %v22
    %vm270 = vcmp.eq.s32.totalorder %v257, %v23
    %vm271 = vcmp.eq.s32.totalorder %v261, %v23
    %vm272 = vcmp.eq.s32.totalorder %v257, %v24
    %vm273 = vcmp.eq.s32.totalorder %v261, %v24
    %vm274 = vcmp.eq.s32.totalorder %v257, %v25
    %vm275 = vcmp.eq.s32.totalorder %v261, %v25
    %vm276 = vcmp.eq.s32.totalorder %v257, %v26
    %vm277 = vcmp.eq.s32.totalorder %v261, %v26
    %vm278 = vcmp.eq.s32.totalorder %v257, %v27
    %vm279 = vcmp.eq.s32.totalorder %v261, %v27
    %vm280 = vcmp.eq.s32.totalorder %v257, %v28
    %vm281 = vcmp.eq.s32.totalorder %v261, %v28
    %vm282 = vcmp.eq.s32.totalorder %v257, %v29
    %vm283 = vcmp.eq.s32.totalorder %v261, %v29
    %vm284 = vcmp.eq.s32.totalorder %v257, %v30
    %vm285 = vcmp.eq.s32.totalorder %v261, %v30
    %vm286 = vcmp.eq.s32.totalorder %v257, %v31
    %vm287 = vcmp.eq.s32.totalorder %v261, %v31
    %vm288 = vcmp.eq.s32.totalorder %v257, %v32
    %vm289 = vcmp.eq.s32.totalorder %v261, %v32
    %vm290 = vcmp.eq.s32.totalorder %v257, %v33
    %vm291 = vcmp.eq.s32.totalorder %v261, %v33
    %vm292 = vcmp.eq.s32.totalorder %v257, %v34
    %vm293 = vcmp.eq.s32.totalorder %v261, %v34
    %vm294 = vcmp.eq.s32.totalorder %v257, %v35
    %vm295 = vcmp.eq.s32.totalorder %v261, %v35
    %vm296 = vcmp.eq.s32.totalorder %v257, %v36
    %vm297 = vcmp.eq.s32.totalorder %v261, %v36
    %vm298 = vcmp.eq.s32.totalorder %v257, %v37
    %vm299 = vcmp.eq.s32.totalorder %v261, %v37
    %vm300 = vcmp.eq.s32.totalorder %v257, %v38
    %vm301 = vcmp.eq.s32.totalorder %v261, %v38
    %vm302 = vcmp.eq.s32.totalorder %v257, %v39
    %vm303 = vcmp.eq.s32.totalorder %v261, %v39
    %vm304 = vcmp.eq.s32.totalorder %v257, %v40
    %vm305 = vcmp.eq.s32.totalorder %v261, %v40
    %vm306 = vcmp.eq.s32.totalorder %v257, %v41
    %vm307 = vcmp.eq.s32.totalorder %v261, %v41
    %vm308 = vcmp.eq.s32.totalorder %v257, %v42
    %vm309 = vcmp.eq.s32.totalorder %v261, %v42
    %vm310 = vcmp.eq.s32.totalorder %v257, %v43
    %vm311 = vcmp.eq.s32.totalorder %v261, %v43
    %vm312 = vcmp.eq.s32.totalorder %v257, %v44
    %vm313 = vcmp.eq.s32.totalorder %v261, %v44
    %vm314 = vcmp.eq.s32.totalorder %v257, %v45
    %vm315 = vcmp.eq.s32.totalorder %v261, %v45
    %vm316 = vcmp.eq.s32.totalorder %v257, %v46
    %vm317 = vcmp.eq.s32.totalorder %v261, %v46
    %vm318 = vcmp.eq.s32.totalorder %v257, %v47
    %vm319 = vcmp.eq.s32.totalorder %v261, %v47
    %vm320 = vcmp.eq.s32.totalorder %v257, %v48
    %vm321 = vcmp.eq.s32.totalorder %v261, %v48
    %vm322 = vcmp.eq.s32.totalorder %v257, %v49
    %vm323 = vcmp.eq.s32.totalorder %v261, %v49
    %vm324 = vcmp.eq.s32.totalorder %v257, %v50
    %vm325 = vcmp.eq.s32.totalorder %v261, %v50
    %v326 = vsel %vm262, 1, 0
    %v327 = vsel %vm263, 1, 0
    %v328 = vsel %vm264, 1, 0
    %v329 = vsel %vm265, 1, 0
    %v330 = vsel %vm266, 1, 0
    %v331 = vsel %vm267, 1, 0
    %v332 = vsel %vm268, 1, 0
    %v333 = vsel %vm269, 1, 0
    %v334 = vsel %vm270, 1, 0
    %v335 = vsel %vm271, 1, 0
    %v336 = vsel %vm272, 1, 0
    %v337 = vsel %vm273, 1, 0
    %v338 = vsel %vm274, 1, 0
    %v339 = vsel %vm275, 1, 0
    %v340 = vsel %vm276, 1, 0
    %v341 = vsel %vm277, 1, 0
    %v342 = vsel %vm278, 1, 0
    %v343 = vsel %vm279, 1, 0
    %v344 = vsel %vm280, 1, 0
    %v345 = vsel %vm281, 1, 0
    %v346 = vsel %vm282, 1, 0
    %v347 = vsel %vm283, 1, 0
    %v348 = vsel %vm284, 1, 0
    %v349 = vsel %vm285, 1, 0
    %v350 = vsel %vm286, 1, 0
    %v351 = vsel %vm287, 1, 0
    %v352 = vsel %vm288, 1, 0
    %v353 = vsel %vm289, 1, 0
    %v354 = vsel %vm290, 1, 0
    %v355 = vsel %vm291, 1, 0
    %v356 = vsel %vm292, 1, 0
    %v357 = vsel %vm293, 1, 0
    %v358 = vsel %vm294, 1, 0
    %v359 = vsel %vm295, 1, 0
    %v360 = vsel %vm296, 1, 0
    %v361 = vsel %vm297, 1, 0
    %v362 = vsel %vm298, 1, 0
    %v363 = vsel %vm299, 1, 0
    %v364 = vsel %vm300, 1, 0
    %v365 = vsel %vm301, 1, 0
    %v366 = vsel %vm302, 1, 0
    %v367 = vsel %vm303, 1, 0
    %v368 = vsel %vm304, 1, 0
    %v369 = vsel %vm305, 1, 0
    %v370 = vsel %vm306, 1, 0
    %v371 = vsel %vm307, 1, 0
    %v372 = vsel %vm308, 1, 0
    %v373 = vsel %vm309, 1, 0
    %v374 = vsel %vm310, 1, 0
    %v375 = vsel %vm311, 1, 0
    %v376 = vsel %vm312, 1, 0
    %v377 = vsel %vm313, 1, 0
    %v378 = vsel %vm314, 1, 0
    %v379 = vsel %vm315, 1, 0
    %v380 = vsel %vm316, 1, 0
    %v381 = vsel %vm317, 1, 0
    %v382 = vsel %vm318, 1, 0
    %v383 = vsel %vm319, 1, 0
    %v384 = vsel %vm320, 1, 0
    %v385 = vsel %vm321, 1, 0
    %v386 = vsel %vm322, 1, 0
    %v387 = vsel %vm323, 1, 0
    %v388 = vsel %vm324, 1, 0
    %v389 = vsel %vm325, 1, 0
    %v390 = vcvt.s32.f32 %v326
    %v391 = vcvt.s32.f32 %v327
    %v392 = vcvt.s32.f32 %v328
    %v393 = vcvt.s32.f32 %v329
    %v394 = vcvt.s32.f32 %v330
    %v395 = vcvt.s32.f32 %v331
    %v396 = vcvt.s32.f32 %v332
    %v397 = vcvt.s32.f32 %v333
    %v398 = vcvt.s32.f32 %v334
    %v399 = vcvt.s32.f32 %v335
    %v400 = vcvt.s32.f32 %v336
    %v401 = vcvt.s32.f32 %v337
    %v402 = vcvt.s32.f32 %v338
    %v403 = vcvt.s32.f32 %v339
    %v404 = vcvt.s32.f32 %v340
    %v405 = vcvt.s32.f32 %v341
    %v406 = vcvt.s32.f32 %v342
    %v407 = vcvt.s32.f32 %v343
    %v408 = vcvt.s32.f32 %v344
    %v409 = vcvt.s32.f32 %v345
    %v410 = vcvt.s32.f32 %v346
    %v411 = vcvt.s32.f32 %v347
    %v412 = vcvt.s32.f32 %v348
    %v413 = vcvt.s32.f32 %v349
    %v414 = vcvt.s32.f32 %v350
    %v415 = vcvt.s32.f32 %v351
    %v416 = vcvt.s32.f32 %v352
    %v417 = vcvt.s32.f32 %v353
    %v418 = vcvt.s32.f32 %v354
    %v419 = vcvt.s32.f32 %v355
    %v420 = vcvt.s32.f32 %v356
    %v421 = vcvt.s32.f32 %v357
    %v422 = vcvt.s32.f32 %v358
    %v423 = vcvt.s32.f32 %v359
    %v424 = vcvt.s32.f32 %v360
    %v425 = vcvt.s32.f32 %v361
    %v426 = vcvt.s32.f32 %v362
    %v427 = vcvt.s32.f32 %v363
    %v428 = vcvt.s32.f32 %v364
    %v429 = vcvt.s32.f32 %v365
    %v430 = vcvt.s32.f32 %v366
    %v431 = vcvt.s32.f32 %v367
    %v432 = vcvt.s32.f32 %v368
    %v433 = vcvt.s32.f32 %v369
    %v434 = vcvt.s32.f32 %v370
    %v435 = vcvt.s32.f32 %v371
    %v436 = vcvt.s32.f32 %v372
    %v437 = vcvt.s32.f32 %v373
    %v438 = vcvt.s32.f32 %v374
    %v439 = vcvt.s32.f32 %v375
    %v440 = vcvt.s32.f32 %v376
    %v441 = vcvt.s32.f32 %v377
    %v442 = vcvt.s32.f32 %v378
    %v443 = vcvt.s32.f32 %v379
    %v444 = vcvt.s32.f32 %v380
    %v445 = vcvt.s32.f32 %v381
    %v446 = vcvt.s32.f32 %v382
    %v447 = vcvt.s32.f32 %v383
    %v448 = vcvt.s32.f32 %v384
    %v449 = vcvt.s32.f32 %v385
    %v450 = vcvt.s32.f32 %v386
    %v451 = vcvt.s32.f32 %v387
    %v452 = vcvt.s32.f32 %v388
    %v453 = vcvt.s32.f32 %v389
    %v454 = vpack.c.bf16 %v392, %v390
    %v455 = vpack.c.bf16 %v393, %v391
    %v456 = vpack.c.bf16 %v396, %v394
    %v457 = vpack.c.bf16 %v397, %v395
    %v458 = vpack.c.bf16 %v400, %v398
    %v459 = vpack.c.bf16 %v401, %v399
    %v460 = vpack.c.bf16 %v404, %v402
    %v461 = vpack.c.bf16 %v405, %v403
    %v462 = vpack.c.bf16 %v408, %v406
    %v463 = vpack.c.bf16 %v409, %v407
    %v464 = vpack.c.bf16 %v412, %v410
    %v465 = vpack.c.bf16 %v413, %v411
    %v466 = vpack.c.bf16 %v416, %v414
    %v467 = vpack.c.bf16 %v417, %v415
    %v468 = vpack.c.bf16 %v420, %v418
    %v469 = vpack.c.bf16 %v421, %v419
    %v470 = vpack.c.bf16 %v424, %v422
    %v471 = vpack.c.bf16 %v425, %v423
    %v472 = vpack.c.bf16 %v428, %v426
    %v473 = vpack.c.bf16 %v429, %v427
    %v474 = vpack.c.bf16 %v432, %v430
    %v475 = vpack.c.bf16 %v433, %v431
    %v476 = vpack.c.bf16 %v436, %v434
    %v477 = vpack.c.bf16 %v437, %v435
    %v478 = vpack.c.bf16 %v440, %v438
    %v479 = vpack.c.bf16 %v441, %v439
    %v480 = vpack.c.bf16 %v444, %v442
    %v481 = vpack.c.bf16 %v445, %v443
    %v482 = vpack.c.bf16 %v448, %v446
    %v483 = vpack.c.bf16 %v449, %v447
    %v484 = vpack.c.bf16 %v452, %v450
    %v485 = vpack.c.bf16 %v453, %v451
    %486 = vmatprep.subr.bf16.mxu0 0
    %487 = vmatpush1.bf16.msra.mxu0 1065369472
    %488 = vmatprep.subr.bf16.mxu0 0
    %489 = vmatpush1.bf16.msra.mxu0 1065369472
    %490 = vmatprep.subr.bf16.mxu0 0
    %491 = vmatpush1.bf16.msra.mxu0 1065369472
    %492 = vmatprep.subr.bf16.mxu0 0
    %493 = vmatpush1.bf16.msra.mxu0 1065369472
    %494 = vmatprep.subr.bf16.mxu0 0
    %495 = vmatpush1.bf16.msra.mxu0 1065369472
    %496 = vmatprep.subr.bf16.mxu0 0
    %497 = vmatpush1.bf16.msra.mxu0 1065369472
    %498 = vmatprep.subr.bf16.mxu0 0
    %499 = vmatpush1.bf16.msra.mxu0 1065369472
    %500 = vmatprep.subr.bf16.mxu0 0
    %501 = vmatpush1.bf16.msra.mxu0 1065369472
    %502 = vmatprep.subr.bf16.mxu0 0
    %503 = vmatpush2.bf16.msra.mxu0 1065369472
    %504 = vmatprep.subr.bf16.mxu0 0
    %505 = vmatpush2.bf16.msra.mxu0 1065369472
    %506 = vmatprep.subr.bf16.mxu0 0
    %507 = vmatpush2.bf16.msra.mxu0 1065369472
    %508 = vmatprep.subr.bf16.mxu0 0
    %509 = vmatpush2.bf16.msra.mxu0 1065369472
    %510 = vmatprep.subr.bf16.mxu0 0
    %511 = vmatpush2.bf16.msra.mxu0 1065369472
    %512 = vmatprep.subr.bf16.mxu0 0
    %513 = vmatpush2.bf16.msra.mxu0 1065369472
    %514 = vmatprep.subr.bf16.mxu0 0
    %515 = vmatpush2.bf16.msra.mxu0 1065369472
    %516 = vmatprep.subr.bf16.mxu0 0
    %517 = vmatpush2.bf16.msra.mxu0 1065369472
    %518 = vmatprep.mubr.bf16.mxu0 %v455
    %519 = vmatmul.mubr.bf16.gmra.mxu0 %v454
    %v520 = vpop.f32.mrf.mxu0
    %v521 = vadd.f32 0.0, %v520
    %v522 = vpop.f32.mrf.mxu0
    %v523 = vpop.f32.mrf.mxu0
    %v524 = vadd.f32 0.0, %v523
    %v525 = vpop.f32.mrf.mxu0
    %526 = vmatprep.mubr.bf16.mxu0 %v457
    %527 = vmatmul.mubr.bf16.gmra.mxu0 %v456
    %v528 = vpop.f32.mrf.mxu0
    %v529 = vadd.f32 0.0, %v528
    %v530 = vpop.f32.mrf.mxu0
    %v531 = vpop.f32.mrf.mxu0
    %v532 = vadd.f32 0.0, %v531
    %v533 = vpop.f32.mrf.mxu0
    %534 = vmatprep.mubr.bf16.mxu0 %v459
    %535 = vmatmul.mubr.bf16.gmra.mxu0 %v458
    %v536 = vpop.f32.mrf.mxu0
    %v537 = vadd.f32 0.0, %v536
    %v538 = vpop.f32.mrf.mxu0
    %v539 = vpop.f32.mrf.mxu0
    %v540 = vadd.f32 0.0, %v539
    %v541 = vpop.f32.mrf.mxu0
    %542 = vmatprep.mubr.bf16.mxu0 %v461
    %543 = vmatmul.mubr.bf16.gmra.mxu0 %v460
    %v544 = vpop.f32.mrf.mxu0
    %v545 = vadd.f32 0.0, %v544
    %v546 = vpop.f32.mrf.mxu0
    %v547 = vpop.f32.mrf.mxu0
    %v548 = vadd.f32 0.0, %v547
    %v549 = vpop.f32.mrf.mxu0
    %550 = vmatprep.mubr.bf16.mxu0 %v463
    %551 = vmatmul.mubr.bf16.gmra.mxu0 %v462
    %v552 = vpop.f32.mrf.mxu0
    %v553 = vadd.f32 0.0, %v552
    %v554 = vpop.f32.mrf.mxu0
    %v555 = vpop.f32.mrf.mxu0
    %v556 = vadd.f32 0.0, %v555
    %v557 = vpop.f32.mrf.mxu0
    %558 = vmatprep.mubr.bf16.mxu0 %v465
    %559 = vmatmul.mubr.bf16.gmra.mxu0 %v464
    %v560 = vpop.f32.mrf.mxu0
    %v561 = vadd.f32 0.0, %v560
    %v562 = vpop.f32.mrf.mxu0
    %v563 = vpop.f32.mrf.mxu0
    %v564 = vadd.f32 0.0, %v563
    %v565 = vpop.f32.mrf.mxu0
    %566 = vmatprep.mubr.bf16.mxu0 %v467
    %567 = vmatmul.mubr.bf16.gmra.mxu0 %v466
    %v568 = vpop.f32.mrf.mxu0
    %v569 = vadd.f32 0.0, %v568
    %v570 = vpop.f32.mrf.mxu0
    %v571 = vpop.f32.mrf.mxu0
    %v572 = vadd.f32 0.0, %v571
    %v573 = vpop.f32.mrf.mxu0
    %574 = vmatprep.mubr.bf16.mxu0 %v469
    %575 = vmatmul.mubr.bf16.gmra.mxu0 %v468
    %v576 = vpop.f32.mrf.mxu0
    %v577 = vadd.f32 0.0, %v576
    %v578 = vpop.f32.mrf.mxu0
    %v579 = vpop.f32.mrf.mxu0
    %v580 = vadd.f32 0.0, %v579
    %v581 = vpop.f32.mrf.mxu0
    %582 = vmatprep.mubr.bf16.mxu0 %v471
    %583 = vmatmul.mubr.bf16.gmra.mxu0 %v470
    %v584 = vpop.f32.mrf.mxu0
    %v585 = vadd.f32 0.0, %v584
    %v586 = vpop.f32.mrf.mxu0
    %v587 = vpop.f32.mrf.mxu0
    %v588 = vadd.f32 0.0, %v587
    %v589 = vpop.f32.mrf.mxu0
    %590 = vmatprep.mubr.bf16.mxu0 %v473
    %591 = vmatmul.mubr.bf16.gmra.mxu0 %v472
    %v592 = vpop.f32.mrf.mxu0
    %v593 = vadd.f32 0.0, %v592
    %v594 = vpop.f32.mrf.mxu0
    %v595 = vpop.f32.mrf.mxu0
    %v596 = vadd.f32 0.0, %v595
    %v597 = vpop.f32.mrf.mxu0
    %598 = vmatprep.mubr.bf16.mxu0 %v475
    %599 = vmatmul.mubr.bf16.gmra.mxu0 %v474
    %v600 = vpop.f32.mrf.mxu0
    %v601 = vadd.f32 0.0, %v600
    %v602 = vpop.f32.mrf.mxu0
    %v603 = vpop.f32.mrf.mxu0
    %v604 = vadd.f32 0.0, %v603
    %v605 = vpop.f32.mrf.mxu0
    %606 = vmatprep.mubr.bf16.mxu0 %v477
    %607 = vmatmul.mubr.bf16.gmra.mxu0 %v476
    %v608 = vpop.f32.mrf.mxu0
    %v609 = vadd.f32 0.0, %v608
    %v610 = vpop.f32.mrf.mxu0
    %v611 = vpop.f32.mrf.mxu0
    %v612 = vadd.f32 0.0, %v611
    %v613 = vpop.f32.mrf.mxu0
    %614 = vmatprep.mubr.bf16.mxu0 %v479
    %615 = vmatmul.mubr.bf16.gmra.mxu0 %v478
    %v616 = vpop.f32.mrf.mxu0
    %v617 = vadd.f32 0.0, %v616
    %v618 = vpop.f32.mrf.mxu0
    %v619 = vpop.f32.mrf.mxu0
    %v620 = vadd.f32 0.0, %v619
    %v621 = vpop.f32.mrf.mxu0
    %622 = vmatprep.mubr.bf16.mxu0 %v481
    %623 = vmatmul.mubr.bf16.gmra.mxu0 %v480
    %v624 = vpop.f32.mrf.mxu0
    %v625 = vadd.f32 0.0, %v624
    %v626 = vpop.f32.mrf.mxu0
    %v627 = vpop.f32.mrf.mxu0
    %v628 = vadd.f32 0.0, %v627
    %v629 = vpop.f32.mrf.mxu0
    %630 = vmatprep.mubr.bf16.mxu0 %v483
    %631 = vmatmul.mubr.bf16.gmra.mxu0 %v482
    %v632 = vpop.f32.mrf.mxu0
    %v633 = vadd.f32 0.0, %v632
    %v634 = vpop.f32.mrf.mxu0
    %v635 = vpop.f32.mrf.mxu0
    %v636 = vadd.f32 0.0, %v635
    %v637 = vpop.f32.mrf.mxu0
    %638 = vmatprep.mubr.bf16.mxu0 %v485
    %639 = vmatmul.mubr.bf16.gmra.mxu0 %v484
    %v640 = vpop.f32.mrf.mxu0
    %v641 = vadd.f32 0.0, %v640
    %v642 = vpop.f32.mrf.mxu0
    %v643 = vpop.f32.mrf.mxu0
    %v644 = vadd.f32 0.0, %v643
    %v645 = vpop.f32.mrf.mxu0
    %646 = vdwg.mxu0
    %vm647 = vcmask 1040384
    %v648 = vsel %vm647, %v249, 2147483648
    %v649 = vsel %vm647, %v253, 2147483648
    %vm650 = vcmp.gt.s32.totalorder %v648, %v649
    %v651 = vsel %vm650, %v648, %v649
    %v652 = vand.u32 %v651, 65535
    %v653 = vshra.s32 %v651, 16
    %v654 = vcvt.s32.f32 %v652
    %v655 = vcvt.s32.f32 %v653
    %656 = vmax.xlane.f32.xlu0 %v655
    %v657 = vpop.xlane.xlu0 %656
    %vm658 = vcmp.eq.f32.partialorder %v655, %v657
    %v659 = vsel %vm658, %v654, -inf
    %660 = vmax.xlane.f32.xlu0 %v659
    %v661 = vpop.xlane.xlu0 %660
    %v662 = vcvt.f32.s32 %v661
    %v663 = vcvt.f32.s32 %v657
    %v664 = vshll.u32 %v663, 16
    %v665 = vadd.s32 %v664, %v662
    %v666 = vrot.slane %v665, 4
    %vm667 = vcmp.gt.s32.totalorder %v665, %v666
    %v668 = vsel %vm667, %v665, %v666
    %v669 = vrot.slane %v668, 2
    %vm670 = vcmp.gt.s32.totalorder %v668, %v669
    %v671 = vsel %vm670, %v668, %v669
    %v672 = vrot.slane %v671, 1
    %vm673 = vcmp.gt.s32.totalorder %v671, %v672
    %v674 = vsel %vm673, %v671, %v672
    %s675 = vtos %v674
    %v676 = vstv %s675
    %vm677 = vcmp.eq.s32.totalorder %v17, %v676
    %v678 = vsel %vm677, 1, 0
    %v679 = vcvt.s32.f32 %v678
    %v681 = vlaneseq
    %v682 = vshrl.u32 %v681, 7
    %v683 = vsub.s32 0, %v682
    %v684 = vrot.slane %v679, %v683
    %v685 = vlaneseq
    %v686 = vshrl.u32 %v685, 7
    %v687 = vsub.s32 4, %v686
    %v688 = vrot.slane %v679, %v687
    %v691 = vsel %vm647, %v684, 0.0
    %v692 = vsel %vm647, %v688, 0.0
    %v693 = vadd.f32 %v691, %v692
    %694 = vadd.xlane.f32.xlu0 %v693
    %v695 = vpop.xlane.xlu0 %694
    %v696 = vrot.slane %v695, 4
    %v697 = vadd.f32 %v695, %v696
    %v698 = vrot.slane %v697, 2
    %v699 = vadd.f32 %v697, %v698
    %v700 = vrot.slane %v699, 1
    %v701 = vadd.f32 %v699, %v700
    %s702 = vtos %v701
    %s703 = ssub.f32 256.0, %s702
    %v704 = vrcp.pop 255.0
    %s705 = vtos %v704
    %s706 = smul.f32 %s703, %s705
    %s707 = sfloor.f32 %s706
    %s708 = smax.f32 %s707, 1.0
    %v709 = vrcp.pop 2.0
    %s710 = vtos %v709
    %s711 = smul.f32 %s708, %s710
    %s712 = sfloor.f32 %s711
    %v713 = vstv %s712
    %714 = vmatprep.subr.mxu0 0.0
    %v715 = vand.u32 %v580, 4294901760
    %716 = vmatpush1.msra.mxu0 %v715
    %717 = vmatprep.subr.mxu0 0.0
    %v718 = vand.u32 %v577, 4294901760
    %719 = vmatpush1.msra.mxu0 %v718
    %720 = vmatprep.subr.mxu0 0.0
    %v721 = vand.u32 %v572, 4294901760
    %722 = vmatpush1.msra.mxu0 %v721
    %723 = vmatprep.subr.mxu0 0.0
    %v724 = vand.u32 %v569, 4294901760
    %725 = vmatpush1.msra.mxu0 %v724
    %726 = vmatprep.subr.mxu0 0.0
    %v727 = vand.u32 %v564, 4294901760
    %728 = vmatpush1.msra.mxu0 %v727
    %729 = vmatprep.subr.mxu0 0.0
    %v730 = vand.u32 %v561, 4294901760
    %731 = vmatpush1.msra.mxu0 %v730
    %732 = vmatprep.subr.mxu0 0.0
    %v733 = vand.u32 %v556, 4294901760
    %734 = vmatpush1.msra.mxu0 %v733
    %735 = vmatprep.subr.mxu0 0.0
    %v736 = vand.u32 %v553, 4294901760
    %737 = vmatpush1.msra.mxu0 %v736
    %738 = vmatprep.subr.mxu0 0.0
    %v739 = vand.u32 %v548, 4294901760
    %740 = vmatpush1.msra.mxu0 %v739
    %741 = vmatprep.subr.mxu0 0.0
    %v742 = vand.u32 %v545, 4294901760
    %743 = vmatpush1.msra.mxu0 %v742
    %744 = vmatprep.subr.mxu0 0.0
    %v745 = vand.u32 %v540, 4294901760
    %746 = vmatpush1.msra.mxu0 %v745
    %747 = vmatprep.subr.mxu0 0.0
    %v748 = vand.u32 %v537, 4294901760
    %749 = vmatpush1.msra.mxu0 %v748
    %750 = vmatprep.subr.mxu0 0.0
    %v751 = vand.u32 %v532, 4294901760
    %752 = vmatpush1.msra.mxu0 %v751
    %753 = vmatprep.subr.mxu0 0.0
    %v754 = vand.u32 %v529, 4294901760
    %755 = vmatpush1.msra.mxu0 %v754
    %756 = vmatprep.subr.mxu0 0.0
    %v757 = vand.u32 %v524, 4294901760
    %758 = vmatpush1.msra.mxu0 %v757
    %759 = vmatprep.subr.mxu0 0.0
    %v760 = vand.u32 %v521, 4294901760
    %761 = vmatpush1.msra.mxu0 %v760
    %762 = vmatprep.subr.mxu0 0.0
    %v763 = vand.u32 %v644, 4294901760
    %764 = vmatpush2.msra.mxu0 %v763
    %765 = vmatprep.subr.mxu0 0.0
    %v766 = vand.u32 %v641, 4294901760
    %767 = vmatpush2.msra.mxu0 %v766
    %768 = vmatprep.subr.mxu0 0.0
    %v769 = vand.u32 %v636, 4294901760
    %770 = vmatpush2.msra.mxu0 %v769
    %771 = vmatprep.subr.mxu0 0.0
    %v772 = vand.u32 %v633, 4294901760
    %773 = vmatpush2.msra.mxu0 %v772
    %774 = vmatprep.subr.mxu0 0.0
    %v775 = vand.u32 %v628, 4294901760
    %776 = vmatpush2.msra.mxu0 %v775
    %777 = vmatprep.subr.mxu0 0.0
    %v778 = vand.u32 %v625, 4294901760
    %779 = vmatpush2.msra.mxu0 %v778
    %780 = vmatprep.subr.mxu0 0.0
    %v781 = vand.u32 %v620, 4294901760
    %782 = vmatpush2.msra.mxu0 %v781
    %783 = vmatprep.subr.mxu0 0.0
    %v784 = vand.u32 %v617, 4294901760
    %785 = vmatpush2.msra.mxu0 %v784
    %786 = vmatprep.subr.mxu0 0.0
    %v787 = vand.u32 %v612, 4294901760
    %788 = vmatpush2.msra.mxu0 %v787
    %789 = vmatprep.subr.mxu0 0.0
    %v790 = vand.u32 %v609, 4294901760
    %791 = vmatpush2.msra.mxu0 %v790
    %792 = vmatprep.subr.mxu0 0.0
    %v793 = vand.u32 %v604, 4294901760
    %794 = vmatpush2.msra.mxu0 %v793
    %795 = vmatprep.subr.mxu0 0.0
    %v796 = vand.u32 %v601, 4294901760
    %797 = vmatpush2.msra.mxu0 %v796
    %798 = vmatprep.subr.mxu0 0.0
    %v799 = vand.u32 %v596, 4294901760
    %800 = vmatpush2.msra.mxu0 %v799
    %801 = vmatprep.subr.mxu0 0.0
    %v802 = vand.u32 %v593, 4294901760
    %803 = vmatpush2.msra.mxu0 %v802
    %804 = vmatprep.subr.mxu0 0.0
    %v805 = vand.u32 %v588, 4294901760
    %806 = vmatpush2.msra.mxu0 %v805
    %807 = vmatprep.subr.mxu0 0.0
    %v808 = vand.u32 %v585, 4294901760
    %809 = vmatpush2.msra.mxu0 %v808
    %v810 = vand.u32 %v183, 4294901760
    %v811 = vsub.f32 %v183, %v810
    %v812 = vand.u32 %v811, 4294901760
    %v813 = vsub.f32 %v811, %v812
    %v814 = vand.u32 %v813, 4294901760
    %815 = vmatprep.mubr.f32.mxu0 %v814
    %v816 = vand.u32 %v182, 4294901760
    %v817 = vsub.f32 %v182, %v816
    %v818 = vand.u32 %v817, 4294901760
    %v819 = vsub.f32 %v817, %v818
    %v820 = vand.u32 %v819, 4294901760
    %821 = vmatmul.mubr.f32.gmra.mxu0 %v820
    %v822 = vpop.f32.mrf.mxu0
    %v823 = vadd.f32 %v713, %v822
    %v824 = vpop.f32.mrf.mxu0
    %v825 = vand.u32 %v185, 4294901760
    %v826 = vsub.f32 %v185, %v825
    %v827 = vand.u32 %v826, 4294901760
    %v828 = vsub.f32 %v826, %v827
    %v829 = vand.u32 %v828, 4294901760
    %830 = vmatprep.mubr.f32.mxu0 %v829
    %v831 = vand.u32 %v184, 4294901760
    %v832 = vsub.f32 %v184, %v831
    %v833 = vand.u32 %v832, 4294901760
    %v834 = vsub.f32 %v832, %v833
    %v835 = vand.u32 %v834, 4294901760
    %836 = vmatmul.mubr.f32.gmra.mxu0 %v835
    %v837 = vpop.f32.mrf.mxu0
    %v838 = vadd.f32 %v713, %v837
    %v839 = vpop.f32.mrf.mxu0
    %v840 = vand.u32 %v187, 4294901760
    %v841 = vsub.f32 %v187, %v840
    %v842 = vand.u32 %v841, 4294901760
    %v843 = vsub.f32 %v841, %v842
    %v844 = vand.u32 %v843, 4294901760
    %845 = vmatprep.mubr.f32.mxu0 %v844
    %v846 = vand.u32 %v186, 4294901760
    %v847 = vsub.f32 %v186, %v846
    %v848 = vand.u32 %v847, 4294901760
    %v849 = vsub.f32 %v847, %v848
    %v850 = vand.u32 %v849, 4294901760
    %851 = vmatmul.mubr.f32.gmra.mxu0 %v850
    %v852 = vpop.f32.mrf.mxu0
    %v853 = vadd.f32 %v713, %v852
    %v854 = vpop.f32.mrf.mxu0
    %v855 = vand.u32 %v189, 4294901760
    %v856 = vsub.f32 %v189, %v855
    %v857 = vand.u32 %v856, 4294901760
    %v858 = vsub.f32 %v856, %v857
    %v859 = vand.u32 %v858, 4294901760
    %860 = vmatprep.mubr.f32.mxu0 %v859
    %v861 = vand.u32 %v188, 4294901760
    %v862 = vsub.f32 %v188, %v861
    %v863 = vand.u32 %v862, 4294901760
    %v864 = vsub.f32 %v862, %v863
    %v865 = vand.u32 %v864, 4294901760
    %866 = vmatmul.mubr.f32.gmra.mxu0 %v865
    %v867 = vpop.f32.mrf.mxu0
    %v868 = vadd.f32 %v713, %v867
    %v869 = vpop.f32.mrf.mxu0
    %v870 = vand.u32 %v191, 4294901760
    %v871 = vsub.f32 %v191, %v870
    %v872 = vand.u32 %v871, 4294901760
    %v873 = vsub.f32 %v871, %v872
    %v874 = vand.u32 %v873, 4294901760
    %875 = vmatprep.mubr.f32.mxu0 %v874
    %v876 = vand.u32 %v190, 4294901760
    %v877 = vsub.f32 %v190, %v876
    %v878 = vand.u32 %v877, 4294901760
    %v879 = vsub.f32 %v877, %v878
    %v880 = vand.u32 %v879, 4294901760
    %881 = vmatmul.mubr.f32.gmra.mxu0 %v880
    %v882 = vpop.f32.mrf.mxu0
    %v883 = vadd.f32 %v713, %v882
    %v884 = vpop.f32.mrf.mxu0
    %v885 = vand.u32 %v193, 4294901760
    %v886 = vsub.f32 %v193, %v885
    %v887 = vand.u32 %v886, 4294901760
    %v888 = vsub.f32 %v886, %v887
    %v889 = vand.u32 %v888, 4294901760
    %890 = vmatprep.mubr.f32.mxu0 %v889
    %v891 = vand.u32 %v192, 4294901760
    %v892 = vsub.f32 %v192, %v891
    %v893 = vand.u32 %v892, 4294901760
    %v894 = vsub.f32 %v892, %v893
    %v895 = vand.u32 %v894, 4294901760
    %896 = vmatmul.mubr.f32.gmra.mxu0 %v895
    %v897 = vpop.f32.mrf.mxu0
    %v898 = vadd.f32 %v713, %v897
    %v899 = vpop.f32.mrf.mxu0
    %v900 = vand.u32 %v195, 4294901760
    %v901 = vsub.f32 %v195, %v900
    %v902 = vand.u32 %v901, 4294901760
    %v903 = vsub.f32 %v901, %v902
    %v904 = vand.u32 %v903, 4294901760
    %905 = vmatprep.mubr.f32.mxu0 %v904
    %v906 = vand.u32 %v194, 4294901760
    %v907 = vsub.f32 %v194, %v906
    %v908 = vand.u32 %v907, 4294901760
    %v909 = vsub.f32 %v907, %v908
    %v910 = vand.u32 %v909, 4294901760
    %911 = vmatmul.mubr.f32.gmra.mxu0 %v910
    %v912 = vpop.f32.mrf.mxu0
    %v913 = vadd.f32 %v713, %v912
    %v914 = vpop.f32.mrf.mxu0
    %v915 = vand.u32 %v197, 4294901760
    %v916 = vsub.f32 %v197, %v915
    %v917 = vand.u32 %v916, 4294901760
    %v918 = vsub.f32 %v916, %v917
    %v919 = vand.u32 %v918, 4294901760
    %920 = vmatprep.mubr.f32.mxu0 %v919
    %v921 = vand.u32 %v196, 4294901760
    %v922 = vsub.f32 %v196, %v921
    %v923 = vand.u32 %v922, 4294901760
    %v924 = vsub.f32 %v922, %v923
    %v925 = vand.u32 %v924, 4294901760
    %926 = vmatmul.mubr.f32.gmra.mxu0 %v925
    %v927 = vpop.f32.mrf.mxu0
    %v928 = vadd.f32 %v713, %v927
    %v929 = vpop.f32.mrf.mxu0
    %v930 = vand.u32 %v199, 4294901760
    %v931 = vsub.f32 %v199, %v930
    %v932 = vand.u32 %v931, 4294901760
    %v933 = vsub.f32 %v931, %v932
    %v934 = vand.u32 %v933, 4294901760
    %935 = vmatprep.mubr.f32.mxu0 %v934
    %v936 = vand.u32 %v198, 4294901760
    %v937 = vsub.f32 %v198, %v936
    %v938 = vand.u32 %v937, 4294901760
    %v939 = vsub.f32 %v937, %v938
    %v940 = vand.u32 %v939, 4294901760
    %941 = vmatmul.mubr.f32.gmra.mxu0 %v940
    %v942 = vpop.f32.mrf.mxu0
    %v943 = vadd.f32 %v713, %v942
    %v944 = vpop.f32.mrf.mxu0
    %v945 = vand.u32 %v201, 4294901760
    %v946 = vsub.f32 %v201, %v945
    %v947 = vand.u32 %v946, 4294901760
    %v948 = vsub.f32 %v946, %v947
    %v949 = vand.u32 %v948, 4294901760
    %950 = vmatprep.mubr.f32.mxu0 %v949
    %v951 = vand.u32 %v200, 4294901760
    %v952 = vsub.f32 %v200, %v951
    %v953 = vand.u32 %v952, 4294901760
    %v954 = vsub.f32 %v952, %v953
    %v955 = vand.u32 %v954, 4294901760
    %956 = vmatmul.mubr.f32.gmra.mxu0 %v955
    %v957 = vpop.f32.mrf.mxu0
    %v958 = vadd.f32 %v713, %v957
    %v959 = vpop.f32.mrf.mxu0
    %v960 = vand.u32 %v203, 4294901760
    %v961 = vsub.f32 %v203, %v960
    %v962 = vand.u32 %v961, 4294901760
    %v963 = vsub.f32 %v961, %v962
    %v964 = vand.u32 %v963, 4294901760
    %965 = vmatprep.mubr.f32.mxu0 %v964
    %v966 = vand.u32 %v202, 4294901760
    %v967 = vsub.f32 %v202, %v966
    %v968 = vand.u32 %v967, 4294901760
    %v969 = vsub.f32 %v967, %v968
    %v970 = vand.u32 %v969, 4294901760
    %971 = vmatmul.mubr.f32.gmra.mxu0 %v970
    %v972 = vpop.f32.mrf.mxu0
    %v973 = vadd.f32 %v713, %v972
    %v974 = vpop.f32.mrf.mxu0
    %v975 = vand.u32 %v205, 4294901760
    %v976 = vsub.f32 %v205, %v975
    %v977 = vand.u32 %v976, 4294901760
    %v978 = vsub.f32 %v976, %v977
    %v979 = vand.u32 %v978, 4294901760
    %980 = vmatprep.mubr.f32.mxu0 %v979
    %v981 = vand.u32 %v204, 4294901760
    %v982 = vsub.f32 %v204, %v981
    %v983 = vand.u32 %v982, 4294901760
    %v984 = vsub.f32 %v982, %v983
    %v985 = vand.u32 %v984, 4294901760
    %986 = vmatmul.mubr.f32.gmra.mxu0 %v985
    %v987 = vpop.f32.mrf.mxu0
    %v988 = vadd.f32 %v713, %v987
    %v989 = vpop.f32.mrf.mxu0
    %v990 = vand.u32 %v207, 4294901760
    %v991 = vsub.f32 %v207, %v990
    %v992 = vand.u32 %v991, 4294901760
    %v993 = vsub.f32 %v991, %v992
    %v994 = vand.u32 %v993, 4294901760
    %995 = vmatprep.mubr.f32.mxu0 %v994
    %v996 = vand.u32 %v206, 4294901760
    %v997 = vsub.f32 %v206, %v996
    %v998 = vand.u32 %v997, 4294901760
    %v999 = vsub.f32 %v997, %v998
    %v1000 = vand.u32 %v999, 4294901760
    %1001 = vmatmul.mubr.f32.gmra.mxu0 %v1000
    %v1002 = vpop.f32.mrf.mxu0
    %v1003 = vadd.f32 %v713, %v1002
    %v1004 = vpop.f32.mrf.mxu0
    %v1005 = vand.u32 %v209, 4294901760
    %v1006 = vsub.f32 %v209, %v1005
    %v1007 = vand.u32 %v1006, 4294901760
    %v1008 = vsub.f32 %v1006, %v1007
    %v1009 = vand.u32 %v1008, 4294901760
    %1010 = vmatprep.mubr.f32.mxu0 %v1009
    %v1011 = vand.u32 %v208, 4294901760
    %v1012 = vsub.f32 %v208, %v1011
    %v1013 = vand.u32 %v1012, 4294901760
    %v1014 = vsub.f32 %v1012, %v1013
    %v1015 = vand.u32 %v1014, 4294901760
    %1016 = vmatmul.mubr.f32.gmra.mxu0 %v1015
    %v1017 = vpop.f32.mrf.mxu0
    %v1018 = vadd.f32 %v713, %v1017
    %v1019 = vpop.f32.mrf.mxu0
    %v1020 = vand.u32 %v211, 4294901760
    %v1021 = vsub.f32 %v211, %v1020
    %v1022 = vand.u32 %v1021, 4294901760
    %v1023 = vsub.f32 %v1021, %v1022
    %v1024 = vand.u32 %v1023, 4294901760
    %1025 = vmatprep.mubr.f32.mxu0 %v1024
    %v1026 = vand.u32 %v210, 4294901760
    %v1027 = vsub.f32 %v210, %v1026
    %v1028 = vand.u32 %v1027, 4294901760
    %v1029 = vsub.f32 %v1027, %v1028
    %v1030 = vand.u32 %v1029, 4294901760
    %1031 = vmatmul.mubr.f32.gmra.mxu0 %v1030
    %v1032 = vpop.f32.mrf.mxu0
    %v1033 = vadd.f32 %v713, %v1032
    %v1034 = vpop.f32.mrf.mxu0
    %v1035 = vand.u32 %v213, 4294901760
    %v1036 = vsub.f32 %v213, %v1035
    %v1037 = vand.u32 %v1036, 4294901760
    %v1038 = vsub.f32 %v1036, %v1037
    %v1039 = vand.u32 %v1038, 4294901760
    %1040 = vmatprep.mubr.f32.mxu0 %v1039
    %v1041 = vand.u32 %v212, 4294901760
    %v1042 = vsub.f32 %v212, %v1041
    %v1043 = vand.u32 %v1042, 4294901760
    %v1044 = vsub.f32 %v1042, %v1043
    %v1045 = vand.u32 %v1044, 4294901760
    %1046 = vmatmul.mubr.f32.gmra.mxu0 %v1045
    %v1047 = vpop.f32.mrf.mxu0
    %v1048 = vadd.f32 %v713, %v1047
    %v1049 = vpop.f32.mrf.mxu0
    %v1050 = vand.u32 %v215, 4294901760
    %v1051 = vsub.f32 %v215, %v1050
    %v1052 = vand.u32 %v1051, 4294901760
    %v1053 = vsub.f32 %v1051, %v1052
    %v1054 = vand.u32 %v1053, 4294901760
    %1055 = vmatprep.mubr.f32.mxu0 %v1054
    %v1056 = vand.u32 %v214, 4294901760
    %v1057 = vsub.f32 %v214, %v1056
    %v1058 = vand.u32 %v1057, 4294901760
    %v1059 = vsub.f32 %v1057, %v1058
    %v1060 = vand.u32 %v1059, 4294901760
    %1061 = vmatmul.mubr.f32.gmra.mxu0 %v1060
    %v1062 = vpop.f32.mrf.mxu0
    %v1063 = vadd.f32 %v713, %v1062
    %v1064 = vpop.f32.mrf.mxu0
    %v1065 = vand.u32 %v217, 4294901760
    %v1066 = vsub.f32 %v217, %v1065
    %v1067 = vand.u32 %v1066, 4294901760
    %v1068 = vsub.f32 %v1066, %v1067
    %v1069 = vand.u32 %v1068, 4294901760
    %1070 = vmatprep.mubr.f32.mxu0 %v1069
    %v1071 = vand.u32 %v216, 4294901760
    %v1072 = vsub.f32 %v216, %v1071
    %v1073 = vand.u32 %v1072, 4294901760
    %v1074 = vsub.f32 %v1072, %v1073
    %v1075 = vand.u32 %v1074, 4294901760
    %1076 = vmatmul.mubr.f32.gmra.mxu0 %v1075
    %v1077 = vpop.f32.mrf.mxu0
    %v1078 = vadd.f32 %v713, %v1077
    %v1079 = vpop.f32.mrf.mxu0
    %v1080 = vand.u32 %v219, 4294901760
    %v1081 = vsub.f32 %v219, %v1080
    %v1082 = vand.u32 %v1081, 4294901760
    %v1083 = vsub.f32 %v1081, %v1082
    %v1084 = vand.u32 %v1083, 4294901760
    %1085 = vmatprep.mubr.f32.mxu0 %v1084
    %v1086 = vand.u32 %v218, 4294901760
    %v1087 = vsub.f32 %v218, %v1086
    %v1088 = vand.u32 %v1087, 4294901760
    %v1089 = vsub.f32 %v1087, %v1088
    %v1090 = vand.u32 %v1089, 4294901760
    %1091 = vmatmul.mubr.f32.gmra.mxu0 %v1090
    %v1092 = vpop.f32.mrf.mxu0
    %v1093 = vadd.f32 %v713, %v1092
    %v1094 = vpop.f32.mrf.mxu0
    %v1095 = vand.u32 %v221, 4294901760
    %v1096 = vsub.f32 %v221, %v1095
    %v1097 = vand.u32 %v1096, 4294901760
    %v1098 = vsub.f32 %v1096, %v1097
    %v1099 = vand.u32 %v1098, 4294901760
    %1100 = vmatprep.mubr.f32.mxu0 %v1099
    %v1101 = vand.u32 %v220, 4294901760
    %v1102 = vsub.f32 %v220, %v1101
    %v1103 = vand.u32 %v1102, 4294901760
    %v1104 = vsub.f32 %v1102, %v1103
    %v1105 = vand.u32 %v1104, 4294901760
    %1106 = vmatmul.mubr.f32.gmra.mxu0 %v1105
    %v1107 = vpop.f32.mrf.mxu0
    %v1108 = vadd.f32 %v713, %v1107
    %v1109 = vpop.f32.mrf.mxu0
    %v1110 = vand.u32 %v223, 4294901760
    %v1111 = vsub.f32 %v223, %v1110
    %v1112 = vand.u32 %v1111, 4294901760
    %v1113 = vsub.f32 %v1111, %v1112
    %v1114 = vand.u32 %v1113, 4294901760
    %1115 = vmatprep.mubr.f32.mxu0 %v1114
    %v1116 = vand.u32 %v222, 4294901760
    %v1117 = vsub.f32 %v222, %v1116
    %v1118 = vand.u32 %v1117, 4294901760
    %v1119 = vsub.f32 %v1117, %v1118
    %v1120 = vand.u32 %v1119, 4294901760
    %1121 = vmatmul.mubr.f32.gmra.mxu0 %v1120
    %v1122 = vpop.f32.mrf.mxu0
    %v1123 = vadd.f32 %v713, %v1122
    %v1124 = vpop.f32.mrf.mxu0
    %v1125 = vand.u32 %v225, 4294901760
    %v1126 = vsub.f32 %v225, %v1125
    %v1127 = vand.u32 %v1126, 4294901760
    %v1128 = vsub.f32 %v1126, %v1127
    %v1129 = vand.u32 %v1128, 4294901760
    %1130 = vmatprep.mubr.f32.mxu0 %v1129
    %v1131 = vand.u32 %v224, 4294901760
    %v1132 = vsub.f32 %v224, %v1131
    %v1133 = vand.u32 %v1132, 4294901760
    %v1134 = vsub.f32 %v1132, %v1133
    %v1135 = vand.u32 %v1134, 4294901760
    %1136 = vmatmul.mubr.f32.gmra.mxu0 %v1135
    %v1137 = vpop.f32.mrf.mxu0
    %v1138 = vadd.f32 %v713, %v1137
    %v1139 = vpop.f32.mrf.mxu0
    %v1140 = vand.u32 %v227, 4294901760
    %v1141 = vsub.f32 %v227, %v1140
    %v1142 = vand.u32 %v1141, 4294901760
    %v1143 = vsub.f32 %v1141, %v1142
    %v1144 = vand.u32 %v1143, 4294901760
    %1145 = vmatprep.mubr.f32.mxu0 %v1144
    %v1146 = vand.u32 %v226, 4294901760
    %v1147 = vsub.f32 %v226, %v1146
    %v1148 = vand.u32 %v1147, 4294901760
    %v1149 = vsub.f32 %v1147, %v1148
    %v1150 = vand.u32 %v1149, 4294901760
    %1151 = vmatmul.mubr.f32.gmra.mxu0 %v1150
    %v1152 = vpop.f32.mrf.mxu0
    %v1153 = vadd.f32 %v713, %v1152
    %v1154 = vpop.f32.mrf.mxu0
    %v1155 = vand.u32 %v229, 4294901760
    %v1156 = vsub.f32 %v229, %v1155
    %v1157 = vand.u32 %v1156, 4294901760
    %v1158 = vsub.f32 %v1156, %v1157
    %v1159 = vand.u32 %v1158, 4294901760
    %1160 = vmatprep.mubr.f32.mxu0 %v1159
    %v1161 = vand.u32 %v228, 4294901760
    %v1162 = vsub.f32 %v228, %v1161
    %v1163 = vand.u32 %v1162, 4294901760
    %v1164 = vsub.f32 %v1162, %v1163
    %v1165 = vand.u32 %v1164, 4294901760
    %1166 = vmatmul.mubr.f32.gmra.mxu0 %v1165
    %v1167 = vpop.f32.mrf.mxu0
    %v1168 = vadd.f32 %v713, %v1167
    %v1169 = vpop.f32.mrf.mxu0
    %v1170 = vand.u32 %v231, 4294901760
    %v1171 = vsub.f32 %v231, %v1170
    %v1172 = vand.u32 %v1171, 4294901760
    %v1173 = vsub.f32 %v1171, %v1172
    %v1174 = vand.u32 %v1173, 4294901760
    %1175 = vmatprep.mubr.f32.mxu0 %v1174
    %v1176 = vand.u32 %v230, 4294901760
    %v1177 = vsub.f32 %v230, %v1176
    %v1178 = vand.u32 %v1177, 4294901760
    %v1179 = vsub.f32 %v1177, %v1178
    %v1180 = vand.u32 %v1179, 4294901760
    %1181 = vmatmul.mubr.f32.gmra.mxu0 %v1180
    %v1182 = vpop.f32.mrf.mxu0
    %v1183 = vadd.f32 %v713, %v1182
    %v1184 = vpop.f32.mrf.mxu0
    %v1185 = vand.u32 %v233, 4294901760
    %v1186 = vsub.f32 %v233, %v1185
    %v1187 = vand.u32 %v1186, 4294901760
    %v1188 = vsub.f32 %v1186, %v1187
    %v1189 = vand.u32 %v1188, 4294901760
    %1190 = vmatprep.mubr.f32.mxu0 %v1189
    %v1191 = vand.u32 %v232, 4294901760
    %v1192 = vsub.f32 %v232, %v1191
    %v1193 = vand.u32 %v1192, 4294901760
    %v1194 = vsub.f32 %v1192, %v1193
    %v1195 = vand.u32 %v1194, 4294901760
    %1196 = vmatmul.mubr.f32.gmra.mxu0 %v1195
    %v1197 = vpop.f32.mrf.mxu0
    %v1198 = vadd.f32 %v713, %v1197
    %v1199 = vpop.f32.mrf.mxu0
    %v1200 = vand.u32 %v235, 4294901760
    %v1201 = vsub.f32 %v235, %v1200
    %v1202 = vand.u32 %v1201, 4294901760
    %v1203 = vsub.f32 %v1201, %v1202
    %v1204 = vand.u32 %v1203, 4294901760
    %1205 = vmatprep.mubr.f32.mxu0 %v1204
    %v1206 = vand.u32 %v234, 4294901760
    %v1207 = vsub.f32 %v234, %v1206
    %v1208 = vand.u32 %v1207, 4294901760
    %v1209 = vsub.f32 %v1207, %v1208
    %v1210 = vand.u32 %v1209, 4294901760
    %1211 = vmatmul.mubr.f32.gmra.mxu0 %v1210
    %v1212 = vpop.f32.mrf.mxu0
    %v1213 = vadd.f32 %v713, %v1212
    %v1214 = vpop.f32.mrf.mxu0
    %v1215 = vand.u32 %v237, 4294901760
    %v1216 = vsub.f32 %v237, %v1215
    %v1217 = vand.u32 %v1216, 4294901760
    %v1218 = vsub.f32 %v1216, %v1217
    %v1219 = vand.u32 %v1218, 4294901760
    %1220 = vmatprep.mubr.f32.mxu0 %v1219
    %v1221 = vand.u32 %v236, 4294901760
    %v1222 = vsub.f32 %v236, %v1221
    %v1223 = vand.u32 %v1222, 4294901760
    %v1224 = vsub.f32 %v1222, %v1223
    %v1225 = vand.u32 %v1224, 4294901760
    %1226 = vmatmul.mubr.f32.gmra.mxu0 %v1225
    %v1227 = vpop.f32.mrf.mxu0
    %v1228 = vadd.f32 %v713, %v1227
    %v1229 = vpop.f32.mrf.mxu0
    %v1230 = vand.u32 %v239, 4294901760
    %v1231 = vsub.f32 %v239, %v1230
    %v1232 = vand.u32 %v1231, 4294901760
    %v1233 = vsub.f32 %v1231, %v1232
    %v1234 = vand.u32 %v1233, 4294901760
    %1235 = vmatprep.mubr.f32.mxu0 %v1234
    %v1236 = vand.u32 %v238, 4294901760
    %v1237 = vsub.f32 %v238, %v1236
    %v1238 = vand.u32 %v1237, 4294901760
    %v1239 = vsub.f32 %v1237, %v1238
    %v1240 = vand.u32 %v1239, 4294901760
    %1241 = vmatmul.mubr.f32.gmra.mxu0 %v1240
    %v1242 = vpop.f32.mrf.mxu0
    %v1243 = vadd.f32 %v713, %v1242
    %v1244 = vpop.f32.mrf.mxu0
    %v1245 = vand.u32 %v241, 4294901760
    %v1246 = vsub.f32 %v241, %v1245
    %v1247 = vand.u32 %v1246, 4294901760
    %v1248 = vsub.f32 %v1246, %v1247
    %v1249 = vand.u32 %v1248, 4294901760
    %1250 = vmatprep.mubr.f32.mxu0 %v1249
    %v1251 = vand.u32 %v240, 4294901760
    %v1252 = vsub.f32 %v240, %v1251
    %v1253 = vand.u32 %v1252, 4294901760
    %v1254 = vsub.f32 %v1252, %v1253
    %v1255 = vand.u32 %v1254, 4294901760
    %1256 = vmatmul.mubr.f32.gmra.mxu0 %v1255
    %v1257 = vpop.f32.mrf.mxu0
    %v1258 = vadd.f32 %v713, %v1257
    %v1259 = vpop.f32.mrf.mxu0
    %v1260 = vand.u32 %v243, 4294901760
    %v1261 = vsub.f32 %v243, %v1260
    %v1262 = vand.u32 %v1261, 4294901760
    %v1263 = vsub.f32 %v1261, %v1262
    %v1264 = vand.u32 %v1263, 4294901760
    %1265 = vmatprep.mubr.f32.mxu0 %v1264
    %v1266 = vand.u32 %v242, 4294901760
    %v1267 = vsub.f32 %v242, %v1266
    %v1268 = vand.u32 %v1267, 4294901760
    %v1269 = vsub.f32 %v1267, %v1268
    %v1270 = vand.u32 %v1269, 4294901760
    %1271 = vmatmul.mubr.f32.gmra.mxu0 %v1270
    %v1272 = vpop.f32.mrf.mxu0
    %v1273 = vadd.f32 %v713, %v1272
    %v1274 = vpop.f32.mrf.mxu0
    %v1275 = vand.u32 %v245, 4294901760
    %v1276 = vsub.f32 %v245, %v1275
    %v1277 = vand.u32 %v1276, 4294901760
    %v1278 = vsub.f32 %v1276, %v1277
    %v1279 = vand.u32 %v1278, 4294901760
    %1280 = vmatprep.mubr.f32.mxu0 %v1279
    %v1281 = vand.u32 %v244, 4294901760
    %v1282 = vsub.f32 %v244, %v1281
    %v1283 = vand.u32 %v1282, 4294901760
    %v1284 = vsub.f32 %v1282, %v1283
    %v1285 = vand.u32 %v1284, 4294901760
    %1286 = vmatmul.mubr.f32.gmra.mxu0 %v1285
    %v1287 = vpop.f32.mrf.mxu0
    %v1288 = vadd.f32 %v713, %v1287
    %v1289 = vpop.f32.mrf.mxu0
    %1290 = vdwg.mxu0
    %1291 = vmatprep.subr.mxu0 0.0
    %v1292 = vand.u32 %v580, 4294901760
    %v1293 = vsub.f32 %v580, %v1292
    %v1294 = vand.u32 %v1293, 4294901760
    %v1295 = vsub.f32 %v1293, %v1294
    %v1296 = vand.u32 %v1295, 4294901760
    %1297 = vmatpush1.msra.mxu0 %v1296
    %1298 = vmatprep.subr.mxu0 0.0
    %v1299 = vand.u32 %v577, 4294901760
    %v1300 = vsub.f32 %v577, %v1299
    %v1301 = vand.u32 %v1300, 4294901760
    %v1302 = vsub.f32 %v1300, %v1301
    %v1303 = vand.u32 %v1302, 4294901760
    %1304 = vmatpush1.msra.mxu0 %v1303
    %1305 = vmatprep.subr.mxu0 0.0
    %v1306 = vand.u32 %v572, 4294901760
    %v1307 = vsub.f32 %v572, %v1306
    %v1308 = vand.u32 %v1307, 4294901760
    %v1309 = vsub.f32 %v1307, %v1308
    %v1310 = vand.u32 %v1309, 4294901760
    %1311 = vmatpush1.msra.mxu0 %v1310
    %1312 = vmatprep.subr.mxu0 0.0
    %v1313 = vand.u32 %v569, 4294901760
    %v1314 = vsub.f32 %v569, %v1313
    %v1315 = vand.u32 %v1314, 4294901760
    %v1316 = vsub.f32 %v1314, %v1315
    %v1317 = vand.u32 %v1316, 4294901760
    %1318 = vmatpush1.msra.mxu0 %v1317
    %1319 = vmatprep.subr.mxu0 0.0
    %v1320 = vand.u32 %v564, 4294901760
    %v1321 = vsub.f32 %v564, %v1320
    %v1322 = vand.u32 %v1321, 4294901760
    %v1323 = vsub.f32 %v1321, %v1322
    %v1324 = vand.u32 %v1323, 4294901760
    %1325 = vmatpush1.msra.mxu0 %v1324
    %1326 = vmatprep.subr.mxu0 0.0
    %v1327 = vand.u32 %v561, 4294901760
    %v1328 = vsub.f32 %v561, %v1327
    %v1329 = vand.u32 %v1328, 4294901760
    %v1330 = vsub.f32 %v1328, %v1329
    %v1331 = vand.u32 %v1330, 4294901760
    %1332 = vmatpush1.msra.mxu0 %v1331
    %1333 = vmatprep.subr.mxu0 0.0
    %v1334 = vand.u32 %v556, 4294901760
    %v1335 = vsub.f32 %v556, %v1334
    %v1336 = vand.u32 %v1335, 4294901760
    %v1337 = vsub.f32 %v1335, %v1336
    %v1338 = vand.u32 %v1337, 4294901760
    %1339 = vmatpush1.msra.mxu0 %v1338
    %1340 = vmatprep.subr.mxu0 0.0
    %v1341 = vand.u32 %v553, 4294901760
    %v1342 = vsub.f32 %v553, %v1341
    %v1343 = vand.u32 %v1342, 4294901760
    %v1344 = vsub.f32 %v1342, %v1343
    %v1345 = vand.u32 %v1344, 4294901760
    %1346 = vmatpush1.msra.mxu0 %v1345
    %1347 = vmatprep.subr.mxu0 0.0
    %v1348 = vand.u32 %v548, 4294901760
    %v1349 = vsub.f32 %v548, %v1348
    %v1350 = vand.u32 %v1349, 4294901760
    %v1351 = vsub.f32 %v1349, %v1350
    %v1352 = vand.u32 %v1351, 4294901760
    %1353 = vmatpush1.msra.mxu0 %v1352
    %1354 = vmatprep.subr.mxu0 0.0
    %v1355 = vand.u32 %v545, 4294901760
    %v1356 = vsub.f32 %v545, %v1355
    %v1357 = vand.u32 %v1356, 4294901760
    %v1358 = vsub.f32 %v1356, %v1357
    %v1359 = vand.u32 %v1358, 4294901760
    %1360 = vmatpush1.msra.mxu0 %v1359
    %1361 = vmatprep.subr.mxu0 0.0
    %v1362 = vand.u32 %v540, 4294901760
    %v1363 = vsub.f32 %v540, %v1362
    %v1364 = vand.u32 %v1363, 4294901760
    %v1365 = vsub.f32 %v1363, %v1364
    %v1366 = vand.u32 %v1365, 4294901760
    %1367 = vmatpush1.msra.mxu0 %v1366
    %1368 = vmatprep.subr.mxu0 0.0
    %v1369 = vand.u32 %v537, 4294901760
    %v1370 = vsub.f32 %v537, %v1369
    %v1371 = vand.u32 %v1370, 4294901760
    %v1372 = vsub.f32 %v1370, %v1371
    %v1373 = vand.u32 %v1372, 4294901760
    %1374 = vmatpush1.msra.mxu0 %v1373
    %1375 = vmatprep.subr.mxu0 0.0
    %v1376 = vand.u32 %v532, 4294901760
    %v1377 = vsub.f32 %v532, %v1376
    %v1378 = vand.u32 %v1377, 4294901760
    %v1379 = vsub.f32 %v1377, %v1378
    %v1380 = vand.u32 %v1379, 4294901760
    %1381 = vmatpush1.msra.mxu0 %v1380
    %1382 = vmatprep.subr.mxu0 0.0
    %v1383 = vand.u32 %v529, 4294901760
    %v1384 = vsub.f32 %v529, %v1383
    %v1385 = vand.u32 %v1384, 4294901760
    %v1386 = vsub.f32 %v1384, %v1385
    %v1387 = vand.u32 %v1386, 4294901760
    %1388 = vmatpush1.msra.mxu0 %v1387
    %1389 = vmatprep.subr.mxu0 0.0
    %v1390 = vand.u32 %v524, 4294901760
    %v1391 = vsub.f32 %v524, %v1390
    %v1392 = vand.u32 %v1391, 4294901760
    %v1393 = vsub.f32 %v1391, %v1392
    %v1394 = vand.u32 %v1393, 4294901760
    %1395 = vmatpush1.msra.mxu0 %v1394
    %1396 = vmatprep.subr.mxu0 0.0
    %v1397 = vand.u32 %v521, 4294901760
    %v1398 = vsub.f32 %v521, %v1397
    %v1399 = vand.u32 %v1398, 4294901760
    %v1400 = vsub.f32 %v1398, %v1399
    %v1401 = vand.u32 %v1400, 4294901760
    %1402 = vmatpush1.msra.mxu0 %v1401
    %1403 = vmatprep.subr.mxu0 0.0
    %v1404 = vand.u32 %v644, 4294901760
    %v1405 = vsub.f32 %v644, %v1404
    %v1406 = vand.u32 %v1405, 4294901760
    %v1407 = vsub.f32 %v1405, %v1406
    %v1408 = vand.u32 %v1407, 4294901760
    %1409 = vmatpush2.msra.mxu0 %v1408
    %1410 = vmatprep.subr.mxu0 0.0
    %v1411 = vand.u32 %v641, 4294901760
    %v1412 = vsub.f32 %v641, %v1411
    %v1413 = vand.u32 %v1412, 4294901760
    %v1414 = vsub.f32 %v1412, %v1413
    %v1415 = vand.u32 %v1414, 4294901760
    %1416 = vmatpush2.msra.mxu0 %v1415
    %1417 = vmatprep.subr.mxu0 0.0
    %v1418 = vand.u32 %v636, 4294901760
    %v1419 = vsub.f32 %v636, %v1418
    %v1420 = vand.u32 %v1419, 4294901760
    %v1421 = vsub.f32 %v1419, %v1420
    %v1422 = vand.u32 %v1421, 4294901760
    %1423 = vmatpush2.msra.mxu0 %v1422
    %1424 = vmatprep.subr.mxu0 0.0
    %v1425 = vand.u32 %v633, 4294901760
    %v1426 = vsub.f32 %v633, %v1425
    %v1427 = vand.u32 %v1426, 4294901760
    %v1428 = vsub.f32 %v1426, %v1427
    %v1429 = vand.u32 %v1428, 4294901760
    %1430 = vmatpush2.msra.mxu0 %v1429
    %1431 = vmatprep.subr.mxu0 0.0
    %v1432 = vand.u32 %v628, 4294901760
    %v1433 = vsub.f32 %v628, %v1432
    %v1434 = vand.u32 %v1433, 4294901760
    %v1435 = vsub.f32 %v1433, %v1434
    %v1436 = vand.u32 %v1435, 4294901760
    %1437 = vmatpush2.msra.mxu0 %v1436
    %1438 = vmatprep.subr.mxu0 0.0
    %v1439 = vand.u32 %v625, 4294901760
    %v1440 = vsub.f32 %v625, %v1439
    %v1441 = vand.u32 %v1440, 4294901760
    %v1442 = vsub.f32 %v1440, %v1441
    %v1443 = vand.u32 %v1442, 4294901760
    %1444 = vmatpush2.msra.mxu0 %v1443
    %1445 = vmatprep.subr.mxu0 0.0
    %v1446 = vand.u32 %v620, 4294901760
    %v1447 = vsub.f32 %v620, %v1446
    %v1448 = vand.u32 %v1447, 4294901760
    %v1449 = vsub.f32 %v1447, %v1448
    %v1450 = vand.u32 %v1449, 4294901760
    %1451 = vmatpush2.msra.mxu0 %v1450
    %1452 = vmatprep.subr.mxu0 0.0
    %v1453 = vand.u32 %v617, 4294901760
    %v1454 = vsub.f32 %v617, %v1453
    %v1455 = vand.u32 %v1454, 4294901760
    %v1456 = vsub.f32 %v1454, %v1455
    %v1457 = vand.u32 %v1456, 4294901760
    %1458 = vmatpush2.msra.mxu0 %v1457
    %1459 = vmatprep.subr.mxu0 0.0
    %v1460 = vand.u32 %v612, 4294901760
    %v1461 = vsub.f32 %v612, %v1460
    %v1462 = vand.u32 %v1461, 4294901760
    %v1463 = vsub.f32 %v1461, %v1462
    %v1464 = vand.u32 %v1463, 4294901760
    %1465 = vmatpush2.msra.mxu0 %v1464
    %1466 = vmatprep.subr.mxu0 0.0
    %v1467 = vand.u32 %v609, 4294901760
    %v1468 = vsub.f32 %v609, %v1467
    %v1469 = vand.u32 %v1468, 4294901760
    %v1470 = vsub.f32 %v1468, %v1469
    %v1471 = vand.u32 %v1470, 4294901760
    %1472 = vmatpush2.msra.mxu0 %v1471
    %1473 = vmatprep.subr.mxu0 0.0
    %v1474 = vand.u32 %v604, 4294901760
    %v1475 = vsub.f32 %v604, %v1474
    %v1476 = vand.u32 %v1475, 4294901760
    %v1477 = vsub.f32 %v1475, %v1476
    %v1478 = vand.u32 %v1477, 4294901760
    %1479 = vmatpush2.msra.mxu0 %v1478
    %1480 = vmatprep.subr.mxu0 0.0
    %v1481 = vand.u32 %v601, 4294901760
    %v1482 = vsub.f32 %v601, %v1481
    %v1483 = vand.u32 %v1482, 4294901760
    %v1484 = vsub.f32 %v1482, %v1483
    %v1485 = vand.u32 %v1484, 4294901760
    %1486 = vmatpush2.msra.mxu0 %v1485
    %1487 = vmatprep.subr.mxu0 0.0
    %v1488 = vand.u32 %v596, 4294901760
    %v1489 = vsub.f32 %v596, %v1488
    %v1490 = vand.u32 %v1489, 4294901760
    %v1491 = vsub.f32 %v1489, %v1490
    %v1492 = vand.u32 %v1491, 4294901760
    %1493 = vmatpush2.msra.mxu0 %v1492
    %1494 = vmatprep.subr.mxu0 0.0
    %v1495 = vand.u32 %v593, 4294901760
    %v1496 = vsub.f32 %v593, %v1495
    %v1497 = vand.u32 %v1496, 4294901760
    %v1498 = vsub.f32 %v1496, %v1497
    %v1499 = vand.u32 %v1498, 4294901760
    %1500 = vmatpush2.msra.mxu0 %v1499
    %1501 = vmatprep.subr.mxu0 0.0
    %v1502 = vand.u32 %v588, 4294901760
    %v1503 = vsub.f32 %v588, %v1502
    %v1504 = vand.u32 %v1503, 4294901760
    %v1505 = vsub.f32 %v1503, %v1504
    %v1506 = vand.u32 %v1505, 4294901760
    %1507 = vmatpush2.msra.mxu0 %v1506
    %1508 = vmatprep.subr.mxu0 0.0
    %v1509 = vand.u32 %v585, 4294901760
    %v1510 = vsub.f32 %v585, %v1509
    %v1511 = vand.u32 %v1510, 4294901760
    %v1512 = vsub.f32 %v1510, %v1511
    %v1513 = vand.u32 %v1512, 4294901760
    %1514 = vmatpush2.msra.mxu0 %v1513
    %v1515 = vand.u32 %v183, 4294901760
    %1516 = vmatprep.mubr.f32.mxu0 %v1515
    %v1517 = vand.u32 %v182, 4294901760
    %1518 = vmatmul.mubr.f32.gmra.mxu0 %v1517
    %v1519 = vpop.f32.mrf.mxu0
    %v1520 = vadd.f32 %v823, %v1519
    %v1521 = vpop.f32.mrf.mxu0
    %v1522 = vand.u32 %v185, 4294901760
    %1523 = vmatprep.mubr.f32.mxu0 %v1522
    %v1524 = vand.u32 %v184, 4294901760
    %1525 = vmatmul.mubr.f32.gmra.mxu0 %v1524
    %v1526 = vpop.f32.mrf.mxu0
    %v1527 = vadd.f32 %v838, %v1526
    %v1528 = vpop.f32.mrf.mxu0
    %v1529 = vand.u32 %v187, 4294901760
    %1530 = vmatprep.mubr.f32.mxu0 %v1529
    %v1531 = vand.u32 %v186, 4294901760
    %1532 = vmatmul.mubr.f32.gmra.mxu0 %v1531
    %v1533 = vpop.f32.mrf.mxu0
    %v1534 = vadd.f32 %v853, %v1533
    %v1535 = vpop.f32.mrf.mxu0
    %v1536 = vand.u32 %v189, 4294901760
    %1537 = vmatprep.mubr.f32.mxu0 %v1536
    %v1538 = vand.u32 %v188, 4294901760
    %1539 = vmatmul.mubr.f32.gmra.mxu0 %v1538
    %v1540 = vpop.f32.mrf.mxu0
    %v1541 = vadd.f32 %v868, %v1540
    %v1542 = vpop.f32.mrf.mxu0
    %v1543 = vand.u32 %v191, 4294901760
    %1544 = vmatprep.mubr.f32.mxu0 %v1543
    %v1545 = vand.u32 %v190, 4294901760
    %1546 = vmatmul.mubr.f32.gmra.mxu0 %v1545
    %v1547 = vpop.f32.mrf.mxu0
    %v1548 = vadd.f32 %v883, %v1547
    %v1549 = vpop.f32.mrf.mxu0
    %v1550 = vand.u32 %v193, 4294901760
    %1551 = vmatprep.mubr.f32.mxu0 %v1550
    %v1552 = vand.u32 %v192, 4294901760
    %1553 = vmatmul.mubr.f32.gmra.mxu0 %v1552
    %v1554 = vpop.f32.mrf.mxu0
    %v1555 = vadd.f32 %v898, %v1554
    %v1556 = vpop.f32.mrf.mxu0
    %v1557 = vand.u32 %v195, 4294901760
    %1558 = vmatprep.mubr.f32.mxu0 %v1557
    %v1559 = vand.u32 %v194, 4294901760
    %1560 = vmatmul.mubr.f32.gmra.mxu0 %v1559
    %v1561 = vpop.f32.mrf.mxu0
    %v1562 = vadd.f32 %v913, %v1561
    %v1563 = vpop.f32.mrf.mxu0
    %v1564 = vand.u32 %v197, 4294901760
    %1565 = vmatprep.mubr.f32.mxu0 %v1564
    %v1566 = vand.u32 %v196, 4294901760
    %1567 = vmatmul.mubr.f32.gmra.mxu0 %v1566
    %v1568 = vpop.f32.mrf.mxu0
    %v1569 = vadd.f32 %v928, %v1568
    %v1570 = vpop.f32.mrf.mxu0
    %v1571 = vand.u32 %v199, 4294901760
    %1572 = vmatprep.mubr.f32.mxu0 %v1571
    %v1573 = vand.u32 %v198, 4294901760
    %1574 = vmatmul.mubr.f32.gmra.mxu0 %v1573
    %v1575 = vpop.f32.mrf.mxu0
    %v1576 = vadd.f32 %v943, %v1575
    %v1577 = vpop.f32.mrf.mxu0
    %v1578 = vand.u32 %v201, 4294901760
    %1579 = vmatprep.mubr.f32.mxu0 %v1578
    %v1580 = vand.u32 %v200, 4294901760
    %1581 = vmatmul.mubr.f32.gmra.mxu0 %v1580
    %v1582 = vpop.f32.mrf.mxu0
    %v1583 = vadd.f32 %v958, %v1582
    %v1584 = vpop.f32.mrf.mxu0
    %v1585 = vand.u32 %v203, 4294901760
    %1586 = vmatprep.mubr.f32.mxu0 %v1585
    %v1587 = vand.u32 %v202, 4294901760
    %1588 = vmatmul.mubr.f32.gmra.mxu0 %v1587
    %v1589 = vpop.f32.mrf.mxu0
    %v1590 = vadd.f32 %v973, %v1589
    %v1591 = vpop.f32.mrf.mxu0
    %v1592 = vand.u32 %v205, 4294901760
    %1593 = vmatprep.mubr.f32.mxu0 %v1592
    %v1594 = vand.u32 %v204, 4294901760
    %1595 = vmatmul.mubr.f32.gmra.mxu0 %v1594
    %v1596 = vpop.f32.mrf.mxu0
    %v1597 = vadd.f32 %v988, %v1596
    %v1598 = vpop.f32.mrf.mxu0
    %v1599 = vand.u32 %v207, 4294901760
    %1600 = vmatprep.mubr.f32.mxu0 %v1599
    %v1601 = vand.u32 %v206, 4294901760
    %1602 = vmatmul.mubr.f32.gmra.mxu0 %v1601
    %v1603 = vpop.f32.mrf.mxu0
    %v1604 = vadd.f32 %v1003, %v1603
    %v1605 = vpop.f32.mrf.mxu0
    %v1606 = vand.u32 %v209, 4294901760
    %1607 = vmatprep.mubr.f32.mxu0 %v1606
    %v1608 = vand.u32 %v208, 4294901760
    %1609 = vmatmul.mubr.f32.gmra.mxu0 %v1608
    %v1610 = vpop.f32.mrf.mxu0
    %v1611 = vadd.f32 %v1018, %v1610
    %v1612 = vpop.f32.mrf.mxu0
    %v1613 = vand.u32 %v211, 4294901760
    %1614 = vmatprep.mubr.f32.mxu0 %v1613
    %v1615 = vand.u32 %v210, 4294901760
    %1616 = vmatmul.mubr.f32.gmra.mxu0 %v1615
    %v1617 = vpop.f32.mrf.mxu0
    %v1618 = vadd.f32 %v1033, %v1617
    %v1619 = vpop.f32.mrf.mxu0
    %v1620 = vand.u32 %v213, 4294901760
    %1621 = vmatprep.mubr.f32.mxu0 %v1620
    %v1622 = vand.u32 %v212, 4294901760
    %1623 = vmatmul.mubr.f32.gmra.mxu0 %v1622
    %v1624 = vpop.f32.mrf.mxu0
    %v1625 = vadd.f32 %v1048, %v1624
    %v1626 = vpop.f32.mrf.mxu0
    %v1627 = vand.u32 %v215, 4294901760
    %1628 = vmatprep.mubr.f32.mxu0 %v1627
    %v1629 = vand.u32 %v214, 4294901760
    %1630 = vmatmul.mubr.f32.gmra.mxu0 %v1629
    %v1631 = vpop.f32.mrf.mxu0
    %v1632 = vadd.f32 %v1063, %v1631
    %v1633 = vpop.f32.mrf.mxu0
    %v1634 = vand.u32 %v217, 4294901760
    %1635 = vmatprep.mubr.f32.mxu0 %v1634
    %v1636 = vand.u32 %v216, 4294901760
    %1637 = vmatmul.mubr.f32.gmra.mxu0 %v1636
    %v1638 = vpop.f32.mrf.mxu0
    %v1639 = vadd.f32 %v1078, %v1638
    %v1640 = vpop.f32.mrf.mxu0
    %v1641 = vand.u32 %v219, 4294901760
    %1642 = vmatprep.mubr.f32.mxu0 %v1641
    %v1643 = vand.u32 %v218, 4294901760
    %1644 = vmatmul.mubr.f32.gmra.mxu0 %v1643
    %v1645 = vpop.f32.mrf.mxu0
    %v1646 = vadd.f32 %v1093, %v1645
    %v1647 = vpop.f32.mrf.mxu0
    %v1648 = vand.u32 %v221, 4294901760
    %1649 = vmatprep.mubr.f32.mxu0 %v1648
    %v1650 = vand.u32 %v220, 4294901760
    %1651 = vmatmul.mubr.f32.gmra.mxu0 %v1650
    %v1652 = vpop.f32.mrf.mxu0
    %v1653 = vadd.f32 %v1108, %v1652
    %v1654 = vpop.f32.mrf.mxu0
    %v1655 = vand.u32 %v223, 4294901760
    %1656 = vmatprep.mubr.f32.mxu0 %v1655
    %v1657 = vand.u32 %v222, 4294901760
    %1658 = vmatmul.mubr.f32.gmra.mxu0 %v1657
    %v1659 = vpop.f32.mrf.mxu0
    %v1660 = vadd.f32 %v1123, %v1659
    %v1661 = vpop.f32.mrf.mxu0
    %v1662 = vand.u32 %v225, 4294901760
    %1663 = vmatprep.mubr.f32.mxu0 %v1662
    %v1664 = vand.u32 %v224, 4294901760
    %1665 = vmatmul.mubr.f32.gmra.mxu0 %v1664
    %v1666 = vpop.f32.mrf.mxu0
    %v1667 = vadd.f32 %v1138, %v1666
    %v1668 = vpop.f32.mrf.mxu0
    %v1669 = vand.u32 %v227, 4294901760
    %1670 = vmatprep.mubr.f32.mxu0 %v1669
    %v1671 = vand.u32 %v226, 4294901760
    %1672 = vmatmul.mubr.f32.gmra.mxu0 %v1671
    %v1673 = vpop.f32.mrf.mxu0
    %v1674 = vadd.f32 %v1153, %v1673
    %v1675 = vpop.f32.mrf.mxu0
    %v1676 = vand.u32 %v229, 4294901760
    %1677 = vmatprep.mubr.f32.mxu0 %v1676
    %v1678 = vand.u32 %v228, 4294901760
    %1679 = vmatmul.mubr.f32.gmra.mxu0 %v1678
    %v1680 = vpop.f32.mrf.mxu0
    %v1681 = vadd.f32 %v1168, %v1680
    %v1682 = vpop.f32.mrf.mxu0
    %v1683 = vand.u32 %v231, 4294901760
    %1684 = vmatprep.mubr.f32.mxu0 %v1683
    %v1685 = vand.u32 %v230, 4294901760
    %1686 = vmatmul.mubr.f32.gmra.mxu0 %v1685
    %v1687 = vpop.f32.mrf.mxu0
    %v1688 = vadd.f32 %v1183, %v1687
    %v1689 = vpop.f32.mrf.mxu0
    %v1690 = vand.u32 %v233, 4294901760
    %1691 = vmatprep.mubr.f32.mxu0 %v1690
    %v1692 = vand.u32 %v232, 4294901760
    %1693 = vmatmul.mubr.f32.gmra.mxu0 %v1692
    %v1694 = vpop.f32.mrf.mxu0
    %v1695 = vadd.f32 %v1198, %v1694
    %v1696 = vpop.f32.mrf.mxu0
    %v1697 = vand.u32 %v235, 4294901760
    %1698 = vmatprep.mubr.f32.mxu0 %v1697
    %v1699 = vand.u32 %v234, 4294901760
    %1700 = vmatmul.mubr.f32.gmra.mxu0 %v1699
    %v1701 = vpop.f32.mrf.mxu0
    %v1702 = vadd.f32 %v1213, %v1701
    %v1703 = vpop.f32.mrf.mxu0
    %v1704 = vand.u32 %v237, 4294901760
    %1705 = vmatprep.mubr.f32.mxu0 %v1704
    %v1706 = vand.u32 %v236, 4294901760
    %1707 = vmatmul.mubr.f32.gmra.mxu0 %v1706
    %v1708 = vpop.f32.mrf.mxu0
    %v1709 = vadd.f32 %v1228, %v1708
    %v1710 = vpop.f32.mrf.mxu0
    %v1711 = vand.u32 %v239, 4294901760
    %1712 = vmatprep.mubr.f32.mxu0 %v1711
    %v1713 = vand.u32 %v238, 4294901760
    %1714 = vmatmul.mubr.f32.gmra.mxu0 %v1713
    %v1715 = vpop.f32.mrf.mxu0
    %v1716 = vadd.f32 %v1243, %v1715
    %v1717 = vpop.f32.mrf.mxu0
    %v1718 = vand.u32 %v241, 4294901760
    %1719 = vmatprep.mubr.f32.mxu0 %v1718
    %v1720 = vand.u32 %v240, 4294901760
    %1721 = vmatmul.mubr.f32.gmra.mxu0 %v1720
    %v1722 = vpop.f32.mrf.mxu0
    %v1723 = vadd.f32 %v1258, %v1722
    %v1724 = vpop.f32.mrf.mxu0
    %v1725 = vand.u32 %v243, 4294901760
    %1726 = vmatprep.mubr.f32.mxu0 %v1725
    %v1727 = vand.u32 %v242, 4294901760
    %1728 = vmatmul.mubr.f32.gmra.mxu0 %v1727
    %v1729 = vpop.f32.mrf.mxu0
    %v1730 = vadd.f32 %v1273, %v1729
    %v1731 = vpop.f32.mrf.mxu0
    %v1732 = vand.u32 %v245, 4294901760
    %1733 = vmatprep.mubr.f32.mxu0 %v1732
    %v1734 = vand.u32 %v244, 4294901760
    %1735 = vmatmul.mubr.f32.gmra.mxu0 %v1734
    %v1736 = vpop.f32.mrf.mxu0
    %v1737 = vadd.f32 %v1288, %v1736
    %v1738 = vpop.f32.mrf.mxu0
    %1739 = vdwg.mxu0
    %1740 = vmatprep.subr.mxu0 0.0
    %v1741 = vand.u32 %v580, 4294901760
    %v1742 = vsub.f32 %v580, %v1741
    %1743 = vmatpush1.msra.mxu0 %v1742
    %1744 = vmatprep.subr.mxu0 0.0
    %v1745 = vand.u32 %v577, 4294901760
    %v1746 = vsub.f32 %v577, %v1745
    %1747 = vmatpush1.msra.mxu0 %v1746
    %1748 = vmatprep.subr.mxu0 0.0
    %v1749 = vand.u32 %v572, 4294901760
    %v1750 = vsub.f32 %v572, %v1749
    %1751 = vmatpush1.msra.mxu0 %v1750
    %1752 = vmatprep.subr.mxu0 0.0
    %v1753 = vand.u32 %v569, 4294901760
    %v1754 = vsub.f32 %v569, %v1753
    %1755 = vmatpush1.msra.mxu0 %v1754
    %1756 = vmatprep.subr.mxu0 0.0
    %v1757 = vand.u32 %v564, 4294901760
    %v1758 = vsub.f32 %v564, %v1757
    %1759 = vmatpush1.msra.mxu0 %v1758
    %1760 = vmatprep.subr.mxu0 0.0
    %v1761 = vand.u32 %v561, 4294901760
    %v1762 = vsub.f32 %v561, %v1761
    %1763 = vmatpush1.msra.mxu0 %v1762
    %1764 = vmatprep.subr.mxu0 0.0
    %v1765 = vand.u32 %v556, 4294901760
    %v1766 = vsub.f32 %v556, %v1765
    %1767 = vmatpush1.msra.mxu0 %v1766
    %1768 = vmatprep.subr.mxu0 0.0
    %v1769 = vand.u32 %v553, 4294901760
    %v1770 = vsub.f32 %v553, %v1769
    %1771 = vmatpush1.msra.mxu0 %v1770
    %1772 = vmatprep.subr.mxu0 0.0
    %v1773 = vand.u32 %v548, 4294901760
    %v1774 = vsub.f32 %v548, %v1773
    %1775 = vmatpush1.msra.mxu0 %v1774
    %1776 = vmatprep.subr.mxu0 0.0
    %v1777 = vand.u32 %v545, 4294901760
    %v1778 = vsub.f32 %v545, %v1777
    %1779 = vmatpush1.msra.mxu0 %v1778
    %1780 = vmatprep.subr.mxu0 0.0
    %v1781 = vand.u32 %v540, 4294901760
    %v1782 = vsub.f32 %v540, %v1781
    %1783 = vmatpush1.msra.mxu0 %v1782
    %1784 = vmatprep.subr.mxu0 0.0
    %v1785 = vand.u32 %v537, 4294901760
    %v1786 = vsub.f32 %v537, %v1785
    %1787 = vmatpush1.msra.mxu0 %v1786
    %1788 = vmatprep.subr.mxu0 0.0
    %v1789 = vand.u32 %v532, 4294901760
    %v1790 = vsub.f32 %v532, %v1789
    %1791 = vmatpush1.msra.mxu0 %v1790
    %1792 = vmatprep.subr.mxu0 0.0
    %v1793 = vand.u32 %v529, 4294901760
    %v1794 = vsub.f32 %v529, %v1793
    %1795 = vmatpush1.msra.mxu0 %v1794
    %1796 = vmatprep.subr.mxu0 0.0
    %v1797 = vand.u32 %v524, 4294901760
    %v1798 = vsub.f32 %v524, %v1797
    %1799 = vmatpush1.msra.mxu0 %v1798
    %1800 = vmatprep.subr.mxu0 0.0
    %v1801 = vand.u32 %v521, 4294901760
    %v1802 = vsub.f32 %v521, %v1801
    %1803 = vmatpush1.msra.mxu0 %v1802
    %1804 = vmatprep.subr.mxu0 0.0
    %v1805 = vand.u32 %v644, 4294901760
    %v1806 = vsub.f32 %v644, %v1805
    %1807 = vmatpush2.msra.mxu0 %v1806
    %1808 = vmatprep.subr.mxu0 0.0
    %v1809 = vand.u32 %v641, 4294901760
    %v1810 = vsub.f32 %v641, %v1809
    %1811 = vmatpush2.msra.mxu0 %v1810
    %1812 = vmatprep.subr.mxu0 0.0
    %v1813 = vand.u32 %v636, 4294901760
    %v1814 = vsub.f32 %v636, %v1813
    %1815 = vmatpush2.msra.mxu0 %v1814
    %1816 = vmatprep.subr.mxu0 0.0
    %v1817 = vand.u32 %v633, 4294901760
    %v1818 = vsub.f32 %v633, %v1817
    %1819 = vmatpush2.msra.mxu0 %v1818
    %1820 = vmatprep.subr.mxu0 0.0
    %v1821 = vand.u32 %v628, 4294901760
    %v1822 = vsub.f32 %v628, %v1821
    %1823 = vmatpush2.msra.mxu0 %v1822
    %1824 = vmatprep.subr.mxu0 0.0
    %v1825 = vand.u32 %v625, 4294901760
    %v1826 = vsub.f32 %v625, %v1825
    %1827 = vmatpush2.msra.mxu0 %v1826
    %1828 = vmatprep.subr.mxu0 0.0
    %v1829 = vand.u32 %v620, 4294901760
    %v1830 = vsub.f32 %v620, %v1829
    %1831 = vmatpush2.msra.mxu0 %v1830
    %1832 = vmatprep.subr.mxu0 0.0
    %v1833 = vand.u32 %v617, 4294901760
    %v1834 = vsub.f32 %v617, %v1833
    %1835 = vmatpush2.msra.mxu0 %v1834
    %1836 = vmatprep.subr.mxu0 0.0
    %v1837 = vand.u32 %v612, 4294901760
    %v1838 = vsub.f32 %v612, %v1837
    %1839 = vmatpush2.msra.mxu0 %v1838
    %1840 = vmatprep.subr.mxu0 0.0
    %v1841 = vand.u32 %v609, 4294901760
    %v1842 = vsub.f32 %v609, %v1841
    %1843 = vmatpush2.msra.mxu0 %v1842
    %1844 = vmatprep.subr.mxu0 0.0
    %v1845 = vand.u32 %v604, 4294901760
    %v1846 = vsub.f32 %v604, %v1845
    %1847 = vmatpush2.msra.mxu0 %v1846
    %1848 = vmatprep.subr.mxu0 0.0
    %v1849 = vand.u32 %v601, 4294901760
    %v1850 = vsub.f32 %v601, %v1849
    %1851 = vmatpush2.msra.mxu0 %v1850
    %1852 = vmatprep.subr.mxu0 0.0
    %v1853 = vand.u32 %v596, 4294901760
    %v1854 = vsub.f32 %v596, %v1853
    %1855 = vmatpush2.msra.mxu0 %v1854
    %1856 = vmatprep.subr.mxu0 0.0
    %v1857 = vand.u32 %v593, 4294901760
    %v1858 = vsub.f32 %v593, %v1857
    %1859 = vmatpush2.msra.mxu0 %v1858
    %1860 = vmatprep.subr.mxu0 0.0
    %v1861 = vand.u32 %v588, 4294901760
    %v1862 = vsub.f32 %v588, %v1861
    %1863 = vmatpush2.msra.mxu0 %v1862
    %1864 = vmatprep.subr.mxu0 0.0
    %v1865 = vand.u32 %v585, 4294901760
    %v1866 = vsub.f32 %v585, %v1865
    %1867 = vmatpush2.msra.mxu0 %v1866
    %v1868 = vand.u32 %v183, 4294901760
    %v1869 = vsub.f32 %v183, %v1868
    %1870 = vmatprep.mubr.f32.mxu0 %v1869
    %v1871 = vand.u32 %v182, 4294901760
    %v1872 = vsub.f32 %v182, %v1871
    %1873 = vmatmul.mubr.f32.gmra.mxu0 %v1872
    %v1874 = vpop.f32.mrf.mxu0
    %v1875 = vadd.f32 %v1520, %v1874
    %v1876 = vpop.f32.mrf.mxu0
    %v1877 = vand.u32 %v185, 4294901760
    %v1878 = vsub.f32 %v185, %v1877
    %1879 = vmatprep.mubr.f32.mxu0 %v1878
    %v1880 = vand.u32 %v184, 4294901760
    %v1881 = vsub.f32 %v184, %v1880
    %1882 = vmatmul.mubr.f32.gmra.mxu0 %v1881
    %v1883 = vpop.f32.mrf.mxu0
    %v1884 = vadd.f32 %v1527, %v1883
    %v1885 = vpop.f32.mrf.mxu0
    %v1886 = vand.u32 %v187, 4294901760
    %v1887 = vsub.f32 %v187, %v1886
    %1888 = vmatprep.mubr.f32.mxu0 %v1887
    %v1889 = vand.u32 %v186, 4294901760
    %v1890 = vsub.f32 %v186, %v1889
    %1891 = vmatmul.mubr.f32.gmra.mxu0 %v1890
    %v1892 = vpop.f32.mrf.mxu0
    %v1893 = vadd.f32 %v1534, %v1892
    %v1894 = vpop.f32.mrf.mxu0
    %v1895 = vand.u32 %v189, 4294901760
    %v1896 = vsub.f32 %v189, %v1895
    %1897 = vmatprep.mubr.f32.mxu0 %v1896
    %v1898 = vand.u32 %v188, 4294901760
    %v1899 = vsub.f32 %v188, %v1898
    %1900 = vmatmul.mubr.f32.gmra.mxu0 %v1899
    %v1901 = vpop.f32.mrf.mxu0
    %v1902 = vadd.f32 %v1541, %v1901
    %v1903 = vpop.f32.mrf.mxu0
    %v1904 = vand.u32 %v191, 4294901760
    %v1905 = vsub.f32 %v191, %v1904
    %1906 = vmatprep.mubr.f32.mxu0 %v1905
    %v1907 = vand.u32 %v190, 4294901760
    %v1908 = vsub.f32 %v190, %v1907
    %1909 = vmatmul.mubr.f32.gmra.mxu0 %v1908
    %v1910 = vpop.f32.mrf.mxu0
    %v1911 = vadd.f32 %v1548, %v1910
    %v1912 = vpop.f32.mrf.mxu0
    %v1913 = vand.u32 %v193, 4294901760
    %v1914 = vsub.f32 %v193, %v1913
    %1915 = vmatprep.mubr.f32.mxu0 %v1914
    %v1916 = vand.u32 %v192, 4294901760
    %v1917 = vsub.f32 %v192, %v1916
    %1918 = vmatmul.mubr.f32.gmra.mxu0 %v1917
    %v1919 = vpop.f32.mrf.mxu0
    %v1920 = vadd.f32 %v1555, %v1919
    %v1921 = vpop.f32.mrf.mxu0
    %v1922 = vand.u32 %v195, 4294901760
    %v1923 = vsub.f32 %v195, %v1922
    %1924 = vmatprep.mubr.f32.mxu0 %v1923
    %v1925 = vand.u32 %v194, 4294901760
    %v1926 = vsub.f32 %v194, %v1925
    %1927 = vmatmul.mubr.f32.gmra.mxu0 %v1926
    %v1928 = vpop.f32.mrf.mxu0
    %v1929 = vadd.f32 %v1562, %v1928
    %v1930 = vpop.f32.mrf.mxu0
    %v1931 = vand.u32 %v197, 4294901760
    %v1932 = vsub.f32 %v197, %v1931
    %1933 = vmatprep.mubr.f32.mxu0 %v1932
    %v1934 = vand.u32 %v196, 4294901760
    %v1935 = vsub.f32 %v196, %v1934
    %1936 = vmatmul.mubr.f32.gmra.mxu0 %v1935
    %v1937 = vpop.f32.mrf.mxu0
    %v1938 = vadd.f32 %v1569, %v1937
    %v1939 = vpop.f32.mrf.mxu0
    %v1940 = vand.u32 %v199, 4294901760
    %v1941 = vsub.f32 %v199, %v1940
    %1942 = vmatprep.mubr.f32.mxu0 %v1941
    %v1943 = vand.u32 %v198, 4294901760
    %v1944 = vsub.f32 %v198, %v1943
    %1945 = vmatmul.mubr.f32.gmra.mxu0 %v1944
    %v1946 = vpop.f32.mrf.mxu0
    %v1947 = vadd.f32 %v1576, %v1946
    %v1948 = vpop.f32.mrf.mxu0
    %v1949 = vand.u32 %v201, 4294901760
    %v1950 = vsub.f32 %v201, %v1949
    %1951 = vmatprep.mubr.f32.mxu0 %v1950
    %v1952 = vand.u32 %v200, 4294901760
    %v1953 = vsub.f32 %v200, %v1952
    %1954 = vmatmul.mubr.f32.gmra.mxu0 %v1953
    %v1955 = vpop.f32.mrf.mxu0
    %v1956 = vadd.f32 %v1583, %v1955
    %v1957 = vpop.f32.mrf.mxu0
    %v1958 = vand.u32 %v203, 4294901760
    %v1959 = vsub.f32 %v203, %v1958
    %1960 = vmatprep.mubr.f32.mxu0 %v1959
    %v1961 = vand.u32 %v202, 4294901760
    %v1962 = vsub.f32 %v202, %v1961
    %1963 = vmatmul.mubr.f32.gmra.mxu0 %v1962
    %v1964 = vpop.f32.mrf.mxu0
    %v1965 = vadd.f32 %v1590, %v1964
    %v1966 = vpop.f32.mrf.mxu0
    %v1967 = vand.u32 %v205, 4294901760
    %v1968 = vsub.f32 %v205, %v1967
    %1969 = vmatprep.mubr.f32.mxu0 %v1968
    %v1970 = vand.u32 %v204, 4294901760
    %v1971 = vsub.f32 %v204, %v1970
    %1972 = vmatmul.mubr.f32.gmra.mxu0 %v1971
    %v1973 = vpop.f32.mrf.mxu0
    %v1974 = vadd.f32 %v1597, %v1973
    %v1975 = vpop.f32.mrf.mxu0
    %v1976 = vand.u32 %v207, 4294901760
    %v1977 = vsub.f32 %v207, %v1976
    %1978 = vmatprep.mubr.f32.mxu0 %v1977
    %v1979 = vand.u32 %v206, 4294901760
    %v1980 = vsub.f32 %v206, %v1979
    %1981 = vmatmul.mubr.f32.gmra.mxu0 %v1980
    %v1982 = vpop.f32.mrf.mxu0
    %v1983 = vadd.f32 %v1604, %v1982
    %v1984 = vpop.f32.mrf.mxu0
    %v1985 = vand.u32 %v209, 4294901760
    %v1986 = vsub.f32 %v209, %v1985
    %1987 = vmatprep.mubr.f32.mxu0 %v1986
    %v1988 = vand.u32 %v208, 4294901760
    %v1989 = vsub.f32 %v208, %v1988
    %1990 = vmatmul.mubr.f32.gmra.mxu0 %v1989
    %v1991 = vpop.f32.mrf.mxu0
    %v1992 = vadd.f32 %v1611, %v1991
    %v1993 = vpop.f32.mrf.mxu0
    %v1994 = vand.u32 %v211, 4294901760
    %v1995 = vsub.f32 %v211, %v1994
    %1996 = vmatprep.mubr.f32.mxu0 %v1995
    %v1997 = vand.u32 %v210, 4294901760
    %v1998 = vsub.f32 %v210, %v1997
    %1999 = vmatmul.mubr.f32.gmra.mxu0 %v1998
    %v2000 = vpop.f32.mrf.mxu0
    %v2001 = vadd.f32 %v1618, %v2000
    %v2002 = vpop.f32.mrf.mxu0
    %v2003 = vand.u32 %v213, 4294901760
    %v2004 = vsub.f32 %v213, %v2003
    %2005 = vmatprep.mubr.f32.mxu0 %v2004
    %v2006 = vand.u32 %v212, 4294901760
    %v2007 = vsub.f32 %v212, %v2006
    %2008 = vmatmul.mubr.f32.gmra.mxu0 %v2007
    %v2009 = vpop.f32.mrf.mxu0
    %v2010 = vadd.f32 %v1625, %v2009
    %v2011 = vpop.f32.mrf.mxu0
    %v2012 = vand.u32 %v215, 4294901760
    %v2013 = vsub.f32 %v215, %v2012
    %2014 = vmatprep.mubr.f32.mxu0 %v2013
    %v2015 = vand.u32 %v214, 4294901760
    %v2016 = vsub.f32 %v214, %v2015
    %2017 = vmatmul.mubr.f32.gmra.mxu0 %v2016
    %v2018 = vpop.f32.mrf.mxu0
    %v2019 = vadd.f32 %v1632, %v2018
    %v2020 = vpop.f32.mrf.mxu0
    %v2021 = vand.u32 %v217, 4294901760
    %v2022 = vsub.f32 %v217, %v2021
    %2023 = vmatprep.mubr.f32.mxu0 %v2022
    %v2024 = vand.u32 %v216, 4294901760
    %v2025 = vsub.f32 %v216, %v2024
    %2026 = vmatmul.mubr.f32.gmra.mxu0 %v2025
    %v2027 = vpop.f32.mrf.mxu0
    %v2028 = vadd.f32 %v1639, %v2027
    %v2029 = vpop.f32.mrf.mxu0
    %v2030 = vand.u32 %v219, 4294901760
    %v2031 = vsub.f32 %v219, %v2030
    %2032 = vmatprep.mubr.f32.mxu0 %v2031
    %v2033 = vand.u32 %v218, 4294901760
    %v2034 = vsub.f32 %v218, %v2033
    %2035 = vmatmul.mubr.f32.gmra.mxu0 %v2034
    %v2036 = vpop.f32.mrf.mxu0
    %v2037 = vadd.f32 %v1646, %v2036
    %v2038 = vpop.f32.mrf.mxu0
    %v2039 = vand.u32 %v221, 4294901760
    %v2040 = vsub.f32 %v221, %v2039
    %2041 = vmatprep.mubr.f32.mxu0 %v2040
    %v2042 = vand.u32 %v220, 4294901760
    %v2043 = vsub.f32 %v220, %v2042
    %2044 = vmatmul.mubr.f32.gmra.mxu0 %v2043
    %v2045 = vpop.f32.mrf.mxu0
    %v2046 = vadd.f32 %v1653, %v2045
    %v2047 = vpop.f32.mrf.mxu0
    %v2048 = vand.u32 %v223, 4294901760
    %v2049 = vsub.f32 %v223, %v2048
    %2050 = vmatprep.mubr.f32.mxu0 %v2049
    %v2051 = vand.u32 %v222, 4294901760
    %v2052 = vsub.f32 %v222, %v2051
    %2053 = vmatmul.mubr.f32.gmra.mxu0 %v2052
    %v2054 = vpop.f32.mrf.mxu0
    %v2055 = vadd.f32 %v1660, %v2054
    %v2056 = vpop.f32.mrf.mxu0
    %v2057 = vand.u32 %v225, 4294901760
    %v2058 = vsub.f32 %v225, %v2057
    %2059 = vmatprep.mubr.f32.mxu0 %v2058
    %v2060 = vand.u32 %v224, 4294901760
    %v2061 = vsub.f32 %v224, %v2060
    %2062 = vmatmul.mubr.f32.gmra.mxu0 %v2061
    %v2063 = vpop.f32.mrf.mxu0
    %v2064 = vadd.f32 %v1667, %v2063
    %v2065 = vpop.f32.mrf.mxu0
    %v2066 = vand.u32 %v227, 4294901760
    %v2067 = vsub.f32 %v227, %v2066
    %2068 = vmatprep.mubr.f32.mxu0 %v2067
    %v2069 = vand.u32 %v226, 4294901760
    %v2070 = vsub.f32 %v226, %v2069
    %2071 = vmatmul.mubr.f32.gmra.mxu0 %v2070
    %v2072 = vpop.f32.mrf.mxu0
    %v2073 = vadd.f32 %v1674, %v2072
    %v2074 = vpop.f32.mrf.mxu0
    %v2075 = vand.u32 %v229, 4294901760
    %v2076 = vsub.f32 %v229, %v2075
    %2077 = vmatprep.mubr.f32.mxu0 %v2076
    %v2078 = vand.u32 %v228, 4294901760
    %v2079 = vsub.f32 %v228, %v2078
    %2080 = vmatmul.mubr.f32.gmra.mxu0 %v2079
    %v2081 = vpop.f32.mrf.mxu0
    %v2082 = vadd.f32 %v1681, %v2081
    %v2083 = vpop.f32.mrf.mxu0
    %v2084 = vand.u32 %v231, 4294901760
    %v2085 = vsub.f32 %v231, %v2084
    %2086 = vmatprep.mubr.f32.mxu0 %v2085
    %v2087 = vand.u32 %v230, 4294901760
    %v2088 = vsub.f32 %v230, %v2087
    %2089 = vmatmul.mubr.f32.gmra.mxu0 %v2088
    %v2090 = vpop.f32.mrf.mxu0
    %v2091 = vadd.f32 %v1688, %v2090
    %v2092 = vpop.f32.mrf.mxu0
    %v2093 = vand.u32 %v233, 4294901760
    %v2094 = vsub.f32 %v233, %v2093
    %2095 = vmatprep.mubr.f32.mxu0 %v2094
    %v2096 = vand.u32 %v232, 4294901760
    %v2097 = vsub.f32 %v232, %v2096
    %2098 = vmatmul.mubr.f32.gmra.mxu0 %v2097
    %v2099 = vpop.f32.mrf.mxu0
    %v2100 = vadd.f32 %v1695, %v2099
    %v2101 = vpop.f32.mrf.mxu0
    %v2102 = vand.u32 %v235, 4294901760
    %v2103 = vsub.f32 %v235, %v2102
    %2104 = vmatprep.mubr.f32.mxu0 %v2103
    %v2105 = vand.u32 %v234, 4294901760
    %v2106 = vsub.f32 %v234, %v2105
    %2107 = vmatmul.mubr.f32.gmra.mxu0 %v2106
    %v2108 = vpop.f32.mrf.mxu0
    %v2109 = vadd.f32 %v1702, %v2108
    %v2110 = vpop.f32.mrf.mxu0
    %v2111 = vand.u32 %v237, 4294901760
    %v2112 = vsub.f32 %v237, %v2111
    %2113 = vmatprep.mubr.f32.mxu0 %v2112
    %v2114 = vand.u32 %v236, 4294901760
    %v2115 = vsub.f32 %v236, %v2114
    %2116 = vmatmul.mubr.f32.gmra.mxu0 %v2115
    %v2117 = vpop.f32.mrf.mxu0
    %v2118 = vadd.f32 %v1709, %v2117
    %v2119 = vpop.f32.mrf.mxu0
    %v2120 = vand.u32 %v239, 4294901760
    %v2121 = vsub.f32 %v239, %v2120
    %2122 = vmatprep.mubr.f32.mxu0 %v2121
    %v2123 = vand.u32 %v238, 4294901760
    %v2124 = vsub.f32 %v238, %v2123
    %2125 = vmatmul.mubr.f32.gmra.mxu0 %v2124
    %v2126 = vpop.f32.mrf.mxu0
    %v2127 = vadd.f32 %v1716, %v2126
    %v2128 = vpop.f32.mrf.mxu0
    %v2129 = vand.u32 %v241, 4294901760
    %v2130 = vsub.f32 %v241, %v2129
    %2131 = vmatprep.mubr.f32.mxu0 %v2130
    %v2132 = vand.u32 %v240, 4294901760
    %v2133 = vsub.f32 %v240, %v2132
    %2134 = vmatmul.mubr.f32.gmra.mxu0 %v2133
    %v2135 = vpop.f32.mrf.mxu0
    %v2136 = vadd.f32 %v1723, %v2135
    %v2137 = vpop.f32.mrf.mxu0
    %v2138 = vand.u32 %v243, 4294901760
    %v2139 = vsub.f32 %v243, %v2138
    %2140 = vmatprep.mubr.f32.mxu0 %v2139
    %v2141 = vand.u32 %v242, 4294901760
    %v2142 = vsub.f32 %v242, %v2141
    %2143 = vmatmul.mubr.f32.gmra.mxu0 %v2142
    %v2144 = vpop.f32.mrf.mxu0
    %v2145 = vadd.f32 %v1730, %v2144
    %v2146 = vpop.f32.mrf.mxu0
    %v2147 = vand.u32 %v245, 4294901760
    %v2148 = vsub.f32 %v245, %v2147
    %2149 = vmatprep.mubr.f32.mxu0 %v2148
    %v2150 = vand.u32 %v244, 4294901760
    %v2151 = vsub.f32 %v244, %v2150
    %2152 = vmatmul.mubr.f32.gmra.mxu0 %v2151
    %v2153 = vpop.f32.mrf.mxu0
    %v2154 = vadd.f32 %v1737, %v2153
    %v2155 = vpop.f32.mrf.mxu0
    %2156 = vdwg.mxu0
    %2157 = vmatprep.subr.mxu0 0.0
    %v2158 = vand.u32 %v580, 4294901760
    %2159 = vmatpush1.msra.mxu0 %v2158
    %2160 = vmatprep.subr.mxu0 0.0
    %v2161 = vand.u32 %v577, 4294901760
    %2162 = vmatpush1.msra.mxu0 %v2161
    %2163 = vmatprep.subr.mxu0 0.0
    %v2164 = vand.u32 %v572, 4294901760
    %2165 = vmatpush1.msra.mxu0 %v2164
    %2166 = vmatprep.subr.mxu0 0.0
    %v2167 = vand.u32 %v569, 4294901760
    %2168 = vmatpush1.msra.mxu0 %v2167
    %2169 = vmatprep.subr.mxu0 0.0
    %v2170 = vand.u32 %v564, 4294901760
    %2171 = vmatpush1.msra.mxu0 %v2170
    %2172 = vmatprep.subr.mxu0 0.0
    %v2173 = vand.u32 %v561, 4294901760
    %2174 = vmatpush1.msra.mxu0 %v2173
    %2175 = vmatprep.subr.mxu0 0.0
    %v2176 = vand.u32 %v556, 4294901760
    %2177 = vmatpush1.msra.mxu0 %v2176
    %2178 = vmatprep.subr.mxu0 0.0
    %v2179 = vand.u32 %v553, 4294901760
    %2180 = vmatpush1.msra.mxu0 %v2179
    %2181 = vmatprep.subr.mxu0 0.0
    %v2182 = vand.u32 %v548, 4294901760
    %2183 = vmatpush1.msra.mxu0 %v2182
    %2184 = vmatprep.subr.mxu0 0.0
    %v2185 = vand.u32 %v545, 4294901760
    %2186 = vmatpush1.msra.mxu0 %v2185
    %2187 = vmatprep.subr.mxu0 0.0
    %v2188 = vand.u32 %v540, 4294901760
    %2189 = vmatpush1.msra.mxu0 %v2188
    %2190 = vmatprep.subr.mxu0 0.0
    %v2191 = vand.u32 %v537, 4294901760
    %2192 = vmatpush1.msra.mxu0 %v2191
    %2193 = vmatprep.subr.mxu0 0.0
    %v2194 = vand.u32 %v532, 4294901760
    %2195 = vmatpush1.msra.mxu0 %v2194
    %2196 = vmatprep.subr.mxu0 0.0
    %v2197 = vand.u32 %v529, 4294901760
    %2198 = vmatpush1.msra.mxu0 %v2197
    %2199 = vmatprep.subr.mxu0 0.0
    %v2200 = vand.u32 %v524, 4294901760
    %2201 = vmatpush1.msra.mxu0 %v2200
    %2202 = vmatprep.subr.mxu0 0.0
    %v2203 = vand.u32 %v521, 4294901760
    %2204 = vmatpush1.msra.mxu0 %v2203
    %2205 = vmatprep.subr.mxu0 0.0
    %v2206 = vand.u32 %v644, 4294901760
    %2207 = vmatpush2.msra.mxu0 %v2206
    %2208 = vmatprep.subr.mxu0 0.0
    %v2209 = vand.u32 %v641, 4294901760
    %2210 = vmatpush2.msra.mxu0 %v2209
    %2211 = vmatprep.subr.mxu0 0.0
    %v2212 = vand.u32 %v636, 4294901760
    %2213 = vmatpush2.msra.mxu0 %v2212
    %2214 = vmatprep.subr.mxu0 0.0
    %v2215 = vand.u32 %v633, 4294901760
    %2216 = vmatpush2.msra.mxu0 %v2215
    %2217 = vmatprep.subr.mxu0 0.0
    %v2218 = vand.u32 %v628, 4294901760
    %2219 = vmatpush2.msra.mxu0 %v2218
    %2220 = vmatprep.subr.mxu0 0.0
    %v2221 = vand.u32 %v625, 4294901760
    %2222 = vmatpush2.msra.mxu0 %v2221
    %2223 = vmatprep.subr.mxu0 0.0
    %v2224 = vand.u32 %v620, 4294901760
    %2225 = vmatpush2.msra.mxu0 %v2224
    %2226 = vmatprep.subr.mxu0 0.0
    %v2227 = vand.u32 %v617, 4294901760
    %2228 = vmatpush2.msra.mxu0 %v2227
    %2229 = vmatprep.subr.mxu0 0.0
    %v2230 = vand.u32 %v612, 4294901760
    %2231 = vmatpush2.msra.mxu0 %v2230
    %2232 = vmatprep.subr.mxu0 0.0
    %v2233 = vand.u32 %v609, 4294901760
    %2234 = vmatpush2.msra.mxu0 %v2233
    %2235 = vmatprep.subr.mxu0 0.0
    %v2236 = vand.u32 %v604, 4294901760
    %2237 = vmatpush2.msra.mxu0 %v2236
    %2238 = vmatprep.subr.mxu0 0.0
    %v2239 = vand.u32 %v601, 4294901760
    %2240 = vmatpush2.msra.mxu0 %v2239
    %2241 = vmatprep.subr.mxu0 0.0
    %v2242 = vand.u32 %v596, 4294901760
    %2243 = vmatpush2.msra.mxu0 %v2242
    %2244 = vmatprep.subr.mxu0 0.0
    %v2245 = vand.u32 %v593, 4294901760
    %2246 = vmatpush2.msra.mxu0 %v2245
    %2247 = vmatprep.subr.mxu0 0.0
    %v2248 = vand.u32 %v588, 4294901760
    %2249 = vmatpush2.msra.mxu0 %v2248
    %2250 = vmatprep.subr.mxu0 0.0
    %v2251 = vand.u32 %v585, 4294901760
    %2252 = vmatpush2.msra.mxu0 %v2251
    %v2253 = vand.u32 %v183, 4294901760
    %v2254 = vsub.f32 %v183, %v2253
    %v2255 = vand.u32 %v2254, 4294901760
    %2256 = vmatprep.mubr.f32.mxu0 %v2255
    %v2257 = vand.u32 %v182, 4294901760
    %v2258 = vsub.f32 %v182, %v2257
    %v2259 = vand.u32 %v2258, 4294901760
    %2260 = vmatmul.mubr.f32.gmra.mxu0 %v2259
    %v2261 = vpop.f32.mrf.mxu0
    %v2262 = vadd.f32 %v1875, %v2261
    %v2263 = vpop.f32.mrf.mxu0
    %v2264 = vand.u32 %v185, 4294901760
    %v2265 = vsub.f32 %v185, %v2264
    %v2266 = vand.u32 %v2265, 4294901760
    %2267 = vmatprep.mubr.f32.mxu0 %v2266
    %v2268 = vand.u32 %v184, 4294901760
    %v2269 = vsub.f32 %v184, %v2268
    %v2270 = vand.u32 %v2269, 4294901760
    %2271 = vmatmul.mubr.f32.gmra.mxu0 %v2270
    %v2272 = vpop.f32.mrf.mxu0
    %v2273 = vadd.f32 %v1884, %v2272
    %v2274 = vpop.f32.mrf.mxu0
    %v2275 = vand.u32 %v187, 4294901760
    %v2276 = vsub.f32 %v187, %v2275
    %v2277 = vand.u32 %v2276, 4294901760
    %2278 = vmatprep.mubr.f32.mxu0 %v2277
    %v2279 = vand.u32 %v186, 4294901760
    %v2280 = vsub.f32 %v186, %v2279
    %v2281 = vand.u32 %v2280, 4294901760
    %2282 = vmatmul.mubr.f32.gmra.mxu0 %v2281
    %v2283 = vpop.f32.mrf.mxu0
    %v2284 = vadd.f32 %v1893, %v2283
    %v2285 = vpop.f32.mrf.mxu0
    %v2286 = vand.u32 %v189, 4294901760
    %v2287 = vsub.f32 %v189, %v2286
    %v2288 = vand.u32 %v2287, 4294901760
    %2289 = vmatprep.mubr.f32.mxu0 %v2288
    %v2290 = vand.u32 %v188, 4294901760
    %v2291 = vsub.f32 %v188, %v2290
    %v2292 = vand.u32 %v2291, 4294901760
    %2293 = vmatmul.mubr.f32.gmra.mxu0 %v2292
    %v2294 = vpop.f32.mrf.mxu0
    %v2295 = vadd.f32 %v1902, %v2294
    %v2296 = vpop.f32.mrf.mxu0
    %v2297 = vand.u32 %v191, 4294901760
    %v2298 = vsub.f32 %v191, %v2297
    %v2299 = vand.u32 %v2298, 4294901760
    %2300 = vmatprep.mubr.f32.mxu0 %v2299
    %v2301 = vand.u32 %v190, 4294901760
    %v2302 = vsub.f32 %v190, %v2301
    %v2303 = vand.u32 %v2302, 4294901760
    %2304 = vmatmul.mubr.f32.gmra.mxu0 %v2303
    %v2305 = vpop.f32.mrf.mxu0
    %v2306 = vadd.f32 %v1911, %v2305
    %v2307 = vpop.f32.mrf.mxu0
    %v2308 = vand.u32 %v193, 4294901760
    %v2309 = vsub.f32 %v193, %v2308
    %v2310 = vand.u32 %v2309, 4294901760
    %2311 = vmatprep.mubr.f32.mxu0 %v2310
    %v2312 = vand.u32 %v192, 4294901760
    %v2313 = vsub.f32 %v192, %v2312
    %v2314 = vand.u32 %v2313, 4294901760
    %2315 = vmatmul.mubr.f32.gmra.mxu0 %v2314
    %v2316 = vpop.f32.mrf.mxu0
    %v2317 = vadd.f32 %v1920, %v2316
    %v2318 = vpop.f32.mrf.mxu0
    %v2319 = vand.u32 %v195, 4294901760
    %v2320 = vsub.f32 %v195, %v2319
    %v2321 = vand.u32 %v2320, 4294901760
    %2322 = vmatprep.mubr.f32.mxu0 %v2321
    %v2323 = vand.u32 %v194, 4294901760
    %v2324 = vsub.f32 %v194, %v2323
    %v2325 = vand.u32 %v2324, 4294901760
    %2326 = vmatmul.mubr.f32.gmra.mxu0 %v2325
    %v2327 = vpop.f32.mrf.mxu0
    %v2328 = vadd.f32 %v1929, %v2327
    %v2329 = vpop.f32.mrf.mxu0
    %v2330 = vand.u32 %v197, 4294901760
    %v2331 = vsub.f32 %v197, %v2330
    %v2332 = vand.u32 %v2331, 4294901760
    %2333 = vmatprep.mubr.f32.mxu0 %v2332
    %v2334 = vand.u32 %v196, 4294901760
    %v2335 = vsub.f32 %v196, %v2334
    %v2336 = vand.u32 %v2335, 4294901760
    %2337 = vmatmul.mubr.f32.gmra.mxu0 %v2336
    %v2338 = vpop.f32.mrf.mxu0
    %v2339 = vadd.f32 %v1938, %v2338
    %v2340 = vpop.f32.mrf.mxu0
    %v2341 = vand.u32 %v199, 4294901760
    %v2342 = vsub.f32 %v199, %v2341
    %v2343 = vand.u32 %v2342, 4294901760
    %2344 = vmatprep.mubr.f32.mxu0 %v2343
    %v2345 = vand.u32 %v198, 4294901760
    %v2346 = vsub.f32 %v198, %v2345
    %v2347 = vand.u32 %v2346, 4294901760
    %2348 = vmatmul.mubr.f32.gmra.mxu0 %v2347
    %v2349 = vpop.f32.mrf.mxu0
    %v2350 = vadd.f32 %v1947, %v2349
    %v2351 = vpop.f32.mrf.mxu0
    %v2352 = vand.u32 %v201, 4294901760
    %v2353 = vsub.f32 %v201, %v2352
    %v2354 = vand.u32 %v2353, 4294901760
    %2355 = vmatprep.mubr.f32.mxu0 %v2354
    %v2356 = vand.u32 %v200, 4294901760
    %v2357 = vsub.f32 %v200, %v2356
    %v2358 = vand.u32 %v2357, 4294901760
    %2359 = vmatmul.mubr.f32.gmra.mxu0 %v2358
    %v2360 = vpop.f32.mrf.mxu0
    %v2361 = vadd.f32 %v1956, %v2360
    %v2362 = vpop.f32.mrf.mxu0
    %v2363 = vand.u32 %v203, 4294901760
    %v2364 = vsub.f32 %v203, %v2363
    %v2365 = vand.u32 %v2364, 4294901760
    %2366 = vmatprep.mubr.f32.mxu0 %v2365
    %v2367 = vand.u32 %v202, 4294901760
    %v2368 = vsub.f32 %v202, %v2367
    %v2369 = vand.u32 %v2368, 4294901760
    %2370 = vmatmul.mubr.f32.gmra.mxu0 %v2369
    %v2371 = vpop.f32.mrf.mxu0
    %v2372 = vadd.f32 %v1965, %v2371
    %v2373 = vpop.f32.mrf.mxu0
    %v2374 = vand.u32 %v205, 4294901760
    %v2375 = vsub.f32 %v205, %v2374
    %v2376 = vand.u32 %v2375, 4294901760
    %2377 = vmatprep.mubr.f32.mxu0 %v2376
    %v2378 = vand.u32 %v204, 4294901760
    %v2379 = vsub.f32 %v204, %v2378
    %v2380 = vand.u32 %v2379, 4294901760
    %2381 = vmatmul.mubr.f32.gmra.mxu0 %v2380
    %v2382 = vpop.f32.mrf.mxu0
    %v2383 = vadd.f32 %v1974, %v2382
    %v2384 = vpop.f32.mrf.mxu0
    %v2385 = vand.u32 %v207, 4294901760
    %v2386 = vsub.f32 %v207, %v2385
    %v2387 = vand.u32 %v2386, 4294901760
    %2388 = vmatprep.mubr.f32.mxu0 %v2387
    %v2389 = vand.u32 %v206, 4294901760
    %v2390 = vsub.f32 %v206, %v2389
    %v2391 = vand.u32 %v2390, 4294901760
    %2392 = vmatmul.mubr.f32.gmra.mxu0 %v2391
    %v2393 = vpop.f32.mrf.mxu0
    %v2394 = vadd.f32 %v1983, %v2393
    %v2395 = vpop.f32.mrf.mxu0
    %v2396 = vand.u32 %v209, 4294901760
    %v2397 = vsub.f32 %v209, %v2396
    %v2398 = vand.u32 %v2397, 4294901760
    %2399 = vmatprep.mubr.f32.mxu0 %v2398
    %v2400 = vand.u32 %v208, 4294901760
    %v2401 = vsub.f32 %v208, %v2400
    %v2402 = vand.u32 %v2401, 4294901760
    %2403 = vmatmul.mubr.f32.gmra.mxu0 %v2402
    %v2404 = vpop.f32.mrf.mxu0
    %v2405 = vadd.f32 %v1992, %v2404
    %v2406 = vpop.f32.mrf.mxu0
    %v2407 = vand.u32 %v211, 4294901760
    %v2408 = vsub.f32 %v211, %v2407
    %v2409 = vand.u32 %v2408, 4294901760
    %2410 = vmatprep.mubr.f32.mxu0 %v2409
    %v2411 = vand.u32 %v210, 4294901760
    %v2412 = vsub.f32 %v210, %v2411
    %v2413 = vand.u32 %v2412, 4294901760
    %2414 = vmatmul.mubr.f32.gmra.mxu0 %v2413
    %v2415 = vpop.f32.mrf.mxu0
    %v2416 = vadd.f32 %v2001, %v2415
    %v2417 = vpop.f32.mrf.mxu0
    %v2418 = vand.u32 %v213, 4294901760
    %v2419 = vsub.f32 %v213, %v2418
    %v2420 = vand.u32 %v2419, 4294901760
    %2421 = vmatprep.mubr.f32.mxu0 %v2420
    %v2422 = vand.u32 %v212, 4294901760
    %v2423 = vsub.f32 %v212, %v2422
    %v2424 = vand.u32 %v2423, 4294901760
    %2425 = vmatmul.mubr.f32.gmra.mxu0 %v2424
    %v2426 = vpop.f32.mrf.mxu0
    %v2427 = vadd.f32 %v2010, %v2426
    %v2428 = vpop.f32.mrf.mxu0
    %v2429 = vand.u32 %v215, 4294901760
    %v2430 = vsub.f32 %v215, %v2429
    %v2431 = vand.u32 %v2430, 4294901760
    %2432 = vmatprep.mubr.f32.mxu0 %v2431
    %v2433 = vand.u32 %v214, 4294901760
    %v2434 = vsub.f32 %v214, %v2433
    %v2435 = vand.u32 %v2434, 4294901760
    %2436 = vmatmul.mubr.f32.gmra.mxu0 %v2435
    %v2437 = vpop.f32.mrf.mxu0
    %v2438 = vadd.f32 %v2019, %v2437
    %v2439 = vpop.f32.mrf.mxu0
    %v2440 = vand.u32 %v217, 4294901760
    %v2441 = vsub.f32 %v217, %v2440
    %v2442 = vand.u32 %v2441, 4294901760
    %2443 = vmatprep.mubr.f32.mxu0 %v2442
    %v2444 = vand.u32 %v216, 4294901760
    %v2445 = vsub.f32 %v216, %v2444
    %v2446 = vand.u32 %v2445, 4294901760
    %2447 = vmatmul.mubr.f32.gmra.mxu0 %v2446
    %v2448 = vpop.f32.mrf.mxu0
    %v2449 = vadd.f32 %v2028, %v2448
    %v2450 = vpop.f32.mrf.mxu0
    %v2451 = vand.u32 %v219, 4294901760
    %v2452 = vsub.f32 %v219, %v2451
    %v2453 = vand.u32 %v2452, 4294901760
    %2454 = vmatprep.mubr.f32.mxu0 %v2453
    %v2455 = vand.u32 %v218, 4294901760
    %v2456 = vsub.f32 %v218, %v2455
    %v2457 = vand.u32 %v2456, 4294901760
    %2458 = vmatmul.mubr.f32.gmra.mxu0 %v2457
    %v2459 = vpop.f32.mrf.mxu0
    %v2460 = vadd.f32 %v2037, %v2459
    %v2461 = vpop.f32.mrf.mxu0
    %v2462 = vand.u32 %v221, 4294901760
    %v2463 = vsub.f32 %v221, %v2462
    %v2464 = vand.u32 %v2463, 4294901760
    %2465 = vmatprep.mubr.f32.mxu0 %v2464
    %v2466 = vand.u32 %v220, 4294901760
    %v2467 = vsub.f32 %v220, %v2466
    %v2468 = vand.u32 %v2467, 4294901760
    %2469 = vmatmul.mubr.f32.gmra.mxu0 %v2468
    %v2470 = vpop.f32.mrf.mxu0
    %v2471 = vadd.f32 %v2046, %v2470
    %v2472 = vpop.f32.mrf.mxu0
    %v2473 = vand.u32 %v223, 4294901760
    %v2474 = vsub.f32 %v223, %v2473
    %v2475 = vand.u32 %v2474, 4294901760
    %2476 = vmatprep.mubr.f32.mxu0 %v2475
    %v2477 = vand.u32 %v222, 4294901760
    %v2478 = vsub.f32 %v222, %v2477
    %v2479 = vand.u32 %v2478, 4294901760
    %2480 = vmatmul.mubr.f32.gmra.mxu0 %v2479
    %v2481 = vpop.f32.mrf.mxu0
    %v2482 = vadd.f32 %v2055, %v2481
    %v2483 = vpop.f32.mrf.mxu0
    %v2484 = vand.u32 %v225, 4294901760
    %v2485 = vsub.f32 %v225, %v2484
    %v2486 = vand.u32 %v2485, 4294901760
    %2487 = vmatprep.mubr.f32.mxu0 %v2486
    %v2488 = vand.u32 %v224, 4294901760
    %v2489 = vsub.f32 %v224, %v2488
    %v2490 = vand.u32 %v2489, 4294901760
    %2491 = vmatmul.mubr.f32.gmra.mxu0 %v2490
    %v2492 = vpop.f32.mrf.mxu0
    %v2493 = vadd.f32 %v2064, %v2492
    %v2494 = vpop.f32.mrf.mxu0
    %v2495 = vand.u32 %v227, 4294901760
    %v2496 = vsub.f32 %v227, %v2495
    %v2497 = vand.u32 %v2496, 4294901760
    %2498 = vmatprep.mubr.f32.mxu0 %v2497
    %v2499 = vand.u32 %v226, 4294901760
    %v2500 = vsub.f32 %v226, %v2499
    %v2501 = vand.u32 %v2500, 4294901760
    %2502 = vmatmul.mubr.f32.gmra.mxu0 %v2501
    %v2503 = vpop.f32.mrf.mxu0
    %v2504 = vadd.f32 %v2073, %v2503
    %v2505 = vpop.f32.mrf.mxu0
    %v2506 = vand.u32 %v229, 4294901760
    %v2507 = vsub.f32 %v229, %v2506
    %v2508 = vand.u32 %v2507, 4294901760
    %2509 = vmatprep.mubr.f32.mxu0 %v2508
    %v2510 = vand.u32 %v228, 4294901760
    %v2511 = vsub.f32 %v228, %v2510
    %v2512 = vand.u32 %v2511, 4294901760
    %2513 = vmatmul.mubr.f32.gmra.mxu0 %v2512
    %v2514 = vpop.f32.mrf.mxu0
    %v2515 = vadd.f32 %v2082, %v2514
    %v2516 = vpop.f32.mrf.mxu0
    %v2517 = vand.u32 %v231, 4294901760
    %v2518 = vsub.f32 %v231, %v2517
    %v2519 = vand.u32 %v2518, 4294901760
    %2520 = vmatprep.mubr.f32.mxu0 %v2519
    %v2521 = vand.u32 %v230, 4294901760
    %v2522 = vsub.f32 %v230, %v2521
    %v2523 = vand.u32 %v2522, 4294901760
    %2524 = vmatmul.mubr.f32.gmra.mxu0 %v2523
    %v2525 = vpop.f32.mrf.mxu0
    %v2526 = vadd.f32 %v2091, %v2525
    %v2527 = vpop.f32.mrf.mxu0
    %v2528 = vand.u32 %v233, 4294901760
    %v2529 = vsub.f32 %v233, %v2528
    %v2530 = vand.u32 %v2529, 4294901760
    %2531 = vmatprep.mubr.f32.mxu0 %v2530
    %v2532 = vand.u32 %v232, 4294901760
    %v2533 = vsub.f32 %v232, %v2532
    %v2534 = vand.u32 %v2533, 4294901760
    %2535 = vmatmul.mubr.f32.gmra.mxu0 %v2534
    %v2536 = vpop.f32.mrf.mxu0
    %v2537 = vadd.f32 %v2100, %v2536
    %v2538 = vpop.f32.mrf.mxu0
    %v2539 = vand.u32 %v235, 4294901760
    %v2540 = vsub.f32 %v235, %v2539
    %v2541 = vand.u32 %v2540, 4294901760
    %2542 = vmatprep.mubr.f32.mxu0 %v2541
    %v2543 = vand.u32 %v234, 4294901760
    %v2544 = vsub.f32 %v234, %v2543
    %v2545 = vand.u32 %v2544, 4294901760
    %2546 = vmatmul.mubr.f32.gmra.mxu0 %v2545
    %v2547 = vpop.f32.mrf.mxu0
    %v2548 = vadd.f32 %v2109, %v2547
    %v2549 = vpop.f32.mrf.mxu0
    %v2550 = vand.u32 %v237, 4294901760
    %v2551 = vsub.f32 %v237, %v2550
    %v2552 = vand.u32 %v2551, 4294901760
    %2553 = vmatprep.mubr.f32.mxu0 %v2552
    %v2554 = vand.u32 %v236, 4294901760
    %v2555 = vsub.f32 %v236, %v2554
    %v2556 = vand.u32 %v2555, 4294901760
    %2557 = vmatmul.mubr.f32.gmra.mxu0 %v2556
    %v2558 = vpop.f32.mrf.mxu0
    %v2559 = vadd.f32 %v2118, %v2558
    %v2560 = vpop.f32.mrf.mxu0
    %v2561 = vand.u32 %v239, 4294901760
    %v2562 = vsub.f32 %v239, %v2561
    %v2563 = vand.u32 %v2562, 4294901760
    %2564 = vmatprep.mubr.f32.mxu0 %v2563
    %v2565 = vand.u32 %v238, 4294901760
    %v2566 = vsub.f32 %v238, %v2565
    %v2567 = vand.u32 %v2566, 4294901760
    %2568 = vmatmul.mubr.f32.gmra.mxu0 %v2567
    %v2569 = vpop.f32.mrf.mxu0
    %v2570 = vadd.f32 %v2127, %v2569
    %v2571 = vpop.f32.mrf.mxu0
    %v2572 = vand.u32 %v241, 4294901760
    %v2573 = vsub.f32 %v241, %v2572
    %v2574 = vand.u32 %v2573, 4294901760
    %2575 = vmatprep.mubr.f32.mxu0 %v2574
    %v2576 = vand.u32 %v240, 4294901760
    %v2577 = vsub.f32 %v240, %v2576
    %v2578 = vand.u32 %v2577, 4294901760
    %2579 = vmatmul.mubr.f32.gmra.mxu0 %v2578
    %v2580 = vpop.f32.mrf.mxu0
    %v2581 = vadd.f32 %v2136, %v2580
    %v2582 = vpop.f32.mrf.mxu0
    %v2583 = vand.u32 %v243, 4294901760
    %v2584 = vsub.f32 %v243, %v2583
    %v2585 = vand.u32 %v2584, 4294901760
    %2586 = vmatprep.mubr.f32.mxu0 %v2585
    %v2587 = vand.u32 %v242, 4294901760
    %v2588 = vsub.f32 %v242, %v2587
    %v2589 = vand.u32 %v2588, 4294901760
    %2590 = vmatmul.mubr.f32.gmra.mxu0 %v2589
    %v2591 = vpop.f32.mrf.mxu0
    %v2592 = vadd.f32 %v2145, %v2591
    %v2593 = vpop.f32.mrf.mxu0
    %v2594 = vand.u32 %v245, 4294901760
    %v2595 = vsub.f32 %v245, %v2594
    %v2596 = vand.u32 %v2595, 4294901760
    %2597 = vmatprep.mubr.f32.mxu0 %v2596
    %v2598 = vand.u32 %v244, 4294901760
    %v2599 = vsub.f32 %v244, %v2598
    %v2600 = vand.u32 %v2599, 4294901760
    %2601 = vmatmul.mubr.f32.gmra.mxu0 %v2600
    %v2602 = vpop.f32.mrf.mxu0
    %v2603 = vadd.f32 %v2154, %v2602
    %v2604 = vpop.f32.mrf.mxu0
    %2605 = vdwg.mxu0
    %2606 = vmatprep.subr.mxu0 0.0
    %v2607 = vand.u32 %v580, 4294901760
    %v2608 = vsub.f32 %v580, %v2607
    %v2609 = vand.u32 %v2608, 4294901760
    %2610 = vmatpush1.msra.mxu0 %v2609
    %2611 = vmatprep.subr.mxu0 0.0
    %v2612 = vand.u32 %v577, 4294901760
    %v2613 = vsub.f32 %v577, %v2612
    %v2614 = vand.u32 %v2613, 4294901760
    %2615 = vmatpush1.msra.mxu0 %v2614
    %2616 = vmatprep.subr.mxu0 0.0
    %v2617 = vand.u32 %v572, 4294901760
    %v2618 = vsub.f32 %v572, %v2617
    %v2619 = vand.u32 %v2618, 4294901760
    %2620 = vmatpush1.msra.mxu0 %v2619
    %2621 = vmatprep.subr.mxu0 0.0
    %v2622 = vand.u32 %v569, 4294901760
    %v2623 = vsub.f32 %v569, %v2622
    %v2624 = vand.u32 %v2623, 4294901760
    %2625 = vmatpush1.msra.mxu0 %v2624
    %2626 = vmatprep.subr.mxu0 0.0
    %v2627 = vand.u32 %v564, 4294901760
    %v2628 = vsub.f32 %v564, %v2627
    %v2629 = vand.u32 %v2628, 4294901760
    %2630 = vmatpush1.msra.mxu0 %v2629
    %2631 = vmatprep.subr.mxu0 0.0
    %v2632 = vand.u32 %v561, 4294901760
    %v2633 = vsub.f32 %v561, %v2632
    %v2634 = vand.u32 %v2633, 4294901760
    %2635 = vmatpush1.msra.mxu0 %v2634
    %2636 = vmatprep.subr.mxu0 0.0
    %v2637 = vand.u32 %v556, 4294901760
    %v2638 = vsub.f32 %v556, %v2637
    %v2639 = vand.u32 %v2638, 4294901760
    %2640 = vmatpush1.msra.mxu0 %v2639
    %2641 = vmatprep.subr.mxu0 0.0
    %v2642 = vand.u32 %v553, 4294901760
    %v2643 = vsub.f32 %v553, %v2642
    %v2644 = vand.u32 %v2643, 4294901760
    %2645 = vmatpush1.msra.mxu0 %v2644
    %2646 = vmatprep.subr.mxu0 0.0
    %v2647 = vand.u32 %v548, 4294901760
    %v2648 = vsub.f32 %v548, %v2647
    %v2649 = vand.u32 %v2648, 4294901760
    %2650 = vmatpush1.msra.mxu0 %v2649
    %2651 = vmatprep.subr.mxu0 0.0
    %v2652 = vand.u32 %v545, 4294901760
    %v2653 = vsub.f32 %v545, %v2652
    %v2654 = vand.u32 %v2653, 4294901760
    %2655 = vmatpush1.msra.mxu0 %v2654
    %2656 = vmatprep.subr.mxu0 0.0
    %v2657 = vand.u32 %v540, 4294901760
    %v2658 = vsub.f32 %v540, %v2657
    %v2659 = vand.u32 %v2658, 4294901760
    %2660 = vmatpush1.msra.mxu0 %v2659
    %2661 = vmatprep.subr.mxu0 0.0
    %v2662 = vand.u32 %v537, 4294901760
    %v2663 = vsub.f32 %v537, %v2662
    %v2664 = vand.u32 %v2663, 4294901760
    %2665 = vmatpush1.msra.mxu0 %v2664
    %2666 = vmatprep.subr.mxu0 0.0
    %v2667 = vand.u32 %v532, 4294901760
    %v2668 = vsub.f32 %v532, %v2667
    %v2669 = vand.u32 %v2668, 4294901760
    %2670 = vmatpush1.msra.mxu0 %v2669
    %2671 = vmatprep.subr.mxu0 0.0
    %v2672 = vand.u32 %v529, 4294901760
    %v2673 = vsub.f32 %v529, %v2672
    %v2674 = vand.u32 %v2673, 4294901760
    %2675 = vmatpush1.msra.mxu0 %v2674
    %2676 = vmatprep.subr.mxu0 0.0
    %v2677 = vand.u32 %v524, 4294901760
    %v2678 = vsub.f32 %v524, %v2677
    %v2679 = vand.u32 %v2678, 4294901760
    %2680 = vmatpush1.msra.mxu0 %v2679
    %2681 = vmatprep.subr.mxu0 0.0
    %v2682 = vand.u32 %v521, 4294901760
    %v2683 = vsub.f32 %v521, %v2682
    %v2684 = vand.u32 %v2683, 4294901760
    %2685 = vmatpush1.msra.mxu0 %v2684
    %2686 = vmatprep.subr.mxu0 0.0
    %v2687 = vand.u32 %v644, 4294901760
    %v2688 = vsub.f32 %v644, %v2687
    %v2689 = vand.u32 %v2688, 4294901760
    %2690 = vmatpush2.msra.mxu0 %v2689
    %2691 = vmatprep.subr.mxu0 0.0
    %v2692 = vand.u32 %v641, 4294901760
    %v2693 = vsub.f32 %v641, %v2692
    %v2694 = vand.u32 %v2693, 4294901760
    %2695 = vmatpush2.msra.mxu0 %v2694
    %2696 = vmatprep.subr.mxu0 0.0
    %v2697 = vand.u32 %v636, 4294901760
    %v2698 = vsub.f32 %v636, %v2697
    %v2699 = vand.u32 %v2698, 4294901760
    %2700 = vmatpush2.msra.mxu0 %v2699
    %2701 = vmatprep.subr.mxu0 0.0
    %v2702 = vand.u32 %v633, 4294901760
    %v2703 = vsub.f32 %v633, %v2702
    %v2704 = vand.u32 %v2703, 4294901760
    %2705 = vmatpush2.msra.mxu0 %v2704
    %2706 = vmatprep.subr.mxu0 0.0
    %v2707 = vand.u32 %v628, 4294901760
    %v2708 = vsub.f32 %v628, %v2707
    %v2709 = vand.u32 %v2708, 4294901760
    %2710 = vmatpush2.msra.mxu0 %v2709
    %2711 = vmatprep.subr.mxu0 0.0
    %v2712 = vand.u32 %v625, 4294901760
    %v2713 = vsub.f32 %v625, %v2712
    %v2714 = vand.u32 %v2713, 4294901760
    %2715 = vmatpush2.msra.mxu0 %v2714
    %2716 = vmatprep.subr.mxu0 0.0
    %v2717 = vand.u32 %v620, 4294901760
    %v2718 = vsub.f32 %v620, %v2717
    %v2719 = vand.u32 %v2718, 4294901760
    %2720 = vmatpush2.msra.mxu0 %v2719
    %2721 = vmatprep.subr.mxu0 0.0
    %v2722 = vand.u32 %v617, 4294901760
    %v2723 = vsub.f32 %v617, %v2722
    %v2724 = vand.u32 %v2723, 4294901760
    %2725 = vmatpush2.msra.mxu0 %v2724
    %2726 = vmatprep.subr.mxu0 0.0
    %v2727 = vand.u32 %v612, 4294901760
    %v2728 = vsub.f32 %v612, %v2727
    %v2729 = vand.u32 %v2728, 4294901760
    %2730 = vmatpush2.msra.mxu0 %v2729
    %2731 = vmatprep.subr.mxu0 0.0
    %v2732 = vand.u32 %v609, 4294901760
    %v2733 = vsub.f32 %v609, %v2732
    %v2734 = vand.u32 %v2733, 4294901760
    %2735 = vmatpush2.msra.mxu0 %v2734
    %2736 = vmatprep.subr.mxu0 0.0
    %v2737 = vand.u32 %v604, 4294901760
    %v2738 = vsub.f32 %v604, %v2737
    %v2739 = vand.u32 %v2738, 4294901760
    %2740 = vmatpush2.msra.mxu0 %v2739
    %2741 = vmatprep.subr.mxu0 0.0
    %v2742 = vand.u32 %v601, 4294901760
    %v2743 = vsub.f32 %v601, %v2742
    %v2744 = vand.u32 %v2743, 4294901760
    %2745 = vmatpush2.msra.mxu0 %v2744
    %2746 = vmatprep.subr.mxu0 0.0
    %v2747 = vand.u32 %v596, 4294901760
    %v2748 = vsub.f32 %v596, %v2747
    %v2749 = vand.u32 %v2748, 4294901760
    %2750 = vmatpush2.msra.mxu0 %v2749
    %2751 = vmatprep.subr.mxu0 0.0
    %v2752 = vand.u32 %v593, 4294901760
    %v2753 = vsub.f32 %v593, %v2752
    %v2754 = vand.u32 %v2753, 4294901760
    %2755 = vmatpush2.msra.mxu0 %v2754
    %2756 = vmatprep.subr.mxu0 0.0
    %v2757 = vand.u32 %v588, 4294901760
    %v2758 = vsub.f32 %v588, %v2757
    %v2759 = vand.u32 %v2758, 4294901760
    %2760 = vmatpush2.msra.mxu0 %v2759
    %2761 = vmatprep.subr.mxu0 0.0
    %v2762 = vand.u32 %v585, 4294901760
    %v2763 = vsub.f32 %v585, %v2762
    %v2764 = vand.u32 %v2763, 4294901760
    %2765 = vmatpush2.msra.mxu0 %v2764
    %v2766 = vand.u32 %v183, 4294901760
    %2767 = vmatprep.mubr.f32.mxu0 %v2766
    %v2768 = vand.u32 %v182, 4294901760
    %2769 = vmatmul.mubr.f32.gmra.mxu0 %v2768
    %v2770 = vpop.f32.mrf.mxu0
    %v2771 = vadd.f32 %v2262, %v2770
    %v2772 = vpop.f32.mrf.mxu0
    %v2773 = vand.u32 %v185, 4294901760
    %2774 = vmatprep.mubr.f32.mxu0 %v2773
    %v2775 = vand.u32 %v184, 4294901760
    %2776 = vmatmul.mubr.f32.gmra.mxu0 %v2775
    %v2777 = vpop.f32.mrf.mxu0
    %v2778 = vadd.f32 %v2273, %v2777
    %v2779 = vpop.f32.mrf.mxu0
    %v2780 = vand.u32 %v187, 4294901760
    %2781 = vmatprep.mubr.f32.mxu0 %v2780
    %v2782 = vand.u32 %v186, 4294901760
    %2783 = vmatmul.mubr.f32.gmra.mxu0 %v2782
    %v2784 = vpop.f32.mrf.mxu0
    %v2785 = vadd.f32 %v2284, %v2784
    %v2786 = vpop.f32.mrf.mxu0
    %v2787 = vand.u32 %v189, 4294901760
    %2788 = vmatprep.mubr.f32.mxu0 %v2787
    %v2789 = vand.u32 %v188, 4294901760
    %2790 = vmatmul.mubr.f32.gmra.mxu0 %v2789
    %v2791 = vpop.f32.mrf.mxu0
    %v2792 = vadd.f32 %v2295, %v2791
    %v2793 = vpop.f32.mrf.mxu0
    %v2794 = vand.u32 %v191, 4294901760
    %2795 = vmatprep.mubr.f32.mxu0 %v2794
    %v2796 = vand.u32 %v190, 4294901760
    %2797 = vmatmul.mubr.f32.gmra.mxu0 %v2796
    %v2798 = vpop.f32.mrf.mxu0
    %v2799 = vadd.f32 %v2306, %v2798
    %v2800 = vpop.f32.mrf.mxu0
    %v2801 = vand.u32 %v193, 4294901760
    %2802 = vmatprep.mubr.f32.mxu0 %v2801
    %v2803 = vand.u32 %v192, 4294901760
    %2804 = vmatmul.mubr.f32.gmra.mxu0 %v2803
    %v2805 = vpop.f32.mrf.mxu0
    %v2806 = vadd.f32 %v2317, %v2805
    %v2807 = vpop.f32.mrf.mxu0
    %v2808 = vand.u32 %v195, 4294901760
    %2809 = vmatprep.mubr.f32.mxu0 %v2808
    %v2810 = vand.u32 %v194, 4294901760
    %2811 = vmatmul.mubr.f32.gmra.mxu0 %v2810
    %v2812 = vpop.f32.mrf.mxu0
    %v2813 = vadd.f32 %v2328, %v2812
    %v2814 = vpop.f32.mrf.mxu0
    %v2815 = vand.u32 %v197, 4294901760
    %2816 = vmatprep.mubr.f32.mxu0 %v2815
    %v2817 = vand.u32 %v196, 4294901760
    %2818 = vmatmul.mubr.f32.gmra.mxu0 %v2817
    %v2819 = vpop.f32.mrf.mxu0
    %v2820 = vadd.f32 %v2339, %v2819
    %v2821 = vpop.f32.mrf.mxu0
    %v2822 = vand.u32 %v199, 4294901760
    %2823 = vmatprep.mubr.f32.mxu0 %v2822
    %v2824 = vand.u32 %v198, 4294901760
    %2825 = vmatmul.mubr.f32.gmra.mxu0 %v2824
    %v2826 = vpop.f32.mrf.mxu0
    %v2827 = vadd.f32 %v2350, %v2826
    %v2828 = vpop.f32.mrf.mxu0
    %v2829 = vand.u32 %v201, 4294901760
    %2830 = vmatprep.mubr.f32.mxu0 %v2829
    %v2831 = vand.u32 %v200, 4294901760
    %2832 = vmatmul.mubr.f32.gmra.mxu0 %v2831
    %v2833 = vpop.f32.mrf.mxu0
    %v2834 = vadd.f32 %v2361, %v2833
    %v2835 = vpop.f32.mrf.mxu0
    %v2836 = vand.u32 %v203, 4294901760
    %2837 = vmatprep.mubr.f32.mxu0 %v2836
    %v2838 = vand.u32 %v202, 4294901760
    %2839 = vmatmul.mubr.f32.gmra.mxu0 %v2838
    %v2840 = vpop.f32.mrf.mxu0
    %v2841 = vadd.f32 %v2372, %v2840
    %v2842 = vpop.f32.mrf.mxu0
    %v2843 = vand.u32 %v205, 4294901760
    %2844 = vmatprep.mubr.f32.mxu0 %v2843
    %v2845 = vand.u32 %v204, 4294901760
    %2846 = vmatmul.mubr.f32.gmra.mxu0 %v2845
    %v2847 = vpop.f32.mrf.mxu0
    %v2848 = vadd.f32 %v2383, %v2847
    %v2849 = vpop.f32.mrf.mxu0
    %v2850 = vand.u32 %v207, 4294901760
    %2851 = vmatprep.mubr.f32.mxu0 %v2850
    %v2852 = vand.u32 %v206, 4294901760
    %2853 = vmatmul.mubr.f32.gmra.mxu0 %v2852
    %v2854 = vpop.f32.mrf.mxu0
    %v2855 = vadd.f32 %v2394, %v2854
    %v2856 = vpop.f32.mrf.mxu0
    %v2857 = vand.u32 %v209, 4294901760
    %2858 = vmatprep.mubr.f32.mxu0 %v2857
    %v2859 = vand.u32 %v208, 4294901760
    %2860 = vmatmul.mubr.f32.gmra.mxu0 %v2859
    %v2861 = vpop.f32.mrf.mxu0
    %v2862 = vadd.f32 %v2405, %v2861
    %v2863 = vpop.f32.mrf.mxu0
    %v2864 = vand.u32 %v211, 4294901760
    %2865 = vmatprep.mubr.f32.mxu0 %v2864
    %v2866 = vand.u32 %v210, 4294901760
    %2867 = vmatmul.mubr.f32.gmra.mxu0 %v2866
    %v2868 = vpop.f32.mrf.mxu0
    %v2869 = vadd.f32 %v2416, %v2868
    %v2870 = vpop.f32.mrf.mxu0
    %v2871 = vand.u32 %v213, 4294901760
    %2872 = vmatprep.mubr.f32.mxu0 %v2871
    %v2873 = vand.u32 %v212, 4294901760
    %2874 = vmatmul.mubr.f32.gmra.mxu0 %v2873
    %v2875 = vpop.f32.mrf.mxu0
    %v2876 = vadd.f32 %v2427, %v2875
    %v2877 = vpop.f32.mrf.mxu0
    %v2878 = vand.u32 %v215, 4294901760
    %2879 = vmatprep.mubr.f32.mxu0 %v2878
    %v2880 = vand.u32 %v214, 4294901760
    %2881 = vmatmul.mubr.f32.gmra.mxu0 %v2880
    %v2882 = vpop.f32.mrf.mxu0
    %v2883 = vadd.f32 %v2438, %v2882
    %v2884 = vpop.f32.mrf.mxu0
    %v2885 = vand.u32 %v217, 4294901760
    %2886 = vmatprep.mubr.f32.mxu0 %v2885
    %v2887 = vand.u32 %v216, 4294901760
    %2888 = vmatmul.mubr.f32.gmra.mxu0 %v2887
    %v2889 = vpop.f32.mrf.mxu0
    %v2890 = vadd.f32 %v2449, %v2889
    %v2891 = vpop.f32.mrf.mxu0
    %v2892 = vand.u32 %v219, 4294901760
    %2893 = vmatprep.mubr.f32.mxu0 %v2892
    %v2894 = vand.u32 %v218, 4294901760
    %2895 = vmatmul.mubr.f32.gmra.mxu0 %v2894
    %v2896 = vpop.f32.mrf.mxu0
    %v2897 = vadd.f32 %v2460, %v2896
    %v2898 = vpop.f32.mrf.mxu0
    %v2899 = vand.u32 %v221, 4294901760
    %2900 = vmatprep.mubr.f32.mxu0 %v2899
    %v2901 = vand.u32 %v220, 4294901760
    %2902 = vmatmul.mubr.f32.gmra.mxu0 %v2901
    %v2903 = vpop.f32.mrf.mxu0
    %v2904 = vadd.f32 %v2471, %v2903
    %v2905 = vpop.f32.mrf.mxu0
    %v2906 = vand.u32 %v223, 4294901760
    %2907 = vmatprep.mubr.f32.mxu0 %v2906
    %v2908 = vand.u32 %v222, 4294901760
    %2909 = vmatmul.mubr.f32.gmra.mxu0 %v2908
    %v2910 = vpop.f32.mrf.mxu0
    %v2911 = vadd.f32 %v2482, %v2910
    %v2912 = vpop.f32.mrf.mxu0
    %v2913 = vand.u32 %v225, 4294901760
    %2914 = vmatprep.mubr.f32.mxu0 %v2913
    %v2915 = vand.u32 %v224, 4294901760
    %2916 = vmatmul.mubr.f32.gmra.mxu0 %v2915
    %v2917 = vpop.f32.mrf.mxu0
    %v2918 = vadd.f32 %v2493, %v2917
    %v2919 = vpop.f32.mrf.mxu0
    %v2920 = vand.u32 %v227, 4294901760
    %2921 = vmatprep.mubr.f32.mxu0 %v2920
    %v2922 = vand.u32 %v226, 4294901760
    %2923 = vmatmul.mubr.f32.gmra.mxu0 %v2922
    %v2924 = vpop.f32.mrf.mxu0
    %v2925 = vadd.f32 %v2504, %v2924
    %v2926 = vpop.f32.mrf.mxu0
    %v2927 = vand.u32 %v229, 4294901760
    %2928 = vmatprep.mubr.f32.mxu0 %v2927
    %v2929 = vand.u32 %v228, 4294901760
    %2930 = vmatmul.mubr.f32.gmra.mxu0 %v2929
    %v2931 = vpop.f32.mrf.mxu0
    %v2932 = vadd.f32 %v2515, %v2931
    %v2933 = vpop.f32.mrf.mxu0
    %v2934 = vand.u32 %v231, 4294901760
    %2935 = vmatprep.mubr.f32.mxu0 %v2934
    %v2936 = vand.u32 %v230, 4294901760
    %2937 = vmatmul.mubr.f32.gmra.mxu0 %v2936
    %v2938 = vpop.f32.mrf.mxu0
    %v2939 = vadd.f32 %v2526, %v2938
    %v2940 = vpop.f32.mrf.mxu0
    %v2941 = vand.u32 %v233, 4294901760
    %2942 = vmatprep.mubr.f32.mxu0 %v2941
    %v2943 = vand.u32 %v232, 4294901760
    %2944 = vmatmul.mubr.f32.gmra.mxu0 %v2943
    %v2945 = vpop.f32.mrf.mxu0
    %v2946 = vadd.f32 %v2537, %v2945
    %v2947 = vpop.f32.mrf.mxu0
    %v2948 = vand.u32 %v235, 4294901760
    %2949 = vmatprep.mubr.f32.mxu0 %v2948
    %v2950 = vand.u32 %v234, 4294901760
    %2951 = vmatmul.mubr.f32.gmra.mxu0 %v2950
    %v2952 = vpop.f32.mrf.mxu0
    %v2953 = vadd.f32 %v2548, %v2952
    %v2954 = vpop.f32.mrf.mxu0
    %v2955 = vand.u32 %v237, 4294901760
    %2956 = vmatprep.mubr.f32.mxu0 %v2955
    %v2957 = vand.u32 %v236, 4294901760
    %2958 = vmatmul.mubr.f32.gmra.mxu0 %v2957
    %v2959 = vpop.f32.mrf.mxu0
    %v2960 = vadd.f32 %v2559, %v2959
    %v2961 = vpop.f32.mrf.mxu0
    %v2962 = vand.u32 %v239, 4294901760
    %2963 = vmatprep.mubr.f32.mxu0 %v2962
    %v2964 = vand.u32 %v238, 4294901760
    %2965 = vmatmul.mubr.f32.gmra.mxu0 %v2964
    %v2966 = vpop.f32.mrf.mxu0
    %v2967 = vadd.f32 %v2570, %v2966
    %v2968 = vpop.f32.mrf.mxu0
    %v2969 = vand.u32 %v241, 4294901760
    %2970 = vmatprep.mubr.f32.mxu0 %v2969
    %v2971 = vand.u32 %v240, 4294901760
    %2972 = vmatmul.mubr.f32.gmra.mxu0 %v2971
    %v2973 = vpop.f32.mrf.mxu0
    %v2974 = vadd.f32 %v2581, %v2973
    %v2975 = vpop.f32.mrf.mxu0
    %v2976 = vand.u32 %v243, 4294901760
    %2977 = vmatprep.mubr.f32.mxu0 %v2976
    %v2978 = vand.u32 %v242, 4294901760
    %2979 = vmatmul.mubr.f32.gmra.mxu0 %v2978
    %v2980 = vpop.f32.mrf.mxu0
    %v2981 = vadd.f32 %v2592, %v2980
    %v2982 = vpop.f32.mrf.mxu0
    %v2983 = vand.u32 %v245, 4294901760
    %2984 = vmatprep.mubr.f32.mxu0 %v2983
    %v2985 = vand.u32 %v244, 4294901760
    %2986 = vmatmul.mubr.f32.gmra.mxu0 %v2985
    %v2987 = vpop.f32.mrf.mxu0
    %v2988 = vadd.f32 %v2603, %v2987
    %v2989 = vpop.f32.mrf.mxu0
    %2990 = vdwg.mxu0
    %2991 = vmatprep.subr.mxu0 0.0
    %v2992 = vand.u32 %v580, 4294901760
    %2993 = vmatpush1.msra.mxu0 %v2992
    %2994 = vmatprep.subr.mxu0 0.0
    %v2995 = vand.u32 %v577, 4294901760
    %2996 = vmatpush1.msra.mxu0 %v2995
    %2997 = vmatprep.subr.mxu0 0.0
    %v2998 = vand.u32 %v572, 4294901760
    %2999 = vmatpush1.msra.mxu0 %v2998
    %3000 = vmatprep.subr.mxu0 0.0
    %v3001 = vand.u32 %v569, 4294901760
    %3002 = vmatpush1.msra.mxu0 %v3001
    %3003 = vmatprep.subr.mxu0 0.0
    %v3004 = vand.u32 %v564, 4294901760
    %3005 = vmatpush1.msra.mxu0 %v3004
    %3006 = vmatprep.subr.mxu0 0.0
    %v3007 = vand.u32 %v561, 4294901760
    %3008 = vmatpush1.msra.mxu0 %v3007
    %3009 = vmatprep.subr.mxu0 0.0
    %v3010 = vand.u32 %v556, 4294901760
    %3011 = vmatpush1.msra.mxu0 %v3010
    %3012 = vmatprep.subr.mxu0 0.0
    %v3013 = vand.u32 %v553, 4294901760
    %3014 = vmatpush1.msra.mxu0 %v3013
    %3015 = vmatprep.subr.mxu0 0.0
    %v3016 = vand.u32 %v548, 4294901760
    %3017 = vmatpush1.msra.mxu0 %v3016
    %3018 = vmatprep.subr.mxu0 0.0
    %v3019 = vand.u32 %v545, 4294901760
    %3020 = vmatpush1.msra.mxu0 %v3019
    %3021 = vmatprep.subr.mxu0 0.0
    %v3022 = vand.u32 %v540, 4294901760
    %3023 = vmatpush1.msra.mxu0 %v3022
    %3024 = vmatprep.subr.mxu0 0.0
    %v3025 = vand.u32 %v537, 4294901760
    %3026 = vmatpush1.msra.mxu0 %v3025
    %3027 = vmatprep.subr.mxu0 0.0
    %v3028 = vand.u32 %v532, 4294901760
    %3029 = vmatpush1.msra.mxu0 %v3028
    %3030 = vmatprep.subr.mxu0 0.0
    %v3031 = vand.u32 %v529, 4294901760
    %3032 = vmatpush1.msra.mxu0 %v3031
    %3033 = vmatprep.subr.mxu0 0.0
    %v3034 = vand.u32 %v524, 4294901760
    %3035 = vmatpush1.msra.mxu0 %v3034
    %3036 = vmatprep.subr.mxu0 0.0
    %v3037 = vand.u32 %v521, 4294901760
    %3038 = vmatpush1.msra.mxu0 %v3037
    %3039 = vmatprep.subr.mxu0 0.0
    %v3040 = vand.u32 %v644, 4294901760
    %3041 = vmatpush2.msra.mxu0 %v3040
    %3042 = vmatprep.subr.mxu0 0.0
    %v3043 = vand.u32 %v641, 4294901760
    %3044 = vmatpush2.msra.mxu0 %v3043
    %3045 = vmatprep.subr.mxu0 0.0
    %v3046 = vand.u32 %v636, 4294901760
    %3047 = vmatpush2.msra.mxu0 %v3046
    %3048 = vmatprep.subr.mxu0 0.0
    %v3049 = vand.u32 %v633, 4294901760
    %3050 = vmatpush2.msra.mxu0 %v3049
    %3051 = vmatprep.subr.mxu0 0.0
    %v3052 = vand.u32 %v628, 4294901760
    %3053 = vmatpush2.msra.mxu0 %v3052
    %3054 = vmatprep.subr.mxu0 0.0
    %v3055 = vand.u32 %v625, 4294901760
    %3056 = vmatpush2.msra.mxu0 %v3055
    %3057 = vmatprep.subr.mxu0 0.0
    %v3058 = vand.u32 %v620, 4294901760
    %3059 = vmatpush2.msra.mxu0 %v3058
    %3060 = vmatprep.subr.mxu0 0.0
    %v3061 = vand.u32 %v617, 4294901760
    %3062 = vmatpush2.msra.mxu0 %v3061
    %3063 = vmatprep.subr.mxu0 0.0
    %v3064 = vand.u32 %v612, 4294901760
    %3065 = vmatpush2.msra.mxu0 %v3064
    %3066 = vmatprep.subr.mxu0 0.0
    %v3067 = vand.u32 %v609, 4294901760
    %3068 = vmatpush2.msra.mxu0 %v3067
    %3069 = vmatprep.subr.mxu0 0.0
    %v3070 = vand.u32 %v604, 4294901760
    %3071 = vmatpush2.msra.mxu0 %v3070
    %3072 = vmatprep.subr.mxu0 0.0
    %v3073 = vand.u32 %v601, 4294901760
    %3074 = vmatpush2.msra.mxu0 %v3073
    %3075 = vmatprep.subr.mxu0 0.0
    %v3076 = vand.u32 %v596, 4294901760
    %3077 = vmatpush2.msra.mxu0 %v3076
    %3078 = vmatprep.subr.mxu0 0.0
    %v3079 = vand.u32 %v593, 4294901760
    %3080 = vmatpush2.msra.mxu0 %v3079
    %3081 = vmatprep.subr.mxu0 0.0
    %v3082 = vand.u32 %v588, 4294901760
    %3083 = vmatpush2.msra.mxu0 %v3082
    %3084 = vmatprep.subr.mxu0 0.0
    %v3085 = vand.u32 %v585, 4294901760
    %3086 = vmatpush2.msra.mxu0 %v3085
    %v3087 = vand.u32 %v183, 4294901760
    %3088 = vmatprep.mubr.f32.mxu0 %v3087
    %v3089 = vand.u32 %v182, 4294901760
    %3090 = vmatmul.mubr.f32.gmra.mxu0 %v3089
    %v3091 = vpop.f32.mrf.mxu0
    %v3092 = vadd.f32 %v2771, %v3091
    %v3093 = vpop.f32.mrf.mxu0
    %v3094 = vand.u32 %v185, 4294901760
    %3095 = vmatprep.mubr.f32.mxu0 %v3094
    %v3096 = vand.u32 %v184, 4294901760
    %3097 = vmatmul.mubr.f32.gmra.mxu0 %v3096
    %v3098 = vpop.f32.mrf.mxu0
    %v3099 = vadd.f32 %v2778, %v3098
    %v3100 = vpop.f32.mrf.mxu0
    %v3101 = vand.u32 %v187, 4294901760
    %3102 = vmatprep.mubr.f32.mxu0 %v3101
    %v3103 = vand.u32 %v186, 4294901760
    %3104 = vmatmul.mubr.f32.gmra.mxu0 %v3103
    %v3105 = vpop.f32.mrf.mxu0
    %v3106 = vadd.f32 %v2785, %v3105
    %v3107 = vpop.f32.mrf.mxu0
    %v3108 = vand.u32 %v189, 4294901760
    %3109 = vmatprep.mubr.f32.mxu0 %v3108
    %v3110 = vand.u32 %v188, 4294901760
    %3111 = vmatmul.mubr.f32.gmra.mxu0 %v3110
    %v3112 = vpop.f32.mrf.mxu0
    %v3113 = vadd.f32 %v2792, %v3112
    %v3114 = vpop.f32.mrf.mxu0
    %v3115 = vand.u32 %v191, 4294901760
    %3116 = vmatprep.mubr.f32.mxu0 %v3115
    %v3117 = vand.u32 %v190, 4294901760
    %3118 = vmatmul.mubr.f32.gmra.mxu0 %v3117
    %v3119 = vpop.f32.mrf.mxu0
    %v3120 = vadd.f32 %v2799, %v3119
    %v3121 = vpop.f32.mrf.mxu0
    %v3122 = vand.u32 %v193, 4294901760
    %3123 = vmatprep.mubr.f32.mxu0 %v3122
    %v3124 = vand.u32 %v192, 4294901760
    %3125 = vmatmul.mubr.f32.gmra.mxu0 %v3124
    %v3126 = vpop.f32.mrf.mxu0
    %v3127 = vadd.f32 %v2806, %v3126
    %v3128 = vpop.f32.mrf.mxu0
    %v3129 = vand.u32 %v195, 4294901760
    %3130 = vmatprep.mubr.f32.mxu0 %v3129
    %v3131 = vand.u32 %v194, 4294901760
    %3132 = vmatmul.mubr.f32.gmra.mxu0 %v3131
    %v3133 = vpop.f32.mrf.mxu0
    %v3134 = vadd.f32 %v2813, %v3133
    %v3135 = vpop.f32.mrf.mxu0
    %v3136 = vand.u32 %v197, 4294901760
    %3137 = vmatprep.mubr.f32.mxu0 %v3136
    %v3138 = vand.u32 %v196, 4294901760
    %3139 = vmatmul.mubr.f32.gmra.mxu0 %v3138
    %v3140 = vpop.f32.mrf.mxu0
    %v3141 = vadd.f32 %v2820, %v3140
    %v3142 = vpop.f32.mrf.mxu0
    %v3143 = vand.u32 %v199, 4294901760
    %3144 = vmatprep.mubr.f32.mxu0 %v3143
    %v3145 = vand.u32 %v198, 4294901760
    %3146 = vmatmul.mubr.f32.gmra.mxu0 %v3145
    %v3147 = vpop.f32.mrf.mxu0
    %v3148 = vadd.f32 %v2827, %v3147
    %v3149 = vpop.f32.mrf.mxu0
    %v3150 = vand.u32 %v201, 4294901760
    %3151 = vmatprep.mubr.f32.mxu0 %v3150
    %v3152 = vand.u32 %v200, 4294901760
    %3153 = vmatmul.mubr.f32.gmra.mxu0 %v3152
    %v3154 = vpop.f32.mrf.mxu0
    %v3155 = vadd.f32 %v2834, %v3154
    %v3156 = vpop.f32.mrf.mxu0
    %v3157 = vand.u32 %v203, 4294901760
    %3158 = vmatprep.mubr.f32.mxu0 %v3157
    %v3159 = vand.u32 %v202, 4294901760
    %3160 = vmatmul.mubr.f32.gmra.mxu0 %v3159
    %v3161 = vpop.f32.mrf.mxu0
    %v3162 = vadd.f32 %v2841, %v3161
    %v3163 = vpop.f32.mrf.mxu0
    %v3164 = vand.u32 %v205, 4294901760
    %3165 = vmatprep.mubr.f32.mxu0 %v3164
    %v3166 = vand.u32 %v204, 4294901760
    %3167 = vmatmul.mubr.f32.gmra.mxu0 %v3166
    %v3168 = vpop.f32.mrf.mxu0
    %v3169 = vadd.f32 %v2848, %v3168
    %v3170 = vpop.f32.mrf.mxu0
    %v3171 = vand.u32 %v207, 4294901760
    %3172 = vmatprep.mubr.f32.mxu0 %v3171
    %v3173 = vand.u32 %v206, 4294901760
    %3174 = vmatmul.mubr.f32.gmra.mxu0 %v3173
    %v3175 = vpop.f32.mrf.mxu0
    %v3176 = vadd.f32 %v2855, %v3175
    %v3177 = vpop.f32.mrf.mxu0
    %v3178 = vand.u32 %v209, 4294901760
    %3179 = vmatprep.mubr.f32.mxu0 %v3178
    %v3180 = vand.u32 %v208, 4294901760
    %3181 = vmatmul.mubr.f32.gmra.mxu0 %v3180
    %v3182 = vpop.f32.mrf.mxu0
    %v3183 = vadd.f32 %v2862, %v3182
    %v3184 = vpop.f32.mrf.mxu0
    %v3185 = vand.u32 %v211, 4294901760
    %3186 = vmatprep.mubr.f32.mxu0 %v3185
    %v3187 = vand.u32 %v210, 4294901760
    %3188 = vmatmul.mubr.f32.gmra.mxu0 %v3187
    %v3189 = vpop.f32.mrf.mxu0
    %v3190 = vadd.f32 %v2869, %v3189
    %v3191 = vpop.f32.mrf.mxu0
    %v3192 = vand.u32 %v213, 4294901760
    %3193 = vmatprep.mubr.f32.mxu0 %v3192
    %v3194 = vand.u32 %v212, 4294901760
    %3195 = vmatmul.mubr.f32.gmra.mxu0 %v3194
    %v3196 = vpop.f32.mrf.mxu0
    %v3197 = vadd.f32 %v2876, %v3196
    %v3198 = vpop.f32.mrf.mxu0
    %v3199 = vand.u32 %v215, 4294901760
    %3200 = vmatprep.mubr.f32.mxu0 %v3199
    %v3201 = vand.u32 %v214, 4294901760
    %3202 = vmatmul.mubr.f32.gmra.mxu0 %v3201
    %v3203 = vpop.f32.mrf.mxu0
    %v3204 = vadd.f32 %v2883, %v3203
    %v3205 = vpop.f32.mrf.mxu0
    %v3206 = vand.u32 %v217, 4294901760
    %3207 = vmatprep.mubr.f32.mxu0 %v3206
    %v3208 = vand.u32 %v216, 4294901760
    %3209 = vmatmul.mubr.f32.gmra.mxu0 %v3208
    %v3210 = vpop.f32.mrf.mxu0
    %v3211 = vadd.f32 %v2890, %v3210
    %v3212 = vpop.f32.mrf.mxu0
    %v3213 = vand.u32 %v219, 4294901760
    %3214 = vmatprep.mubr.f32.mxu0 %v3213
    %v3215 = vand.u32 %v218, 4294901760
    %3216 = vmatmul.mubr.f32.gmra.mxu0 %v3215
    %v3217 = vpop.f32.mrf.mxu0
    %v3218 = vadd.f32 %v2897, %v3217
    %v3219 = vpop.f32.mrf.mxu0
    %v3220 = vand.u32 %v221, 4294901760
    %3221 = vmatprep.mubr.f32.mxu0 %v3220
    %v3222 = vand.u32 %v220, 4294901760
    %3223 = vmatmul.mubr.f32.gmra.mxu0 %v3222
    %v3224 = vpop.f32.mrf.mxu0
    %v3225 = vadd.f32 %v2904, %v3224
    %v3226 = vpop.f32.mrf.mxu0
    %v3227 = vand.u32 %v223, 4294901760
    %3228 = vmatprep.mubr.f32.mxu0 %v3227
    %v3229 = vand.u32 %v222, 4294901760
    %3230 = vmatmul.mubr.f32.gmra.mxu0 %v3229
    %v3231 = vpop.f32.mrf.mxu0
    %v3232 = vadd.f32 %v2911, %v3231
    %v3233 = vpop.f32.mrf.mxu0
    %v3234 = vand.u32 %v225, 4294901760
    %3235 = vmatprep.mubr.f32.mxu0 %v3234
    %v3236 = vand.u32 %v224, 4294901760
    %3237 = vmatmul.mubr.f32.gmra.mxu0 %v3236
    %v3238 = vpop.f32.mrf.mxu0
    %v3239 = vadd.f32 %v2918, %v3238
    %v3240 = vpop.f32.mrf.mxu0
    %v3241 = vand.u32 %v227, 4294901760
    %3242 = vmatprep.mubr.f32.mxu0 %v3241
    %v3243 = vand.u32 %v226, 4294901760
    %3244 = vmatmul.mubr.f32.gmra.mxu0 %v3243
    %v3245 = vpop.f32.mrf.mxu0
    %v3246 = vadd.f32 %v2925, %v3245
    %v3247 = vpop.f32.mrf.mxu0
    %v3248 = vand.u32 %v229, 4294901760
    %3249 = vmatprep.mubr.f32.mxu0 %v3248
    %v3250 = vand.u32 %v228, 4294901760
    %3251 = vmatmul.mubr.f32.gmra.mxu0 %v3250
    %v3252 = vpop.f32.mrf.mxu0
    %v3253 = vadd.f32 %v2932, %v3252
    %v3254 = vpop.f32.mrf.mxu0
    %v3255 = vand.u32 %v231, 4294901760
    %3256 = vmatprep.mubr.f32.mxu0 %v3255
    %v3257 = vand.u32 %v230, 4294901760
    %3258 = vmatmul.mubr.f32.gmra.mxu0 %v3257
    %v3259 = vpop.f32.mrf.mxu0
    %v3260 = vadd.f32 %v2939, %v3259
    %v3261 = vpop.f32.mrf.mxu0
    %v3262 = vand.u32 %v233, 4294901760
    %3263 = vmatprep.mubr.f32.mxu0 %v3262
    %v3264 = vand.u32 %v232, 4294901760
    %3265 = vmatmul.mubr.f32.gmra.mxu0 %v3264
    %v3266 = vpop.f32.mrf.mxu0
    %v3267 = vadd.f32 %v2946, %v3266
    %v3268 = vpop.f32.mrf.mxu0
    %v3269 = vand.u32 %v235, 4294901760
    %3270 = vmatprep.mubr.f32.mxu0 %v3269
    %v3271 = vand.u32 %v234, 4294901760
    %3272 = vmatmul.mubr.f32.gmra.mxu0 %v3271
    %v3273 = vpop.f32.mrf.mxu0
    %v3274 = vadd.f32 %v2953, %v3273
    %v3275 = vpop.f32.mrf.mxu0
    %v3276 = vand.u32 %v237, 4294901760
    %3277 = vmatprep.mubr.f32.mxu0 %v3276
    %v3278 = vand.u32 %v236, 4294901760
    %3279 = vmatmul.mubr.f32.gmra.mxu0 %v3278
    %v3280 = vpop.f32.mrf.mxu0
    %v3281 = vadd.f32 %v2960, %v3280
    %v3282 = vpop.f32.mrf.mxu0
    %v3283 = vand.u32 %v239, 4294901760
    %3284 = vmatprep.mubr.f32.mxu0 %v3283
    %v3285 = vand.u32 %v238, 4294901760
    %3286 = vmatmul.mubr.f32.gmra.mxu0 %v3285
    %v3287 = vpop.f32.mrf.mxu0
    %v3288 = vadd.f32 %v2967, %v3287
    %v3289 = vpop.f32.mrf.mxu0
    %v3290 = vand.u32 %v241, 4294901760
    %3291 = vmatprep.mubr.f32.mxu0 %v3290
    %v3292 = vand.u32 %v240, 4294901760
    %3293 = vmatmul.mubr.f32.gmra.mxu0 %v3292
    %v3294 = vpop.f32.mrf.mxu0
    %v3295 = vadd.f32 %v2974, %v3294
    %v3296 = vpop.f32.mrf.mxu0
    %v3297 = vand.u32 %v243, 4294901760
    %3298 = vmatprep.mubr.f32.mxu0 %v3297
    %v3299 = vand.u32 %v242, 4294901760
    %3300 = vmatmul.mubr.f32.gmra.mxu0 %v3299
    %v3301 = vpop.f32.mrf.mxu0
    %v3302 = vadd.f32 %v2981, %v3301
    %v3303 = vpop.f32.mrf.mxu0
    %v3304 = vand.u32 %v245, 4294901760
    %3305 = vmatprep.mubr.f32.mxu0 %v3304
    %v3306 = vand.u32 %v244, 4294901760
    %3307 = vmatmul.mubr.f32.gmra.mxu0 %v3306
    %v3308 = vpop.f32.mrf.mxu0
    %v3309 = vadd.f32 %v2988, %v3308
    %v3310 = vpop.f32.mrf.mxu0
    %3311 = vdwg.mxu0
    %v3312 = vstv %s708
    %v3313 = vrcp.pop %v3312
    %v3314 = vmul.f32 %v3092, %v3313
    %v3315 = vmul.f32 %v3099, %v3313
    %v3316 = vmul.f32 %v3106, %v3313
    %v3317 = vmul.f32 %v3113, %v3313
    %v3318 = vmul.f32 %v3120, %v3313
    %v3319 = vmul.f32 %v3127, %v3313
    %v3320 = vmul.f32 %v3134, %v3313
    %v3321 = vmul.f32 %v3141, %v3313
    %v3322 = vmul.f32 %v3148, %v3313
    %v3323 = vmul.f32 %v3155, %v3313
    %v3324 = vmul.f32 %v3162, %v3313
    %v3325 = vmul.f32 %v3169, %v3313
    %v3326 = vmul.f32 %v3176, %v3313
    %v3327 = vmul.f32 %v3183, %v3313
    %v3328 = vmul.f32 %v3190, %v3313
    %v3329 = vmul.f32 %v3197, %v3313
    %v3330 = vmul.f32 %v3204, %v3313
    %v3331 = vmul.f32 %v3211, %v3313
    %v3332 = vmul.f32 %v3218, %v3313
    %v3333 = vmul.f32 %v3225, %v3313
    %v3334 = vmul.f32 %v3232, %v3313
    %v3335 = vmul.f32 %v3239, %v3313
    %v3336 = vmul.f32 %v3246, %v3313
    %v3337 = vmul.f32 %v3253, %v3313
    %v3338 = vmul.f32 %v3260, %v3313
    %v3339 = vmul.f32 %v3267, %v3313
    %v3340 = vmul.f32 %v3274, %v3313
    %v3341 = vmul.f32 %v3281, %v3313
    %v3342 = vmul.f32 %v3288, %v3313
    %v3343 = vmul.f32 %v3295, %v3313
    %v3344 = vmul.f32 %v3302, %v3313
    %v3345 = vmul.f32 %v3309, %v3313
    %v3346 = vfloor.f32 %v3314
    %v3347 = vfloor.f32 %v3315
    %v3348 = vfloor.f32 %v3316
    %v3349 = vfloor.f32 %v3317
    %v3350 = vfloor.f32 %v3318
    %v3351 = vfloor.f32 %v3319
    %v3352 = vfloor.f32 %v3320
    %v3353 = vfloor.f32 %v3321
    %v3354 = vfloor.f32 %v3322
    %v3355 = vfloor.f32 %v3323
    %v3356 = vfloor.f32 %v3324
    %v3357 = vfloor.f32 %v3325
    %v3358 = vfloor.f32 %v3326
    %v3359 = vfloor.f32 %v3327
    %v3360 = vfloor.f32 %v3328
    %v3361 = vfloor.f32 %v3329
    %v3362 = vfloor.f32 %v3330
    %v3363 = vfloor.f32 %v3331
    %v3364 = vfloor.f32 %v3332
    %v3365 = vfloor.f32 %v3333
    %v3366 = vfloor.f32 %v3334
    %v3367 = vfloor.f32 %v3335
    %v3368 = vfloor.f32 %v3336
    %v3369 = vfloor.f32 %v3337
    %v3370 = vfloor.f32 %v3338
    %v3371 = vfloor.f32 %v3339
    %v3372 = vfloor.f32 %v3340
    %v3373 = vfloor.f32 %v3341
    %v3374 = vfloor.f32 %v3342
    %v3375 = vfloor.f32 %v3343
    %v3376 = vfloor.f32 %v3344
    %v3377 = vfloor.f32 %v3345
    %v3378 = vmax.f32 %v3346, 0.0
    %v3379 = vmax.f32 %v3347, 0.0
    %v3380 = vmax.f32 %v3348, 0.0
    %v3381 = vmax.f32 %v3349, 0.0
    %v3382 = vmax.f32 %v3350, 0.0
    %v3383 = vmax.f32 %v3351, 0.0
    %v3384 = vmax.f32 %v3352, 0.0
    %v3385 = vmax.f32 %v3353, 0.0
    %v3386 = vmax.f32 %v3354, 0.0
    %v3387 = vmax.f32 %v3355, 0.0
    %v3388 = vmax.f32 %v3356, 0.0
    %v3389 = vmax.f32 %v3357, 0.0
    %v3390 = vmax.f32 %v3358, 0.0
    %v3391 = vmax.f32 %v3359, 0.0
    %v3392 = vmax.f32 %v3360, 0.0
    %v3393 = vmax.f32 %v3361, 0.0
    %v3394 = vmax.f32 %v3362, 0.0
    %v3395 = vmax.f32 %v3363, 0.0
    %v3396 = vmax.f32 %v3364, 0.0
    %v3397 = vmax.f32 %v3365, 0.0
    %v3398 = vmax.f32 %v3366, 0.0
    %v3399 = vmax.f32 %v3367, 0.0
    %v3400 = vmax.f32 %v3368, 0.0
    %v3401 = vmax.f32 %v3369, 0.0
    %v3402 = vmax.f32 %v3370, 0.0
    %v3403 = vmax.f32 %v3371, 0.0
    %v3404 = vmax.f32 %v3372, 0.0
    %v3405 = vmax.f32 %v3373, 0.0
    %v3406 = vmax.f32 %v3374, 0.0
    %v3407 = vmax.f32 %v3375, 0.0
    %v3408 = vmax.f32 %v3376, 0.0
    %v3409 = vmax.f32 %v3377, 0.0
    %v3410 = vmin.f32 %v3378, 255.0
    %v3411 = vmin.f32 %v3379, 255.0
    %v3412 = vmin.f32 %v3380, 255.0
    %v3413 = vmin.f32 %v3381, 255.0
    %v3414 = vmin.f32 %v3382, 255.0
    %v3415 = vmin.f32 %v3383, 255.0
    %v3416 = vmin.f32 %v3384, 255.0
    %v3417 = vmin.f32 %v3385, 255.0
    %v3418 = vmin.f32 %v3386, 255.0
    %v3419 = vmin.f32 %v3387, 255.0
    %v3420 = vmin.f32 %v3388, 255.0
    %v3421 = vmin.f32 %v3389, 255.0
    %v3422 = vmin.f32 %v3390, 255.0
    %v3423 = vmin.f32 %v3391, 255.0
    %v3424 = vmin.f32 %v3392, 255.0
    %v3425 = vmin.f32 %v3393, 255.0
    %v3426 = vmin.f32 %v3394, 255.0
    %v3427 = vmin.f32 %v3395, 255.0
    %v3428 = vmin.f32 %v3396, 255.0
    %v3429 = vmin.f32 %v3397, 255.0
    %v3430 = vmin.f32 %v3398, 255.0
    %v3431 = vmin.f32 %v3399, 255.0
    %v3432 = vmin.f32 %v3400, 255.0
    %v3433 = vmin.f32 %v3401, 255.0
    %v3434 = vmin.f32 %v3402, 255.0
    %v3435 = vmin.f32 %v3403, 255.0
    %v3436 = vmin.f32 %v3404, 255.0
    %v3437 = vmin.f32 %v3405, 255.0
    %v3438 = vmin.f32 %v3406, 255.0
    %v3439 = vmin.f32 %v3407, 255.0
    %v3440 = vmin.f32 %v3408, 255.0
    %v3441 = vmin.f32 %v3409, 255.0
    %3443 = vset.pattern.permute.xlu0 0
    %3444 = vperm.xlu0 %3443, %v3410
    %v3445 = vpop.permute.xlu0 %3444
    %3448 = vset.pattern.permute.xlu0 0
    %3449 = vperm.xlu0 %3448, %v3411
    %v3450 = vpop.permute.xlu0 %3449
    %3453 = vset.pattern.permute.xlu0 0
    %3454 = vperm.xlu0 %3453, %v3412
    %v3455 = vpop.permute.xlu0 %3454
    %3458 = vset.pattern.permute.xlu0 0
    %3459 = vperm.xlu0 %3458, %v3413
    %v3460 = vpop.permute.xlu0 %3459
    %3463 = vset.pattern.permute.xlu0 0
    %3464 = vperm.xlu0 %3463, %v3414
    %v3465 = vpop.permute.xlu0 %3464
    %3468 = vset.pattern.permute.xlu0 0
    %3469 = vperm.xlu0 %3468, %v3415
    %v3470 = vpop.permute.xlu0 %3469
    %3473 = vset.pattern.permute.xlu0 0
    %3474 = vperm.xlu0 %3473, %v3416
    %v3475 = vpop.permute.xlu0 %3474
    %3478 = vset.pattern.permute.xlu0 0
    %3479 = vperm.xlu0 %3478, %v3417
    %v3480 = vpop.permute.xlu0 %3479
    %3483 = vset.pattern.permute.xlu0 0
    %3484 = vperm.xlu0 %3483, %v3418
    %v3485 = vpop.permute.xlu0 %3484
    %3488 = vset.pattern.permute.xlu0 0
    %3489 = vperm.xlu0 %3488, %v3419
    %v3490 = vpop.permute.xlu0 %3489
    %3493 = vset.pattern.permute.xlu0 0
    %3494 = vperm.xlu0 %3493, %v3420
    %v3495 = vpop.permute.xlu0 %3494
    %3498 = vset.pattern.permute.xlu0 0
    %3499 = vperm.xlu0 %3498, %v3421
    %v3500 = vpop.permute.xlu0 %3499
    %3503 = vset.pattern.permute.xlu0 0
    %3504 = vperm.xlu0 %3503, %v3422
    %v3505 = vpop.permute.xlu0 %3504
    %3508 = vset.pattern.permute.xlu0 0
    %3509 = vperm.xlu0 %3508, %v3423
    %v3510 = vpop.permute.xlu0 %3509
    %3513 = vset.pattern.permute.xlu0 0
    %3514 = vperm.xlu0 %3513, %v3424
    %v3515 = vpop.permute.xlu0 %3514
    %3518 = vset.pattern.permute.xlu0 0
    %3519 = vperm.xlu0 %3518, %v3425
    %v3520 = vpop.permute.xlu0 %3519
    %3523 = vset.pattern.permute.xlu0 0
    %3524 = vperm.xlu0 %3523, %v3426
    %v3525 = vpop.permute.xlu0 %3524
    %3528 = vset.pattern.permute.xlu0 0
    %3529 = vperm.xlu0 %3528, %v3427
    %v3530 = vpop.permute.xlu0 %3529
    %3533 = vset.pattern.permute.xlu0 0
    %3534 = vperm.xlu0 %3533, %v3428
    %v3535 = vpop.permute.xlu0 %3534
    %3538 = vset.pattern.permute.xlu0 0
    %3539 = vperm.xlu0 %3538, %v3429
    %v3540 = vpop.permute.xlu0 %3539
    %3543 = vset.pattern.permute.xlu0 0
    %3544 = vperm.xlu0 %3543, %v3430
    %v3545 = vpop.permute.xlu0 %3544
    %3548 = vset.pattern.permute.xlu0 0
    %3549 = vperm.xlu0 %3548, %v3431
    %v3550 = vpop.permute.xlu0 %3549
    %3553 = vset.pattern.permute.xlu0 0
    %3554 = vperm.xlu0 %3553, %v3432
    %v3555 = vpop.permute.xlu0 %3554
    %3558 = vset.pattern.permute.xlu0 0
    %3559 = vperm.xlu0 %3558, %v3433
    %v3560 = vpop.permute.xlu0 %3559
    %3563 = vset.pattern.permute.xlu0 0
    %3564 = vperm.xlu0 %3563, %v3434
    %v3565 = vpop.permute.xlu0 %3564
    %3568 = vset.pattern.permute.xlu0 0
    %3569 = vperm.xlu0 %3568, %v3435
    %v3570 = vpop.permute.xlu0 %3569
    %3573 = vset.pattern.permute.xlu0 0
    %3574 = vperm.xlu0 %3573, %v3436
    %v3575 = vpop.permute.xlu0 %3574
    %3578 = vset.pattern.permute.xlu0 0
    %3579 = vperm.xlu0 %3578, %v3437
    %v3580 = vpop.permute.xlu0 %3579
    %3583 = vset.pattern.permute.xlu0 0
    %3584 = vperm.xlu0 %3583, %v3438
    %v3585 = vpop.permute.xlu0 %3584
    %3588 = vset.pattern.permute.xlu0 0
    %3589 = vperm.xlu0 %3588, %v3439
    %v3590 = vpop.permute.xlu0 %3589
    %3593 = vset.pattern.permute.xlu0 0
    %3594 = vperm.xlu0 %3593, %v3440
    %v3595 = vpop.permute.xlu0 %3594
    %3598 = vset.pattern.permute.xlu0 0
    %3599 = vperm.xlu0 %3598, %v3441
    %v3600 = vpop.permute.xlu0 %3599
    %v3602 = vsel %vm262, %v3445, 0.0
    %v3603 = vsel %vm263, %v3445, 0.0
    %v3604 = vsel %vm264, %v3450, 0.0
    %v3605 = vsel %vm265, %v3450, 0.0
    %v3606 = vsel %vm266, %v3455, 0.0
    %v3607 = vsel %vm267, %v3455, 0.0
    %v3608 = vsel %vm268, %v3460, 0.0
    %v3609 = vsel %vm269, %v3460, 0.0
    %v3610 = vsel %vm270, %v3465, 0.0
    %v3611 = vsel %vm271, %v3465, 0.0
    %v3612 = vsel %vm272, %v3470, 0.0
    %v3613 = vsel %vm273, %v3470, 0.0
    %v3614 = vsel %vm274, %v3475, 0.0
    %v3615 = vsel %vm275, %v3475, 0.0
    %v3616 = vsel %vm276, %v3480, 0.0
    %v3617 = vsel %vm277, %v3480, 0.0
    %v3618 = vsel %vm278, %v3485, 0.0
    %v3619 = vsel %vm279, %v3485, 0.0
    %v3620 = vsel %vm280, %v3490, 0.0
    %v3621 = vsel %vm281, %v3490, 0.0
    %v3622 = vsel %vm282, %v3495, 0.0
    %v3623 = vsel %vm283, %v3495, 0.0
    %v3624 = vsel %vm284, %v3500, 0.0
    %v3625 = vsel %vm285, %v3500, 0.0
    %v3626 = vsel %vm286, %v3505, 0.0
    %v3627 = vsel %vm287, %v3505, 0.0
    %v3628 = vsel %vm288, %v3510, 0.0
    %v3629 = vsel %vm289, %v3510, 0.0
    %v3630 = vsel %vm290, %v3515, 0.0
    %v3631 = vsel %vm291, %v3515, 0.0
    %v3632 = vsel %vm292, %v3520, 0.0
    %v3633 = vsel %vm293, %v3520, 0.0
    %v3634 = vsel %vm294, %v3525, 0.0
    %v3635 = vsel %vm295, %v3525, 0.0
    %v3636 = vsel %vm296, %v3530, 0.0
    %v3637 = vsel %vm297, %v3530, 0.0
    %v3638 = vsel %vm298, %v3535, 0.0
    %v3639 = vsel %vm299, %v3535, 0.0
    %v3640 = vsel %vm300, %v3540, 0.0
    %v3641 = vsel %vm301, %v3540, 0.0
    %v3642 = vsel %vm302, %v3545, 0.0
    %v3643 = vsel %vm303, %v3545, 0.0
    %v3644 = vsel %vm304, %v3550, 0.0
    %v3645 = vsel %vm305, %v3550, 0.0
    %v3646 = vsel %vm306, %v3555, 0.0
    %v3647 = vsel %vm307, %v3555, 0.0
    %v3648 = vsel %vm308, %v3560, 0.0
    %v3649 = vsel %vm309, %v3560, 0.0
    %v3650 = vsel %vm310, %v3565, 0.0
    %v3651 = vsel %vm311, %v3565, 0.0
    %v3652 = vsel %vm312, %v3570, 0.0
    %v3653 = vsel %vm313, %v3570, 0.0
    %v3654 = vsel %vm314, %v3575, 0.0
    %v3655 = vsel %vm315, %v3575, 0.0
    %v3656 = vsel %vm316, %v3580, 0.0
    %v3657 = vsel %vm317, %v3580, 0.0
    %v3658 = vsel %vm318, %v3585, 0.0
    %v3659 = vsel %vm319, %v3585, 0.0
    %v3660 = vsel %vm320, %v3590, 0.0
    %v3661 = vsel %vm321, %v3590, 0.0
    %v3662 = vsel %vm322, %v3595, 0.0
    %v3663 = vsel %vm323, %v3595, 0.0
    %v3664 = vsel %vm324, %v3600, 0.0
    %v3665 = vsel %vm325, %v3600, 0.0
    %v3666 = vadd.f32 %v3602, %v3604
    %v3667 = vadd.f32 %v3666, %v3606
    %v3668 = vadd.f32 %v3667, %v3608
    %v3669 = vadd.f32 %v3668, %v3610
    %v3670 = vadd.f32 %v3669, %v3612
    %v3671 = vadd.f32 %v3670, %v3614
    %v3672 = vadd.f32 %v3671, %v3616
    %v3673 = vadd.f32 %v3672, %v3618
    %v3674 = vadd.f32 %v3673, %v3620
    %v3675 = vadd.f32 %v3674, %v3622
    %v3676 = vadd.f32 %v3675, %v3624
    %v3677 = vadd.f32 %v3676, %v3626
    %v3678 = vadd.f32 %v3677, %v3628
    %v3679 = vadd.f32 %v3678, %v3630
    %v3680 = vadd.f32 %v3679, %v3632
    %v3681 = vadd.f32 %v3680, %v3634
    %v3682 = vadd.f32 %v3681, %v3636
    %v3683 = vadd.f32 %v3682, %v3638
    %v3684 = vadd.f32 %v3683, %v3640
    %v3685 = vadd.f32 %v3684, %v3642
    %v3686 = vadd.f32 %v3685, %v3644
    %v3687 = vadd.f32 %v3686, %v3646
    %v3688 = vadd.f32 %v3687, %v3648
    %v3689 = vadd.f32 %v3688, %v3650
    %v3690 = vadd.f32 %v3689, %v3652
    %v3691 = vadd.f32 %v3690, %v3654
    %v3692 = vadd.f32 %v3691, %v3656
    %v3693 = vadd.f32 %v3692, %v3658
    %v3694 = vadd.f32 %v3693, %v3660
    %v3695 = vadd.f32 %v3694, %v3662
    %v3696 = vadd.f32 %v3695, %v3664
    %v3697 = vrot.slane %v3696, 4
    %v3698 = vadd.f32 %v3696, %v3697
    %v3699 = vrot.slane %v3698, 2
    %v3700 = vadd.f32 %v3698, %v3699
    %v3701 = vrot.slane %v3700, 1
    %v3702 = vadd.f32 %v3700, %v3701
    %v3703 = vadd.f32 %v3603, %v3605
    %v3704 = vadd.f32 %v3703, %v3607
    %v3705 = vadd.f32 %v3704, %v3609
    %v3706 = vadd.f32 %v3705, %v3611
    %v3707 = vadd.f32 %v3706, %v3613
    %v3708 = vadd.f32 %v3707, %v3615
    %v3709 = vadd.f32 %v3708, %v3617
    %v3710 = vadd.f32 %v3709, %v3619
    %v3711 = vadd.f32 %v3710, %v3621
    %v3712 = vadd.f32 %v3711, %v3623
    %v3713 = vadd.f32 %v3712, %v3625
    %v3714 = vadd.f32 %v3713, %v3627
    %v3715 = vadd.f32 %v3714, %v3629
    %v3716 = vadd.f32 %v3715, %v3631
    %v3717 = vadd.f32 %v3716, %v3633
    %v3718 = vadd.f32 %v3717, %v3635
    %v3719 = vadd.f32 %v3718, %v3637
    %v3720 = vadd.f32 %v3719, %v3639
    %v3721 = vadd.f32 %v3720, %v3641
    %v3722 = vadd.f32 %v3721, %v3643
    %v3723 = vadd.f32 %v3722, %v3645
    %v3724 = vadd.f32 %v3723, %v3647
    %v3725 = vadd.f32 %v3724, %v3649
    %v3726 = vadd.f32 %v3725, %v3651
    %v3727 = vadd.f32 %v3726, %v3653
    %v3728 = vadd.f32 %v3727, %v3655
    %v3729 = vadd.f32 %v3728, %v3657
    %v3730 = vadd.f32 %v3729, %v3659
    %v3731 = vadd.f32 %v3730, %v3661
    %v3732 = vadd.f32 %v3731, %v3663
    %v3733 = vadd.f32 %v3732, %v3665
    %v3734 = vrot.slane %v3733, 4
    %v3735 = vadd.f32 %v3733, %v3734
    %v3736 = vrot.slane %v3735, 2
    %v3737 = vadd.f32 %v3735, %v3736
    %v3738 = vrot.slane %v3737, 1
    %v3739 = vadd.f32 %v3737, %v3738
    %p3740 = scmp.gt.f32.partialorder %s707, 0.0
    %v3741 = vcvt.s32.f32 %v17
    %s3742 = scalar_select %p3740, 1, 0
    %v3743 = vstv %s3742
    %vm3744 = vcmp.eq.s32.totalorder %v3743, 1
    %v3746 = vlaneseq
    %v3747 = vshrl.u32 %v3746, 7
    %v3748 = vsub.s32 0, %v3747
    %v3749 = vrot.slane %v3741, %v3748
    %v3750 = vlaneseq
    %v3751 = vshrl.u32 %v3750, 7
    %v3752 = vsub.s32 4, %v3751
    %v3753 = vrot.slane %v3741, %v3752
    %v3756 = vsel %vm3744, %v3702, %v3749
    %v3757 = vsel %vm3744, %v3739, %v3753
    %v3758 = vlaneseq
    %v3759 = vshrl.u32 %v3758, 7
    %v3760 = vsub.s32 1, %v3759
    %v3761 = vrot.slane %v17, %v3760
    %v3762 = vlaneseq
    %v3763 = vshrl.u32 %v3762, 7
    %v3764 = vsub.s32 5, %v3763
    %v3765 = vrot.slane %v17, %v3764
    %v3766 = vlaneseq
    %v3767 = vshrl.u32 %v3766, 7
    %v3768 = vsub.s32 1, %v3767
    %v3769 = vrot.slane %v3761, %v3768
    %v3770 = vlaneseq
    %v3771 = vshrl.u32 %v3770, 7
    %v3772 = vsub.s32 1, %v3771
    %v3773 = vrot.slane %v3765, %v3772
    %vm3774 = vcmp.eq.s32.totalorder %v3769, %v19
    %vm3775 = vcmp.eq.s32.totalorder %v3773, %v19
    %vm3776 = vcmp.eq.s32.totalorder %v3769, %v20
    %vm3777 = vcmp.eq.s32.totalorder %v3773, %v20
    %vm3778 = vcmp.eq.s32.totalorder %v3769, %v21
    %vm3779 = vcmp.eq.s32.totalorder %v3773, %v21
    %vm3780 = vcmp.eq.s32.totalorder %v3769, %v22
    %vm3781 = vcmp.eq.s32.totalorder %v3773, %v22
    %vm3782 = vcmp.eq.s32.totalorder %v3769, %v23
    %vm3783 = vcmp.eq.s32.totalorder %v3773, %v23
    %vm3784 = vcmp.eq.s32.totalorder %v3769, %v24
    %vm3785 = vcmp.eq.s32.totalorder %v3773, %v24
    %vm3786 = vcmp.eq.s32.totalorder %v3769, %v25
    %vm3787 = vcmp.eq.s32.totalorder %v3773, %v25
    %vm3788 = vcmp.eq.s32.totalorder %v3769, %v26
    %vm3789 = vcmp.eq.s32.totalorder %v3773, %v26
    %vm3790 = vcmp.eq.s32.totalorder %v3769, %v27
    %vm3791 = vcmp.eq.s32.totalorder %v3773, %v27
    %vm3792 = vcmp.eq.s32.totalorder %v3769, %v28
    %vm3793 = vcmp.eq.s32.totalorder %v3773, %v28
    %vm3794 = vcmp.eq.s32.totalorder %v3769, %v29
    %vm3795 = vcmp.eq.s32.totalorder %v3773, %v29
    %vm3796 = vcmp.eq.s32.totalorder %v3769, %v30
    %vm3797 = vcmp.eq.s32.totalorder %v3773, %v30
    %vm3798 = vcmp.eq.s32.totalorder %v3769, %v31
    %vm3799 = vcmp.eq.s32.totalorder %v3773, %v31
    %vm3800 = vcmp.eq.s32.totalorder %v3769, %v32
    %vm3801 = vcmp.eq.s32.totalorder %v3773, %v32
    %vm3802 = vcmp.eq.s32.totalorder %v3769, %v33
    %vm3803 = vcmp.eq.s32.totalorder %v3773, %v33
    %vm3804 = vcmp.eq.s32.totalorder %v3769, %v34
    %vm3805 = vcmp.eq.s32.totalorder %v3773, %v34
    %vm3806 = vcmp.eq.s32.totalorder %v3769, %v35
    %vm3807 = vcmp.eq.s32.totalorder %v3773, %v35
    %vm3808 = vcmp.eq.s32.totalorder %v3769, %v36
    %vm3809 = vcmp.eq.s32.totalorder %v3773, %v36
    %vm3810 = vcmp.eq.s32.totalorder %v3769, %v37
    %vm3811 = vcmp.eq.s32.totalorder %v3773, %v37
    %vm3812 = vcmp.eq.s32.totalorder %v3769, %v38
    %vm3813 = vcmp.eq.s32.totalorder %v3773, %v38
    %vm3814 = vcmp.eq.s32.totalorder %v3769, %v39
    %vm3815 = vcmp.eq.s32.totalorder %v3773, %v39
    %vm3816 = vcmp.eq.s32.totalorder %v3769, %v40
    %vm3817 = vcmp.eq.s32.totalorder %v3773, %v40
    %vm3818 = vcmp.eq.s32.totalorder %v3769, %v41
    %vm3819 = vcmp.eq.s32.totalorder %v3773, %v41
    %vm3820 = vcmp.eq.s32.totalorder %v3769, %v42
    %vm3821 = vcmp.eq.s32.totalorder %v3773, %v42
    %vm3822 = vcmp.eq.s32.totalorder %v3769, %v43
    %vm3823 = vcmp.eq.s32.totalorder %v3773, %v43
    %vm3824 = vcmp.eq.s32.totalorder %v3769, %v44
    %vm3825 = vcmp.eq.s32.totalorder %v3773, %v44
    %vm3826 = vcmp.eq.s32.totalorder %v3769, %v45
    %vm3827 = vcmp.eq.s32.totalorder %v3773, %v45
    %vm3828 = vcmp.eq.s32.totalorder %v3769, %v46
    %vm3829 = vcmp.eq.s32.totalorder %v3773, %v46
    %vm3830 = vcmp.eq.s32.totalorder %v3769, %v47
    %vm3831 = vcmp.eq.s32.totalorder %v3773, %v47
    %vm3832 = vcmp.eq.s32.totalorder %v3769, %v48
    %vm3833 = vcmp.eq.s32.totalorder %v3773, %v48
    %vm3834 = vcmp.eq.s32.totalorder %v3769, %v49
    %vm3835 = vcmp.eq.s32.totalorder %v3773, %v49
    %vm3836 = vcmp.eq.s32.totalorder %v3769, %v50
    %vm3837 = vcmp.eq.s32.totalorder %v3773, %v50
    %v3838 = vsel %vm3774, 1, 0
    %v3839 = vsel %vm3775, 1, 0
    %v3840 = vsel %vm3776, 1, 0
    %v3841 = vsel %vm3777, 1, 0
    %v3842 = vsel %vm3778, 1, 0
    %v3843 = vsel %vm3779, 1, 0
    %v3844 = vsel %vm3780, 1, 0
    %v3845 = vsel %vm3781, 1, 0
    %v3846 = vsel %vm3782, 1, 0
    %v3847 = vsel %vm3783, 1, 0
    %v3848 = vsel %vm3784, 1, 0
    %v3849 = vsel %vm3785, 1, 0
    %v3850 = vsel %vm3786, 1, 0
    %v3851 = vsel %vm3787, 1, 0
    %v3852 = vsel %vm3788, 1, 0
    %v3853 = vsel %vm3789, 1, 0
    %v3854 = vsel %vm3790, 1, 0
    %v3855 = vsel %vm3791, 1, 0
    %v3856 = vsel %vm3792, 1, 0
    %v3857 = vsel %vm3793, 1, 0
    %v3858 = vsel %vm3794, 1, 0
    %v3859 = vsel %vm3795, 1, 0
    %v3860 = vsel %vm3796, 1, 0
    %v3861 = vsel %vm3797, 1, 0
    %v3862 = vsel %vm3798, 1, 0
    %v3863 = vsel %vm3799, 1, 0
    %v3864 = vsel %vm3800, 1, 0
    %v3865 = vsel %vm3801, 1, 0
    %v3866 = vsel %vm3802, 1, 0
    %v3867 = vsel %vm3803, 1, 0
    %v3868 = vsel %vm3804, 1, 0
    %v3869 = vsel %vm3805, 1, 0
    %v3870 = vsel %vm3806, 1, 0
    %v3871 = vsel %vm3807, 1, 0
    %v3872 = vsel %vm3808, 1, 0
    %v3873 = vsel %vm3809, 1, 0
    %v3874 = vsel %vm3810, 1, 0
    %v3875 = vsel %vm3811, 1, 0
    %v3876 = vsel %vm3812, 1, 0
    %v3877 = vsel %vm3813, 1, 0
    %v3878 = vsel %vm3814, 1, 0
    %v3879 = vsel %vm3815, 1, 0
    %v3880 = vsel %vm3816, 1, 0
    %v3881 = vsel %vm3817, 1, 0
    %v3882 = vsel %vm3818, 1, 0
    %v3883 = vsel %vm3819, 1, 0
    %v3884 = vsel %vm3820, 1, 0
    %v3885 = vsel %vm3821, 1, 0
    %v3886 = vsel %vm3822, 1, 0
    %v3887 = vsel %vm3823, 1, 0
    %v3888 = vsel %vm3824, 1, 0
    %v3889 = vsel %vm3825, 1, 0
    %v3890 = vsel %vm3826, 1, 0
    %v3891 = vsel %vm3827, 1, 0
    %v3892 = vsel %vm3828, 1, 0
    %v3893 = vsel %vm3829, 1, 0
    %v3894 = vsel %vm3830, 1, 0
    %v3895 = vsel %vm3831, 1, 0
    %v3896 = vsel %vm3832, 1, 0
    %v3897 = vsel %vm3833, 1, 0
    %v3898 = vsel %vm3834, 1, 0
    %v3899 = vsel %vm3835, 1, 0
    %v3900 = vsel %vm3836, 1, 0
    %v3901 = vsel %vm3837, 1, 0
    %v3902 = vcvt.s32.f32 %v3838
    %v3903 = vcvt.s32.f32 %v3839
    %v3904 = vcvt.s32.f32 %v3840
    %v3905 = vcvt.s32.f32 %v3841
    %v3906 = vcvt.s32.f32 %v3842
    %v3907 = vcvt.s32.f32 %v3843
    %v3908 = vcvt.s32.f32 %v3844
    %v3909 = vcvt.s32.f32 %v3845
    %v3910 = vcvt.s32.f32 %v3846
    %v3911 = vcvt.s32.f32 %v3847
    %v3912 = vcvt.s32.f32 %v3848
    %v3913 = vcvt.s32.f32 %v3849
    %v3914 = vcvt.s32.f32 %v3850
    %v3915 = vcvt.s32.f32 %v3851
    %v3916 = vcvt.s32.f32 %v3852
    %v3917 = vcvt.s32.f32 %v3853
    %v3918 = vcvt.s32.f32 %v3854
    %v3919 = vcvt.s32.f32 %v3855
    %v3920 = vcvt.s32.f32 %v3856
    %v3921 = vcvt.s32.f32 %v3857
    %v3922 = vcvt.s32.f32 %v3858
    %v3923 = vcvt.s32.f32 %v3859
    %v3924 = vcvt.s32.f32 %v3860
    %v3925 = vcvt.s32.f32 %v3861
    %v3926 = vcvt.s32.f32 %v3862
    %v3927 = vcvt.s32.f32 %v3863
    %v3928 = vcvt.s32.f32 %v3864
    %v3929 = vcvt.s32.f32 %v3865
    %v3930 = vcvt.s32.f32 %v3866
    %v3931 = vcvt.s32.f32 %v3867
    %v3932 = vcvt.s32.f32 %v3868
    %v3933 = vcvt.s32.f32 %v3869
    %v3934 = vcvt.s32.f32 %v3870
    %v3935 = vcvt.s32.f32 %v3871
    %v3936 = vcvt.s32.f32 %v3872
    %v3937 = vcvt.s32.f32 %v3873
    %v3938 = vcvt.s32.f32 %v3874
    %v3939 = vcvt.s32.f32 %v3875
    %v3940 = vcvt.s32.f32 %v3876
    %v3941 = vcvt.s32.f32 %v3877
    %v3942 = vcvt.s32.f32 %v3878
    %v3943 = vcvt.s32.f32 %v3879
    %v3944 = vcvt.s32.f32 %v3880
    %v3945 = vcvt.s32.f32 %v3881
    %v3946 = vcvt.s32.f32 %v3882
    %v3947 = vcvt.s32.f32 %v3883
    %v3948 = vcvt.s32.f32 %v3884
    %v3949 = vcvt.s32.f32 %v3885
    %v3950 = vcvt.s32.f32 %v3886
    %v3951 = vcvt.s32.f32 %v3887
    %v3952 = vcvt.s32.f32 %v3888
    %v3953 = vcvt.s32.f32 %v3889
    %v3954 = vcvt.s32.f32 %v3890
    %v3955 = vcvt.s32.f32 %v3891
    %v3956 = vcvt.s32.f32 %v3892
    %v3957 = vcvt.s32.f32 %v3893
    %v3958 = vcvt.s32.f32 %v3894
    %v3959 = vcvt.s32.f32 %v3895
    %v3960 = vcvt.s32.f32 %v3896
    %v3961 = vcvt.s32.f32 %v3897
    %v3962 = vcvt.s32.f32 %v3898
    %v3963 = vcvt.s32.f32 %v3899
    %v3964 = vcvt.s32.f32 %v3900
    %v3965 = vcvt.s32.f32 %v3901
    %v3966 = vpack.c.bf16 %v3904, %v3902
    %v3967 = vpack.c.bf16 %v3905, %v3903
    %v3968 = vpack.c.bf16 %v3908, %v3906
    %v3969 = vpack.c.bf16 %v3909, %v3907
    %v3970 = vpack.c.bf16 %v3912, %v3910
    %v3971 = vpack.c.bf16 %v3913, %v3911
    %v3972 = vpack.c.bf16 %v3916, %v3914
    %v3973 = vpack.c.bf16 %v3917, %v3915
    %v3974 = vpack.c.bf16 %v3920, %v3918
    %v3975 = vpack.c.bf16 %v3921, %v3919
    %v3976 = vpack.c.bf16 %v3924, %v3922
    %v3977 = vpack.c.bf16 %v3925, %v3923
    %v3978 = vpack.c.bf16 %v3928, %v3926
    %v3979 = vpack.c.bf16 %v3929, %v3927
    %v3980 = vpack.c.bf16 %v3932, %v3930
    %v3981 = vpack.c.bf16 %v3933, %v3931
    %v3982 = vpack.c.bf16 %v3936, %v3934
    %v3983 = vpack.c.bf16 %v3937, %v3935
    %v3984 = vpack.c.bf16 %v3940, %v3938
    %v3985 = vpack.c.bf16 %v3941, %v3939
    %v3986 = vpack.c.bf16 %v3944, %v3942
    %v3987 = vpack.c.bf16 %v3945, %v3943
    %v3988 = vpack.c.bf16 %v3948, %v3946
    %v3989 = vpack.c.bf16 %v3949, %v3947
    %v3990 = vpack.c.bf16 %v3952, %v3950
    %v3991 = vpack.c.bf16 %v3953, %v3951
    %v3992 = vpack.c.bf16 %v3956, %v3954
    %v3993 = vpack.c.bf16 %v3957, %v3955
    %v3994 = vpack.c.bf16 %v3960, %v3958
    %v3995 = vpack.c.bf16 %v3961, %v3959
    %v3996 = vpack.c.bf16 %v3964, %v3962
    %v3997 = vpack.c.bf16 %v3965, %v3963
    %3998 = vmatprep.subr.bf16.mxu0 0
    %3999 = vmatpush1.bf16.msra.mxu0 1065369472
    %4000 = vmatprep.subr.bf16.mxu0 0
    %4001 = vmatpush1.bf16.msra.mxu0 1065369472
    %4002 = vmatprep.subr.bf16.mxu0 0
    %4003 = vmatpush1.bf16.msra.mxu0 1065369472
    %4004 = vmatprep.subr.bf16.mxu0 0
    %4005 = vmatpush1.bf16.msra.mxu0 1065369472
    %4006 = vmatprep.subr.bf16.mxu0 0
    %4007 = vmatpush1.bf16.msra.mxu0 1065369472
    %4008 = vmatprep.subr.bf16.mxu0 0
    %4009 = vmatpush1.bf16.msra.mxu0 1065369472
    %4010 = vmatprep.subr.bf16.mxu0 0
    %4011 = vmatpush1.bf16.msra.mxu0 1065369472
    %4012 = vmatprep.subr.bf16.mxu0 0
    %4013 = vmatpush1.bf16.msra.mxu0 1065369472
    %4014 = vmatprep.subr.bf16.mxu0 0
    %4015 = vmatpush2.bf16.msra.mxu0 1065369472
    %4016 = vmatprep.subr.bf16.mxu0 0
    %4017 = vmatpush2.bf16.msra.mxu0 1065369472
    %4018 = vmatprep.subr.bf16.mxu0 0
    %4019 = vmatpush2.bf16.msra.mxu0 1065369472
    %4020 = vmatprep.subr.bf16.mxu0 0
    %4021 = vmatpush2.bf16.msra.mxu0 1065369472
    %4022 = vmatprep.subr.bf16.mxu0 0
    %4023 = vmatpush2.bf16.msra.mxu0 1065369472
    %4024 = vmatprep.subr.bf16.mxu0 0
    %4025 = vmatpush2.bf16.msra.mxu0 1065369472
    %4026 = vmatprep.subr.bf16.mxu0 0
    %4027 = vmatpush2.bf16.msra.mxu0 1065369472
    %4028 = vmatprep.subr.bf16.mxu0 0
    %4029 = vmatpush2.bf16.msra.mxu0 1065369472
    %4030 = vmatprep.mubr.bf16.mxu0 %v3967
    %4031 = vmatmul.mubr.bf16.gmra.mxu0 %v3966
    %v4032 = vpop.f32.mrf.mxu0
    %v4033 = vadd.f32 0.0, %v4032
    %v4034 = vpop.f32.mrf.mxu0
    %v4035 = vpop.f32.mrf.mxu0
    %v4036 = vadd.f32 0.0, %v4035
    %v4037 = vpop.f32.mrf.mxu0
    %4038 = vmatprep.mubr.bf16.mxu0 %v3969
    %4039 = vmatmul.mubr.bf16.gmra.mxu0 %v3968
    %v4040 = vpop.f32.mrf.mxu0
    %v4041 = vadd.f32 0.0, %v4040
    %v4042 = vpop.f32.mrf.mxu0
    %v4043 = vpop.f32.mrf.mxu0
    %v4044 = vadd.f32 0.0, %v4043
    %v4045 = vpop.f32.mrf.mxu0
    %4046 = vmatprep.mubr.bf16.mxu0 %v3971
    %4047 = vmatmul.mubr.bf16.gmra.mxu0 %v3970
    %v4048 = vpop.f32.mrf.mxu0
    %v4049 = vadd.f32 0.0, %v4048
    %v4050 = vpop.f32.mrf.mxu0
    %v4051 = vpop.f32.mrf.mxu0
    %v4052 = vadd.f32 0.0, %v4051
    %v4053 = vpop.f32.mrf.mxu0
    %4054 = vmatprep.mubr.bf16.mxu0 %v3973
    %4055 = vmatmul.mubr.bf16.gmra.mxu0 %v3972
    %v4056 = vpop.f32.mrf.mxu0
    %v4057 = vadd.f32 0.0, %v4056
    %v4058 = vpop.f32.mrf.mxu0
    %v4059 = vpop.f32.mrf.mxu0
    %v4060 = vadd.f32 0.0, %v4059
    %v4061 = vpop.f32.mrf.mxu0
    %4062 = vmatprep.mubr.bf16.mxu0 %v3975
    %4063 = vmatmul.mubr.bf16.gmra.mxu0 %v3974
    %v4064 = vpop.f32.mrf.mxu0
    %v4065 = vadd.f32 0.0, %v4064
    %v4066 = vpop.f32.mrf.mxu0
    %v4067 = vpop.f32.mrf.mxu0
    %v4068 = vadd.f32 0.0, %v4067
    %v4069 = vpop.f32.mrf.mxu0
    %4070 = vmatprep.mubr.bf16.mxu0 %v3977
    %4071 = vmatmul.mubr.bf16.gmra.mxu0 %v3976
    %v4072 = vpop.f32.mrf.mxu0
    %v4073 = vadd.f32 0.0, %v4072
    %v4074 = vpop.f32.mrf.mxu0
    %v4075 = vpop.f32.mrf.mxu0
    %v4076 = vadd.f32 0.0, %v4075
    %v4077 = vpop.f32.mrf.mxu0
    %4078 = vmatprep.mubr.bf16.mxu0 %v3979
    %4079 = vmatmul.mubr.bf16.gmra.mxu0 %v3978
    %v4080 = vpop.f32.mrf.mxu0
    %v4081 = vadd.f32 0.0, %v4080
    %v4082 = vpop.f32.mrf.mxu0
    %v4083 = vpop.f32.mrf.mxu0
    %v4084 = vadd.f32 0.0, %v4083
    %v4085 = vpop.f32.mrf.mxu0
    %4086 = vmatprep.mubr.bf16.mxu0 %v3981
    %4087 = vmatmul.mubr.bf16.gmra.mxu0 %v3980
    %v4088 = vpop.f32.mrf.mxu0
    %v4089 = vadd.f32 0.0, %v4088
    %v4090 = vpop.f32.mrf.mxu0
    %v4091 = vpop.f32.mrf.mxu0
    %v4092 = vadd.f32 0.0, %v4091
    %v4093 = vpop.f32.mrf.mxu0
    %4094 = vmatprep.mubr.bf16.mxu0 %v3983
    %4095 = vmatmul.mubr.bf16.gmra.mxu0 %v3982
    %v4096 = vpop.f32.mrf.mxu0
    %v4097 = vadd.f32 0.0, %v4096
    %v4098 = vpop.f32.mrf.mxu0
    %v4099 = vpop.f32.mrf.mxu0
    %v4100 = vadd.f32 0.0, %v4099
    %v4101 = vpop.f32.mrf.mxu0
    %4102 = vmatprep.mubr.bf16.mxu0 %v3985
    %4103 = vmatmul.mubr.bf16.gmra.mxu0 %v3984
    %v4104 = vpop.f32.mrf.mxu0
    %v4105 = vadd.f32 0.0, %v4104
    %v4106 = vpop.f32.mrf.mxu0
    %v4107 = vpop.f32.mrf.mxu0
    %v4108 = vadd.f32 0.0, %v4107
    %v4109 = vpop.f32.mrf.mxu0
    %4110 = vmatprep.mubr.bf16.mxu0 %v3987
    %4111 = vmatmul.mubr.bf16.gmra.mxu0 %v3986
    %v4112 = vpop.f32.mrf.mxu0
    %v4113 = vadd.f32 0.0, %v4112
    %v4114 = vpop.f32.mrf.mxu0
    %v4115 = vpop.f32.mrf.mxu0
    %v4116 = vadd.f32 0.0, %v4115
    %v4117 = vpop.f32.mrf.mxu0
    %4118 = vmatprep.mubr.bf16.mxu0 %v3989
    %4119 = vmatmul.mubr.bf16.gmra.mxu0 %v3988
    %v4120 = vpop.f32.mrf.mxu0
    %v4121 = vadd.f32 0.0, %v4120
    %v4122 = vpop.f32.mrf.mxu0
    %v4123 = vpop.f32.mrf.mxu0
    %v4124 = vadd.f32 0.0, %v4123
    %v4125 = vpop.f32.mrf.mxu0
    %4126 = vmatprep.mubr.bf16.mxu0 %v3991
    %4127 = vmatmul.mubr.bf16.gmra.mxu0 %v3990
    %v4128 = vpop.f32.mrf.mxu0
    %v4129 = vadd.f32 0.0, %v4128
    %v4130 = vpop.f32.mrf.mxu0
    %v4131 = vpop.f32.mrf.mxu0
    %v4132 = vadd.f32 0.0, %v4131
    %v4133 = vpop.f32.mrf.mxu0
    %4134 = vmatprep.mubr.bf16.mxu0 %v3993
    %4135 = vmatmul.mubr.bf16.gmra.mxu0 %v3992
    %v4136 = vpop.f32.mrf.mxu0
    %v4137 = vadd.f32 0.0, %v4136
    %v4138 = vpop.f32.mrf.mxu0
    %v4139 = vpop.f32.mrf.mxu0
    %v4140 = vadd.f32 0.0, %v4139
    %v4141 = vpop.f32.mrf.mxu0
    %4142 = vmatprep.mubr.bf16.mxu0 %v3995
    %4143 = vmatmul.mubr.bf16.gmra.mxu0 %v3994
    %v4144 = vpop.f32.mrf.mxu0
    %v4145 = vadd.f32 0.0, %v4144
    %v4146 = vpop.f32.mrf.mxu0
    %v4147 = vpop.f32.mrf.mxu0
    %v4148 = vadd.f32 0.0, %v4147
    %v4149 = vpop.f32.mrf.mxu0
    %4150 = vmatprep.mubr.bf16.mxu0 %v3997
    %4151 = vmatmul.mubr.bf16.gmra.mxu0 %v3996
    %v4152 = vpop.f32.mrf.mxu0
    %v4153 = vadd.f32 0.0, %v4152
    %v4154 = vpop.f32.mrf.mxu0
    %v4155 = vpop.f32.mrf.mxu0
    %v4156 = vadd.f32 0.0, %v4155
    %v4157 = vpop.f32.mrf.mxu0
    %4158 = vdwg.mxu0
    %vm4159 = vcmask 1041409
    %v4160 = vsel %vm4159, %v3761, 2147483648
    %v4161 = vsel %vm4159, %v3765, 2147483648
    %vm4162 = vcmp.gt.s32.totalorder %v4160, %v4161
    %v4163 = vsel %vm4162, %v4160, %v4161
    %v4164 = vand.u32 %v4163, 65535
    %v4165 = vshra.s32 %v4163, 16
    %v4166 = vcvt.s32.f32 %v4164
    %v4167 = vcvt.s32.f32 %v4165
    %4168 = vmax.xlane.f32.xlu0 %v4167
    %v4169 = vpop.xlane.xlu0 %4168
    %vm4170 = vcmp.eq.f32.partialorder %v4167, %v4169
    %v4171 = vsel %vm4170, %v4166, -inf
    %4172 = vmax.xlane.f32.xlu0 %v4171
    %v4173 = vpop.xlane.xlu0 %4172
    %v4174 = vcvt.f32.s32 %v4173
    %v4175 = vcvt.f32.s32 %v4169
    %v4176 = vshll.u32 %v4175, 16
    %v4177 = vadd.s32 %v4176, %v4174
    %v4178 = vrot.slane %v4177, 4
    %vm4179 = vcmp.gt.s32.totalorder %v4177, %v4178
    %v4180 = vsel %vm4179, %v4177, %v4178
    %v4181 = vrot.slane %v4180, 2
    %vm4182 = vcmp.gt.s32.totalorder %v4180, %v4181
    %v4183 = vsel %vm4182, %v4180, %v4181
    %v4184 = vrot.slane %v4183, 1
    %vm4185 = vcmp.gt.s32.totalorder %v4183, %v4184
    %v4186 = vsel %vm4185, %v4183, %v4184
    %s4187 = vtos %v4186
    %v4188 = vstv %s4187
    %vm4189 = vcmp.eq.s32.totalorder %v17, %v4188
    %v4190 = vsel %vm4189, 1, 0
    %v4191 = vcvt.s32.f32 %v4190
    %v4193 = vlaneseq
    %v4194 = vshrl.u32 %v4193, 7
    %v4195 = vsub.s32 1, %v4194
    %v4196 = vrot.slane %v4191, %v4195
    %v4197 = vlaneseq
    %v4198 = vshrl.u32 %v4197, 7
    %v4199 = vsub.s32 5, %v4198
    %v4200 = vrot.slane %v4191, %v4199
    %v4203 = vsel %vm647, %v4196, 0.0
    %v4204 = vsel %vm647, %v4200, 0.0
    %v4205 = vadd.f32 %v4203, %v4204
    %4206 = vadd.xlane.f32.xlu0 %v4205
    %v4207 = vpop.xlane.xlu0 %4206
    %v4208 = vrot.slane %v4207, 4
    %v4209 = vadd.f32 %v4207, %v4208
    %v4210 = vrot.slane %v4209, 2
    %v4211 = vadd.f32 %v4209, %v4210
    %v4212 = vrot.slane %v4211, 1
    %v4213 = vadd.f32 %v4211, %v4212
    %s4214 = vtos %v4213
    %s4215 = ssub.f32 256.0, %s4214
    %v4216 = vrcp.pop 255.0
    %s4217 = vtos %v4216
    %s4218 = smul.f32 %s4215, %s4217
    %s4219 = sfloor.f32 %s4218
    %s4220 = smax.f32 %s4219, 1.0
    %v4221 = vrcp.pop 2.0
    %s4222 = vtos %v4221
    %s4223 = smul.f32 %s4220, %s4222
    %s4224 = sfloor.f32 %s4223
    %v4225 = vstv %s4224
    %4226 = vmatprep.subr.mxu0 0.0
    %v4227 = vand.u32 %v4092, 4294901760
    %4228 = vmatpush1.msra.mxu0 %v4227
    %4229 = vmatprep.subr.mxu0 0.0
    %v4230 = vand.u32 %v4089, 4294901760
    %4231 = vmatpush1.msra.mxu0 %v4230
    %4232 = vmatprep.subr.mxu0 0.0
    %v4233 = vand.u32 %v4084, 4294901760
    %4234 = vmatpush1.msra.mxu0 %v4233
    %4235 = vmatprep.subr.mxu0 0.0
    %v4236 = vand.u32 %v4081, 4294901760
    %4237 = vmatpush1.msra.mxu0 %v4236
    %4238 = vmatprep.subr.mxu0 0.0
    %v4239 = vand.u32 %v4076, 4294901760
    %4240 = vmatpush1.msra.mxu0 %v4239
    %4241 = vmatprep.subr.mxu0 0.0
    %v4242 = vand.u32 %v4073, 4294901760
    %4243 = vmatpush1.msra.mxu0 %v4242
    %4244 = vmatprep.subr.mxu0 0.0
    %v4245 = vand.u32 %v4068, 4294901760
    %4246 = vmatpush1.msra.mxu0 %v4245
    %4247 = vmatprep.subr.mxu0 0.0
    %v4248 = vand.u32 %v4065, 4294901760
    %4249 = vmatpush1.msra.mxu0 %v4248
    %4250 = vmatprep.subr.mxu0 0.0
    %v4251 = vand.u32 %v4060, 4294901760
    %4252 = vmatpush1.msra.mxu0 %v4251
    %4253 = vmatprep.subr.mxu0 0.0
    %v4254 = vand.u32 %v4057, 4294901760
    %4255 = vmatpush1.msra.mxu0 %v4254
    %4256 = vmatprep.subr.mxu0 0.0
    %v4257 = vand.u32 %v4052, 4294901760
    %4258 = vmatpush1.msra.mxu0 %v4257
    %4259 = vmatprep.subr.mxu0 0.0
    %v4260 = vand.u32 %v4049, 4294901760
    %4261 = vmatpush1.msra.mxu0 %v4260
    %4262 = vmatprep.subr.mxu0 0.0
    %v4263 = vand.u32 %v4044, 4294901760
    %4264 = vmatpush1.msra.mxu0 %v4263
    %4265 = vmatprep.subr.mxu0 0.0
    %v4266 = vand.u32 %v4041, 4294901760
    %4267 = vmatpush1.msra.mxu0 %v4266
    %4268 = vmatprep.subr.mxu0 0.0
    %v4269 = vand.u32 %v4036, 4294901760
    %4270 = vmatpush1.msra.mxu0 %v4269
    %4271 = vmatprep.subr.mxu0 0.0
    %v4272 = vand.u32 %v4033, 4294901760
    %4273 = vmatpush1.msra.mxu0 %v4272
    %4274 = vmatprep.subr.mxu0 0.0
    %v4275 = vand.u32 %v4156, 4294901760
    %4276 = vmatpush2.msra.mxu0 %v4275
    %4277 = vmatprep.subr.mxu0 0.0
    %v4278 = vand.u32 %v4153, 4294901760
    %4279 = vmatpush2.msra.mxu0 %v4278
    %4280 = vmatprep.subr.mxu0 0.0
    %v4281 = vand.u32 %v4148, 4294901760
    %4282 = vmatpush2.msra.mxu0 %v4281
    %4283 = vmatprep.subr.mxu0 0.0
    %v4284 = vand.u32 %v4145, 4294901760
    %4285 = vmatpush2.msra.mxu0 %v4284
    %4286 = vmatprep.subr.mxu0 0.0
    %v4287 = vand.u32 %v4140, 4294901760
    %4288 = vmatpush2.msra.mxu0 %v4287
    %4289 = vmatprep.subr.mxu0 0.0
    %v4290 = vand.u32 %v4137, 4294901760
    %4291 = vmatpush2.msra.mxu0 %v4290
    %4292 = vmatprep.subr.mxu0 0.0
    %v4293 = vand.u32 %v4132, 4294901760
    %4294 = vmatpush2.msra.mxu0 %v4293
    %4295 = vmatprep.subr.mxu0 0.0
    %v4296 = vand.u32 %v4129, 4294901760
    %4297 = vmatpush2.msra.mxu0 %v4296
    %4298 = vmatprep.subr.mxu0 0.0
    %v4299 = vand.u32 %v4124, 4294901760
    %4300 = vmatpush2.msra.mxu0 %v4299
    %4301 = vmatprep.subr.mxu0 0.0
    %v4302 = vand.u32 %v4121, 4294901760
    %4303 = vmatpush2.msra.mxu0 %v4302
    %4304 = vmatprep.subr.mxu0 0.0
    %v4305 = vand.u32 %v4116, 4294901760
    %4306 = vmatpush2.msra.mxu0 %v4305
    %4307 = vmatprep.subr.mxu0 0.0
    %v4308 = vand.u32 %v4113, 4294901760
    %4309 = vmatpush2.msra.mxu0 %v4308
    %4310 = vmatprep.subr.mxu0 0.0
    %v4311 = vand.u32 %v4108, 4294901760
    %4312 = vmatpush2.msra.mxu0 %v4311
    %4313 = vmatprep.subr.mxu0 0.0
    %v4314 = vand.u32 %v4105, 4294901760
    %4315 = vmatpush2.msra.mxu0 %v4314
    %4316 = vmatprep.subr.mxu0 0.0
    %v4317 = vand.u32 %v4100, 4294901760
    %4318 = vmatpush2.msra.mxu0 %v4317
    %4319 = vmatprep.subr.mxu0 0.0
    %v4320 = vand.u32 %v4097, 4294901760
    %4321 = vmatpush2.msra.mxu0 %v4320
    %v4322 = vand.u32 %v183, 4294901760
    %v4323 = vsub.f32 %v183, %v4322
    %v4324 = vand.u32 %v4323, 4294901760
    %v4325 = vsub.f32 %v4323, %v4324
    %v4326 = vand.u32 %v4325, 4294901760
    %4327 = vmatprep.mubr.f32.mxu0 %v4326
    %v4328 = vand.u32 %v182, 4294901760
    %v4329 = vsub.f32 %v182, %v4328
    %v4330 = vand.u32 %v4329, 4294901760
    %v4331 = vsub.f32 %v4329, %v4330
    %v4332 = vand.u32 %v4331, 4294901760
    %4333 = vmatmul.mubr.f32.gmra.mxu0 %v4332
    %v4334 = vpop.f32.mrf.mxu0
    %v4335 = vadd.f32 %v4225, %v4334
    %v4336 = vpop.f32.mrf.mxu0
    %v4337 = vand.u32 %v185, 4294901760
    %v4338 = vsub.f32 %v185, %v4337
    %v4339 = vand.u32 %v4338, 4294901760
    %v4340 = vsub.f32 %v4338, %v4339
    %v4341 = vand.u32 %v4340, 4294901760
    %4342 = vmatprep.mubr.f32.mxu0 %v4341
    %v4343 = vand.u32 %v184, 4294901760
    %v4344 = vsub.f32 %v184, %v4343
    %v4345 = vand.u32 %v4344, 4294901760
    %v4346 = vsub.f32 %v4344, %v4345
    %v4347 = vand.u32 %v4346, 4294901760
    %4348 = vmatmul.mubr.f32.gmra.mxu0 %v4347
    %v4349 = vpop.f32.mrf.mxu0
    %v4350 = vadd.f32 %v4225, %v4349
    %v4351 = vpop.f32.mrf.mxu0
    %v4352 = vand.u32 %v187, 4294901760
    %v4353 = vsub.f32 %v187, %v4352
    %v4354 = vand.u32 %v4353, 4294901760
    %v4355 = vsub.f32 %v4353, %v4354
    %v4356 = vand.u32 %v4355, 4294901760
    %4357 = vmatprep.mubr.f32.mxu0 %v4356
    %v4358 = vand.u32 %v186, 4294901760
    %v4359 = vsub.f32 %v186, %v4358
    %v4360 = vand.u32 %v4359, 4294901760
    %v4361 = vsub.f32 %v4359, %v4360
    %v4362 = vand.u32 %v4361, 4294901760
    %4363 = vmatmul.mubr.f32.gmra.mxu0 %v4362
    %v4364 = vpop.f32.mrf.mxu0
    %v4365 = vadd.f32 %v4225, %v4364
    %v4366 = vpop.f32.mrf.mxu0
    %v4367 = vand.u32 %v189, 4294901760
    %v4368 = vsub.f32 %v189, %v4367
    %v4369 = vand.u32 %v4368, 4294901760
    %v4370 = vsub.f32 %v4368, %v4369
    %v4371 = vand.u32 %v4370, 4294901760
    %4372 = vmatprep.mubr.f32.mxu0 %v4371
    %v4373 = vand.u32 %v188, 4294901760
    %v4374 = vsub.f32 %v188, %v4373
    %v4375 = vand.u32 %v4374, 4294901760
    %v4376 = vsub.f32 %v4374, %v4375
    %v4377 = vand.u32 %v4376, 4294901760
    %4378 = vmatmul.mubr.f32.gmra.mxu0 %v4377
    %v4379 = vpop.f32.mrf.mxu0
    %v4380 = vadd.f32 %v4225, %v4379
    %v4381 = vpop.f32.mrf.mxu0
    %v4382 = vand.u32 %v191, 4294901760
    %v4383 = vsub.f32 %v191, %v4382
    %v4384 = vand.u32 %v4383, 4294901760
    %v4385 = vsub.f32 %v4383, %v4384
    %v4386 = vand.u32 %v4385, 4294901760
    %4387 = vmatprep.mubr.f32.mxu0 %v4386
    %v4388 = vand.u32 %v190, 4294901760
    %v4389 = vsub.f32 %v190, %v4388
    %v4390 = vand.u32 %v4389, 4294901760
    %v4391 = vsub.f32 %v4389, %v4390
    %v4392 = vand.u32 %v4391, 4294901760
    %4393 = vmatmul.mubr.f32.gmra.mxu0 %v4392
    %v4394 = vpop.f32.mrf.mxu0
    %v4395 = vadd.f32 %v4225, %v4394
    %v4396 = vpop.f32.mrf.mxu0
    %v4397 = vand.u32 %v193, 4294901760
    %v4398 = vsub.f32 %v193, %v4397
    %v4399 = vand.u32 %v4398, 4294901760
    %v4400 = vsub.f32 %v4398, %v4399
    %v4401 = vand.u32 %v4400, 4294901760
    %4402 = vmatprep.mubr.f32.mxu0 %v4401
    %v4403 = vand.u32 %v192, 4294901760
    %v4404 = vsub.f32 %v192, %v4403
    %v4405 = vand.u32 %v4404, 4294901760
    %v4406 = vsub.f32 %v4404, %v4405
    %v4407 = vand.u32 %v4406, 4294901760
    %4408 = vmatmul.mubr.f32.gmra.mxu0 %v4407
    %v4409 = vpop.f32.mrf.mxu0
    %v4410 = vadd.f32 %v4225, %v4409
    %v4411 = vpop.f32.mrf.mxu0
    %v4412 = vand.u32 %v195, 4294901760
    %v4413 = vsub.f32 %v195, %v4412
    %v4414 = vand.u32 %v4413, 4294901760
    %v4415 = vsub.f32 %v4413, %v4414
    %v4416 = vand.u32 %v4415, 4294901760
    %4417 = vmatprep.mubr.f32.mxu0 %v4416
    %v4418 = vand.u32 %v194, 4294901760
    %v4419 = vsub.f32 %v194, %v4418
    %v4420 = vand.u32 %v4419, 4294901760
    %v4421 = vsub.f32 %v4419, %v4420
    %v4422 = vand.u32 %v4421, 4294901760
    %4423 = vmatmul.mubr.f32.gmra.mxu0 %v4422
    %v4424 = vpop.f32.mrf.mxu0
    %v4425 = vadd.f32 %v4225, %v4424
    %v4426 = vpop.f32.mrf.mxu0
    %v4427 = vand.u32 %v197, 4294901760
    %v4428 = vsub.f32 %v197, %v4427
    %v4429 = vand.u32 %v4428, 4294901760
    %v4430 = vsub.f32 %v4428, %v4429
    %v4431 = vand.u32 %v4430, 4294901760
    %4432 = vmatprep.mubr.f32.mxu0 %v4431
    %v4433 = vand.u32 %v196, 4294901760
    %v4434 = vsub.f32 %v196, %v4433
    %v4435 = vand.u32 %v4434, 4294901760
    %v4436 = vsub.f32 %v4434, %v4435
    %v4437 = vand.u32 %v4436, 4294901760
    %4438 = vmatmul.mubr.f32.gmra.mxu0 %v4437
    %v4439 = vpop.f32.mrf.mxu0
    %v4440 = vadd.f32 %v4225, %v4439
    %v4441 = vpop.f32.mrf.mxu0
    %v4442 = vand.u32 %v199, 4294901760
    %v4443 = vsub.f32 %v199, %v4442
    %v4444 = vand.u32 %v4443, 4294901760
    %v4445 = vsub.f32 %v4443, %v4444
    %v4446 = vand.u32 %v4445, 4294901760
    %4447 = vmatprep.mubr.f32.mxu0 %v4446
    %v4448 = vand.u32 %v198, 4294901760
    %v4449 = vsub.f32 %v198, %v4448
    %v4450 = vand.u32 %v4449, 4294901760
    %v4451 = vsub.f32 %v4449, %v4450
    %v4452 = vand.u32 %v4451, 4294901760
    %4453 = vmatmul.mubr.f32.gmra.mxu0 %v4452
    %v4454 = vpop.f32.mrf.mxu0
    %v4455 = vadd.f32 %v4225, %v4454
    %v4456 = vpop.f32.mrf.mxu0
    %v4457 = vand.u32 %v201, 4294901760
    %v4458 = vsub.f32 %v201, %v4457
    %v4459 = vand.u32 %v4458, 4294901760
    %v4460 = vsub.f32 %v4458, %v4459
    %v4461 = vand.u32 %v4460, 4294901760
    %4462 = vmatprep.mubr.f32.mxu0 %v4461
    %v4463 = vand.u32 %v200, 4294901760
    %v4464 = vsub.f32 %v200, %v4463
    %v4465 = vand.u32 %v4464, 4294901760
    %v4466 = vsub.f32 %v4464, %v4465
    %v4467 = vand.u32 %v4466, 4294901760
    %4468 = vmatmul.mubr.f32.gmra.mxu0 %v4467
    %v4469 = vpop.f32.mrf.mxu0
    %v4470 = vadd.f32 %v4225, %v4469
    %v4471 = vpop.f32.mrf.mxu0
    %v4472 = vand.u32 %v203, 4294901760
    %v4473 = vsub.f32 %v203, %v4472
    %v4474 = vand.u32 %v4473, 4294901760
    %v4475 = vsub.f32 %v4473, %v4474
    %v4476 = vand.u32 %v4475, 4294901760
    %4477 = vmatprep.mubr.f32.mxu0 %v4476
    %v4478 = vand.u32 %v202, 4294901760
    %v4479 = vsub.f32 %v202, %v4478
    %v4480 = vand.u32 %v4479, 4294901760
    %v4481 = vsub.f32 %v4479, %v4480
    %v4482 = vand.u32 %v4481, 4294901760
    %4483 = vmatmul.mubr.f32.gmra.mxu0 %v4482
    %v4484 = vpop.f32.mrf.mxu0
    %v4485 = vadd.f32 %v4225, %v4484
    %v4486 = vpop.f32.mrf.mxu0
    %v4487 = vand.u32 %v205, 4294901760
    %v4488 = vsub.f32 %v205, %v4487
    %v4489 = vand.u32 %v4488, 4294901760
    %v4490 = vsub.f32 %v4488, %v4489
    %v4491 = vand.u32 %v4490, 4294901760
    %4492 = vmatprep.mubr.f32.mxu0 %v4491
    %v4493 = vand.u32 %v204, 4294901760
    %v4494 = vsub.f32 %v204, %v4493
    %v4495 = vand.u32 %v4494, 4294901760
    %v4496 = vsub.f32 %v4494, %v4495
    %v4497 = vand.u32 %v4496, 4294901760
    %4498 = vmatmul.mubr.f32.gmra.mxu0 %v4497
    %v4499 = vpop.f32.mrf.mxu0
    %v4500 = vadd.f32 %v4225, %v4499
    %v4501 = vpop.f32.mrf.mxu0
    %v4502 = vand.u32 %v207, 4294901760
    %v4503 = vsub.f32 %v207, %v4502
    %v4504 = vand.u32 %v4503, 4294901760
    %v4505 = vsub.f32 %v4503, %v4504
    %v4506 = vand.u32 %v4505, 4294901760
    %4507 = vmatprep.mubr.f32.mxu0 %v4506
    %v4508 = vand.u32 %v206, 4294901760
    %v4509 = vsub.f32 %v206, %v4508
    %v4510 = vand.u32 %v4509, 4294901760
    %v4511 = vsub.f32 %v4509, %v4510
    %v4512 = vand.u32 %v4511, 4294901760
    %4513 = vmatmul.mubr.f32.gmra.mxu0 %v4512
    %v4514 = vpop.f32.mrf.mxu0
    %v4515 = vadd.f32 %v4225, %v4514
    %v4516 = vpop.f32.mrf.mxu0
    %v4517 = vand.u32 %v209, 4294901760
    %v4518 = vsub.f32 %v209, %v4517
    %v4519 = vand.u32 %v4518, 4294901760
    %v4520 = vsub.f32 %v4518, %v4519
    %v4521 = vand.u32 %v4520, 4294901760
    %4522 = vmatprep.mubr.f32.mxu0 %v4521
    %v4523 = vand.u32 %v208, 4294901760
    %v4524 = vsub.f32 %v208, %v4523
    %v4525 = vand.u32 %v4524, 4294901760
    %v4526 = vsub.f32 %v4524, %v4525
    %v4527 = vand.u32 %v4526, 4294901760
    %4528 = vmatmul.mubr.f32.gmra.mxu0 %v4527
    %v4529 = vpop.f32.mrf.mxu0
    %v4530 = vadd.f32 %v4225, %v4529
    %v4531 = vpop.f32.mrf.mxu0
    %v4532 = vand.u32 %v211, 4294901760
    %v4533 = vsub.f32 %v211, %v4532
    %v4534 = vand.u32 %v4533, 4294901760
    %v4535 = vsub.f32 %v4533, %v4534
    %v4536 = vand.u32 %v4535, 4294901760
    %4537 = vmatprep.mubr.f32.mxu0 %v4536
    %v4538 = vand.u32 %v210, 4294901760
    %v4539 = vsub.f32 %v210, %v4538
    %v4540 = vand.u32 %v4539, 4294901760
    %v4541 = vsub.f32 %v4539, %v4540
    %v4542 = vand.u32 %v4541, 4294901760
    %4543 = vmatmul.mubr.f32.gmra.mxu0 %v4542
    %v4544 = vpop.f32.mrf.mxu0
    %v4545 = vadd.f32 %v4225, %v4544
    %v4546 = vpop.f32.mrf.mxu0
    %v4547 = vand.u32 %v213, 4294901760
    %v4548 = vsub.f32 %v213, %v4547
    %v4549 = vand.u32 %v4548, 4294901760
    %v4550 = vsub.f32 %v4548, %v4549
    %v4551 = vand.u32 %v4550, 4294901760
    %4552 = vmatprep.mubr.f32.mxu0 %v4551
    %v4553 = vand.u32 %v212, 4294901760
    %v4554 = vsub.f32 %v212, %v4553
    %v4555 = vand.u32 %v4554, 4294901760
    %v4556 = vsub.f32 %v4554, %v4555
    %v4557 = vand.u32 %v4556, 4294901760
    %4558 = vmatmul.mubr.f32.gmra.mxu0 %v4557
    %v4559 = vpop.f32.mrf.mxu0
    %v4560 = vadd.f32 %v4225, %v4559
    %v4561 = vpop.f32.mrf.mxu0
    %v4562 = vand.u32 %v215, 4294901760
    %v4563 = vsub.f32 %v215, %v4562
    %v4564 = vand.u32 %v4563, 4294901760
    %v4565 = vsub.f32 %v4563, %v4564
    %v4566 = vand.u32 %v4565, 4294901760
    %4567 = vmatprep.mubr.f32.mxu0 %v4566
    %v4568 = vand.u32 %v214, 4294901760
    %v4569 = vsub.f32 %v214, %v4568
    %v4570 = vand.u32 %v4569, 4294901760
    %v4571 = vsub.f32 %v4569, %v4570
    %v4572 = vand.u32 %v4571, 4294901760
    %4573 = vmatmul.mubr.f32.gmra.mxu0 %v4572
    %v4574 = vpop.f32.mrf.mxu0
    %v4575 = vadd.f32 %v4225, %v4574
    %v4576 = vpop.f32.mrf.mxu0
    %v4577 = vand.u32 %v217, 4294901760
    %v4578 = vsub.f32 %v217, %v4577
    %v4579 = vand.u32 %v4578, 4294901760
    %v4580 = vsub.f32 %v4578, %v4579
    %v4581 = vand.u32 %v4580, 4294901760
    %4582 = vmatprep.mubr.f32.mxu0 %v4581
    %v4583 = vand.u32 %v216, 4294901760
    %v4584 = vsub.f32 %v216, %v4583
    %v4585 = vand.u32 %v4584, 4294901760
    %v4586 = vsub.f32 %v4584, %v4585
    %v4587 = vand.u32 %v4586, 4294901760
    %4588 = vmatmul.mubr.f32.gmra.mxu0 %v4587
    %v4589 = vpop.f32.mrf.mxu0
    %v4590 = vadd.f32 %v4225, %v4589
    %v4591 = vpop.f32.mrf.mxu0
    %v4592 = vand.u32 %v219, 4294901760
    %v4593 = vsub.f32 %v219, %v4592
    %v4594 = vand.u32 %v4593, 4294901760
    %v4595 = vsub.f32 %v4593, %v4594
    %v4596 = vand.u32 %v4595, 4294901760
    %4597 = vmatprep.mubr.f32.mxu0 %v4596
    %v4598 = vand.u32 %v218, 4294901760
    %v4599 = vsub.f32 %v218, %v4598
    %v4600 = vand.u32 %v4599, 4294901760
    %v4601 = vsub.f32 %v4599, %v4600
    %v4602 = vand.u32 %v4601, 4294901760
    %4603 = vmatmul.mubr.f32.gmra.mxu0 %v4602
    %v4604 = vpop.f32.mrf.mxu0
    %v4605 = vadd.f32 %v4225, %v4604
    %v4606 = vpop.f32.mrf.mxu0
    %v4607 = vand.u32 %v221, 4294901760
    %v4608 = vsub.f32 %v221, %v4607
    %v4609 = vand.u32 %v4608, 4294901760
    %v4610 = vsub.f32 %v4608, %v4609
    %v4611 = vand.u32 %v4610, 4294901760
    %4612 = vmatprep.mubr.f32.mxu0 %v4611
    %v4613 = vand.u32 %v220, 4294901760
    %v4614 = vsub.f32 %v220, %v4613
    %v4615 = vand.u32 %v4614, 4294901760
    %v4616 = vsub.f32 %v4614, %v4615
    %v4617 = vand.u32 %v4616, 4294901760
    %4618 = vmatmul.mubr.f32.gmra.mxu0 %v4617
    %v4619 = vpop.f32.mrf.mxu0
    %v4620 = vadd.f32 %v4225, %v4619
    %v4621 = vpop.f32.mrf.mxu0
    %v4622 = vand.u32 %v223, 4294901760
    %v4623 = vsub.f32 %v223, %v4622
    %v4624 = vand.u32 %v4623, 4294901760
    %v4625 = vsub.f32 %v4623, %v4624
    %v4626 = vand.u32 %v4625, 4294901760
    %4627 = vmatprep.mubr.f32.mxu0 %v4626
    %v4628 = vand.u32 %v222, 4294901760
    %v4629 = vsub.f32 %v222, %v4628
    %v4630 = vand.u32 %v4629, 4294901760
    %v4631 = vsub.f32 %v4629, %v4630
    %v4632 = vand.u32 %v4631, 4294901760
    %4633 = vmatmul.mubr.f32.gmra.mxu0 %v4632
    %v4634 = vpop.f32.mrf.mxu0
    %v4635 = vadd.f32 %v4225, %v4634
    %v4636 = vpop.f32.mrf.mxu0
    %v4637 = vand.u32 %v225, 4294901760
    %v4638 = vsub.f32 %v225, %v4637
    %v4639 = vand.u32 %v4638, 4294901760
    %v4640 = vsub.f32 %v4638, %v4639
    %v4641 = vand.u32 %v4640, 4294901760
    %4642 = vmatprep.mubr.f32.mxu0 %v4641
    %v4643 = vand.u32 %v224, 4294901760
    %v4644 = vsub.f32 %v224, %v4643
    %v4645 = vand.u32 %v4644, 4294901760
    %v4646 = vsub.f32 %v4644, %v4645
    %v4647 = vand.u32 %v4646, 4294901760
    %4648 = vmatmul.mubr.f32.gmra.mxu0 %v4647
    %v4649 = vpop.f32.mrf.mxu0
    %v4650 = vadd.f32 %v4225, %v4649
    %v4651 = vpop.f32.mrf.mxu0
    %v4652 = vand.u32 %v227, 4294901760
    %v4653 = vsub.f32 %v227, %v4652
    %v4654 = vand.u32 %v4653, 4294901760
    %v4655 = vsub.f32 %v4653, %v4654
    %v4656 = vand.u32 %v4655, 4294901760
    %4657 = vmatprep.mubr.f32.mxu0 %v4656
    %v4658 = vand.u32 %v226, 4294901760
    %v4659 = vsub.f32 %v226, %v4658
    %v4660 = vand.u32 %v4659, 4294901760
    %v4661 = vsub.f32 %v4659, %v4660
    %v4662 = vand.u32 %v4661, 4294901760
    %4663 = vmatmul.mubr.f32.gmra.mxu0 %v4662
    %v4664 = vpop.f32.mrf.mxu0
    %v4665 = vadd.f32 %v4225, %v4664
    %v4666 = vpop.f32.mrf.mxu0
    %v4667 = vand.u32 %v229, 4294901760
    %v4668 = vsub.f32 %v229, %v4667
    %v4669 = vand.u32 %v4668, 4294901760
    %v4670 = vsub.f32 %v4668, %v4669
    %v4671 = vand.u32 %v4670, 4294901760
    %4672 = vmatprep.mubr.f32.mxu0 %v4671
    %v4673 = vand.u32 %v228, 4294901760
    %v4674 = vsub.f32 %v228, %v4673
    %v4675 = vand.u32 %v4674, 4294901760
    %v4676 = vsub.f32 %v4674, %v4675
    %v4677 = vand.u32 %v4676, 4294901760
    %4678 = vmatmul.mubr.f32.gmra.mxu0 %v4677
    %v4679 = vpop.f32.mrf.mxu0
    %v4680 = vadd.f32 %v4225, %v4679
    %v4681 = vpop.f32.mrf.mxu0
    %v4682 = vand.u32 %v231, 4294901760
    %v4683 = vsub.f32 %v231, %v4682
    %v4684 = vand.u32 %v4683, 4294901760
    %v4685 = vsub.f32 %v4683, %v4684
    %v4686 = vand.u32 %v4685, 4294901760
    %4687 = vmatprep.mubr.f32.mxu0 %v4686
    %v4688 = vand.u32 %v230, 4294901760
    %v4689 = vsub.f32 %v230, %v4688
    %v4690 = vand.u32 %v4689, 4294901760
    %v4691 = vsub.f32 %v4689, %v4690
    %v4692 = vand.u32 %v4691, 4294901760
    %4693 = vmatmul.mubr.f32.gmra.mxu0 %v4692
    %v4694 = vpop.f32.mrf.mxu0
    %v4695 = vadd.f32 %v4225, %v4694
    %v4696 = vpop.f32.mrf.mxu0
    %v4697 = vand.u32 %v233, 4294901760
    %v4698 = vsub.f32 %v233, %v4697
    %v4699 = vand.u32 %v4698, 4294901760
    %v4700 = vsub.f32 %v4698, %v4699
    %v4701 = vand.u32 %v4700, 4294901760
    %4702 = vmatprep.mubr.f32.mxu0 %v4701
    %v4703 = vand.u32 %v232, 4294901760
    %v4704 = vsub.f32 %v232, %v4703
    %v4705 = vand.u32 %v4704, 4294901760
    %v4706 = vsub.f32 %v4704, %v4705
    %v4707 = vand.u32 %v4706, 4294901760
    %4708 = vmatmul.mubr.f32.gmra.mxu0 %v4707
    %v4709 = vpop.f32.mrf.mxu0
    %v4710 = vadd.f32 %v4225, %v4709
    %v4711 = vpop.f32.mrf.mxu0
    %v4712 = vand.u32 %v235, 4294901760
    %v4713 = vsub.f32 %v235, %v4712
    %v4714 = vand.u32 %v4713, 4294901760
    %v4715 = vsub.f32 %v4713, %v4714
    %v4716 = vand.u32 %v4715, 4294901760
    %4717 = vmatprep.mubr.f32.mxu0 %v4716
    %v4718 = vand.u32 %v234, 4294901760
    %v4719 = vsub.f32 %v234, %v4718
    %v4720 = vand.u32 %v4719, 4294901760
    %v4721 = vsub.f32 %v4719, %v4720
    %v4722 = vand.u32 %v4721, 4294901760
    %4723 = vmatmul.mubr.f32.gmra.mxu0 %v4722
    %v4724 = vpop.f32.mrf.mxu0
    %v4725 = vadd.f32 %v4225, %v4724
    %v4726 = vpop.f32.mrf.mxu0
    %v4727 = vand.u32 %v237, 4294901760
    %v4728 = vsub.f32 %v237, %v4727
    %v4729 = vand.u32 %v4728, 4294901760
    %v4730 = vsub.f32 %v4728, %v4729
    %v4731 = vand.u32 %v4730, 4294901760
    %4732 = vmatprep.mubr.f32.mxu0 %v4731
    %v4733 = vand.u32 %v236, 4294901760
    %v4734 = vsub.f32 %v236, %v4733
    %v4735 = vand.u32 %v4734, 4294901760
    %v4736 = vsub.f32 %v4734, %v4735
    %v4737 = vand.u32 %v4736, 4294901760
    %4738 = vmatmul.mubr.f32.gmra.mxu0 %v4737
    %v4739 = vpop.f32.mrf.mxu0
    %v4740 = vadd.f32 %v4225, %v4739
    %v4741 = vpop.f32.mrf.mxu0
    %v4742 = vand.u32 %v239, 4294901760
    %v4743 = vsub.f32 %v239, %v4742
    %v4744 = vand.u32 %v4743, 4294901760
    %v4745 = vsub.f32 %v4743, %v4744
    %v4746 = vand.u32 %v4745, 4294901760
    %4747 = vmatprep.mubr.f32.mxu0 %v4746
    %v4748 = vand.u32 %v238, 4294901760
    %v4749 = vsub.f32 %v238, %v4748
    %v4750 = vand.u32 %v4749, 4294901760
    %v4751 = vsub.f32 %v4749, %v4750
    %v4752 = vand.u32 %v4751, 4294901760
    %4753 = vmatmul.mubr.f32.gmra.mxu0 %v4752
    %v4754 = vpop.f32.mrf.mxu0
    %v4755 = vadd.f32 %v4225, %v4754
    %v4756 = vpop.f32.mrf.mxu0
    %v4757 = vand.u32 %v241, 4294901760
    %v4758 = vsub.f32 %v241, %v4757
    %v4759 = vand.u32 %v4758, 4294901760
    %v4760 = vsub.f32 %v4758, %v4759
    %v4761 = vand.u32 %v4760, 4294901760
    %4762 = vmatprep.mubr.f32.mxu0 %v4761
    %v4763 = vand.u32 %v240, 4294901760
    %v4764 = vsub.f32 %v240, %v4763
    %v4765 = vand.u32 %v4764, 4294901760
    %v4766 = vsub.f32 %v4764, %v4765
    %v4767 = vand.u32 %v4766, 4294901760
    %4768 = vmatmul.mubr.f32.gmra.mxu0 %v4767
    %v4769 = vpop.f32.mrf.mxu0
    %v4770 = vadd.f32 %v4225, %v4769
    %v4771 = vpop.f32.mrf.mxu0
    %v4772 = vand.u32 %v243, 4294901760
    %v4773 = vsub.f32 %v243, %v4772
    %v4774 = vand.u32 %v4773, 4294901760
    %v4775 = vsub.f32 %v4773, %v4774
    %v4776 = vand.u32 %v4775, 4294901760
    %4777 = vmatprep.mubr.f32.mxu0 %v4776
    %v4778 = vand.u32 %v242, 4294901760
    %v4779 = vsub.f32 %v242, %v4778
    %v4780 = vand.u32 %v4779, 4294901760
    %v4781 = vsub.f32 %v4779, %v4780
    %v4782 = vand.u32 %v4781, 4294901760
    %4783 = vmatmul.mubr.f32.gmra.mxu0 %v4782
    %v4784 = vpop.f32.mrf.mxu0
    %v4785 = vadd.f32 %v4225, %v4784
    %v4786 = vpop.f32.mrf.mxu0
    %v4787 = vand.u32 %v245, 4294901760
    %v4788 = vsub.f32 %v245, %v4787
    %v4789 = vand.u32 %v4788, 4294901760
    %v4790 = vsub.f32 %v4788, %v4789
    %v4791 = vand.u32 %v4790, 4294901760
    %4792 = vmatprep.mubr.f32.mxu0 %v4791
    %v4793 = vand.u32 %v244, 4294901760
    %v4794 = vsub.f32 %v244, %v4793
    %v4795 = vand.u32 %v4794, 4294901760
    %v4796 = vsub.f32 %v4794, %v4795
    %v4797 = vand.u32 %v4796, 4294901760
    %4798 = vmatmul.mubr.f32.gmra.mxu0 %v4797
    %v4799 = vpop.f32.mrf.mxu0
    %v4800 = vadd.f32 %v4225, %v4799
    %v4801 = vpop.f32.mrf.mxu0
    %4802 = vdwg.mxu0
    %4803 = vmatprep.subr.mxu0 0.0
    %v4804 = vand.u32 %v4092, 4294901760
    %v4805 = vsub.f32 %v4092, %v4804
    %v4806 = vand.u32 %v4805, 4294901760
    %v4807 = vsub.f32 %v4805, %v4806
    %v4808 = vand.u32 %v4807, 4294901760
    %4809 = vmatpush1.msra.mxu0 %v4808
    %4810 = vmatprep.subr.mxu0 0.0
    %v4811 = vand.u32 %v4089, 4294901760
    %v4812 = vsub.f32 %v4089, %v4811
    %v4813 = vand.u32 %v4812, 4294901760
    %v4814 = vsub.f32 %v4812, %v4813
    %v4815 = vand.u32 %v4814, 4294901760
    %4816 = vmatpush1.msra.mxu0 %v4815
    %4817 = vmatprep.subr.mxu0 0.0
    %v4818 = vand.u32 %v4084, 4294901760
    %v4819 = vsub.f32 %v4084, %v4818
    %v4820 = vand.u32 %v4819, 4294901760
    %v4821 = vsub.f32 %v4819, %v4820
    %v4822 = vand.u32 %v4821, 4294901760
    %4823 = vmatpush1.msra.mxu0 %v4822
    %4824 = vmatprep.subr.mxu0 0.0
    %v4825 = vand.u32 %v4081, 4294901760
    %v4826 = vsub.f32 %v4081, %v4825
    %v4827 = vand.u32 %v4826, 4294901760
    %v4828 = vsub.f32 %v4826, %v4827
    %v4829 = vand.u32 %v4828, 4294901760
    %4830 = vmatpush1.msra.mxu0 %v4829
    %4831 = vmatprep.subr.mxu0 0.0
    %v4832 = vand.u32 %v4076, 4294901760
    %v4833 = vsub.f32 %v4076, %v4832
    %v4834 = vand.u32 %v4833, 4294901760
    %v4835 = vsub.f32 %v4833, %v4834
    %v4836 = vand.u32 %v4835, 4294901760
    %4837 = vmatpush1.msra.mxu0 %v4836
    %4838 = vmatprep.subr.mxu0 0.0
    %v4839 = vand.u32 %v4073, 4294901760
    %v4840 = vsub.f32 %v4073, %v4839
    %v4841 = vand.u32 %v4840, 4294901760
    %v4842 = vsub.f32 %v4840, %v4841
    %v4843 = vand.u32 %v4842, 4294901760
    %4844 = vmatpush1.msra.mxu0 %v4843
    %4845 = vmatprep.subr.mxu0 0.0
    %v4846 = vand.u32 %v4068, 4294901760
    %v4847 = vsub.f32 %v4068, %v4846
    %v4848 = vand.u32 %v4847, 4294901760
    %v4849 = vsub.f32 %v4847, %v4848
    %v4850 = vand.u32 %v4849, 4294901760
    %4851 = vmatpush1.msra.mxu0 %v4850
    %4852 = vmatprep.subr.mxu0 0.0
    %v4853 = vand.u32 %v4065, 4294901760
    %v4854 = vsub.f32 %v4065, %v4853
    %v4855 = vand.u32 %v4854, 4294901760
    %v4856 = vsub.f32 %v4854, %v4855
    %v4857 = vand.u32 %v4856, 4294901760
    %4858 = vmatpush1.msra.mxu0 %v4857
    %4859 = vmatprep.subr.mxu0 0.0
    %v4860 = vand.u32 %v4060, 4294901760
    %v4861 = vsub.f32 %v4060, %v4860
    %v4862 = vand.u32 %v4861, 4294901760
    %v4863 = vsub.f32 %v4861, %v4862
    %v4864 = vand.u32 %v4863, 4294901760
    %4865 = vmatpush1.msra.mxu0 %v4864
    %4866 = vmatprep.subr.mxu0 0.0
    %v4867 = vand.u32 %v4057, 4294901760
    %v4868 = vsub.f32 %v4057, %v4867
    %v4869 = vand.u32 %v4868, 4294901760
    %v4870 = vsub.f32 %v4868, %v4869
    %v4871 = vand.u32 %v4870, 4294901760
    %4872 = vmatpush1.msra.mxu0 %v4871
    %4873 = vmatprep.subr.mxu0 0.0
    %v4874 = vand.u32 %v4052, 4294901760
    %v4875 = vsub.f32 %v4052, %v4874
    %v4876 = vand.u32 %v4875, 4294901760
    %v4877 = vsub.f32 %v4875, %v4876
    %v4878 = vand.u32 %v4877, 4294901760
    %4879 = vmatpush1.msra.mxu0 %v4878
    %4880 = vmatprep.subr.mxu0 0.0
    %v4881 = vand.u32 %v4049, 4294901760
    %v4882 = vsub.f32 %v4049, %v4881
    %v4883 = vand.u32 %v4882, 4294901760
    %v4884 = vsub.f32 %v4882, %v4883
    %v4885 = vand.u32 %v4884, 4294901760
    %4886 = vmatpush1.msra.mxu0 %v4885
    %4887 = vmatprep.subr.mxu0 0.0
    %v4888 = vand.u32 %v4044, 4294901760
    %v4889 = vsub.f32 %v4044, %v4888
    %v4890 = vand.u32 %v4889, 4294901760
    %v4891 = vsub.f32 %v4889, %v4890
    %v4892 = vand.u32 %v4891, 4294901760
    %4893 = vmatpush1.msra.mxu0 %v4892
    %4894 = vmatprep.subr.mxu0 0.0
    %v4895 = vand.u32 %v4041, 4294901760
    %v4896 = vsub.f32 %v4041, %v4895
    %v4897 = vand.u32 %v4896, 4294901760
    %v4898 = vsub.f32 %v4896, %v4897
    %v4899 = vand.u32 %v4898, 4294901760
    %4900 = vmatpush1.msra.mxu0 %v4899
    %4901 = vmatprep.subr.mxu0 0.0
    %v4902 = vand.u32 %v4036, 4294901760
    %v4903 = vsub.f32 %v4036, %v4902
    %v4904 = vand.u32 %v4903, 4294901760
    %v4905 = vsub.f32 %v4903, %v4904
    %v4906 = vand.u32 %v4905, 4294901760
    %4907 = vmatpush1.msra.mxu0 %v4906
    %4908 = vmatprep.subr.mxu0 0.0
    %v4909 = vand.u32 %v4033, 4294901760
    %v4910 = vsub.f32 %v4033, %v4909
    %v4911 = vand.u32 %v4910, 4294901760
    %v4912 = vsub.f32 %v4910, %v4911
    %v4913 = vand.u32 %v4912, 4294901760
    %4914 = vmatpush1.msra.mxu0 %v4913
    %4915 = vmatprep.subr.mxu0 0.0
    %v4916 = vand.u32 %v4156, 4294901760
    %v4917 = vsub.f32 %v4156, %v4916
    %v4918 = vand.u32 %v4917, 4294901760
    %v4919 = vsub.f32 %v4917, %v4918
    %v4920 = vand.u32 %v4919, 4294901760
    %4921 = vmatpush2.msra.mxu0 %v4920
    %4922 = vmatprep.subr.mxu0 0.0
    %v4923 = vand.u32 %v4153, 4294901760
    %v4924 = vsub.f32 %v4153, %v4923
    %v4925 = vand.u32 %v4924, 4294901760
    %v4926 = vsub.f32 %v4924, %v4925
    %v4927 = vand.u32 %v4926, 4294901760
    %4928 = vmatpush2.msra.mxu0 %v4927
    %4929 = vmatprep.subr.mxu0 0.0
    %v4930 = vand.u32 %v4148, 4294901760
    %v4931 = vsub.f32 %v4148, %v4930
    %v4932 = vand.u32 %v4931, 4294901760
    %v4933 = vsub.f32 %v4931, %v4932
    %v4934 = vand.u32 %v4933, 4294901760
    %4935 = vmatpush2.msra.mxu0 %v4934
    %4936 = vmatprep.subr.mxu0 0.0
    %v4937 = vand.u32 %v4145, 4294901760
    %v4938 = vsub.f32 %v4145, %v4937
    %v4939 = vand.u32 %v4938, 4294901760
    %v4940 = vsub.f32 %v4938, %v4939
    %v4941 = vand.u32 %v4940, 4294901760
    %4942 = vmatpush2.msra.mxu0 %v4941
    %4943 = vmatprep.subr.mxu0 0.0
    %v4944 = vand.u32 %v4140, 4294901760
    %v4945 = vsub.f32 %v4140, %v4944
    %v4946 = vand.u32 %v4945, 4294901760
    %v4947 = vsub.f32 %v4945, %v4946
    %v4948 = vand.u32 %v4947, 4294901760
    %4949 = vmatpush2.msra.mxu0 %v4948
    %4950 = vmatprep.subr.mxu0 0.0
    %v4951 = vand.u32 %v4137, 4294901760
    %v4952 = vsub.f32 %v4137, %v4951
    %v4953 = vand.u32 %v4952, 4294901760
    %v4954 = vsub.f32 %v4952, %v4953
    %v4955 = vand.u32 %v4954, 4294901760
    %4956 = vmatpush2.msra.mxu0 %v4955
    %4957 = vmatprep.subr.mxu0 0.0
    %v4958 = vand.u32 %v4132, 4294901760
    %v4959 = vsub.f32 %v4132, %v4958
    %v4960 = vand.u32 %v4959, 4294901760
    %v4961 = vsub.f32 %v4959, %v4960
    %v4962 = vand.u32 %v4961, 4294901760
    %4963 = vmatpush2.msra.mxu0 %v4962
    %4964 = vmatprep.subr.mxu0 0.0
    %v4965 = vand.u32 %v4129, 4294901760
    %v4966 = vsub.f32 %v4129, %v4965
    %v4967 = vand.u32 %v4966, 4294901760
    %v4968 = vsub.f32 %v4966, %v4967
    %v4969 = vand.u32 %v4968, 4294901760
    %4970 = vmatpush2.msra.mxu0 %v4969
    %4971 = vmatprep.subr.mxu0 0.0
    %v4972 = vand.u32 %v4124, 4294901760
    %v4973 = vsub.f32 %v4124, %v4972
    %v4974 = vand.u32 %v4973, 4294901760
    %v4975 = vsub.f32 %v4973, %v4974
    %v4976 = vand.u32 %v4975, 4294901760
    %4977 = vmatpush2.msra.mxu0 %v4976
    %4978 = vmatprep.subr.mxu0 0.0
    %v4979 = vand.u32 %v4121, 4294901760
    %v4980 = vsub.f32 %v4121, %v4979
    %v4981 = vand.u32 %v4980, 4294901760
    %v4982 = vsub.f32 %v4980, %v4981
    %v4983 = vand.u32 %v4982, 4294901760
    %4984 = vmatpush2.msra.mxu0 %v4983
    %4985 = vmatprep.subr.mxu0 0.0
    %v4986 = vand.u32 %v4116, 4294901760
    %v4987 = vsub.f32 %v4116, %v4986
    %v4988 = vand.u32 %v4987, 4294901760
    %v4989 = vsub.f32 %v4987, %v4988
    %v4990 = vand.u32 %v4989, 4294901760
    %4991 = vmatpush2.msra.mxu0 %v4990
    %4992 = vmatprep.subr.mxu0 0.0
    %v4993 = vand.u32 %v4113, 4294901760
    %v4994 = vsub.f32 %v4113, %v4993
    %v4995 = vand.u32 %v4994, 4294901760
    %v4996 = vsub.f32 %v4994, %v4995
    %v4997 = vand.u32 %v4996, 4294901760
    %4998 = vmatpush2.msra.mxu0 %v4997
    %4999 = vmatprep.subr.mxu0 0.0
    %v5000 = vand.u32 %v4108, 4294901760
    %v5001 = vsub.f32 %v4108, %v5000
    %v5002 = vand.u32 %v5001, 4294901760
    %v5003 = vsub.f32 %v5001, %v5002
    %v5004 = vand.u32 %v5003, 4294901760
    %5005 = vmatpush2.msra.mxu0 %v5004
    %5006 = vmatprep.subr.mxu0 0.0
    %v5007 = vand.u32 %v4105, 4294901760
    %v5008 = vsub.f32 %v4105, %v5007
    %v5009 = vand.u32 %v5008, 4294901760
    %v5010 = vsub.f32 %v5008, %v5009
    %v5011 = vand.u32 %v5010, 4294901760
    %5012 = vmatpush2.msra.mxu0 %v5011
    %5013 = vmatprep.subr.mxu0 0.0
    %v5014 = vand.u32 %v4100, 4294901760
    %v5015 = vsub.f32 %v4100, %v5014
    %v5016 = vand.u32 %v5015, 4294901760
    %v5017 = vsub.f32 %v5015, %v5016
    %v5018 = vand.u32 %v5017, 4294901760
    %5019 = vmatpush2.msra.mxu0 %v5018
    %5020 = vmatprep.subr.mxu0 0.0
    %v5021 = vand.u32 %v4097, 4294901760
    %v5022 = vsub.f32 %v4097, %v5021
    %v5023 = vand.u32 %v5022, 4294901760
    %v5024 = vsub.f32 %v5022, %v5023
    %v5025 = vand.u32 %v5024, 4294901760
    %5026 = vmatpush2.msra.mxu0 %v5025
    %v5027 = vand.u32 %v183, 4294901760
    %5028 = vmatprep.mubr.f32.mxu0 %v5027
    %v5029 = vand.u32 %v182, 4294901760
    %5030 = vmatmul.mubr.f32.gmra.mxu0 %v5029
    %v5031 = vpop.f32.mrf.mxu0
    %v5032 = vadd.f32 %v4335, %v5031
    %v5033 = vpop.f32.mrf.mxu0
    %v5034 = vand.u32 %v185, 4294901760
    %5035 = vmatprep.mubr.f32.mxu0 %v5034
    %v5036 = vand.u32 %v184, 4294901760
    %5037 = vmatmul.mubr.f32.gmra.mxu0 %v5036
    %v5038 = vpop.f32.mrf.mxu0
    %v5039 = vadd.f32 %v4350, %v5038
    %v5040 = vpop.f32.mrf.mxu0
    %v5041 = vand.u32 %v187, 4294901760
    %5042 = vmatprep.mubr.f32.mxu0 %v5041
    %v5043 = vand.u32 %v186, 4294901760
    %5044 = vmatmul.mubr.f32.gmra.mxu0 %v5043
    %v5045 = vpop.f32.mrf.mxu0
    %v5046 = vadd.f32 %v4365, %v5045
    %v5047 = vpop.f32.mrf.mxu0
    %v5048 = vand.u32 %v189, 4294901760
    %5049 = vmatprep.mubr.f32.mxu0 %v5048
    %v5050 = vand.u32 %v188, 4294901760
    %5051 = vmatmul.mubr.f32.gmra.mxu0 %v5050
    %v5052 = vpop.f32.mrf.mxu0
    %v5053 = vadd.f32 %v4380, %v5052
    %v5054 = vpop.f32.mrf.mxu0
    %v5055 = vand.u32 %v191, 4294901760
    %5056 = vmatprep.mubr.f32.mxu0 %v5055
    %v5057 = vand.u32 %v190, 4294901760
    %5058 = vmatmul.mubr.f32.gmra.mxu0 %v5057
    %v5059 = vpop.f32.mrf.mxu0
    %v5060 = vadd.f32 %v4395, %v5059
    %v5061 = vpop.f32.mrf.mxu0
    %v5062 = vand.u32 %v193, 4294901760
    %5063 = vmatprep.mubr.f32.mxu0 %v5062
    %v5064 = vand.u32 %v192, 4294901760
    %5065 = vmatmul.mubr.f32.gmra.mxu0 %v5064
    %v5066 = vpop.f32.mrf.mxu0
    %v5067 = vadd.f32 %v4410, %v5066
    %v5068 = vpop.f32.mrf.mxu0
    %v5069 = vand.u32 %v195, 4294901760
    %5070 = vmatprep.mubr.f32.mxu0 %v5069
    %v5071 = vand.u32 %v194, 4294901760
    %5072 = vmatmul.mubr.f32.gmra.mxu0 %v5071
    %v5073 = vpop.f32.mrf.mxu0
    %v5074 = vadd.f32 %v4425, %v5073
    %v5075 = vpop.f32.mrf.mxu0
    %v5076 = vand.u32 %v197, 4294901760
    %5077 = vmatprep.mubr.f32.mxu0 %v5076
    %v5078 = vand.u32 %v196, 4294901760
    %5079 = vmatmul.mubr.f32.gmra.mxu0 %v5078
    %v5080 = vpop.f32.mrf.mxu0
    %v5081 = vadd.f32 %v4440, %v5080
    %v5082 = vpop.f32.mrf.mxu0
    %v5083 = vand.u32 %v199, 4294901760
    %5084 = vmatprep.mubr.f32.mxu0 %v5083
    %v5085 = vand.u32 %v198, 4294901760
    %5086 = vmatmul.mubr.f32.gmra.mxu0 %v5085
    %v5087 = vpop.f32.mrf.mxu0
    %v5088 = vadd.f32 %v4455, %v5087
    %v5089 = vpop.f32.mrf.mxu0
    %v5090 = vand.u32 %v201, 4294901760
    %5091 = vmatprep.mubr.f32.mxu0 %v5090
    %v5092 = vand.u32 %v200, 4294901760
    %5093 = vmatmul.mubr.f32.gmra.mxu0 %v5092
    %v5094 = vpop.f32.mrf.mxu0
    %v5095 = vadd.f32 %v4470, %v5094
    %v5096 = vpop.f32.mrf.mxu0
    %v5097 = vand.u32 %v203, 4294901760
    %5098 = vmatprep.mubr.f32.mxu0 %v5097
    %v5099 = vand.u32 %v202, 4294901760
    %5100 = vmatmul.mubr.f32.gmra.mxu0 %v5099
    %v5101 = vpop.f32.mrf.mxu0
    %v5102 = vadd.f32 %v4485, %v5101
    %v5103 = vpop.f32.mrf.mxu0
    %v5104 = vand.u32 %v205, 4294901760
    %5105 = vmatprep.mubr.f32.mxu0 %v5104
    %v5106 = vand.u32 %v204, 4294901760
    %5107 = vmatmul.mubr.f32.gmra.mxu0 %v5106
    %v5108 = vpop.f32.mrf.mxu0
    %v5109 = vadd.f32 %v4500, %v5108
    %v5110 = vpop.f32.mrf.mxu0
    %v5111 = vand.u32 %v207, 4294901760
    %5112 = vmatprep.mubr.f32.mxu0 %v5111
    %v5113 = vand.u32 %v206, 4294901760
    %5114 = vmatmul.mubr.f32.gmra.mxu0 %v5113
    %v5115 = vpop.f32.mrf.mxu0
    %v5116 = vadd.f32 %v4515, %v5115
    %v5117 = vpop.f32.mrf.mxu0
    %v5118 = vand.u32 %v209, 4294901760
    %5119 = vmatprep.mubr.f32.mxu0 %v5118
    %v5120 = vand.u32 %v208, 4294901760
    %5121 = vmatmul.mubr.f32.gmra.mxu0 %v5120
    %v5122 = vpop.f32.mrf.mxu0
    %v5123 = vadd.f32 %v4530, %v5122
    %v5124 = vpop.f32.mrf.mxu0
    %v5125 = vand.u32 %v211, 4294901760
    %5126 = vmatprep.mubr.f32.mxu0 %v5125
    %v5127 = vand.u32 %v210, 4294901760
    %5128 = vmatmul.mubr.f32.gmra.mxu0 %v5127
    %v5129 = vpop.f32.mrf.mxu0
    %v5130 = vadd.f32 %v4545, %v5129
    %v5131 = vpop.f32.mrf.mxu0
    %v5132 = vand.u32 %v213, 4294901760
    %5133 = vmatprep.mubr.f32.mxu0 %v5132
    %v5134 = vand.u32 %v212, 4294901760
    %5135 = vmatmul.mubr.f32.gmra.mxu0 %v5134
    %v5136 = vpop.f32.mrf.mxu0
    %v5137 = vadd.f32 %v4560, %v5136
    %v5138 = vpop.f32.mrf.mxu0
    %v5139 = vand.u32 %v215, 4294901760
    %5140 = vmatprep.mubr.f32.mxu0 %v5139
    %v5141 = vand.u32 %v214, 4294901760
    %5142 = vmatmul.mubr.f32.gmra.mxu0 %v5141
    %v5143 = vpop.f32.mrf.mxu0
    %v5144 = vadd.f32 %v4575, %v5143
    %v5145 = vpop.f32.mrf.mxu0
    %v5146 = vand.u32 %v217, 4294901760
    %5147 = vmatprep.mubr.f32.mxu0 %v5146
    %v5148 = vand.u32 %v216, 4294901760
    %5149 = vmatmul.mubr.f32.gmra.mxu0 %v5148
    %v5150 = vpop.f32.mrf.mxu0
    %v5151 = vadd.f32 %v4590, %v5150
    %v5152 = vpop.f32.mrf.mxu0
    %v5153 = vand.u32 %v219, 4294901760
    %5154 = vmatprep.mubr.f32.mxu0 %v5153
    %v5155 = vand.u32 %v218, 4294901760
    %5156 = vmatmul.mubr.f32.gmra.mxu0 %v5155
    %v5157 = vpop.f32.mrf.mxu0
    %v5158 = vadd.f32 %v4605, %v5157
    %v5159 = vpop.f32.mrf.mxu0
    %v5160 = vand.u32 %v221, 4294901760
    %5161 = vmatprep.mubr.f32.mxu0 %v5160
    %v5162 = vand.u32 %v220, 4294901760
    %5163 = vmatmul.mubr.f32.gmra.mxu0 %v5162
    %v5164 = vpop.f32.mrf.mxu0
    %v5165 = vadd.f32 %v4620, %v5164
    %v5166 = vpop.f32.mrf.mxu0
    %v5167 = vand.u32 %v223, 4294901760
    %5168 = vmatprep.mubr.f32.mxu0 %v5167
    %v5169 = vand.u32 %v222, 4294901760
    %5170 = vmatmul.mubr.f32.gmra.mxu0 %v5169
    %v5171 = vpop.f32.mrf.mxu0
    %v5172 = vadd.f32 %v4635, %v5171
    %v5173 = vpop.f32.mrf.mxu0
    %v5174 = vand.u32 %v225, 4294901760
    %5175 = vmatprep.mubr.f32.mxu0 %v5174
    %v5176 = vand.u32 %v224, 4294901760
    %5177 = vmatmul.mubr.f32.gmra.mxu0 %v5176
    %v5178 = vpop.f32.mrf.mxu0
    %v5179 = vadd.f32 %v4650, %v5178
    %v5180 = vpop.f32.mrf.mxu0
    %v5181 = vand.u32 %v227, 4294901760
    %5182 = vmatprep.mubr.f32.mxu0 %v5181
    %v5183 = vand.u32 %v226, 4294901760
    %5184 = vmatmul.mubr.f32.gmra.mxu0 %v5183
    %v5185 = vpop.f32.mrf.mxu0
    %v5186 = vadd.f32 %v4665, %v5185
    %v5187 = vpop.f32.mrf.mxu0
    %v5188 = vand.u32 %v229, 4294901760
    %5189 = vmatprep.mubr.f32.mxu0 %v5188
    %v5190 = vand.u32 %v228, 4294901760
    %5191 = vmatmul.mubr.f32.gmra.mxu0 %v5190
    %v5192 = vpop.f32.mrf.mxu0
    %v5193 = vadd.f32 %v4680, %v5192
    %v5194 = vpop.f32.mrf.mxu0
    %v5195 = vand.u32 %v231, 4294901760
    %5196 = vmatprep.mubr.f32.mxu0 %v5195
    %v5197 = vand.u32 %v230, 4294901760
    %5198 = vmatmul.mubr.f32.gmra.mxu0 %v5197
    %v5199 = vpop.f32.mrf.mxu0
    %v5200 = vadd.f32 %v4695, %v5199
    %v5201 = vpop.f32.mrf.mxu0
    %v5202 = vand.u32 %v233, 4294901760
    %5203 = vmatprep.mubr.f32.mxu0 %v5202
    %v5204 = vand.u32 %v232, 4294901760
    %5205 = vmatmul.mubr.f32.gmra.mxu0 %v5204
    %v5206 = vpop.f32.mrf.mxu0
    %v5207 = vadd.f32 %v4710, %v5206
    %v5208 = vpop.f32.mrf.mxu0
    %v5209 = vand.u32 %v235, 4294901760
    %5210 = vmatprep.mubr.f32.mxu0 %v5209
    %v5211 = vand.u32 %v234, 4294901760
    %5212 = vmatmul.mubr.f32.gmra.mxu0 %v5211
    %v5213 = vpop.f32.mrf.mxu0
    %v5214 = vadd.f32 %v4725, %v5213
    %v5215 = vpop.f32.mrf.mxu0
    %v5216 = vand.u32 %v237, 4294901760
    %5217 = vmatprep.mubr.f32.mxu0 %v5216
    %v5218 = vand.u32 %v236, 4294901760
    %5219 = vmatmul.mubr.f32.gmra.mxu0 %v5218
    %v5220 = vpop.f32.mrf.mxu0
    %v5221 = vadd.f32 %v4740, %v5220
    %v5222 = vpop.f32.mrf.mxu0
    %v5223 = vand.u32 %v239, 4294901760
    %5224 = vmatprep.mubr.f32.mxu0 %v5223
    %v5225 = vand.u32 %v238, 4294901760
    %5226 = vmatmul.mubr.f32.gmra.mxu0 %v5225
    %v5227 = vpop.f32.mrf.mxu0
    %v5228 = vadd.f32 %v4755, %v5227
    %v5229 = vpop.f32.mrf.mxu0
    %v5230 = vand.u32 %v241, 4294901760
    %5231 = vmatprep.mubr.f32.mxu0 %v5230
    %v5232 = vand.u32 %v240, 4294901760
    %5233 = vmatmul.mubr.f32.gmra.mxu0 %v5232
    %v5234 = vpop.f32.mrf.mxu0
    %v5235 = vadd.f32 %v4770, %v5234
    %v5236 = vpop.f32.mrf.mxu0
    %v5237 = vand.u32 %v243, 4294901760
    %5238 = vmatprep.mubr.f32.mxu0 %v5237
    %v5239 = vand.u32 %v242, 4294901760
    %5240 = vmatmul.mubr.f32.gmra.mxu0 %v5239
    %v5241 = vpop.f32.mrf.mxu0
    %v5242 = vadd.f32 %v4785, %v5241
    %v5243 = vpop.f32.mrf.mxu0
    %v5244 = vand.u32 %v245, 4294901760
    %5245 = vmatprep.mubr.f32.mxu0 %v5244
    %v5246 = vand.u32 %v244, 4294901760
    %5247 = vmatmul.mubr.f32.gmra.mxu0 %v5246
    %v5248 = vpop.f32.mrf.mxu0
    %v5249 = vadd.f32 %v4800, %v5248
    %v5250 = vpop.f32.mrf.mxu0
    %5251 = vdwg.mxu0
    %5252 = vmatprep.subr.mxu0 0.0
    %v5253 = vand.u32 %v4092, 4294901760
    %v5254 = vsub.f32 %v4092, %v5253
    %5255 = vmatpush1.msra.mxu0 %v5254
    %5256 = vmatprep.subr.mxu0 0.0
    %v5257 = vand.u32 %v4089, 4294901760
    %v5258 = vsub.f32 %v4089, %v5257
    %5259 = vmatpush1.msra.mxu0 %v5258
    %5260 = vmatprep.subr.mxu0 0.0
    %v5261 = vand.u32 %v4084, 4294901760
    %v5262 = vsub.f32 %v4084, %v5261
    %5263 = vmatpush1.msra.mxu0 %v5262
    %5264 = vmatprep.subr.mxu0 0.0
    %v5265 = vand.u32 %v4081, 4294901760
    %v5266 = vsub.f32 %v4081, %v5265
    %5267 = vmatpush1.msra.mxu0 %v5266
    %5268 = vmatprep.subr.mxu0 0.0
    %v5269 = vand.u32 %v4076, 4294901760
    %v5270 = vsub.f32 %v4076, %v5269
    %5271 = vmatpush1.msra.mxu0 %v5270
    %5272 = vmatprep.subr.mxu0 0.0
    %v5273 = vand.u32 %v4073, 4294901760
    %v5274 = vsub.f32 %v4073, %v5273
    %5275 = vmatpush1.msra.mxu0 %v5274
    %5276 = vmatprep.subr.mxu0 0.0
    %v5277 = vand.u32 %v4068, 4294901760
    %v5278 = vsub.f32 %v4068, %v5277
    %5279 = vmatpush1.msra.mxu0 %v5278
    %5280 = vmatprep.subr.mxu0 0.0
    %v5281 = vand.u32 %v4065, 4294901760
    %v5282 = vsub.f32 %v4065, %v5281
    %5283 = vmatpush1.msra.mxu0 %v5282
    %5284 = vmatprep.subr.mxu0 0.0
    %v5285 = vand.u32 %v4060, 4294901760
    %v5286 = vsub.f32 %v4060, %v5285
    %5287 = vmatpush1.msra.mxu0 %v5286
    %5288 = vmatprep.subr.mxu0 0.0
    %v5289 = vand.u32 %v4057, 4294901760
    %v5290 = vsub.f32 %v4057, %v5289
    %5291 = vmatpush1.msra.mxu0 %v5290
    %5292 = vmatprep.subr.mxu0 0.0
    %v5293 = vand.u32 %v4052, 4294901760
    %v5294 = vsub.f32 %v4052, %v5293
    %5295 = vmatpush1.msra.mxu0 %v5294
    %5296 = vmatprep.subr.mxu0 0.0
    %v5297 = vand.u32 %v4049, 4294901760
    %v5298 = vsub.f32 %v4049, %v5297
    %5299 = vmatpush1.msra.mxu0 %v5298
    %5300 = vmatprep.subr.mxu0 0.0
    %v5301 = vand.u32 %v4044, 4294901760
    %v5302 = vsub.f32 %v4044, %v5301
    %5303 = vmatpush1.msra.mxu0 %v5302
    %5304 = vmatprep.subr.mxu0 0.0
    %v5305 = vand.u32 %v4041, 4294901760
    %v5306 = vsub.f32 %v4041, %v5305
    %5307 = vmatpush1.msra.mxu0 %v5306
    %5308 = vmatprep.subr.mxu0 0.0
    %v5309 = vand.u32 %v4036, 4294901760
    %v5310 = vsub.f32 %v4036, %v5309
    %5311 = vmatpush1.msra.mxu0 %v5310
    %5312 = vmatprep.subr.mxu0 0.0
    %v5313 = vand.u32 %v4033, 4294901760
    %v5314 = vsub.f32 %v4033, %v5313
    %5315 = vmatpush1.msra.mxu0 %v5314
    %5316 = vmatprep.subr.mxu0 0.0
    %v5317 = vand.u32 %v4156, 4294901760
    %v5318 = vsub.f32 %v4156, %v5317
    %5319 = vmatpush2.msra.mxu0 %v5318
    %5320 = vmatprep.subr.mxu0 0.0
    %v5321 = vand.u32 %v4153, 4294901760
    %v5322 = vsub.f32 %v4153, %v5321
    %5323 = vmatpush2.msra.mxu0 %v5322
    %5324 = vmatprep.subr.mxu0 0.0
    %v5325 = vand.u32 %v4148, 4294901760
    %v5326 = vsub.f32 %v4148, %v5325
    %5327 = vmatpush2.msra.mxu0 %v5326
    %5328 = vmatprep.subr.mxu0 0.0
    %v5329 = vand.u32 %v4145, 4294901760
    %v5330 = vsub.f32 %v4145, %v5329
    %5331 = vmatpush2.msra.mxu0 %v5330
    %5332 = vmatprep.subr.mxu0 0.0
    %v5333 = vand.u32 %v4140, 4294901760
    %v5334 = vsub.f32 %v4140, %v5333
    %5335 = vmatpush2.msra.mxu0 %v5334
    %5336 = vmatprep.subr.mxu0 0.0
    %v5337 = vand.u32 %v4137, 4294901760
    %v5338 = vsub.f32 %v4137, %v5337
    %5339 = vmatpush2.msra.mxu0 %v5338
    %5340 = vmatprep.subr.mxu0 0.0
    %v5341 = vand.u32 %v4132, 4294901760
    %v5342 = vsub.f32 %v4132, %v5341
    %5343 = vmatpush2.msra.mxu0 %v5342
    %5344 = vmatprep.subr.mxu0 0.0
    %v5345 = vand.u32 %v4129, 4294901760
    %v5346 = vsub.f32 %v4129, %v5345
    %5347 = vmatpush2.msra.mxu0 %v5346
    %5348 = vmatprep.subr.mxu0 0.0
    %v5349 = vand.u32 %v4124, 4294901760
    %v5350 = vsub.f32 %v4124, %v5349
    %5351 = vmatpush2.msra.mxu0 %v5350
    %5352 = vmatprep.subr.mxu0 0.0
    %v5353 = vand.u32 %v4121, 4294901760
    %v5354 = vsub.f32 %v4121, %v5353
    %5355 = vmatpush2.msra.mxu0 %v5354
    %5356 = vmatprep.subr.mxu0 0.0
    %v5357 = vand.u32 %v4116, 4294901760
    %v5358 = vsub.f32 %v4116, %v5357
    %5359 = vmatpush2.msra.mxu0 %v5358
    %5360 = vmatprep.subr.mxu0 0.0
    %v5361 = vand.u32 %v4113, 4294901760
    %v5362 = vsub.f32 %v4113, %v5361
    %5363 = vmatpush2.msra.mxu0 %v5362
    %5364 = vmatprep.subr.mxu0 0.0
    %v5365 = vand.u32 %v4108, 4294901760
    %v5366 = vsub.f32 %v4108, %v5365
    %5367 = vmatpush2.msra.mxu0 %v5366
    %5368 = vmatprep.subr.mxu0 0.0
    %v5369 = vand.u32 %v4105, 4294901760
    %v5370 = vsub.f32 %v4105, %v5369
    %5371 = vmatpush2.msra.mxu0 %v5370
    %5372 = vmatprep.subr.mxu0 0.0
    %v5373 = vand.u32 %v4100, 4294901760
    %v5374 = vsub.f32 %v4100, %v5373
    %5375 = vmatpush2.msra.mxu0 %v5374
    %5376 = vmatprep.subr.mxu0 0.0
    %v5377 = vand.u32 %v4097, 4294901760
    %v5378 = vsub.f32 %v4097, %v5377
    %5379 = vmatpush2.msra.mxu0 %v5378
    %v5380 = vand.u32 %v183, 4294901760
    %v5381 = vsub.f32 %v183, %v5380
    %5382 = vmatprep.mubr.f32.mxu0 %v5381
    %v5383 = vand.u32 %v182, 4294901760
    %v5384 = vsub.f32 %v182, %v5383
    %5385 = vmatmul.mubr.f32.gmra.mxu0 %v5384
    %v5386 = vpop.f32.mrf.mxu0
    %v5387 = vadd.f32 %v5032, %v5386
    %v5388 = vpop.f32.mrf.mxu0
    %v5389 = vand.u32 %v185, 4294901760
    %v5390 = vsub.f32 %v185, %v5389
    %5391 = vmatprep.mubr.f32.mxu0 %v5390
    %v5392 = vand.u32 %v184, 4294901760
    %v5393 = vsub.f32 %v184, %v5392
    %5394 = vmatmul.mubr.f32.gmra.mxu0 %v5393
    %v5395 = vpop.f32.mrf.mxu0
    %v5396 = vadd.f32 %v5039, %v5395
    %v5397 = vpop.f32.mrf.mxu0
    %v5398 = vand.u32 %v187, 4294901760
    %v5399 = vsub.f32 %v187, %v5398
    %5400 = vmatprep.mubr.f32.mxu0 %v5399
    %v5401 = vand.u32 %v186, 4294901760
    %v5402 = vsub.f32 %v186, %v5401
    %5403 = vmatmul.mubr.f32.gmra.mxu0 %v5402
    %v5404 = vpop.f32.mrf.mxu0
    %v5405 = vadd.f32 %v5046, %v5404
    %v5406 = vpop.f32.mrf.mxu0
    %v5407 = vand.u32 %v189, 4294901760
    %v5408 = vsub.f32 %v189, %v5407
    %5409 = vmatprep.mubr.f32.mxu0 %v5408
    %v5410 = vand.u32 %v188, 4294901760
    %v5411 = vsub.f32 %v188, %v5410
    %5412 = vmatmul.mubr.f32.gmra.mxu0 %v5411
    %v5413 = vpop.f32.mrf.mxu0
    %v5414 = vadd.f32 %v5053, %v5413
    %v5415 = vpop.f32.mrf.mxu0
    %v5416 = vand.u32 %v191, 4294901760
    %v5417 = vsub.f32 %v191, %v5416
    %5418 = vmatprep.mubr.f32.mxu0 %v5417
    %v5419 = vand.u32 %v190, 4294901760
    %v5420 = vsub.f32 %v190, %v5419
    %5421 = vmatmul.mubr.f32.gmra.mxu0 %v5420
    %v5422 = vpop.f32.mrf.mxu0
    %v5423 = vadd.f32 %v5060, %v5422
    %v5424 = vpop.f32.mrf.mxu0
    %v5425 = vand.u32 %v193, 4294901760
    %v5426 = vsub.f32 %v193, %v5425
    %5427 = vmatprep.mubr.f32.mxu0 %v5426
    %v5428 = vand.u32 %v192, 4294901760
    %v5429 = vsub.f32 %v192, %v5428
    %5430 = vmatmul.mubr.f32.gmra.mxu0 %v5429
    %v5431 = vpop.f32.mrf.mxu0
    %v5432 = vadd.f32 %v5067, %v5431
    %v5433 = vpop.f32.mrf.mxu0
    %v5434 = vand.u32 %v195, 4294901760
    %v5435 = vsub.f32 %v195, %v5434
    %5436 = vmatprep.mubr.f32.mxu0 %v5435
    %v5437 = vand.u32 %v194, 4294901760
    %v5438 = vsub.f32 %v194, %v5437
    %5439 = vmatmul.mubr.f32.gmra.mxu0 %v5438
    %v5440 = vpop.f32.mrf.mxu0
    %v5441 = vadd.f32 %v5074, %v5440
    %v5442 = vpop.f32.mrf.mxu0
    %v5443 = vand.u32 %v197, 4294901760
    %v5444 = vsub.f32 %v197, %v5443
    %5445 = vmatprep.mubr.f32.mxu0 %v5444
    %v5446 = vand.u32 %v196, 4294901760
    %v5447 = vsub.f32 %v196, %v5446
    %5448 = vmatmul.mubr.f32.gmra.mxu0 %v5447
    %v5449 = vpop.f32.mrf.mxu0
    %v5450 = vadd.f32 %v5081, %v5449
    %v5451 = vpop.f32.mrf.mxu0
    %v5452 = vand.u32 %v199, 4294901760
    %v5453 = vsub.f32 %v199, %v5452
    %5454 = vmatprep.mubr.f32.mxu0 %v5453
    %v5455 = vand.u32 %v198, 4294901760
    %v5456 = vsub.f32 %v198, %v5455
    %5457 = vmatmul.mubr.f32.gmra.mxu0 %v5456
    %v5458 = vpop.f32.mrf.mxu0
    %v5459 = vadd.f32 %v5088, %v5458
    %v5460 = vpop.f32.mrf.mxu0
    %v5461 = vand.u32 %v201, 4294901760
    %v5462 = vsub.f32 %v201, %v5461
    %5463 = vmatprep.mubr.f32.mxu0 %v5462
    %v5464 = vand.u32 %v200, 4294901760
    %v5465 = vsub.f32 %v200, %v5464
    %5466 = vmatmul.mubr.f32.gmra.mxu0 %v5465
    %v5467 = vpop.f32.mrf.mxu0
    %v5468 = vadd.f32 %v5095, %v5467
    %v5469 = vpop.f32.mrf.mxu0
    %v5470 = vand.u32 %v203, 4294901760
    %v5471 = vsub.f32 %v203, %v5470
    %5472 = vmatprep.mubr.f32.mxu0 %v5471
    %v5473 = vand.u32 %v202, 4294901760
    %v5474 = vsub.f32 %v202, %v5473
    %5475 = vmatmul.mubr.f32.gmra.mxu0 %v5474
    %v5476 = vpop.f32.mrf.mxu0
    %v5477 = vadd.f32 %v5102, %v5476
    %v5478 = vpop.f32.mrf.mxu0
    %v5479 = vand.u32 %v205, 4294901760
    %v5480 = vsub.f32 %v205, %v5479
    %5481 = vmatprep.mubr.f32.mxu0 %v5480
    %v5482 = vand.u32 %v204, 4294901760
    %v5483 = vsub.f32 %v204, %v5482
    %5484 = vmatmul.mubr.f32.gmra.mxu0 %v5483
    %v5485 = vpop.f32.mrf.mxu0
    %v5486 = vadd.f32 %v5109, %v5485
    %v5487 = vpop.f32.mrf.mxu0
    %v5488 = vand.u32 %v207, 4294901760
    %v5489 = vsub.f32 %v207, %v5488
    %5490 = vmatprep.mubr.f32.mxu0 %v5489
    %v5491 = vand.u32 %v206, 4294901760
    %v5492 = vsub.f32 %v206, %v5491
    %5493 = vmatmul.mubr.f32.gmra.mxu0 %v5492
    %v5494 = vpop.f32.mrf.mxu0
    %v5495 = vadd.f32 %v5116, %v5494
    %v5496 = vpop.f32.mrf.mxu0
    %v5497 = vand.u32 %v209, 4294901760
    %v5498 = vsub.f32 %v209, %v5497
    %5499 = vmatprep.mubr.f32.mxu0 %v5498
    %v5500 = vand.u32 %v208, 4294901760
    %v5501 = vsub.f32 %v208, %v5500
    %5502 = vmatmul.mubr.f32.gmra.mxu0 %v5501
    %v5503 = vpop.f32.mrf.mxu0
    %v5504 = vadd.f32 %v5123, %v5503
    %v5505 = vpop.f32.mrf.mxu0
    %v5506 = vand.u32 %v211, 4294901760
    %v5507 = vsub.f32 %v211, %v5506
    %5508 = vmatprep.mubr.f32.mxu0 %v5507
    %v5509 = vand.u32 %v210, 4294901760
    %v5510 = vsub.f32 %v210, %v5509
    %5511 = vmatmul.mubr.f32.gmra.mxu0 %v5510
    %v5512 = vpop.f32.mrf.mxu0
    %v5513 = vadd.f32 %v5130, %v5512
    %v5514 = vpop.f32.mrf.mxu0
    %v5515 = vand.u32 %v213, 4294901760
    %v5516 = vsub.f32 %v213, %v5515
    %5517 = vmatprep.mubr.f32.mxu0 %v5516
    %v5518 = vand.u32 %v212, 4294901760
    %v5519 = vsub.f32 %v212, %v5518
    %5520 = vmatmul.mubr.f32.gmra.mxu0 %v5519
    %v5521 = vpop.f32.mrf.mxu0
    %v5522 = vadd.f32 %v5137, %v5521
    %v5523 = vpop.f32.mrf.mxu0
    %v5524 = vand.u32 %v215, 4294901760
    %v5525 = vsub.f32 %v215, %v5524
    %5526 = vmatprep.mubr.f32.mxu0 %v5525
    %v5527 = vand.u32 %v214, 4294901760
    %v5528 = vsub.f32 %v214, %v5527
    %5529 = vmatmul.mubr.f32.gmra.mxu0 %v5528
    %v5530 = vpop.f32.mrf.mxu0
    %v5531 = vadd.f32 %v5144, %v5530
    %v5532 = vpop.f32.mrf.mxu0
    %v5533 = vand.u32 %v217, 4294901760
    %v5534 = vsub.f32 %v217, %v5533
    %5535 = vmatprep.mubr.f32.mxu0 %v5534
    %v5536 = vand.u32 %v216, 4294901760
    %v5537 = vsub.f32 %v216, %v5536
    %5538 = vmatmul.mubr.f32.gmra.mxu0 %v5537
    %v5539 = vpop.f32.mrf.mxu0
    %v5540 = vadd.f32 %v5151, %v5539
    %v5541 = vpop.f32.mrf.mxu0
    %v5542 = vand.u32 %v219, 4294901760
    %v5543 = vsub.f32 %v219, %v5542
    %5544 = vmatprep.mubr.f32.mxu0 %v5543
    %v5545 = vand.u32 %v218, 4294901760
    %v5546 = vsub.f32 %v218, %v5545
    %5547 = vmatmul.mubr.f32.gmra.mxu0 %v5546
    %v5548 = vpop.f32.mrf.mxu0
    %v5549 = vadd.f32 %v5158, %v5548
    %v5550 = vpop.f32.mrf.mxu0
    %v5551 = vand.u32 %v221, 4294901760
    %v5552 = vsub.f32 %v221, %v5551
    %5553 = vmatprep.mubr.f32.mxu0 %v5552
    %v5554 = vand.u32 %v220, 4294901760
    %v5555 = vsub.f32 %v220, %v5554
    %5556 = vmatmul.mubr.f32.gmra.mxu0 %v5555
    %v5557 = vpop.f32.mrf.mxu0
    %v5558 = vadd.f32 %v5165, %v5557
    %v5559 = vpop.f32.mrf.mxu0
    %v5560 = vand.u32 %v223, 4294901760
    %v5561 = vsub.f32 %v223, %v5560
    %5562 = vmatprep.mubr.f32.mxu0 %v5561
    %v5563 = vand.u32 %v222, 4294901760
    %v5564 = vsub.f32 %v222, %v5563
    %5565 = vmatmul.mubr.f32.gmra.mxu0 %v5564
    %v5566 = vpop.f32.mrf.mxu0
    %v5567 = vadd.f32 %v5172, %v5566
    %v5568 = vpop.f32.mrf.mxu0
    %v5569 = vand.u32 %v225, 4294901760
    %v5570 = vsub.f32 %v225, %v5569
    %5571 = vmatprep.mubr.f32.mxu0 %v5570
    %v5572 = vand.u32 %v224, 4294901760
    %v5573 = vsub.f32 %v224, %v5572
    %5574 = vmatmul.mubr.f32.gmra.mxu0 %v5573
    %v5575 = vpop.f32.mrf.mxu0
    %v5576 = vadd.f32 %v5179, %v5575
    %v5577 = vpop.f32.mrf.mxu0
    %v5578 = vand.u32 %v227, 4294901760
    %v5579 = vsub.f32 %v227, %v5578
    %5580 = vmatprep.mubr.f32.mxu0 %v5579
    %v5581 = vand.u32 %v226, 4294901760
    %v5582 = vsub.f32 %v226, %v5581
    %5583 = vmatmul.mubr.f32.gmra.mxu0 %v5582
    %v5584 = vpop.f32.mrf.mxu0
    %v5585 = vadd.f32 %v5186, %v5584
    %v5586 = vpop.f32.mrf.mxu0
    %v5587 = vand.u32 %v229, 4294901760
    %v5588 = vsub.f32 %v229, %v5587
    %5589 = vmatprep.mubr.f32.mxu0 %v5588
    %v5590 = vand.u32 %v228, 4294901760
    %v5591 = vsub.f32 %v228, %v5590
    %5592 = vmatmul.mubr.f32.gmra.mxu0 %v5591
    %v5593 = vpop.f32.mrf.mxu0
    %v5594 = vadd.f32 %v5193, %v5593
    %v5595 = vpop.f32.mrf.mxu0
    %v5596 = vand.u32 %v231, 4294901760
    %v5597 = vsub.f32 %v231, %v5596
    %5598 = vmatprep.mubr.f32.mxu0 %v5597
    %v5599 = vand.u32 %v230, 4294901760
    %v5600 = vsub.f32 %v230, %v5599
    %5601 = vmatmul.mubr.f32.gmra.mxu0 %v5600
    %v5602 = vpop.f32.mrf.mxu0
    %v5603 = vadd.f32 %v5200, %v5602
    %v5604 = vpop.f32.mrf.mxu0
    %v5605 = vand.u32 %v233, 4294901760
    %v5606 = vsub.f32 %v233, %v5605
    %5607 = vmatprep.mubr.f32.mxu0 %v5606
    %v5608 = vand.u32 %v232, 4294901760
    %v5609 = vsub.f32 %v232, %v5608
    %5610 = vmatmul.mubr.f32.gmra.mxu0 %v5609
    %v5611 = vpop.f32.mrf.mxu0
    %v5612 = vadd.f32 %v5207, %v5611
    %v5613 = vpop.f32.mrf.mxu0
    %v5614 = vand.u32 %v235, 4294901760
    %v5615 = vsub.f32 %v235, %v5614
    %5616 = vmatprep.mubr.f32.mxu0 %v5615
    %v5617 = vand.u32 %v234, 4294901760
    %v5618 = vsub.f32 %v234, %v5617
    %5619 = vmatmul.mubr.f32.gmra.mxu0 %v5618
    %v5620 = vpop.f32.mrf.mxu0
    %v5621 = vadd.f32 %v5214, %v5620
    %v5622 = vpop.f32.mrf.mxu0
    %v5623 = vand.u32 %v237, 4294901760
    %v5624 = vsub.f32 %v237, %v5623
    %5625 = vmatprep.mubr.f32.mxu0 %v5624
    %v5626 = vand.u32 %v236, 4294901760
    %v5627 = vsub.f32 %v236, %v5626
    %5628 = vmatmul.mubr.f32.gmra.mxu0 %v5627
    %v5629 = vpop.f32.mrf.mxu0
    %v5630 = vadd.f32 %v5221, %v5629
    %v5631 = vpop.f32.mrf.mxu0
    %v5632 = vand.u32 %v239, 4294901760
    %v5633 = vsub.f32 %v239, %v5632
    %5634 = vmatprep.mubr.f32.mxu0 %v5633
    %v5635 = vand.u32 %v238, 4294901760
    %v5636 = vsub.f32 %v238, %v5635
    %5637 = vmatmul.mubr.f32.gmra.mxu0 %v5636
    %v5638 = vpop.f32.mrf.mxu0
    %v5639 = vadd.f32 %v5228, %v5638
    %v5640 = vpop.f32.mrf.mxu0
    %v5641 = vand.u32 %v241, 4294901760
    %v5642 = vsub.f32 %v241, %v5641
    %5643 = vmatprep.mubr.f32.mxu0 %v5642
    %v5644 = vand.u32 %v240, 4294901760
    %v5645 = vsub.f32 %v240, %v5644
    %5646 = vmatmul.mubr.f32.gmra.mxu0 %v5645
    %v5647 = vpop.f32.mrf.mxu0
    %v5648 = vadd.f32 %v5235, %v5647
    %v5649 = vpop.f32.mrf.mxu0
    %v5650 = vand.u32 %v243, 4294901760
    %v5651 = vsub.f32 %v243, %v5650
    %5652 = vmatprep.mubr.f32.mxu0 %v5651
    %v5653 = vand.u32 %v242, 4294901760
    %v5654 = vsub.f32 %v242, %v5653
    %5655 = vmatmul.mubr.f32.gmra.mxu0 %v5654
    %v5656 = vpop.f32.mrf.mxu0
    %v5657 = vadd.f32 %v5242, %v5656
    %v5658 = vpop.f32.mrf.mxu0
    %v5659 = vand.u32 %v245, 4294901760
    %v5660 = vsub.f32 %v245, %v5659
    %5661 = vmatprep.mubr.f32.mxu0 %v5660
    %v5662 = vand.u32 %v244, 4294901760
    %v5663 = vsub.f32 %v244, %v5662
    %5664 = vmatmul.mubr.f32.gmra.mxu0 %v5663
    %v5665 = vpop.f32.mrf.mxu0
    %v5666 = vadd.f32 %v5249, %v5665
    %v5667 = vpop.f32.mrf.mxu0
    %5668 = vdwg.mxu0
    %5669 = vmatprep.subr.mxu0 0.0
    %v5670 = vand.u32 %v4092, 4294901760
    %5671 = vmatpush1.msra.mxu0 %v5670
    %5672 = vmatprep.subr.mxu0 0.0
    %v5673 = vand.u32 %v4089, 4294901760
    %5674 = vmatpush1.msra.mxu0 %v5673
    %5675 = vmatprep.subr.mxu0 0.0
    %v5676 = vand.u32 %v4084, 4294901760
    %5677 = vmatpush1.msra.mxu0 %v5676
    %5678 = vmatprep.subr.mxu0 0.0
    %v5679 = vand.u32 %v4081, 4294901760
    %5680 = vmatpush1.msra.mxu0 %v5679
    %5681 = vmatprep.subr.mxu0 0.0
    %v5682 = vand.u32 %v4076, 4294901760
    %5683 = vmatpush1.msra.mxu0 %v5682
    %5684 = vmatprep.subr.mxu0 0.0
    %v5685 = vand.u32 %v4073, 4294901760
    %5686 = vmatpush1.msra.mxu0 %v5685
    %5687 = vmatprep.subr.mxu0 0.0
    %v5688 = vand.u32 %v4068, 4294901760
    %5689 = vmatpush1.msra.mxu0 %v5688
    %5690 = vmatprep.subr.mxu0 0.0
    %v5691 = vand.u32 %v4065, 4294901760
    %5692 = vmatpush1.msra.mxu0 %v5691
    %5693 = vmatprep.subr.mxu0 0.0
    %v5694 = vand.u32 %v4060, 4294901760
    %5695 = vmatpush1.msra.mxu0 %v5694
    %5696 = vmatprep.subr.mxu0 0.0
    %v5697 = vand.u32 %v4057, 4294901760
    %5698 = vmatpush1.msra.mxu0 %v5697
    %5699 = vmatprep.subr.mxu0 0.0
    %v5700 = vand.u32 %v4052, 4294901760
    %5701 = vmatpush1.msra.mxu0 %v5700
    %5702 = vmatprep.subr.mxu0 0.0
    %v5703 = vand.u32 %v4049, 4294901760
    %5704 = vmatpush1.msra.mxu0 %v5703
    %5705 = vmatprep.subr.mxu0 0.0
    %v5706 = vand.u32 %v4044, 4294901760
    %5707 = vmatpush1.msra.mxu0 %v5706
    %5708 = vmatprep.subr.mxu0 0.0
    %v5709 = vand.u32 %v4041, 4294901760
    %5710 = vmatpush1.msra.mxu0 %v5709
    %5711 = vmatprep.subr.mxu0 0.0
    %v5712 = vand.u32 %v4036, 4294901760
    %5713 = vmatpush1.msra.mxu0 %v5712
    %5714 = vmatprep.subr.mxu0 0.0
    %v5715 = vand.u32 %v4033, 4294901760
    %5716 = vmatpush1.msra.mxu0 %v5715
    %5717 = vmatprep.subr.mxu0 0.0
    %v5718 = vand.u32 %v4156, 4294901760
    %5719 = vmatpush2.msra.mxu0 %v5718
    %5720 = vmatprep.subr.mxu0 0.0
    %v5721 = vand.u32 %v4153, 4294901760
    %5722 = vmatpush2.msra.mxu0 %v5721
    %5723 = vmatprep.subr.mxu0 0.0
    %v5724 = vand.u32 %v4148, 4294901760
    %5725 = vmatpush2.msra.mxu0 %v5724
    %5726 = vmatprep.subr.mxu0 0.0
    %v5727 = vand.u32 %v4145, 4294901760
    %5728 = vmatpush2.msra.mxu0 %v5727
    %5729 = vmatprep.subr.mxu0 0.0
    %v5730 = vand.u32 %v4140, 4294901760
    %5731 = vmatpush2.msra.mxu0 %v5730
    %5732 = vmatprep.subr.mxu0 0.0
    %v5733 = vand.u32 %v4137, 4294901760
    %5734 = vmatpush2.msra.mxu0 %v5733
    %5735 = vmatprep.subr.mxu0 0.0
    %v5736 = vand.u32 %v4132, 4294901760
    %5737 = vmatpush2.msra.mxu0 %v5736
    %5738 = vmatprep.subr.mxu0 0.0
    %v5739 = vand.u32 %v4129, 4294901760
    %5740 = vmatpush2.msra.mxu0 %v5739
    %5741 = vmatprep.subr.mxu0 0.0
    %v5742 = vand.u32 %v4124, 4294901760
    %5743 = vmatpush2.msra.mxu0 %v5742
    %5744 = vmatprep.subr.mxu0 0.0
    %v5745 = vand.u32 %v4121, 4294901760
    %5746 = vmatpush2.msra.mxu0 %v5745
    %5747 = vmatprep.subr.mxu0 0.0
    %v5748 = vand.u32 %v4116, 4294901760
    %5749 = vmatpush2.msra.mxu0 %v5748
    %5750 = vmatprep.subr.mxu0 0.0
    %v5751 = vand.u32 %v4113, 4294901760
    %5752 = vmatpush2.msra.mxu0 %v5751
    %5753 = vmatprep.subr.mxu0 0.0
    %v5754 = vand.u32 %v4108, 4294901760
    %5755 = vmatpush2.msra.mxu0 %v5754
    %5756 = vmatprep.subr.mxu0 0.0
    %v5757 = vand.u32 %v4105, 4294901760
    %5758 = vmatpush2.msra.mxu0 %v5757
    %5759 = vmatprep.subr.mxu0 0.0
    %v5760 = vand.u32 %v4100, 4294901760
    %5761 = vmatpush2.msra.mxu0 %v5760
    %5762 = vmatprep.subr.mxu0 0.0
    %v5763 = vand.u32 %v4097, 4294901760
    %5764 = vmatpush2.msra.mxu0 %v5763
    %v5765 = vand.u32 %v183, 4294901760
    %v5766 = vsub.f32 %v183, %v5765
    %v5767 = vand.u32 %v5766, 4294901760
    %5768 = vmatprep.mubr.f32.mxu0 %v5767
    %v5769 = vand.u32 %v182, 4294901760
    %v5770 = vsub.f32 %v182, %v5769
    %v5771 = vand.u32 %v5770, 4294901760
    %5772 = vmatmul.mubr.f32.gmra.mxu0 %v5771
    %v5773 = vpop.f32.mrf.mxu0
    %v5774 = vadd.f32 %v5387, %v5773
    %v5775 = vpop.f32.mrf.mxu0
    %v5776 = vand.u32 %v185, 4294901760
    %v5777 = vsub.f32 %v185, %v5776
    %v5778 = vand.u32 %v5777, 4294901760
    %5779 = vmatprep.mubr.f32.mxu0 %v5778
    %v5780 = vand.u32 %v184, 4294901760
    %v5781 = vsub.f32 %v184, %v5780
    %v5782 = vand.u32 %v5781, 4294901760
    %5783 = vmatmul.mubr.f32.gmra.mxu0 %v5782
    %v5784 = vpop.f32.mrf.mxu0
    %v5785 = vadd.f32 %v5396, %v5784
    %v5786 = vpop.f32.mrf.mxu0
    %v5787 = vand.u32 %v187, 4294901760
    %v5788 = vsub.f32 %v187, %v5787
    %v5789 = vand.u32 %v5788, 4294901760
    %5790 = vmatprep.mubr.f32.mxu0 %v5789
    %v5791 = vand.u32 %v186, 4294901760
    %v5792 = vsub.f32 %v186, %v5791
    %v5793 = vand.u32 %v5792, 4294901760
    %5794 = vmatmul.mubr.f32.gmra.mxu0 %v5793
    %v5795 = vpop.f32.mrf.mxu0
    %v5796 = vadd.f32 %v5405, %v5795
    %v5797 = vpop.f32.mrf.mxu0
    %v5798 = vand.u32 %v189, 4294901760
    %v5799 = vsub.f32 %v189, %v5798
    %v5800 = vand.u32 %v5799, 4294901760
    %5801 = vmatprep.mubr.f32.mxu0 %v5800
    %v5802 = vand.u32 %v188, 4294901760
    %v5803 = vsub.f32 %v188, %v5802
    %v5804 = vand.u32 %v5803, 4294901760
    %5805 = vmatmul.mubr.f32.gmra.mxu0 %v5804
    %v5806 = vpop.f32.mrf.mxu0
    %v5807 = vadd.f32 %v5414, %v5806
    %v5808 = vpop.f32.mrf.mxu0
    %v5809 = vand.u32 %v191, 4294901760
    %v5810 = vsub.f32 %v191, %v5809
    %v5811 = vand.u32 %v5810, 4294901760
    %5812 = vmatprep.mubr.f32.mxu0 %v5811
    %v5813 = vand.u32 %v190, 4294901760
    %v5814 = vsub.f32 %v190, %v5813
    %v5815 = vand.u32 %v5814, 4294901760
    %5816 = vmatmul.mubr.f32.gmra.mxu0 %v5815
    %v5817 = vpop.f32.mrf.mxu0
    %v5818 = vadd.f32 %v5423, %v5817
    %v5819 = vpop.f32.mrf.mxu0
    %v5820 = vand.u32 %v193, 4294901760
    %v5821 = vsub.f32 %v193, %v5820
    %v5822 = vand.u32 %v5821, 4294901760
    %5823 = vmatprep.mubr.f32.mxu0 %v5822
    %v5824 = vand.u32 %v192, 4294901760
    %v5825 = vsub.f32 %v192, %v5824
    %v5826 = vand.u32 %v5825, 4294901760
    %5827 = vmatmul.mubr.f32.gmra.mxu0 %v5826
    %v5828 = vpop.f32.mrf.mxu0
    %v5829 = vadd.f32 %v5432, %v5828
    %v5830 = vpop.f32.mrf.mxu0
    %v5831 = vand.u32 %v195, 4294901760
    %v5832 = vsub.f32 %v195, %v5831
    %v5833 = vand.u32 %v5832, 4294901760
    %5834 = vmatprep.mubr.f32.mxu0 %v5833
    %v5835 = vand.u32 %v194, 4294901760
    %v5836 = vsub.f32 %v194, %v5835
    %v5837 = vand.u32 %v5836, 4294901760
    %5838 = vmatmul.mubr.f32.gmra.mxu0 %v5837
    %v5839 = vpop.f32.mrf.mxu0
    %v5840 = vadd.f32 %v5441, %v5839
    %v5841 = vpop.f32.mrf.mxu0
    %v5842 = vand.u32 %v197, 4294901760
    %v5843 = vsub.f32 %v197, %v5842
    %v5844 = vand.u32 %v5843, 4294901760
    %5845 = vmatprep.mubr.f32.mxu0 %v5844
    %v5846 = vand.u32 %v196, 4294901760
    %v5847 = vsub.f32 %v196, %v5846
    %v5848 = vand.u32 %v5847, 4294901760
    %5849 = vmatmul.mubr.f32.gmra.mxu0 %v5848
    %v5850 = vpop.f32.mrf.mxu0
    %v5851 = vadd.f32 %v5450, %v5850
    %v5852 = vpop.f32.mrf.mxu0
    %v5853 = vand.u32 %v199, 4294901760
    %v5854 = vsub.f32 %v199, %v5853
    %v5855 = vand.u32 %v5854, 4294901760
    %5856 = vmatprep.mubr.f32.mxu0 %v5855
    %v5857 = vand.u32 %v198, 4294901760
    %v5858 = vsub.f32 %v198, %v5857
    %v5859 = vand.u32 %v5858, 4294901760
    %5860 = vmatmul.mubr.f32.gmra.mxu0 %v5859
    %v5861 = vpop.f32.mrf.mxu0
    %v5862 = vadd.f32 %v5459, %v5861
    %v5863 = vpop.f32.mrf.mxu0
    %v5864 = vand.u32 %v201, 4294901760
    %v5865 = vsub.f32 %v201, %v5864
    %v5866 = vand.u32 %v5865, 4294901760
    %5867 = vmatprep.mubr.f32.mxu0 %v5866
    %v5868 = vand.u32 %v200, 4294901760
    %v5869 = vsub.f32 %v200, %v5868
    %v5870 = vand.u32 %v5869, 4294901760
    %5871 = vmatmul.mubr.f32.gmra.mxu0 %v5870
    %v5872 = vpop.f32.mrf.mxu0
    %v5873 = vadd.f32 %v5468, %v5872
    %v5874 = vpop.f32.mrf.mxu0
    %v5875 = vand.u32 %v203, 4294901760
    %v5876 = vsub.f32 %v203, %v5875
    %v5877 = vand.u32 %v5876, 4294901760
    %5878 = vmatprep.mubr.f32.mxu0 %v5877
    %v5879 = vand.u32 %v202, 4294901760
    %v5880 = vsub.f32 %v202, %v5879
    %v5881 = vand.u32 %v5880, 4294901760
    %5882 = vmatmul.mubr.f32.gmra.mxu0 %v5881
    %v5883 = vpop.f32.mrf.mxu0
    %v5884 = vadd.f32 %v5477, %v5883
    %v5885 = vpop.f32.mrf.mxu0
    %v5886 = vand.u32 %v205, 4294901760
    %v5887 = vsub.f32 %v205, %v5886
    %v5888 = vand.u32 %v5887, 4294901760
    %5889 = vmatprep.mubr.f32.mxu0 %v5888
    %v5890 = vand.u32 %v204, 4294901760
    %v5891 = vsub.f32 %v204, %v5890
    %v5892 = vand.u32 %v5891, 4294901760
    %5893 = vmatmul.mubr.f32.gmra.mxu0 %v5892
    %v5894 = vpop.f32.mrf.mxu0
    %v5895 = vadd.f32 %v5486, %v5894
    %v5896 = vpop.f32.mrf.mxu0
    %v5897 = vand.u32 %v207, 4294901760
    %v5898 = vsub.f32 %v207, %v5897
    %v5899 = vand.u32 %v5898, 4294901760
    %5900 = vmatprep.mubr.f32.mxu0 %v5899
    %v5901 = vand.u32 %v206, 4294901760
    %v5902 = vsub.f32 %v206, %v5901
    %v5903 = vand.u32 %v5902, 4294901760
    %5904 = vmatmul.mubr.f32.gmra.mxu0 %v5903
    %v5905 = vpop.f32.mrf.mxu0
    %v5906 = vadd.f32 %v5495, %v5905
    %v5907 = vpop.f32.mrf.mxu0
    %v5908 = vand.u32 %v209, 4294901760
    %v5909 = vsub.f32 %v209, %v5908
    %v5910 = vand.u32 %v5909, 4294901760
    %5911 = vmatprep.mubr.f32.mxu0 %v5910
    %v5912 = vand.u32 %v208, 4294901760
    %v5913 = vsub.f32 %v208, %v5912
    %v5914 = vand.u32 %v5913, 4294901760
    %5915 = vmatmul.mubr.f32.gmra.mxu0 %v5914
    %v5916 = vpop.f32.mrf.mxu0
    %v5917 = vadd.f32 %v5504, %v5916
    %v5918 = vpop.f32.mrf.mxu0
    %v5919 = vand.u32 %v211, 4294901760
    %v5920 = vsub.f32 %v211, %v5919
    %v5921 = vand.u32 %v5920, 4294901760
    %5922 = vmatprep.mubr.f32.mxu0 %v5921
    %v5923 = vand.u32 %v210, 4294901760
    %v5924 = vsub.f32 %v210, %v5923
    %v5925 = vand.u32 %v5924, 4294901760
    %5926 = vmatmul.mubr.f32.gmra.mxu0 %v5925
    %v5927 = vpop.f32.mrf.mxu0
    %v5928 = vadd.f32 %v5513, %v5927
    %v5929 = vpop.f32.mrf.mxu0
    %v5930 = vand.u32 %v213, 4294901760
    %v5931 = vsub.f32 %v213, %v5930
    %v5932 = vand.u32 %v5931, 4294901760
    %5933 = vmatprep.mubr.f32.mxu0 %v5932
    %v5934 = vand.u32 %v212, 4294901760
    %v5935 = vsub.f32 %v212, %v5934
    %v5936 = vand.u32 %v5935, 4294901760
    %5937 = vmatmul.mubr.f32.gmra.mxu0 %v5936
    %v5938 = vpop.f32.mrf.mxu0
    %v5939 = vadd.f32 %v5522, %v5938
    %v5940 = vpop.f32.mrf.mxu0
    %v5941 = vand.u32 %v215, 4294901760
    %v5942 = vsub.f32 %v215, %v5941
    %v5943 = vand.u32 %v5942, 4294901760
    %5944 = vmatprep.mubr.f32.mxu0 %v5943
    %v5945 = vand.u32 %v214, 4294901760
    %v5946 = vsub.f32 %v214, %v5945
    %v5947 = vand.u32 %v5946, 4294901760
    %5948 = vmatmul.mubr.f32.gmra.mxu0 %v5947
    %v5949 = vpop.f32.mrf.mxu0
    %v5950 = vadd.f32 %v5531, %v5949
    %v5951 = vpop.f32.mrf.mxu0
    %v5952 = vand.u32 %v217, 4294901760
    %v5953 = vsub.f32 %v217, %v5952
    %v5954 = vand.u32 %v5953, 4294901760
    %5955 = vmatprep.mubr.f32.mxu0 %v5954
    %v5956 = vand.u32 %v216, 4294901760
    %v5957 = vsub.f32 %v216, %v5956
    %v5958 = vand.u32 %v5957, 4294901760
    %5959 = vmatmul.mubr.f32.gmra.mxu0 %v5958
    %v5960 = vpop.f32.mrf.mxu0
    %v5961 = vadd.f32 %v5540, %v5960
    %v5962 = vpop.f32.mrf.mxu0
    %v5963 = vand.u32 %v219, 4294901760
    %v5964 = vsub.f32 %v219, %v5963
    %v5965 = vand.u32 %v5964, 4294901760
    %5966 = vmatprep.mubr.f32.mxu0 %v5965
    %v5967 = vand.u32 %v218, 4294901760
    %v5968 = vsub.f32 %v218, %v5967
    %v5969 = vand.u32 %v5968, 4294901760
    %5970 = vmatmul.mubr.f32.gmra.mxu0 %v5969
    %v5971 = vpop.f32.mrf.mxu0
    %v5972 = vadd.f32 %v5549, %v5971
    %v5973 = vpop.f32.mrf.mxu0
    %v5974 = vand.u32 %v221, 4294901760
    %v5975 = vsub.f32 %v221, %v5974
    %v5976 = vand.u32 %v5975, 4294901760
    %5977 = vmatprep.mubr.f32.mxu0 %v5976
    %v5978 = vand.u32 %v220, 4294901760
    %v5979 = vsub.f32 %v220, %v5978
    %v5980 = vand.u32 %v5979, 4294901760
    %5981 = vmatmul.mubr.f32.gmra.mxu0 %v5980
    %v5982 = vpop.f32.mrf.mxu0
    %v5983 = vadd.f32 %v5558, %v5982
    %v5984 = vpop.f32.mrf.mxu0
    %v5985 = vand.u32 %v223, 4294901760
    %v5986 = vsub.f32 %v223, %v5985
    %v5987 = vand.u32 %v5986, 4294901760
    %5988 = vmatprep.mubr.f32.mxu0 %v5987
    %v5989 = vand.u32 %v222, 4294901760
    %v5990 = vsub.f32 %v222, %v5989
    %v5991 = vand.u32 %v5990, 4294901760
    %5992 = vmatmul.mubr.f32.gmra.mxu0 %v5991
    %v5993 = vpop.f32.mrf.mxu0
    %v5994 = vadd.f32 %v5567, %v5993
    %v5995 = vpop.f32.mrf.mxu0
    %v5996 = vand.u32 %v225, 4294901760
    %v5997 = vsub.f32 %v225, %v5996
    %v5998 = vand.u32 %v5997, 4294901760
    %5999 = vmatprep.mubr.f32.mxu0 %v5998
    %v6000 = vand.u32 %v224, 4294901760
    %v6001 = vsub.f32 %v224, %v6000
    %v6002 = vand.u32 %v6001, 4294901760
    %6003 = vmatmul.mubr.f32.gmra.mxu0 %v6002
    %v6004 = vpop.f32.mrf.mxu0
    %v6005 = vadd.f32 %v5576, %v6004
    %v6006 = vpop.f32.mrf.mxu0
    %v6007 = vand.u32 %v227, 4294901760
    %v6008 = vsub.f32 %v227, %v6007
    %v6009 = vand.u32 %v6008, 4294901760
    %6010 = vmatprep.mubr.f32.mxu0 %v6009
    %v6011 = vand.u32 %v226, 4294901760
    %v6012 = vsub.f32 %v226, %v6011
    %v6013 = vand.u32 %v6012, 4294901760
    %6014 = vmatmul.mubr.f32.gmra.mxu0 %v6013
    %v6015 = vpop.f32.mrf.mxu0
    %v6016 = vadd.f32 %v5585, %v6015
    %v6017 = vpop.f32.mrf.mxu0
    %v6018 = vand.u32 %v229, 4294901760
    %v6019 = vsub.f32 %v229, %v6018
    %v6020 = vand.u32 %v6019, 4294901760
    %6021 = vmatprep.mubr.f32.mxu0 %v6020
    %v6022 = vand.u32 %v228, 4294901760
    %v6023 = vsub.f32 %v228, %v6022
    %v6024 = vand.u32 %v6023, 4294901760
    %6025 = vmatmul.mubr.f32.gmra.mxu0 %v6024
    %v6026 = vpop.f32.mrf.mxu0
    %v6027 = vadd.f32 %v5594, %v6026
    %v6028 = vpop.f32.mrf.mxu0
    %v6029 = vand.u32 %v231, 4294901760
    %v6030 = vsub.f32 %v231, %v6029
    %v6031 = vand.u32 %v6030, 4294901760
    %6032 = vmatprep.mubr.f32.mxu0 %v6031
    %v6033 = vand.u32 %v230, 4294901760
    %v6034 = vsub.f32 %v230, %v6033
    %v6035 = vand.u32 %v6034, 4294901760
    %6036 = vmatmul.mubr.f32.gmra.mxu0 %v6035
    %v6037 = vpop.f32.mrf.mxu0
    %v6038 = vadd.f32 %v5603, %v6037
    %v6039 = vpop.f32.mrf.mxu0
    %v6040 = vand.u32 %v233, 4294901760
    %v6041 = vsub.f32 %v233, %v6040
    %v6042 = vand.u32 %v6041, 4294901760
    %6043 = vmatprep.mubr.f32.mxu0 %v6042
    %v6044 = vand.u32 %v232, 4294901760
    %v6045 = vsub.f32 %v232, %v6044
    %v6046 = vand.u32 %v6045, 4294901760
    %6047 = vmatmul.mubr.f32.gmra.mxu0 %v6046
    %v6048 = vpop.f32.mrf.mxu0
    %v6049 = vadd.f32 %v5612, %v6048
    %v6050 = vpop.f32.mrf.mxu0
    %v6051 = vand.u32 %v235, 4294901760
    %v6052 = vsub.f32 %v235, %v6051
    %v6053 = vand.u32 %v6052, 4294901760
    %6054 = vmatprep.mubr.f32.mxu0 %v6053
    %v6055 = vand.u32 %v234, 4294901760
    %v6056 = vsub.f32 %v234, %v6055
    %v6057 = vand.u32 %v6056, 4294901760
    %6058 = vmatmul.mubr.f32.gmra.mxu0 %v6057
    %v6059 = vpop.f32.mrf.mxu0
    %v6060 = vadd.f32 %v5621, %v6059
    %v6061 = vpop.f32.mrf.mxu0
    %v6062 = vand.u32 %v237, 4294901760
    %v6063 = vsub.f32 %v237, %v6062
    %v6064 = vand.u32 %v6063, 4294901760
    %6065 = vmatprep.mubr.f32.mxu0 %v6064
    %v6066 = vand.u32 %v236, 4294901760
    %v6067 = vsub.f32 %v236, %v6066
    %v6068 = vand.u32 %v6067, 4294901760
    %6069 = vmatmul.mubr.f32.gmra.mxu0 %v6068
    %v6070 = vpop.f32.mrf.mxu0
    %v6071 = vadd.f32 %v5630, %v6070
    %v6072 = vpop.f32.mrf.mxu0
    %v6073 = vand.u32 %v239, 4294901760
    %v6074 = vsub.f32 %v239, %v6073
    %v6075 = vand.u32 %v6074, 4294901760
    %6076 = vmatprep.mubr.f32.mxu0 %v6075
    %v6077 = vand.u32 %v238, 4294901760
    %v6078 = vsub.f32 %v238, %v6077
    %v6079 = vand.u32 %v6078, 4294901760
    %6080 = vmatmul.mubr.f32.gmra.mxu0 %v6079
    %v6081 = vpop.f32.mrf.mxu0
    %v6082 = vadd.f32 %v5639, %v6081
    %v6083 = vpop.f32.mrf.mxu0
    %v6084 = vand.u32 %v241, 4294901760
    %v6085 = vsub.f32 %v241, %v6084
    %v6086 = vand.u32 %v6085, 4294901760
    %6087 = vmatprep.mubr.f32.mxu0 %v6086
    %v6088 = vand.u32 %v240, 4294901760
    %v6089 = vsub.f32 %v240, %v6088
    %v6090 = vand.u32 %v6089, 4294901760
    %6091 = vmatmul.mubr.f32.gmra.mxu0 %v6090
    %v6092 = vpop.f32.mrf.mxu0
    %v6093 = vadd.f32 %v5648, %v6092
    %v6094 = vpop.f32.mrf.mxu0
    %v6095 = vand.u32 %v243, 4294901760
    %v6096 = vsub.f32 %v243, %v6095
    %v6097 = vand.u32 %v6096, 4294901760
    %6098 = vmatprep.mubr.f32.mxu0 %v6097
    %v6099 = vand.u32 %v242, 4294901760
    %v6100 = vsub.f32 %v242, %v6099
    %v6101 = vand.u32 %v6100, 4294901760
    %6102 = vmatmul.mubr.f32.gmra.mxu0 %v6101
    %v6103 = vpop.f32.mrf.mxu0
    %v6104 = vadd.f32 %v5657, %v6103
    %v6105 = vpop.f32.mrf.mxu0
    %v6106 = vand.u32 %v245, 4294901760
    %v6107 = vsub.f32 %v245, %v6106
    %v6108 = vand.u32 %v6107, 4294901760
    %6109 = vmatprep.mubr.f32.mxu0 %v6108
    %v6110 = vand.u32 %v244, 4294901760
    %v6111 = vsub.f32 %v244, %v6110
    %v6112 = vand.u32 %v6111, 4294901760
    %6113 = vmatmul.mubr.f32.gmra.mxu0 %v6112
    %v6114 = vpop.f32.mrf.mxu0
    %v6115 = vadd.f32 %v5666, %v6114
    %v6116 = vpop.f32.mrf.mxu0
    %6117 = vdwg.mxu0
    %6118 = vmatprep.subr.mxu0 0.0
    %v6119 = vand.u32 %v4092, 4294901760
    %v6120 = vsub.f32 %v4092, %v6119
    %v6121 = vand.u32 %v6120, 4294901760
    %6122 = vmatpush1.msra.mxu0 %v6121
    %6123 = vmatprep.subr.mxu0 0.0
    %v6124 = vand.u32 %v4089, 4294901760
    %v6125 = vsub.f32 %v4089, %v6124
    %v6126 = vand.u32 %v6125, 4294901760
    %6127 = vmatpush1.msra.mxu0 %v6126
    %6128 = vmatprep.subr.mxu0 0.0
    %v6129 = vand.u32 %v4084, 4294901760
    %v6130 = vsub.f32 %v4084, %v6129
    %v6131 = vand.u32 %v6130, 4294901760
    %6132 = vmatpush1.msra.mxu0 %v6131
    %6133 = vmatprep.subr.mxu0 0.0
    %v6134 = vand.u32 %v4081, 4294901760
    %v6135 = vsub.f32 %v4081, %v6134
    %v6136 = vand.u32 %v6135, 4294901760
    %6137 = vmatpush1.msra.mxu0 %v6136
    %6138 = vmatprep.subr.mxu0 0.0
    %v6139 = vand.u32 %v4076, 4294901760
    %v6140 = vsub.f32 %v4076, %v6139
    %v6141 = vand.u32 %v6140, 4294901760
    %6142 = vmatpush1.msra.mxu0 %v6141
    %6143 = vmatprep.subr.mxu0 0.0
    %v6144 = vand.u32 %v4073, 4294901760
    %v6145 = vsub.f32 %v4073, %v6144
    %v6146 = vand.u32 %v6145, 4294901760
    %6147 = vmatpush1.msra.mxu0 %v6146
    %6148 = vmatprep.subr.mxu0 0.0
    %v6149 = vand.u32 %v4068, 4294901760
    %v6150 = vsub.f32 %v4068, %v6149
    %v6151 = vand.u32 %v6150, 4294901760
    %6152 = vmatpush1.msra.mxu0 %v6151
    %6153 = vmatprep.subr.mxu0 0.0
    %v6154 = vand.u32 %v4065, 4294901760
    %v6155 = vsub.f32 %v4065, %v6154
    %v6156 = vand.u32 %v6155, 4294901760
    %6157 = vmatpush1.msra.mxu0 %v6156
    %6158 = vmatprep.subr.mxu0 0.0
    %v6159 = vand.u32 %v4060, 4294901760
    %v6160 = vsub.f32 %v4060, %v6159
    %v6161 = vand.u32 %v6160, 4294901760
    %6162 = vmatpush1.msra.mxu0 %v6161
    %6163 = vmatprep.subr.mxu0 0.0
    %v6164 = vand.u32 %v4057, 4294901760
    %v6165 = vsub.f32 %v4057, %v6164
    %v6166 = vand.u32 %v6165, 4294901760
    %6167 = vmatpush1.msra.mxu0 %v6166
    %6168 = vmatprep.subr.mxu0 0.0
    %v6169 = vand.u32 %v4052, 4294901760
    %v6170 = vsub.f32 %v4052, %v6169
    %v6171 = vand.u32 %v6170, 4294901760
    %6172 = vmatpush1.msra.mxu0 %v6171
    %6173 = vmatprep.subr.mxu0 0.0
    %v6174 = vand.u32 %v4049, 4294901760
    %v6175 = vsub.f32 %v4049, %v6174
    %v6176 = vand.u32 %v6175, 4294901760
    %6177 = vmatpush1.msra.mxu0 %v6176
    %6178 = vmatprep.subr.mxu0 0.0
    %v6179 = vand.u32 %v4044, 4294901760
    %v6180 = vsub.f32 %v4044, %v6179
    %v6181 = vand.u32 %v6180, 4294901760
    %6182 = vmatpush1.msra.mxu0 %v6181
    %6183 = vmatprep.subr.mxu0 0.0
    %v6184 = vand.u32 %v4041, 4294901760
    %v6185 = vsub.f32 %v4041, %v6184
    %v6186 = vand.u32 %v6185, 4294901760
    %6187 = vmatpush1.msra.mxu0 %v6186
    %6188 = vmatprep.subr.mxu0 0.0
    %v6189 = vand.u32 %v4036, 4294901760
    %v6190 = vsub.f32 %v4036, %v6189
    %v6191 = vand.u32 %v6190, 4294901760
    %6192 = vmatpush1.msra.mxu0 %v6191
    %6193 = vmatprep.subr.mxu0 0.0
    %v6194 = vand.u32 %v4033, 4294901760
    %v6195 = vsub.f32 %v4033, %v6194
    %v6196 = vand.u32 %v6195, 4294901760
    %6197 = vmatpush1.msra.mxu0 %v6196
    %6198 = vmatprep.subr.mxu0 0.0
    %v6199 = vand.u32 %v4156, 4294901760
    %v6200 = vsub.f32 %v4156, %v6199
    %v6201 = vand.u32 %v6200, 4294901760
    %6202 = vmatpush2.msra.mxu0 %v6201
    %6203 = vmatprep.subr.mxu0 0.0
    %v6204 = vand.u32 %v4153, 4294901760
    %v6205 = vsub.f32 %v4153, %v6204
    %v6206 = vand.u32 %v6205, 4294901760
    %6207 = vmatpush2.msra.mxu0 %v6206
    %6208 = vmatprep.subr.mxu0 0.0
    %v6209 = vand.u32 %v4148, 4294901760
    %v6210 = vsub.f32 %v4148, %v6209
    %v6211 = vand.u32 %v6210, 4294901760
    %6212 = vmatpush2.msra.mxu0 %v6211
    %6213 = vmatprep.subr.mxu0 0.0
    %v6214 = vand.u32 %v4145, 4294901760
    %v6215 = vsub.f32 %v4145, %v6214
    %v6216 = vand.u32 %v6215, 4294901760
    %6217 = vmatpush2.msra.mxu0 %v6216
    %6218 = vmatprep.subr.mxu0 0.0
    %v6219 = vand.u32 %v4140, 4294901760
    %v6220 = vsub.f32 %v4140, %v6219
    %v6221 = vand.u32 %v6220, 4294901760
    %6222 = vmatpush2.msra.mxu0 %v6221
    %6223 = vmatprep.subr.mxu0 0.0
    %v6224 = vand.u32 %v4137, 4294901760
    %v6225 = vsub.f32 %v4137, %v6224
    %v6226 = vand.u32 %v6225, 4294901760
    %6227 = vmatpush2.msra.mxu0 %v6226
    %6228 = vmatprep.subr.mxu0 0.0
    %v6229 = vand.u32 %v4132, 4294901760
    %v6230 = vsub.f32 %v4132, %v6229
    %v6231 = vand.u32 %v6230, 4294901760
    %6232 = vmatpush2.msra.mxu0 %v6231
    %6233 = vmatprep.subr.mxu0 0.0
    %v6234 = vand.u32 %v4129, 4294901760
    %v6235 = vsub.f32 %v4129, %v6234
    %v6236 = vand.u32 %v6235, 4294901760
    %6237 = vmatpush2.msra.mxu0 %v6236
    %6238 = vmatprep.subr.mxu0 0.0
    %v6239 = vand.u32 %v4124, 4294901760
    %v6240 = vsub.f32 %v4124, %v6239
    %v6241 = vand.u32 %v6240, 4294901760
    %6242 = vmatpush2.msra.mxu0 %v6241
    %6243 = vmatprep.subr.mxu0 0.0
    %v6244 = vand.u32 %v4121, 4294901760
    %v6245 = vsub.f32 %v4121, %v6244
    %v6246 = vand.u32 %v6245, 4294901760
    %6247 = vmatpush2.msra.mxu0 %v6246
    %6248 = vmatprep.subr.mxu0 0.0
    %v6249 = vand.u32 %v4116, 4294901760
    %v6250 = vsub.f32 %v4116, %v6249
    %v6251 = vand.u32 %v6250, 4294901760
    %6252 = vmatpush2.msra.mxu0 %v6251
    %6253 = vmatprep.subr.mxu0 0.0
    %v6254 = vand.u32 %v4113, 4294901760
    %v6255 = vsub.f32 %v4113, %v6254
    %v6256 = vand.u32 %v6255, 4294901760
    %6257 = vmatpush2.msra.mxu0 %v6256
    %6258 = vmatprep.subr.mxu0 0.0
    %v6259 = vand.u32 %v4108, 4294901760
    %v6260 = vsub.f32 %v4108, %v6259
    %v6261 = vand.u32 %v6260, 4294901760
    %6262 = vmatpush2.msra.mxu0 %v6261
    %6263 = vmatprep.subr.mxu0 0.0
    %v6264 = vand.u32 %v4105, 4294901760
    %v6265 = vsub.f32 %v4105, %v6264
    %v6266 = vand.u32 %v6265, 4294901760
    %6267 = vmatpush2.msra.mxu0 %v6266
    %6268 = vmatprep.subr.mxu0 0.0
    %v6269 = vand.u32 %v4100, 4294901760
    %v6270 = vsub.f32 %v4100, %v6269
    %v6271 = vand.u32 %v6270, 4294901760
    %6272 = vmatpush2.msra.mxu0 %v6271
    %6273 = vmatprep.subr.mxu0 0.0
    %v6274 = vand.u32 %v4097, 4294901760
    %v6275 = vsub.f32 %v4097, %v6274
    %v6276 = vand.u32 %v6275, 4294901760
    %6277 = vmatpush2.msra.mxu0 %v6276
    %v6278 = vand.u32 %v183, 4294901760
    %6279 = vmatprep.mubr.f32.mxu0 %v6278
    %v6280 = vand.u32 %v182, 4294901760
    %6281 = vmatmul.mubr.f32.gmra.mxu0 %v6280
    %v6282 = vpop.f32.mrf.mxu0
    %v6283 = vadd.f32 %v5774, %v6282
    %v6284 = vpop.f32.mrf.mxu0
    %v6285 = vand.u32 %v185, 4294901760
    %6286 = vmatprep.mubr.f32.mxu0 %v6285
    %v6287 = vand.u32 %v184, 4294901760
    %6288 = vmatmul.mubr.f32.gmra.mxu0 %v6287
    %v6289 = vpop.f32.mrf.mxu0
    %v6290 = vadd.f32 %v5785, %v6289
    %v6291 = vpop.f32.mrf.mxu0
    %v6292 = vand.u32 %v187, 4294901760
    %6293 = vmatprep.mubr.f32.mxu0 %v6292
    %v6294 = vand.u32 %v186, 4294901760
    %6295 = vmatmul.mubr.f32.gmra.mxu0 %v6294
    %v6296 = vpop.f32.mrf.mxu0
    %v6297 = vadd.f32 %v5796, %v6296
    %v6298 = vpop.f32.mrf.mxu0
    %v6299 = vand.u32 %v189, 4294901760
    %6300 = vmatprep.mubr.f32.mxu0 %v6299
    %v6301 = vand.u32 %v188, 4294901760
    %6302 = vmatmul.mubr.f32.gmra.mxu0 %v6301
    %v6303 = vpop.f32.mrf.mxu0
    %v6304 = vadd.f32 %v5807, %v6303
    %v6305 = vpop.f32.mrf.mxu0
    %v6306 = vand.u32 %v191, 4294901760
    %6307 = vmatprep.mubr.f32.mxu0 %v6306
    %v6308 = vand.u32 %v190, 4294901760
    %6309 = vmatmul.mubr.f32.gmra.mxu0 %v6308
    %v6310 = vpop.f32.mrf.mxu0
    %v6311 = vadd.f32 %v5818, %v6310
    %v6312 = vpop.f32.mrf.mxu0
    %v6313 = vand.u32 %v193, 4294901760
    %6314 = vmatprep.mubr.f32.mxu0 %v6313
    %v6315 = vand.u32 %v192, 4294901760
    %6316 = vmatmul.mubr.f32.gmra.mxu0 %v6315
    %v6317 = vpop.f32.mrf.mxu0
    %v6318 = vadd.f32 %v5829, %v6317
    %v6319 = vpop.f32.mrf.mxu0
    %v6320 = vand.u32 %v195, 4294901760
    %6321 = vmatprep.mubr.f32.mxu0 %v6320
    %v6322 = vand.u32 %v194, 4294901760
    %6323 = vmatmul.mubr.f32.gmra.mxu0 %v6322
    %v6324 = vpop.f32.mrf.mxu0
    %v6325 = vadd.f32 %v5840, %v6324
    %v6326 = vpop.f32.mrf.mxu0
    %v6327 = vand.u32 %v197, 4294901760
    %6328 = vmatprep.mubr.f32.mxu0 %v6327
    %v6329 = vand.u32 %v196, 4294901760
    %6330 = vmatmul.mubr.f32.gmra.mxu0 %v6329
    %v6331 = vpop.f32.mrf.mxu0
    %v6332 = vadd.f32 %v5851, %v6331
    %v6333 = vpop.f32.mrf.mxu0
    %v6334 = vand.u32 %v199, 4294901760
    %6335 = vmatprep.mubr.f32.mxu0 %v6334
    %v6336 = vand.u32 %v198, 4294901760
    %6337 = vmatmul.mubr.f32.gmra.mxu0 %v6336
    %v6338 = vpop.f32.mrf.mxu0
    %v6339 = vadd.f32 %v5862, %v6338
    %v6340 = vpop.f32.mrf.mxu0
    %v6341 = vand.u32 %v201, 4294901760
    %6342 = vmatprep.mubr.f32.mxu0 %v6341
    %v6343 = vand.u32 %v200, 4294901760
    %6344 = vmatmul.mubr.f32.gmra.mxu0 %v6343
    %v6345 = vpop.f32.mrf.mxu0
    %v6346 = vadd.f32 %v5873, %v6345
    %v6347 = vpop.f32.mrf.mxu0
    %v6348 = vand.u32 %v203, 4294901760
    %6349 = vmatprep.mubr.f32.mxu0 %v6348
    %v6350 = vand.u32 %v202, 4294901760
    %6351 = vmatmul.mubr.f32.gmra.mxu0 %v6350
    %v6352 = vpop.f32.mrf.mxu0
    %v6353 = vadd.f32 %v5884, %v6352
    %v6354 = vpop.f32.mrf.mxu0
    %v6355 = vand.u32 %v205, 4294901760
    %6356 = vmatprep.mubr.f32.mxu0 %v6355
    %v6357 = vand.u32 %v204, 4294901760
    %6358 = vmatmul.mubr.f32.gmra.mxu0 %v6357
    %v6359 = vpop.f32.mrf.mxu0
    %v6360 = vadd.f32 %v5895, %v6359
    %v6361 = vpop.f32.mrf.mxu0
    %v6362 = vand.u32 %v207, 4294901760
    %6363 = vmatprep.mubr.f32.mxu0 %v6362
    %v6364 = vand.u32 %v206, 4294901760
    %6365 = vmatmul.mubr.f32.gmra.mxu0 %v6364
    %v6366 = vpop.f32.mrf.mxu0
    %v6367 = vadd.f32 %v5906, %v6366
    %v6368 = vpop.f32.mrf.mxu0
    %v6369 = vand.u32 %v209, 4294901760
    %6370 = vmatprep.mubr.f32.mxu0 %v6369
    %v6371 = vand.u32 %v208, 4294901760
    %6372 = vmatmul.mubr.f32.gmra.mxu0 %v6371
    %v6373 = vpop.f32.mrf.mxu0
    %v6374 = vadd.f32 %v5917, %v6373
    %v6375 = vpop.f32.mrf.mxu0
    %v6376 = vand.u32 %v211, 4294901760
    %6377 = vmatprep.mubr.f32.mxu0 %v6376
    %v6378 = vand.u32 %v210, 4294901760
    %6379 = vmatmul.mubr.f32.gmra.mxu0 %v6378
    %v6380 = vpop.f32.mrf.mxu0
    %v6381 = vadd.f32 %v5928, %v6380
    %v6382 = vpop.f32.mrf.mxu0
    %v6383 = vand.u32 %v213, 4294901760
    %6384 = vmatprep.mubr.f32.mxu0 %v6383
    %v6385 = vand.u32 %v212, 4294901760
    %6386 = vmatmul.mubr.f32.gmra.mxu0 %v6385
    %v6387 = vpop.f32.mrf.mxu0
    %v6388 = vadd.f32 %v5939, %v6387
    %v6389 = vpop.f32.mrf.mxu0
    %v6390 = vand.u32 %v215, 4294901760
    %6391 = vmatprep.mubr.f32.mxu0 %v6390
    %v6392 = vand.u32 %v214, 4294901760
    %6393 = vmatmul.mubr.f32.gmra.mxu0 %v6392
    %v6394 = vpop.f32.mrf.mxu0
    %v6395 = vadd.f32 %v5950, %v6394
    %v6396 = vpop.f32.mrf.mxu0
    %v6397 = vand.u32 %v217, 4294901760
    %6398 = vmatprep.mubr.f32.mxu0 %v6397
    %v6399 = vand.u32 %v216, 4294901760
    %6400 = vmatmul.mubr.f32.gmra.mxu0 %v6399
    %v6401 = vpop.f32.mrf.mxu0
    %v6402 = vadd.f32 %v5961, %v6401
    %v6403 = vpop.f32.mrf.mxu0
    %v6404 = vand.u32 %v219, 4294901760
    %6405 = vmatprep.mubr.f32.mxu0 %v6404
    %v6406 = vand.u32 %v218, 4294901760
    %6407 = vmatmul.mubr.f32.gmra.mxu0 %v6406
    %v6408 = vpop.f32.mrf.mxu0
    %v6409 = vadd.f32 %v5972, %v6408
    %v6410 = vpop.f32.mrf.mxu0
    %v6411 = vand.u32 %v221, 4294901760
    %6412 = vmatprep.mubr.f32.mxu0 %v6411
    %v6413 = vand.u32 %v220, 4294901760
    %6414 = vmatmul.mubr.f32.gmra.mxu0 %v6413
    %v6415 = vpop.f32.mrf.mxu0
    %v6416 = vadd.f32 %v5983, %v6415
    %v6417 = vpop.f32.mrf.mxu0
    %v6418 = vand.u32 %v223, 4294901760
    %6419 = vmatprep.mubr.f32.mxu0 %v6418
    %v6420 = vand.u32 %v222, 4294901760
    %6421 = vmatmul.mubr.f32.gmra.mxu0 %v6420
    %v6422 = vpop.f32.mrf.mxu0
    %v6423 = vadd.f32 %v5994, %v6422
    %v6424 = vpop.f32.mrf.mxu0
    %v6425 = vand.u32 %v225, 4294901760
    %6426 = vmatprep.mubr.f32.mxu0 %v6425
    %v6427 = vand.u32 %v224, 4294901760
    %6428 = vmatmul.mubr.f32.gmra.mxu0 %v6427
    %v6429 = vpop.f32.mrf.mxu0
    %v6430 = vadd.f32 %v6005, %v6429
    %v6431 = vpop.f32.mrf.mxu0
    %v6432 = vand.u32 %v227, 4294901760
    %6433 = vmatprep.mubr.f32.mxu0 %v6432
    %v6434 = vand.u32 %v226, 4294901760
    %6435 = vmatmul.mubr.f32.gmra.mxu0 %v6434
    %v6436 = vpop.f32.mrf.mxu0
    %v6437 = vadd.f32 %v6016, %v6436
    %v6438 = vpop.f32.mrf.mxu0
    %v6439 = vand.u32 %v229, 4294901760
    %6440 = vmatprep.mubr.f32.mxu0 %v6439
    %v6441 = vand.u32 %v228, 4294901760
    %6442 = vmatmul.mubr.f32.gmra.mxu0 %v6441
    %v6443 = vpop.f32.mrf.mxu0
    %v6444 = vadd.f32 %v6027, %v6443
    %v6445 = vpop.f32.mrf.mxu0
    %v6446 = vand.u32 %v231, 4294901760
    %6447 = vmatprep.mubr.f32.mxu0 %v6446
    %v6448 = vand.u32 %v230, 4294901760
    %6449 = vmatmul.mubr.f32.gmra.mxu0 %v6448
    %v6450 = vpop.f32.mrf.mxu0
    %v6451 = vadd.f32 %v6038, %v6450
    %v6452 = vpop.f32.mrf.mxu0
    %v6453 = vand.u32 %v233, 4294901760
    %6454 = vmatprep.mubr.f32.mxu0 %v6453
    %v6455 = vand.u32 %v232, 4294901760
    %6456 = vmatmul.mubr.f32.gmra.mxu0 %v6455
    %v6457 = vpop.f32.mrf.mxu0
    %v6458 = vadd.f32 %v6049, %v6457
    %v6459 = vpop.f32.mrf.mxu0
    %v6460 = vand.u32 %v235, 4294901760
    %6461 = vmatprep.mubr.f32.mxu0 %v6460
    %v6462 = vand.u32 %v234, 4294901760
    %6463 = vmatmul.mubr.f32.gmra.mxu0 %v6462
    %v6464 = vpop.f32.mrf.mxu0
    %v6465 = vadd.f32 %v6060, %v6464
    %v6466 = vpop.f32.mrf.mxu0
    %v6467 = vand.u32 %v237, 4294901760
    %6468 = vmatprep.mubr.f32.mxu0 %v6467
    %v6469 = vand.u32 %v236, 4294901760
    %6470 = vmatmul.mubr.f32.gmra.mxu0 %v6469
    %v6471 = vpop.f32.mrf.mxu0
    %v6472 = vadd.f32 %v6071, %v6471
    %v6473 = vpop.f32.mrf.mxu0
    %v6474 = vand.u32 %v239, 4294901760
    %6475 = vmatprep.mubr.f32.mxu0 %v6474
    %v6476 = vand.u32 %v238, 4294901760
    %6477 = vmatmul.mubr.f32.gmra.mxu0 %v6476
    %v6478 = vpop.f32.mrf.mxu0
    %v6479 = vadd.f32 %v6082, %v6478
    %v6480 = vpop.f32.mrf.mxu0
    %v6481 = vand.u32 %v241, 4294901760
    %6482 = vmatprep.mubr.f32.mxu0 %v6481
    %v6483 = vand.u32 %v240, 4294901760
    %6484 = vmatmul.mubr.f32.gmra.mxu0 %v6483
    %v6485 = vpop.f32.mrf.mxu0
    %v6486 = vadd.f32 %v6093, %v6485
    %v6487 = vpop.f32.mrf.mxu0
    %v6488 = vand.u32 %v243, 4294901760
    %6489 = vmatprep.mubr.f32.mxu0 %v6488
    %v6490 = vand.u32 %v242, 4294901760
    %6491 = vmatmul.mubr.f32.gmra.mxu0 %v6490
    %v6492 = vpop.f32.mrf.mxu0
    %v6493 = vadd.f32 %v6104, %v6492
    %v6494 = vpop.f32.mrf.mxu0
    %v6495 = vand.u32 %v245, 4294901760
    %6496 = vmatprep.mubr.f32.mxu0 %v6495
    %v6497 = vand.u32 %v244, 4294901760
    %6498 = vmatmul.mubr.f32.gmra.mxu0 %v6497
    %v6499 = vpop.f32.mrf.mxu0
    %v6500 = vadd.f32 %v6115, %v6499
    %v6501 = vpop.f32.mrf.mxu0
    %6502 = vdwg.mxu0
    %6503 = vmatprep.subr.mxu0 0.0
    %v6504 = vand.u32 %v4092, 4294901760
    %6505 = vmatpush1.msra.mxu0 %v6504
    %6506 = vmatprep.subr.mxu0 0.0
    %v6507 = vand.u32 %v4089, 4294901760
    %6508 = vmatpush1.msra.mxu0 %v6507
    %6509 = vmatprep.subr.mxu0 0.0
    %v6510 = vand.u32 %v4084, 4294901760
    %6511 = vmatpush1.msra.mxu0 %v6510
    %6512 = vmatprep.subr.mxu0 0.0
    %v6513 = vand.u32 %v4081, 4294901760
    %6514 = vmatpush1.msra.mxu0 %v6513
    %6515 = vmatprep.subr.mxu0 0.0
    %v6516 = vand.u32 %v4076, 4294901760
    %6517 = vmatpush1.msra.mxu0 %v6516
    %6518 = vmatprep.subr.mxu0 0.0
    %v6519 = vand.u32 %v4073, 4294901760
    %6520 = vmatpush1.msra.mxu0 %v6519
    %6521 = vmatprep.subr.mxu0 0.0
    %v6522 = vand.u32 %v4068, 4294901760
    %6523 = vmatpush1.msra.mxu0 %v6522
    %6524 = vmatprep.subr.mxu0 0.0
    %v6525 = vand.u32 %v4065, 4294901760
    %6526 = vmatpush1.msra.mxu0 %v6525
    %6527 = vmatprep.subr.mxu0 0.0
    %v6528 = vand.u32 %v4060, 4294901760
    %6529 = vmatpush1.msra.mxu0 %v6528
    %6530 = vmatprep.subr.mxu0 0.0
    %v6531 = vand.u32 %v4057, 4294901760
    %6532 = vmatpush1.msra.mxu0 %v6531
    %6533 = vmatprep.subr.mxu0 0.0
    %v6534 = vand.u32 %v4052, 4294901760
    %6535 = vmatpush1.msra.mxu0 %v6534
    %6536 = vmatprep.subr.mxu0 0.0
    %v6537 = vand.u32 %v4049, 4294901760
    %6538 = vmatpush1.msra.mxu0 %v6537
    %6539 = vmatprep.subr.mxu0 0.0
    %v6540 = vand.u32 %v4044, 4294901760
    %6541 = vmatpush1.msra.mxu0 %v6540
    %6542 = vmatprep.subr.mxu0 0.0
    %v6543 = vand.u32 %v4041, 4294901760
    %6544 = vmatpush1.msra.mxu0 %v6543
    %6545 = vmatprep.subr.mxu0 0.0
    %v6546 = vand.u32 %v4036, 4294901760
    %6547 = vmatpush1.msra.mxu0 %v6546
    %6548 = vmatprep.subr.mxu0 0.0
    %v6549 = vand.u32 %v4033, 4294901760
    %6550 = vmatpush1.msra.mxu0 %v6549
    %6551 = vmatprep.subr.mxu0 0.0
    %v6552 = vand.u32 %v4156, 4294901760
    %6553 = vmatpush2.msra.mxu0 %v6552
    %6554 = vmatprep.subr.mxu0 0.0
    %v6555 = vand.u32 %v4153, 4294901760
    %6556 = vmatpush2.msra.mxu0 %v6555
    %6557 = vmatprep.subr.mxu0 0.0
    %v6558 = vand.u32 %v4148, 4294901760
    %6559 = vmatpush2.msra.mxu0 %v6558
    %6560 = vmatprep.subr.mxu0 0.0
    %v6561 = vand.u32 %v4145, 4294901760
    %6562 = vmatpush2.msra.mxu0 %v6561
    %6563 = vmatprep.subr.mxu0 0.0
    %v6564 = vand.u32 %v4140, 4294901760
    %6565 = vmatpush2.msra.mxu0 %v6564
    %6566 = vmatprep.subr.mxu0 0.0
    %v6567 = vand.u32 %v4137, 4294901760
    %6568 = vmatpush2.msra.mxu0 %v6567
    %6569 = vmatprep.subr.mxu0 0.0
    %v6570 = vand.u32 %v4132, 4294901760
    %6571 = vmatpush2.msra.mxu0 %v6570
    %6572 = vmatprep.subr.mxu0 0.0
    %v6573 = vand.u32 %v4129, 4294901760
    %6574 = vmatpush2.msra.mxu0 %v6573
    %6575 = vmatprep.subr.mxu0 0.0
    %v6576 = vand.u32 %v4124, 4294901760
    %6577 = vmatpush2.msra.mxu0 %v6576
    %6578 = vmatprep.subr.mxu0 0.0
    %v6579 = vand.u32 %v4121, 4294901760
    %6580 = vmatpush2.msra.mxu0 %v6579
    %6581 = vmatprep.subr.mxu0 0.0
    %v6582 = vand.u32 %v4116, 4294901760
    %6583 = vmatpush2.msra.mxu0 %v6582
    %6584 = vmatprep.subr.mxu0 0.0
    %v6585 = vand.u32 %v4113, 4294901760
    %6586 = vmatpush2.msra.mxu0 %v6585
    %6587 = vmatprep.subr.mxu0 0.0
    %v6588 = vand.u32 %v4108, 4294901760
    %6589 = vmatpush2.msra.mxu0 %v6588
    %6590 = vmatprep.subr.mxu0 0.0
    %v6591 = vand.u32 %v4105, 4294901760
    %6592 = vmatpush2.msra.mxu0 %v6591
    %6593 = vmatprep.subr.mxu0 0.0
    %v6594 = vand.u32 %v4100, 4294901760
    %6595 = vmatpush2.msra.mxu0 %v6594
    %6596 = vmatprep.subr.mxu0 0.0
    %v6597 = vand.u32 %v4097, 4294901760
    %6598 = vmatpush2.msra.mxu0 %v6597
    %v6599 = vand.u32 %v183, 4294901760
    %6600 = vmatprep.mubr.f32.mxu0 %v6599
    %v6601 = vand.u32 %v182, 4294901760
    %6602 = vmatmul.mubr.f32.gmra.mxu0 %v6601
    %v6603 = vpop.f32.mrf.mxu0
    %v6604 = vadd.f32 %v6283, %v6603
    %v6605 = vpop.f32.mrf.mxu0
    %v6606 = vand.u32 %v185, 4294901760
    %6607 = vmatprep.mubr.f32.mxu0 %v6606
    %v6608 = vand.u32 %v184, 4294901760
    %6609 = vmatmul.mubr.f32.gmra.mxu0 %v6608
    %v6610 = vpop.f32.mrf.mxu0
    %v6611 = vadd.f32 %v6290, %v6610
    %v6612 = vpop.f32.mrf.mxu0
    %v6613 = vand.u32 %v187, 4294901760
    %6614 = vmatprep.mubr.f32.mxu0 %v6613
    %v6615 = vand.u32 %v186, 4294901760
    %6616 = vmatmul.mubr.f32.gmra.mxu0 %v6615
    %v6617 = vpop.f32.mrf.mxu0
    %v6618 = vadd.f32 %v6297, %v6617
    %v6619 = vpop.f32.mrf.mxu0
    %v6620 = vand.u32 %v189, 4294901760
    %6621 = vmatprep.mubr.f32.mxu0 %v6620
    %v6622 = vand.u32 %v188, 4294901760
    %6623 = vmatmul.mubr.f32.gmra.mxu0 %v6622
    %v6624 = vpop.f32.mrf.mxu0
    %v6625 = vadd.f32 %v6304, %v6624
    %v6626 = vpop.f32.mrf.mxu0
    %v6627 = vand.u32 %v191, 4294901760
    %6628 = vmatprep.mubr.f32.mxu0 %v6627
    %v6629 = vand.u32 %v190, 4294901760
    %6630 = vmatmul.mubr.f32.gmra.mxu0 %v6629
    %v6631 = vpop.f32.mrf.mxu0
    %v6632 = vadd.f32 %v6311, %v6631
    %v6633 = vpop.f32.mrf.mxu0
    %v6634 = vand.u32 %v193, 4294901760
    %6635 = vmatprep.mubr.f32.mxu0 %v6634
    %v6636 = vand.u32 %v192, 4294901760
    %6637 = vmatmul.mubr.f32.gmra.mxu0 %v6636
    %v6638 = vpop.f32.mrf.mxu0
    %v6639 = vadd.f32 %v6318, %v6638
    %v6640 = vpop.f32.mrf.mxu0
    %v6641 = vand.u32 %v195, 4294901760
    %6642 = vmatprep.mubr.f32.mxu0 %v6641
    %v6643 = vand.u32 %v194, 4294901760
    %6644 = vmatmul.mubr.f32.gmra.mxu0 %v6643
    %v6645 = vpop.f32.mrf.mxu0
    %v6646 = vadd.f32 %v6325, %v6645
    %v6647 = vpop.f32.mrf.mxu0
    %v6648 = vand.u32 %v197, 4294901760
    %6649 = vmatprep.mubr.f32.mxu0 %v6648
    %v6650 = vand.u32 %v196, 4294901760
    %6651 = vmatmul.mubr.f32.gmra.mxu0 %v6650
    %v6652 = vpop.f32.mrf.mxu0
    %v6653 = vadd.f32 %v6332, %v6652
    %v6654 = vpop.f32.mrf.mxu0
    %v6655 = vand.u32 %v199, 4294901760
    %6656 = vmatprep.mubr.f32.mxu0 %v6655
    %v6657 = vand.u32 %v198, 4294901760
    %6658 = vmatmul.mubr.f32.gmra.mxu0 %v6657
    %v6659 = vpop.f32.mrf.mxu0
    %v6660 = vadd.f32 %v6339, %v6659
    %v6661 = vpop.f32.mrf.mxu0
    %v6662 = vand.u32 %v201, 4294901760
    %6663 = vmatprep.mubr.f32.mxu0 %v6662
    %v6664 = vand.u32 %v200, 4294901760
    %6665 = vmatmul.mubr.f32.gmra.mxu0 %v6664
    %v6666 = vpop.f32.mrf.mxu0
    %v6667 = vadd.f32 %v6346, %v6666
    %v6668 = vpop.f32.mrf.mxu0
    %v6669 = vand.u32 %v203, 4294901760
    %6670 = vmatprep.mubr.f32.mxu0 %v6669
    %v6671 = vand.u32 %v202, 4294901760
    %6672 = vmatmul.mubr.f32.gmra.mxu0 %v6671
    %v6673 = vpop.f32.mrf.mxu0
    %v6674 = vadd.f32 %v6353, %v6673
    %v6675 = vpop.f32.mrf.mxu0
    %v6676 = vand.u32 %v205, 4294901760
    %6677 = vmatprep.mubr.f32.mxu0 %v6676
    %v6678 = vand.u32 %v204, 4294901760
    %6679 = vmatmul.mubr.f32.gmra.mxu0 %v6678
    %v6680 = vpop.f32.mrf.mxu0
    %v6681 = vadd.f32 %v6360, %v6680
    %v6682 = vpop.f32.mrf.mxu0
    %v6683 = vand.u32 %v207, 4294901760
    %6684 = vmatprep.mubr.f32.mxu0 %v6683
    %v6685 = vand.u32 %v206, 4294901760
    %6686 = vmatmul.mubr.f32.gmra.mxu0 %v6685
    %v6687 = vpop.f32.mrf.mxu0
    %v6688 = vadd.f32 %v6367, %v6687
    %v6689 = vpop.f32.mrf.mxu0
    %v6690 = vand.u32 %v209, 4294901760
    %6691 = vmatprep.mubr.f32.mxu0 %v6690
    %v6692 = vand.u32 %v208, 4294901760
    %6693 = vmatmul.mubr.f32.gmra.mxu0 %v6692
    %v6694 = vpop.f32.mrf.mxu0
    %v6695 = vadd.f32 %v6374, %v6694
    %v6696 = vpop.f32.mrf.mxu0
    %v6697 = vand.u32 %v211, 4294901760
    %6698 = vmatprep.mubr.f32.mxu0 %v6697
    %v6699 = vand.u32 %v210, 4294901760
    %6700 = vmatmul.mubr.f32.gmra.mxu0 %v6699
    %v6701 = vpop.f32.mrf.mxu0
    %v6702 = vadd.f32 %v6381, %v6701
    %v6703 = vpop.f32.mrf.mxu0
    %v6704 = vand.u32 %v213, 4294901760
    %6705 = vmatprep.mubr.f32.mxu0 %v6704
    %v6706 = vand.u32 %v212, 4294901760
    %6707 = vmatmul.mubr.f32.gmra.mxu0 %v6706
    %v6708 = vpop.f32.mrf.mxu0
    %v6709 = vadd.f32 %v6388, %v6708
    %v6710 = vpop.f32.mrf.mxu0
    %v6711 = vand.u32 %v215, 4294901760
    %6712 = vmatprep.mubr.f32.mxu0 %v6711
    %v6713 = vand.u32 %v214, 4294901760
    %6714 = vmatmul.mubr.f32.gmra.mxu0 %v6713
    %v6715 = vpop.f32.mrf.mxu0
    %v6716 = vadd.f32 %v6395, %v6715
    %v6717 = vpop.f32.mrf.mxu0
    %v6718 = vand.u32 %v217, 4294901760
    %6719 = vmatprep.mubr.f32.mxu0 %v6718
    %v6720 = vand.u32 %v216, 4294901760
    %6721 = vmatmul.mubr.f32.gmra.mxu0 %v6720
    %v6722 = vpop.f32.mrf.mxu0
    %v6723 = vadd.f32 %v6402, %v6722
    %v6724 = vpop.f32.mrf.mxu0
    %v6725 = vand.u32 %v219, 4294901760
    %6726 = vmatprep.mubr.f32.mxu0 %v6725
    %v6727 = vand.u32 %v218, 4294901760
    %6728 = vmatmul.mubr.f32.gmra.mxu0 %v6727
    %v6729 = vpop.f32.mrf.mxu0
    %v6730 = vadd.f32 %v6409, %v6729
    %v6731 = vpop.f32.mrf.mxu0
    %v6732 = vand.u32 %v221, 4294901760
    %6733 = vmatprep.mubr.f32.mxu0 %v6732
    %v6734 = vand.u32 %v220, 4294901760
    %6735 = vmatmul.mubr.f32.gmra.mxu0 %v6734
    %v6736 = vpop.f32.mrf.mxu0
    %v6737 = vadd.f32 %v6416, %v6736
    %v6738 = vpop.f32.mrf.mxu0
    %v6739 = vand.u32 %v223, 4294901760
    %6740 = vmatprep.mubr.f32.mxu0 %v6739
    %v6741 = vand.u32 %v222, 4294901760
    %6742 = vmatmul.mubr.f32.gmra.mxu0 %v6741
    %v6743 = vpop.f32.mrf.mxu0
    %v6744 = vadd.f32 %v6423, %v6743
    %v6745 = vpop.f32.mrf.mxu0
    %v6746 = vand.u32 %v225, 4294901760
    %6747 = vmatprep.mubr.f32.mxu0 %v6746
    %v6748 = vand.u32 %v224, 4294901760
    %6749 = vmatmul.mubr.f32.gmra.mxu0 %v6748
    %v6750 = vpop.f32.mrf.mxu0
    %v6751 = vadd.f32 %v6430, %v6750
    %v6752 = vpop.f32.mrf.mxu0
    %v6753 = vand.u32 %v227, 4294901760
    %6754 = vmatprep.mubr.f32.mxu0 %v6753
    %v6755 = vand.u32 %v226, 4294901760
    %6756 = vmatmul.mubr.f32.gmra.mxu0 %v6755
    %v6757 = vpop.f32.mrf.mxu0
    %v6758 = vadd.f32 %v6437, %v6757
    %v6759 = vpop.f32.mrf.mxu0
    %v6760 = vand.u32 %v229, 4294901760
    %6761 = vmatprep.mubr.f32.mxu0 %v6760
    %v6762 = vand.u32 %v228, 4294901760
    %6763 = vmatmul.mubr.f32.gmra.mxu0 %v6762
    %v6764 = vpop.f32.mrf.mxu0
    %v6765 = vadd.f32 %v6444, %v6764
    %v6766 = vpop.f32.mrf.mxu0
    %v6767 = vand.u32 %v231, 4294901760
    %6768 = vmatprep.mubr.f32.mxu0 %v6767
    %v6769 = vand.u32 %v230, 4294901760
    %6770 = vmatmul.mubr.f32.gmra.mxu0 %v6769
    %v6771 = vpop.f32.mrf.mxu0
    %v6772 = vadd.f32 %v6451, %v6771
    %v6773 = vpop.f32.mrf.mxu0
    %v6774 = vand.u32 %v233, 4294901760
    %6775 = vmatprep.mubr.f32.mxu0 %v6774
    %v6776 = vand.u32 %v232, 4294901760
    %6777 = vmatmul.mubr.f32.gmra.mxu0 %v6776
    %v6778 = vpop.f32.mrf.mxu0
    %v6779 = vadd.f32 %v6458, %v6778
    %v6780 = vpop.f32.mrf.mxu0
    %v6781 = vand.u32 %v235, 4294901760
    %6782 = vmatprep.mubr.f32.mxu0 %v6781
    %v6783 = vand.u32 %v234, 4294901760
    %6784 = vmatmul.mubr.f32.gmra.mxu0 %v6783
    %v6785 = vpop.f32.mrf.mxu0
    %v6786 = vadd.f32 %v6465, %v6785
    %v6787 = vpop.f32.mrf.mxu0
    %v6788 = vand.u32 %v237, 4294901760
    %6789 = vmatprep.mubr.f32.mxu0 %v6788
    %v6790 = vand.u32 %v236, 4294901760
    %6791 = vmatmul.mubr.f32.gmra.mxu0 %v6790
    %v6792 = vpop.f32.mrf.mxu0
    %v6793 = vadd.f32 %v6472, %v6792
    %v6794 = vpop.f32.mrf.mxu0
    %v6795 = vand.u32 %v239, 4294901760
    %6796 = vmatprep.mubr.f32.mxu0 %v6795
    %v6797 = vand.u32 %v238, 4294901760
    %6798 = vmatmul.mubr.f32.gmra.mxu0 %v6797
    %v6799 = vpop.f32.mrf.mxu0
    %v6800 = vadd.f32 %v6479, %v6799
    %v6801 = vpop.f32.mrf.mxu0
    %v6802 = vand.u32 %v241, 4294901760
    %6803 = vmatprep.mubr.f32.mxu0 %v6802
    %v6804 = vand.u32 %v240, 4294901760
    %6805 = vmatmul.mubr.f32.gmra.mxu0 %v6804
    %v6806 = vpop.f32.mrf.mxu0
    %v6807 = vadd.f32 %v6486, %v6806
    %v6808 = vpop.f32.mrf.mxu0
    %v6809 = vand.u32 %v243, 4294901760
    %6810 = vmatprep.mubr.f32.mxu0 %v6809
    %v6811 = vand.u32 %v242, 4294901760
    %6812 = vmatmul.mubr.f32.gmra.mxu0 %v6811
    %v6813 = vpop.f32.mrf.mxu0
    %v6814 = vadd.f32 %v6493, %v6813
    %v6815 = vpop.f32.mrf.mxu0
    %v6816 = vand.u32 %v245, 4294901760
    %6817 = vmatprep.mubr.f32.mxu0 %v6816
    %v6818 = vand.u32 %v244, 4294901760
    %6819 = vmatmul.mubr.f32.gmra.mxu0 %v6818
    %v6820 = vpop.f32.mrf.mxu0
    %v6821 = vadd.f32 %v6500, %v6820
    %v6822 = vpop.f32.mrf.mxu0
    %6823 = vdwg.mxu0
    %v6824 = vstv %s4220
    %v6825 = vrcp.pop %v6824
    %v6826 = vmul.f32 %v6604, %v6825
    %v6827 = vmul.f32 %v6611, %v6825
    %v6828 = vmul.f32 %v6618, %v6825
    %v6829 = vmul.f32 %v6625, %v6825
    %v6830 = vmul.f32 %v6632, %v6825
    %v6831 = vmul.f32 %v6639, %v6825
    %v6832 = vmul.f32 %v6646, %v6825
    %v6833 = vmul.f32 %v6653, %v6825
    %v6834 = vmul.f32 %v6660, %v6825
    %v6835 = vmul.f32 %v6667, %v6825
    %v6836 = vmul.f32 %v6674, %v6825
    %v6837 = vmul.f32 %v6681, %v6825
    %v6838 = vmul.f32 %v6688, %v6825
    %v6839 = vmul.f32 %v6695, %v6825
    %v6840 = vmul.f32 %v6702, %v6825
    %v6841 = vmul.f32 %v6709, %v6825
    %v6842 = vmul.f32 %v6716, %v6825
    %v6843 = vmul.f32 %v6723, %v6825
    %v6844 = vmul.f32 %v6730, %v6825
    %v6845 = vmul.f32 %v6737, %v6825
    %v6846 = vmul.f32 %v6744, %v6825
    %v6847 = vmul.f32 %v6751, %v6825
    %v6848 = vmul.f32 %v6758, %v6825
    %v6849 = vmul.f32 %v6765, %v6825
    %v6850 = vmul.f32 %v6772, %v6825
    %v6851 = vmul.f32 %v6779, %v6825
    %v6852 = vmul.f32 %v6786, %v6825
    %v6853 = vmul.f32 %v6793, %v6825
    %v6854 = vmul.f32 %v6800, %v6825
    %v6855 = vmul.f32 %v6807, %v6825
    %v6856 = vmul.f32 %v6814, %v6825
    %v6857 = vmul.f32 %v6821, %v6825
    %v6858 = vfloor.f32 %v6826
    %v6859 = vfloor.f32 %v6827
    %v6860 = vfloor.f32 %v6828
    %v6861 = vfloor.f32 %v6829
    %v6862 = vfloor.f32 %v6830
    %v6863 = vfloor.f32 %v6831
    %v6864 = vfloor.f32 %v6832
    %v6865 = vfloor.f32 %v6833
    %v6866 = vfloor.f32 %v6834
    %v6867 = vfloor.f32 %v6835
    %v6868 = vfloor.f32 %v6836
    %v6869 = vfloor.f32 %v6837
    %v6870 = vfloor.f32 %v6838
    %v6871 = vfloor.f32 %v6839
    %v6872 = vfloor.f32 %v6840
    %v6873 = vfloor.f32 %v6841
    %v6874 = vfloor.f32 %v6842
    %v6875 = vfloor.f32 %v6843
    %v6876 = vfloor.f32 %v6844
    %v6877 = vfloor.f32 %v6845
    %v6878 = vfloor.f32 %v6846
    %v6879 = vfloor.f32 %v6847
    %v6880 = vfloor.f32 %v6848
    %v6881 = vfloor.f32 %v6849
    %v6882 = vfloor.f32 %v6850
    %v6883 = vfloor.f32 %v6851
    %v6884 = vfloor.f32 %v6852
    %v6885 = vfloor.f32 %v6853
    %v6886 = vfloor.f32 %v6854
    %v6887 = vfloor.f32 %v6855
    %v6888 = vfloor.f32 %v6856
    %v6889 = vfloor.f32 %v6857
    %v6890 = vmax.f32 %v6858, 0.0
    %v6891 = vmax.f32 %v6859, 0.0
    %v6892 = vmax.f32 %v6860, 0.0
    %v6893 = vmax.f32 %v6861, 0.0
    %v6894 = vmax.f32 %v6862, 0.0
    %v6895 = vmax.f32 %v6863, 0.0
    %v6896 = vmax.f32 %v6864, 0.0
    %v6897 = vmax.f32 %v6865, 0.0
    %v6898 = vmax.f32 %v6866, 0.0
    %v6899 = vmax.f32 %v6867, 0.0
    %v6900 = vmax.f32 %v6868, 0.0
    %v6901 = vmax.f32 %v6869, 0.0
    %v6902 = vmax.f32 %v6870, 0.0
    %v6903 = vmax.f32 %v6871, 0.0
    %v6904 = vmax.f32 %v6872, 0.0
    %v6905 = vmax.f32 %v6873, 0.0
    %v6906 = vmax.f32 %v6874, 0.0
    %v6907 = vmax.f32 %v6875, 0.0
    %v6908 = vmax.f32 %v6876, 0.0
    %v6909 = vmax.f32 %v6877, 0.0
    %v6910 = vmax.f32 %v6878, 0.0
    %v6911 = vmax.f32 %v6879, 0.0
    %v6912 = vmax.f32 %v6880, 0.0
    %v6913 = vmax.f32 %v6881, 0.0
    %v6914 = vmax.f32 %v6882, 0.0
    %v6915 = vmax.f32 %v6883, 0.0
    %v6916 = vmax.f32 %v6884, 0.0
    %v6917 = vmax.f32 %v6885, 0.0
    %v6918 = vmax.f32 %v6886, 0.0
    %v6919 = vmax.f32 %v6887, 0.0
    %v6920 = vmax.f32 %v6888, 0.0
    %v6921 = vmax.f32 %v6889, 0.0
    %v6922 = vmin.f32 %v6890, 255.0
    %v6923 = vmin.f32 %v6891, 255.0
    %v6924 = vmin.f32 %v6892, 255.0
    %v6925 = vmin.f32 %v6893, 255.0
    %v6926 = vmin.f32 %v6894, 255.0
    %v6927 = vmin.f32 %v6895, 255.0
    %v6928 = vmin.f32 %v6896, 255.0
    %v6929 = vmin.f32 %v6897, 255.0
    %v6930 = vmin.f32 %v6898, 255.0
    %v6931 = vmin.f32 %v6899, 255.0
    %v6932 = vmin.f32 %v6900, 255.0
    %v6933 = vmin.f32 %v6901, 255.0
    %v6934 = vmin.f32 %v6902, 255.0
    %v6935 = vmin.f32 %v6903, 255.0
    %v6936 = vmin.f32 %v6904, 255.0
    %v6937 = vmin.f32 %v6905, 255.0
    %v6938 = vmin.f32 %v6906, 255.0
    %v6939 = vmin.f32 %v6907, 255.0
    %v6940 = vmin.f32 %v6908, 255.0
    %v6941 = vmin.f32 %v6909, 255.0
    %v6942 = vmin.f32 %v6910, 255.0
    %v6943 = vmin.f32 %v6911, 255.0
    %v6944 = vmin.f32 %v6912, 255.0
    %v6945 = vmin.f32 %v6913, 255.0
    %v6946 = vmin.f32 %v6914, 255.0
    %v6947 = vmin.f32 %v6915, 255.0
    %v6948 = vmin.f32 %v6916, 255.0
    %v6949 = vmin.f32 %v6917, 255.0
    %v6950 = vmin.f32 %v6918, 255.0
    %v6951 = vmin.f32 %v6919, 255.0
    %v6952 = vmin.f32 %v6920, 255.0
    %v6953 = vmin.f32 %v6921, 255.0
    %6955 = vset.pattern.permute.xlu0 0
    %6956 = vperm.xlu0 %6955, %v6922
    %v6957 = vpop.permute.xlu0 %6956
    %6960 = vset.pattern.permute.xlu0 0
    %6961 = vperm.xlu0 %6960, %v6923
    %v6962 = vpop.permute.xlu0 %6961
    %6965 = vset.pattern.permute.xlu0 0
    %6966 = vperm.xlu0 %6965, %v6924
    %v6967 = vpop.permute.xlu0 %6966
    %6970 = vset.pattern.permute.xlu0 0
    %6971 = vperm.xlu0 %6970, %v6925
    %v6972 = vpop.permute.xlu0 %6971
    %6975 = vset.pattern.permute.xlu0 0
    %6976 = vperm.xlu0 %6975, %v6926
    %v6977 = vpop.permute.xlu0 %6976
    %6980 = vset.pattern.permute.xlu0 0
    %6981 = vperm.xlu0 %6980, %v6927
    %v6982 = vpop.permute.xlu0 %6981
    %6985 = vset.pattern.permute.xlu0 0
    %6986 = vperm.xlu0 %6985, %v6928
    %v6987 = vpop.permute.xlu0 %6986
    %6990 = vset.pattern.permute.xlu0 0
    %6991 = vperm.xlu0 %6990, %v6929
    %v6992 = vpop.permute.xlu0 %6991
    %6995 = vset.pattern.permute.xlu0 0
    %6996 = vperm.xlu0 %6995, %v6930
    %v6997 = vpop.permute.xlu0 %6996
    %7000 = vset.pattern.permute.xlu0 0
    %7001 = vperm.xlu0 %7000, %v6931
    %v7002 = vpop.permute.xlu0 %7001
    %7005 = vset.pattern.permute.xlu0 0
    %7006 = vperm.xlu0 %7005, %v6932
    %v7007 = vpop.permute.xlu0 %7006
    %7010 = vset.pattern.permute.xlu0 0
    %7011 = vperm.xlu0 %7010, %v6933
    %v7012 = vpop.permute.xlu0 %7011
    %7015 = vset.pattern.permute.xlu0 0
    %7016 = vperm.xlu0 %7015, %v6934
    %v7017 = vpop.permute.xlu0 %7016
    %7020 = vset.pattern.permute.xlu0 0
    %7021 = vperm.xlu0 %7020, %v6935
    %v7022 = vpop.permute.xlu0 %7021
    %7025 = vset.pattern.permute.xlu0 0
    %7026 = vperm.xlu0 %7025, %v6936
    %v7027 = vpop.permute.xlu0 %7026
    %7030 = vset.pattern.permute.xlu0 0
    %7031 = vperm.xlu0 %7030, %v6937
    %v7032 = vpop.permute.xlu0 %7031
    %7035 = vset.pattern.permute.xlu0 0
    %7036 = vperm.xlu0 %7035, %v6938
    %v7037 = vpop.permute.xlu0 %7036
    %7040 = vset.pattern.permute.xlu0 0
    %7041 = vperm.xlu0 %7040, %v6939
    %v7042 = vpop.permute.xlu0 %7041
    %7045 = vset.pattern.permute.xlu0 0
    %7046 = vperm.xlu0 %7045, %v6940
    %v7047 = vpop.permute.xlu0 %7046
    %7050 = vset.pattern.permute.xlu0 0
    %7051 = vperm.xlu0 %7050, %v6941
    %v7052 = vpop.permute.xlu0 %7051
    %7055 = vset.pattern.permute.xlu0 0
    %7056 = vperm.xlu0 %7055, %v6942
    %v7057 = vpop.permute.xlu0 %7056
    %7060 = vset.pattern.permute.xlu0 0
    %7061 = vperm.xlu0 %7060, %v6943
    %v7062 = vpop.permute.xlu0 %7061
    %7065 = vset.pattern.permute.xlu0 0
    %7066 = vperm.xlu0 %7065, %v6944
    %v7067 = vpop.permute.xlu0 %7066
    %7070 = vset.pattern.permute.xlu0 0
    %7071 = vperm.xlu0 %7070, %v6945
    %v7072 = vpop.permute.xlu0 %7071
    %7075 = vset.pattern.permute.xlu0 0
    %7076 = vperm.xlu0 %7075, %v6946
    %v7077 = vpop.permute.xlu0 %7076
    %7080 = vset.pattern.permute.xlu0 0
    %7081 = vperm.xlu0 %7080, %v6947
    %v7082 = vpop.permute.xlu0 %7081
    %7085 = vset.pattern.permute.xlu0 0
    %7086 = vperm.xlu0 %7085, %v6948
    %v7087 = vpop.permute.xlu0 %7086
    %7090 = vset.pattern.permute.xlu0 0
    %7091 = vperm.xlu0 %7090, %v6949
    %v7092 = vpop.permute.xlu0 %7091
    %7095 = vset.pattern.permute.xlu0 0
    %7096 = vperm.xlu0 %7095, %v6950
    %v7097 = vpop.permute.xlu0 %7096
    %7100 = vset.pattern.permute.xlu0 0
    %7101 = vperm.xlu0 %7100, %v6951
    %v7102 = vpop.permute.xlu0 %7101
    %7105 = vset.pattern.permute.xlu0 0
    %7106 = vperm.xlu0 %7105, %v6952
    %v7107 = vpop.permute.xlu0 %7106
    %7110 = vset.pattern.permute.xlu0 0
    %7111 = vperm.xlu0 %7110, %v6953
    %v7112 = vpop.permute.xlu0 %7111
    %v7114 = vsel %vm3774, %v6957, 0.0
    %v7115 = vsel %vm3775, %v6957, 0.0
    %v7116 = vsel %vm3776, %v6962, 0.0
    %v7117 = vsel %vm3777, %v6962, 0.0
    %v7118 = vsel %vm3778, %v6967, 0.0
    %v7119 = vsel %vm3779, %v6967, 0.0
    %v7120 = vsel %vm3780, %v6972, 0.0
    %v7121 = vsel %vm3781, %v6972, 0.0
    %v7122 = vsel %vm3782, %v6977, 0.0
    %v7123 = vsel %vm3783, %v6977, 0.0
    %v7124 = vsel %vm3784, %v6982, 0.0
    %v7125 = vsel %vm3785, %v6982, 0.0
    %v7126 = vsel %vm3786, %v6987, 0.0
    %v7127 = vsel %vm3787, %v6987, 0.0
    %v7128 = vsel %vm3788, %v6992, 0.0
    %v7129 = vsel %vm3789, %v6992, 0.0
    %v7130 = vsel %vm3790, %v6997, 0.0
    %v7131 = vsel %vm3791, %v6997, 0.0
    %v7132 = vsel %vm3792, %v7002, 0.0
    %v7133 = vsel %vm3793, %v7002, 0.0
    %v7134 = vsel %vm3794, %v7007, 0.0
    %v7135 = vsel %vm3795, %v7007, 0.0
    %v7136 = vsel %vm3796, %v7012, 0.0
    %v7137 = vsel %vm3797, %v7012, 0.0
    %v7138 = vsel %vm3798, %v7017, 0.0
    %v7139 = vsel %vm3799, %v7017, 0.0
    %v7140 = vsel %vm3800, %v7022, 0.0
    %v7141 = vsel %vm3801, %v7022, 0.0
    %v7142 = vsel %vm3802, %v7027, 0.0
    %v7143 = vsel %vm3803, %v7027, 0.0
    %v7144 = vsel %vm3804, %v7032, 0.0
    %v7145 = vsel %vm3805, %v7032, 0.0
    %v7146 = vsel %vm3806, %v7037, 0.0
    %v7147 = vsel %vm3807, %v7037, 0.0
    %v7148 = vsel %vm3808, %v7042, 0.0
    %v7149 = vsel %vm3809, %v7042, 0.0
    %v7150 = vsel %vm3810, %v7047, 0.0
    %v7151 = vsel %vm3811, %v7047, 0.0
    %v7152 = vsel %vm3812, %v7052, 0.0
    %v7153 = vsel %vm3813, %v7052, 0.0
    %v7154 = vsel %vm3814, %v7057, 0.0
    %v7155 = vsel %vm3815, %v7057, 0.0
    %v7156 = vsel %vm3816, %v7062, 0.0
    %v7157 = vsel %vm3817, %v7062, 0.0
    %v7158 = vsel %vm3818, %v7067, 0.0
    %v7159 = vsel %vm3819, %v7067, 0.0
    %v7160 = vsel %vm3820, %v7072, 0.0
    %v7161 = vsel %vm3821, %v7072, 0.0
    %v7162 = vsel %vm3822, %v7077, 0.0
    %v7163 = vsel %vm3823, %v7077, 0.0
    %v7164 = vsel %vm3824, %v7082, 0.0
    %v7165 = vsel %vm3825, %v7082, 0.0
    %v7166 = vsel %vm3826, %v7087, 0.0
    %v7167 = vsel %vm3827, %v7087, 0.0
    %v7168 = vsel %vm3828, %v7092, 0.0
    %v7169 = vsel %vm3829, %v7092, 0.0
    %v7170 = vsel %vm3830, %v7097, 0.0
    %v7171 = vsel %vm3831, %v7097, 0.0
    %v7172 = vsel %vm3832, %v7102, 0.0
    %v7173 = vsel %vm3833, %v7102, 0.0
    %v7174 = vsel %vm3834, %v7107, 0.0
    %v7175 = vsel %vm3835, %v7107, 0.0
    %v7176 = vsel %vm3836, %v7112, 0.0
    %v7177 = vsel %vm3837, %v7112, 0.0
    %v7178 = vadd.f32 %v7114, %v7116
    %v7179 = vadd.f32 %v7178, %v7118
    %v7180 = vadd.f32 %v7179, %v7120
    %v7181 = vadd.f32 %v7180, %v7122
    %v7182 = vadd.f32 %v7181, %v7124
    %v7183 = vadd.f32 %v7182, %v7126
    %v7184 = vadd.f32 %v7183, %v7128
    %v7185 = vadd.f32 %v7184, %v7130
    %v7186 = vadd.f32 %v7185, %v7132
    %v7187 = vadd.f32 %v7186, %v7134
    %v7188 = vadd.f32 %v7187, %v7136
    %v7189 = vadd.f32 %v7188, %v7138
    %v7190 = vadd.f32 %v7189, %v7140
    %v7191 = vadd.f32 %v7190, %v7142
    %v7192 = vadd.f32 %v7191, %v7144
    %v7193 = vadd.f32 %v7192, %v7146
    %v7194 = vadd.f32 %v7193, %v7148
    %v7195 = vadd.f32 %v7194, %v7150
    %v7196 = vadd.f32 %v7195, %v7152
    %v7197 = vadd.f32 %v7196, %v7154
    %v7198 = vadd.f32 %v7197, %v7156
    %v7199 = vadd.f32 %v7198, %v7158
    %v7200 = vadd.f32 %v7199, %v7160
    %v7201 = vadd.f32 %v7200, %v7162
    %v7202 = vadd.f32 %v7201, %v7164
    %v7203 = vadd.f32 %v7202, %v7166
    %v7204 = vadd.f32 %v7203, %v7168
    %v7205 = vadd.f32 %v7204, %v7170
    %v7206 = vadd.f32 %v7205, %v7172
    %v7207 = vadd.f32 %v7206, %v7174
    %v7208 = vadd.f32 %v7207, %v7176
    %v7209 = vrot.slane %v7208, 4
    %v7210 = vadd.f32 %v7208, %v7209
    %v7211 = vrot.slane %v7210, 2
    %v7212 = vadd.f32 %v7210, %v7211
    %v7213 = vrot.slane %v7212, 1
    %v7214 = vadd.f32 %v7212, %v7213
    %v7215 = vadd.f32 %v7115, %v7117
    %v7216 = vadd.f32 %v7215, %v7119
    %v7217 = vadd.f32 %v7216, %v7121
    %v7218 = vadd.f32 %v7217, %v7123
    %v7219 = vadd.f32 %v7218, %v7125
    %v7220 = vadd.f32 %v7219, %v7127
    %v7221 = vadd.f32 %v7220, %v7129
    %v7222 = vadd.f32 %v7221, %v7131
    %v7223 = vadd.f32 %v7222, %v7133
    %v7224 = vadd.f32 %v7223, %v7135
    %v7225 = vadd.f32 %v7224, %v7137
    %v7226 = vadd.f32 %v7225, %v7139
    %v7227 = vadd.f32 %v7226, %v7141
    %v7228 = vadd.f32 %v7227, %v7143
    %v7229 = vadd.f32 %v7228, %v7145
    %v7230 = vadd.f32 %v7229, %v7147
    %v7231 = vadd.f32 %v7230, %v7149
    %v7232 = vadd.f32 %v7231, %v7151
    %v7233 = vadd.f32 %v7232, %v7153
    %v7234 = vadd.f32 %v7233, %v7155
    %v7235 = vadd.f32 %v7234, %v7157
    %v7236 = vadd.f32 %v7235, %v7159
    %v7237 = vadd.f32 %v7236, %v7161
    %v7238 = vadd.f32 %v7237, %v7163
    %v7239 = vadd.f32 %v7238, %v7165
    %v7240 = vadd.f32 %v7239, %v7167
    %v7241 = vadd.f32 %v7240, %v7169
    %v7242 = vadd.f32 %v7241, %v7171
    %v7243 = vadd.f32 %v7242, %v7173
    %v7244 = vadd.f32 %v7243, %v7175
    %v7245 = vadd.f32 %v7244, %v7177
    %v7246 = vrot.slane %v7245, 4
    %v7247 = vadd.f32 %v7245, %v7246
    %v7248 = vrot.slane %v7247, 2
    %v7249 = vadd.f32 %v7247, %v7248
    %v7250 = vrot.slane %v7249, 1
    %v7251 = vadd.f32 %v7249, %v7250
    %p7252 = scmp.gt.f32.partialorder %s4219, 0.0
    %s7253 = scalar_select %p7252, 1, 0
    %v7254 = vstv %s7253
    %vm7255 = vcmp.eq.s32.totalorder %v7254, 1
    %v7256 = vlaneseq
    %v7257 = vshrl.u32 %v7256, 7
    %v7258 = vsub.s32 1, %v7257
    %v7259 = vrot.slane %v3741, %v7258
    %v7260 = vlaneseq
    %v7261 = vshrl.u32 %v7260, 7
    %v7262 = vsub.s32 5, %v7261
    %v7263 = vrot.slane %v3741, %v7262
    %v7266 = vsel %vm7255, %v7214, %v7259
    %v7267 = vsel %vm7255, %v7251, %v7263
    %v7268 = vlaneseq
    %v7269 = vshrl.u32 %v7268, 7
    %v7270 = vsub.s32 2, %v7269
    %v7271 = vrot.slane %v17, %v7270
    %v7272 = vlaneseq
    %v7273 = vshrl.u32 %v7272, 7
    %v7274 = vsub.s32 6, %v7273
    %v7275 = vrot.slane %v17, %v7274
    %v7276 = vlaneseq
    %v7277 = vshrl.u32 %v7276, 7
    %v7278 = vsub.s32 2, %v7277
    %v7279 = vrot.slane %v7271, %v7278
    %v7280 = vlaneseq
    %v7281 = vshrl.u32 %v7280, 7
    %v7282 = vsub.s32 2, %v7281
    %v7283 = vrot.slane %v7275, %v7282
    %vm7284 = vcmp.eq.s32.totalorder %v7279, %v19
    %vm7285 = vcmp.eq.s32.totalorder %v7283, %v19
    %vm7286 = vcmp.eq.s32.totalorder %v7279, %v20
    %vm7287 = vcmp.eq.s32.totalorder %v7283, %v20
    %vm7288 = vcmp.eq.s32.totalorder %v7279, %v21
    %vm7289 = vcmp.eq.s32.totalorder %v7283, %v21
    %vm7290 = vcmp.eq.s32.totalorder %v7279, %v22
    %vm7291 = vcmp.eq.s32.totalorder %v7283, %v22
    %vm7292 = vcmp.eq.s32.totalorder %v7279, %v23
    %vm7293 = vcmp.eq.s32.totalorder %v7283, %v23
    %vm7294 = vcmp.eq.s32.totalorder %v7279, %v24
    %vm7295 = vcmp.eq.s32.totalorder %v7283, %v24
    %vm7296 = vcmp.eq.s32.totalorder %v7279, %v25
    %vm7297 = vcmp.eq.s32.totalorder %v7283, %v25
    %vm7298 = vcmp.eq.s32.totalorder %v7279, %v26
    %vm7299 = vcmp.eq.s32.totalorder %v7283, %v26
    %vm7300 = vcmp.eq.s32.totalorder %v7279, %v27
    %vm7301 = vcmp.eq.s32.totalorder %v7283, %v27
    %vm7302 = vcmp.eq.s32.totalorder %v7279, %v28
    %vm7303 = vcmp.eq.s32.totalorder %v7283, %v28
    %vm7304 = vcmp.eq.s32.totalorder %v7279, %v29
    %vm7305 = vcmp.eq.s32.totalorder %v7283, %v29
    %vm7306 = vcmp.eq.s32.totalorder %v7279, %v30
    %vm7307 = vcmp.eq.s32.totalorder %v7283, %v30
    %vm7308 = vcmp.eq.s32.totalorder %v7279, %v31
    %vm7309 = vcmp.eq.s32.totalorder %v7283, %v31
    %vm7310 = vcmp.eq.s32.totalorder %v7279, %v32
    %vm7311 = vcmp.eq.s32.totalorder %v7283, %v32
    %vm7312 = vcmp.eq.s32.totalorder %v7279, %v33
    %vm7313 = vcmp.eq.s32.totalorder %v7283, %v33
    %vm7314 = vcmp.eq.s32.totalorder %v7279, %v34
    %vm7315 = vcmp.eq.s32.totalorder %v7283, %v34
    %vm7316 = vcmp.eq.s32.totalorder %v7279, %v35
    %vm7317 = vcmp.eq.s32.totalorder %v7283, %v35
    %vm7318 = vcmp.eq.s32.totalorder %v7279, %v36
    %vm7319 = vcmp.eq.s32.totalorder %v7283, %v36
    %vm7320 = vcmp.eq.s32.totalorder %v7279, %v37
    %vm7321 = vcmp.eq.s32.totalorder %v7283, %v37
    %vm7322 = vcmp.eq.s32.totalorder %v7279, %v38
    %vm7323 = vcmp.eq.s32.totalorder %v7283, %v38
    %vm7324 = vcmp.eq.s32.totalorder %v7279, %v39
    %vm7325 = vcmp.eq.s32.totalorder %v7283, %v39
    %vm7326 = vcmp.eq.s32.totalorder %v7279, %v40
    %vm7327 = vcmp.eq.s32.totalorder %v7283, %v40
    %vm7328 = vcmp.eq.s32.totalorder %v7279, %v41
    %vm7329 = vcmp.eq.s32.totalorder %v7283, %v41
    %vm7330 = vcmp.eq.s32.totalorder %v7279, %v42
    %vm7331 = vcmp.eq.s32.totalorder %v7283, %v42
    %vm7332 = vcmp.eq.s32.totalorder %v7279, %v43
    %vm7333 = vcmp.eq.s32.totalorder %v7283, %v43
    %vm7334 = vcmp.eq.s32.totalorder %v7279, %v44
    %vm7335 = vcmp.eq.s32.totalorder %v7283, %v44
    %vm7336 = vcmp.eq.s32.totalorder %v7279, %v45
    %vm7337 = vcmp.eq.s32.totalorder %v7283, %v45
    %vm7338 = vcmp.eq.s32.totalorder %v7279, %v46
    %vm7339 = vcmp.eq.s32.totalorder %v7283, %v46
    %vm7340 = vcmp.eq.s32.totalorder %v7279, %v47
    %vm7341 = vcmp.eq.s32.totalorder %v7283, %v47
    %vm7342 = vcmp.eq.s32.totalorder %v7279, %v48
    %vm7343 = vcmp.eq.s32.totalorder %v7283, %v48
    %vm7344 = vcmp.eq.s32.totalorder %v7279, %v49
    %vm7345 = vcmp.eq.s32.totalorder %v7283, %v49
    %vm7346 = vcmp.eq.s32.totalorder %v7279, %v50
    %vm7347 = vcmp.eq.s32.totalorder %v7283, %v50
    %v7348 = vsel %vm7284, 1, 0
    %v7349 = vsel %vm7285, 1, 0
    %v7350 = vsel %vm7286, 1, 0
    %v7351 = vsel %vm7287, 1, 0
    %v7352 = vsel %vm7288, 1, 0
    %v7353 = vsel %vm7289, 1, 0
    %v7354 = vsel %vm7290, 1, 0
    %v7355 = vsel %vm7291, 1, 0
    %v7356 = vsel %vm7292, 1, 0
    %v7357 = vsel %vm7293, 1, 0
    %v7358 = vsel %vm7294, 1, 0
    %v7359 = vsel %vm7295, 1, 0
    %v7360 = vsel %vm7296, 1, 0
    %v7361 = vsel %vm7297, 1, 0
    %v7362 = vsel %vm7298, 1, 0
    %v7363 = vsel %vm7299, 1, 0
    %v7364 = vsel %vm7300, 1, 0
    %v7365 = vsel %vm7301, 1, 0
    %v7366 = vsel %vm7302, 1, 0
    %v7367 = vsel %vm7303, 1, 0
    %v7368 = vsel %vm7304, 1, 0
    %v7369 = vsel %vm7305, 1, 0
    %v7370 = vsel %vm7306, 1, 0
    %v7371 = vsel %vm7307, 1, 0
    %v7372 = vsel %vm7308, 1, 0
    %v7373 = vsel %vm7309, 1, 0
    %v7374 = vsel %vm7310, 1, 0
    %v7375 = vsel %vm7311, 1, 0
    %v7376 = vsel %vm7312, 1, 0
    %v7377 = vsel %vm7313, 1, 0
    %v7378 = vsel %vm7314, 1, 0
    %v7379 = vsel %vm7315, 1, 0
    %v7380 = vsel %vm7316, 1, 0
    %v7381 = vsel %vm7317, 1, 0
    %v7382 = vsel %vm7318, 1, 0
    %v7383 = vsel %vm7319, 1, 0
    %v7384 = vsel %vm7320, 1, 0
    %v7385 = vsel %vm7321, 1, 0
    %v7386 = vsel %vm7322, 1, 0
    %v7387 = vsel %vm7323, 1, 0
    %v7388 = vsel %vm7324, 1, 0
    %v7389 = vsel %vm7325, 1, 0
    %v7390 = vsel %vm7326, 1, 0
    %v7391 = vsel %vm7327, 1, 0
    %v7392 = vsel %vm7328, 1, 0
    %v7393 = vsel %vm7329, 1, 0
    %v7394 = vsel %vm7330, 1, 0
    %v7395 = vsel %vm7331, 1, 0
    %v7396 = vsel %vm7332, 1, 0
    %v7397 = vsel %vm7333, 1, 0
    %v7398 = vsel %vm7334, 1, 0
    %v7399 = vsel %vm7335, 1, 0
    %v7400 = vsel %vm7336, 1, 0
    %v7401 = vsel %vm7337, 1, 0
    %v7402 = vsel %vm7338, 1, 0
    %v7403 = vsel %vm7339, 1, 0
    %v7404 = vsel %vm7340, 1, 0
    %v7405 = vsel %vm7341, 1, 0
    %v7406 = vsel %vm7342, 1, 0
    %v7407 = vsel %vm7343, 1, 0
    %v7408 = vsel %vm7344, 1, 0
    %v7409 = vsel %vm7345, 1, 0
    %v7410 = vsel %vm7346, 1, 0
    %v7411 = vsel %vm7347, 1, 0
    %v7412 = vcvt.s32.f32 %v7348
    %v7413 = vcvt.s32.f32 %v7349
    %v7414 = vcvt.s32.f32 %v7350
    %v7415 = vcvt.s32.f32 %v7351
    %v7416 = vcvt.s32.f32 %v7352
    %v7417 = vcvt.s32.f32 %v7353
    %v7418 = vcvt.s32.f32 %v7354
    %v7419 = vcvt.s32.f32 %v7355
    %v7420 = vcvt.s32.f32 %v7356
    %v7421 = vcvt.s32.f32 %v7357
    %v7422 = vcvt.s32.f32 %v7358
    %v7423 = vcvt.s32.f32 %v7359
    %v7424 = vcvt.s32.f32 %v7360
    %v7425 = vcvt.s32.f32 %v7361
    %v7426 = vcvt.s32.f32 %v7362
    %v7427 = vcvt.s32.f32 %v7363
    %v7428 = vcvt.s32.f32 %v7364
    %v7429 = vcvt.s32.f32 %v7365
    %v7430 = vcvt.s32.f32 %v7366
    %v7431 = vcvt.s32.f32 %v7367
    %v7432 = vcvt.s32.f32 %v7368
    %v7433 = vcvt.s32.f32 %v7369
    %v7434 = vcvt.s32.f32 %v7370
    %v7435 = vcvt.s32.f32 %v7371
    %v7436 = vcvt.s32.f32 %v7372
    %v7437 = vcvt.s32.f32 %v7373
    %v7438 = vcvt.s32.f32 %v7374
    %v7439 = vcvt.s32.f32 %v7375
    %v7440 = vcvt.s32.f32 %v7376
    %v7441 = vcvt.s32.f32 %v7377
    %v7442 = vcvt.s32.f32 %v7378
    %v7443 = vcvt.s32.f32 %v7379
    %v7444 = vcvt.s32.f32 %v7380
    %v7445 = vcvt.s32.f32 %v7381
    %v7446 = vcvt.s32.f32 %v7382
    %v7447 = vcvt.s32.f32 %v7383
    %v7448 = vcvt.s32.f32 %v7384
    %v7449 = vcvt.s32.f32 %v7385
    %v7450 = vcvt.s32.f32 %v7386
    %v7451 = vcvt.s32.f32 %v7387
    %v7452 = vcvt.s32.f32 %v7388
    %v7453 = vcvt.s32.f32 %v7389
    %v7454 = vcvt.s32.f32 %v7390
    %v7455 = vcvt.s32.f32 %v7391
    %v7456 = vcvt.s32.f32 %v7392
    %v7457 = vcvt.s32.f32 %v7393
    %v7458 = vcvt.s32.f32 %v7394
    %v7459 = vcvt.s32.f32 %v7395
    %v7460 = vcvt.s32.f32 %v7396
    %v7461 = vcvt.s32.f32 %v7397
    %v7462 = vcvt.s32.f32 %v7398
    %v7463 = vcvt.s32.f32 %v7399
    %v7464 = vcvt.s32.f32 %v7400
    %v7465 = vcvt.s32.f32 %v7401
    %v7466 = vcvt.s32.f32 %v7402
    %v7467 = vcvt.s32.f32 %v7403
    %v7468 = vcvt.s32.f32 %v7404
    %v7469 = vcvt.s32.f32 %v7405
    %v7470 = vcvt.s32.f32 %v7406
    %v7471 = vcvt.s32.f32 %v7407
    %v7472 = vcvt.s32.f32 %v7408
    %v7473 = vcvt.s32.f32 %v7409
    %v7474 = vcvt.s32.f32 %v7410
    %v7475 = vcvt.s32.f32 %v7411
    %v7476 = vpack.c.bf16 %v7414, %v7412
    %v7477 = vpack.c.bf16 %v7415, %v7413
    %v7478 = vpack.c.bf16 %v7418, %v7416
    %v7479 = vpack.c.bf16 %v7419, %v7417
    %v7480 = vpack.c.bf16 %v7422, %v7420
    %v7481 = vpack.c.bf16 %v7423, %v7421
    %v7482 = vpack.c.bf16 %v7426, %v7424
    %v7483 = vpack.c.bf16 %v7427, %v7425
    %v7484 = vpack.c.bf16 %v7430, %v7428
    %v7485 = vpack.c.bf16 %v7431, %v7429
    %v7486 = vpack.c.bf16 %v7434, %v7432
    %v7487 = vpack.c.bf16 %v7435, %v7433
    %v7488 = vpack.c.bf16 %v7438, %v7436
    %v7489 = vpack.c.bf16 %v7439, %v7437
    %v7490 = vpack.c.bf16 %v7442, %v7440
    %v7491 = vpack.c.bf16 %v7443, %v7441
    %v7492 = vpack.c.bf16 %v7446, %v7444
    %v7493 = vpack.c.bf16 %v7447, %v7445
    %v7494 = vpack.c.bf16 %v7450, %v7448
    %v7495 = vpack.c.bf16 %v7451, %v7449
    %v7496 = vpack.c.bf16 %v7454, %v7452
    %v7497 = vpack.c.bf16 %v7455, %v7453
    %v7498 = vpack.c.bf16 %v7458, %v7456
    %v7499 = vpack.c.bf16 %v7459, %v7457
    %v7500 = vpack.c.bf16 %v7462, %v7460
    %v7501 = vpack.c.bf16 %v7463, %v7461
    %v7502 = vpack.c.bf16 %v7466, %v7464
    %v7503 = vpack.c.bf16 %v7467, %v7465
    %v7504 = vpack.c.bf16 %v7470, %v7468
    %v7505 = vpack.c.bf16 %v7471, %v7469
    %v7506 = vpack.c.bf16 %v7474, %v7472
    %v7507 = vpack.c.bf16 %v7475, %v7473
    %7508 = vmatprep.subr.bf16.mxu0 0
    %7509 = vmatpush1.bf16.msra.mxu0 1065369472
    %7510 = vmatprep.subr.bf16.mxu0 0
    %7511 = vmatpush1.bf16.msra.mxu0 1065369472
    %7512 = vmatprep.subr.bf16.mxu0 0
    %7513 = vmatpush1.bf16.msra.mxu0 1065369472
    %7514 = vmatprep.subr.bf16.mxu0 0
    %7515 = vmatpush1.bf16.msra.mxu0 1065369472
    %7516 = vmatprep.subr.bf16.mxu0 0
    %7517 = vmatpush1.bf16.msra.mxu0 1065369472
    %7518 = vmatprep.subr.bf16.mxu0 0
    %7519 = vmatpush1.bf16.msra.mxu0 1065369472
    %7520 = vmatprep.subr.bf16.mxu0 0
    %7521 = vmatpush1.bf16.msra.mxu0 1065369472
    %7522 = vmatprep.subr.bf16.mxu0 0
    %7523 = vmatpush1.bf16.msra.mxu0 1065369472
    %7524 = vmatprep.subr.bf16.mxu0 0
    %7525 = vmatpush2.bf16.msra.mxu0 1065369472
    %7526 = vmatprep.subr.bf16.mxu0 0
    %7527 = vmatpush2.bf16.msra.mxu0 1065369472
    %7528 = vmatprep.subr.bf16.mxu0 0
    %7529 = vmatpush2.bf16.msra.mxu0 1065369472
    %7530 = vmatprep.subr.bf16.mxu0 0
    %7531 = vmatpush2.bf16.msra.mxu0 1065369472
    %7532 = vmatprep.subr.bf16.mxu0 0
    %7533 = vmatpush2.bf16.msra.mxu0 1065369472
    %7534 = vmatprep.subr.bf16.mxu0 0
    %7535 = vmatpush2.bf16.msra.mxu0 1065369472
    %7536 = vmatprep.subr.bf16.mxu0 0
    %7537 = vmatpush2.bf16.msra.mxu0 1065369472
    %7538 = vmatprep.subr.bf16.mxu0 0
    %7539 = vmatpush2.bf16.msra.mxu0 1065369472
    %7540 = vmatprep.mubr.bf16.mxu0 %v7477
    %7541 = vmatmul.mubr.bf16.gmra.mxu0 %v7476
    %v7542 = vpop.f32.mrf.mxu0
    %v7543 = vadd.f32 0.0, %v7542
    %v7544 = vpop.f32.mrf.mxu0
    %v7545 = vpop.f32.mrf.mxu0
    %v7546 = vadd.f32 0.0, %v7545
    %v7547 = vpop.f32.mrf.mxu0
    %7548 = vmatprep.mubr.bf16.mxu0 %v7479
    %7549 = vmatmul.mubr.bf16.gmra.mxu0 %v7478
    %v7550 = vpop.f32.mrf.mxu0
    %v7551 = vadd.f32 0.0, %v7550
    %v7552 = vpop.f32.mrf.mxu0
    %v7553 = vpop.f32.mrf.mxu0
    %v7554 = vadd.f32 0.0, %v7553
    %v7555 = vpop.f32.mrf.mxu0
    %7556 = vmatprep.mubr.bf16.mxu0 %v7481
    %7557 = vmatmul.mubr.bf16.gmra.mxu0 %v7480
    %v7558 = vpop.f32.mrf.mxu0
    %v7559 = vadd.f32 0.0, %v7558
    %v7560 = vpop.f32.mrf.mxu0
    %v7561 = vpop.f32.mrf.mxu0
    %v7562 = vadd.f32 0.0, %v7561
    %v7563 = vpop.f32.mrf.mxu0
    %7564 = vmatprep.mubr.bf16.mxu0 %v7483
    %7565 = vmatmul.mubr.bf16.gmra.mxu0 %v7482
    %v7566 = vpop.f32.mrf.mxu0
    %v7567 = vadd.f32 0.0, %v7566
    %v7568 = vpop.f32.mrf.mxu0
    %v7569 = vpop.f32.mrf.mxu0
    %v7570 = vadd.f32 0.0, %v7569
    %v7571 = vpop.f32.mrf.mxu0
    %7572 = vmatprep.mubr.bf16.mxu0 %v7485
    %7573 = vmatmul.mubr.bf16.gmra.mxu0 %v7484
    %v7574 = vpop.f32.mrf.mxu0
    %v7575 = vadd.f32 0.0, %v7574
    %v7576 = vpop.f32.mrf.mxu0
    %v7577 = vpop.f32.mrf.mxu0
    %v7578 = vadd.f32 0.0, %v7577
    %v7579 = vpop.f32.mrf.mxu0
    %7580 = vmatprep.mubr.bf16.mxu0 %v7487
    %7581 = vmatmul.mubr.bf16.gmra.mxu0 %v7486
    %v7582 = vpop.f32.mrf.mxu0
    %v7583 = vadd.f32 0.0, %v7582
    %v7584 = vpop.f32.mrf.mxu0
    %v7585 = vpop.f32.mrf.mxu0
    %v7586 = vadd.f32 0.0, %v7585
    %v7587 = vpop.f32.mrf.mxu0
    %7588 = vmatprep.mubr.bf16.mxu0 %v7489
    %7589 = vmatmul.mubr.bf16.gmra.mxu0 %v7488
    %v7590 = vpop.f32.mrf.mxu0
    %v7591 = vadd.f32 0.0, %v7590
    %v7592 = vpop.f32.mrf.mxu0
    %v7593 = vpop.f32.mrf.mxu0
    %v7594 = vadd.f32 0.0, %v7593
    %v7595 = vpop.f32.mrf.mxu0
    %7596 = vmatprep.mubr.bf16.mxu0 %v7491
    %7597 = vmatmul.mubr.bf16.gmra.mxu0 %v7490
    %v7598 = vpop.f32.mrf.mxu0
    %v7599 = vadd.f32 0.0, %v7598
    %v7600 = vpop.f32.mrf.mxu0
    %v7601 = vpop.f32.mrf.mxu0
    %v7602 = vadd.f32 0.0, %v7601
    %v7603 = vpop.f32.mrf.mxu0
    %7604 = vmatprep.mubr.bf16.mxu0 %v7493
    %7605 = vmatmul.mubr.bf16.gmra.mxu0 %v7492
    %v7606 = vpop.f32.mrf.mxu0
    %v7607 = vadd.f32 0.0, %v7606
    %v7608 = vpop.f32.mrf.mxu0
    %v7609 = vpop.f32.mrf.mxu0
    %v7610 = vadd.f32 0.0, %v7609
    %v7611 = vpop.f32.mrf.mxu0
    %7612 = vmatprep.mubr.bf16.mxu0 %v7495
    %7613 = vmatmul.mubr.bf16.gmra.mxu0 %v7494
    %v7614 = vpop.f32.mrf.mxu0
    %v7615 = vadd.f32 0.0, %v7614
    %v7616 = vpop.f32.mrf.mxu0
    %v7617 = vpop.f32.mrf.mxu0
    %v7618 = vadd.f32 0.0, %v7617
    %v7619 = vpop.f32.mrf.mxu0
    %7620 = vmatprep.mubr.bf16.mxu0 %v7497
    %7621 = vmatmul.mubr.bf16.gmra.mxu0 %v7496
    %v7622 = vpop.f32.mrf.mxu0
    %v7623 = vadd.f32 0.0, %v7622
    %v7624 = vpop.f32.mrf.mxu0
    %v7625 = vpop.f32.mrf.mxu0
    %v7626 = vadd.f32 0.0, %v7625
    %v7627 = vpop.f32.mrf.mxu0
    %7628 = vmatprep.mubr.bf16.mxu0 %v7499
    %7629 = vmatmul.mubr.bf16.gmra.mxu0 %v7498
    %v7630 = vpop.f32.mrf.mxu0
    %v7631 = vadd.f32 0.0, %v7630
    %v7632 = vpop.f32.mrf.mxu0
    %v7633 = vpop.f32.mrf.mxu0
    %v7634 = vadd.f32 0.0, %v7633
    %v7635 = vpop.f32.mrf.mxu0
    %7636 = vmatprep.mubr.bf16.mxu0 %v7501
    %7637 = vmatmul.mubr.bf16.gmra.mxu0 %v7500
    %v7638 = vpop.f32.mrf.mxu0
    %v7639 = vadd.f32 0.0, %v7638
    %v7640 = vpop.f32.mrf.mxu0
    %v7641 = vpop.f32.mrf.mxu0
    %v7642 = vadd.f32 0.0, %v7641
    %v7643 = vpop.f32.mrf.mxu0
    %7644 = vmatprep.mubr.bf16.mxu0 %v7503
    %7645 = vmatmul.mubr.bf16.gmra.mxu0 %v7502
    %v7646 = vpop.f32.mrf.mxu0
    %v7647 = vadd.f32 0.0, %v7646
    %v7648 = vpop.f32.mrf.mxu0
    %v7649 = vpop.f32.mrf.mxu0
    %v7650 = vadd.f32 0.0, %v7649
    %v7651 = vpop.f32.mrf.mxu0
    %7652 = vmatprep.mubr.bf16.mxu0 %v7505
    %7653 = vmatmul.mubr.bf16.gmra.mxu0 %v7504
    %v7654 = vpop.f32.mrf.mxu0
    %v7655 = vadd.f32 0.0, %v7654
    %v7656 = vpop.f32.mrf.mxu0
    %v7657 = vpop.f32.mrf.mxu0
    %v7658 = vadd.f32 0.0, %v7657
    %v7659 = vpop.f32.mrf.mxu0
    %7660 = vmatprep.mubr.bf16.mxu0 %v7507
    %7661 = vmatmul.mubr.bf16.gmra.mxu0 %v7506
    %v7662 = vpop.f32.mrf.mxu0
    %v7663 = vadd.f32 0.0, %v7662
    %v7664 = vpop.f32.mrf.mxu0
    %v7665 = vpop.f32.mrf.mxu0
    %v7666 = vadd.f32 0.0, %v7665
    %v7667 = vpop.f32.mrf.mxu0
    %7668 = vdwg.mxu0
    %vm7669 = vcmask 1042434
    %v7670 = vsel %vm7669, %v7271, 2147483648
    %v7671 = vsel %vm7669, %v7275, 2147483648
    %vm7672 = vcmp.gt.s32.totalorder %v7670, %v7671
    %v7673 = vsel %vm7672, %v7670, %v7671
    %v7674 = vand.u32 %v7673, 65535
    %v7675 = vshra.s32 %v7673, 16
    %v7676 = vcvt.s32.f32 %v7674
    %v7677 = vcvt.s32.f32 %v7675
    %7678 = vmax.xlane.f32.xlu0 %v7677
    %v7679 = vpop.xlane.xlu0 %7678
    %vm7680 = vcmp.eq.f32.partialorder %v7677, %v7679
    %v7681 = vsel %vm7680, %v7676, -inf
    %7682 = vmax.xlane.f32.xlu0 %v7681
    %v7683 = vpop.xlane.xlu0 %7682
    %v7684 = vcvt.f32.s32 %v7683
    %v7685 = vcvt.f32.s32 %v7679
    %v7686 = vshll.u32 %v7685, 16
    %v7687 = vadd.s32 %v7686, %v7684
    %v7688 = vrot.slane %v7687, 4
    %vm7689 = vcmp.gt.s32.totalorder %v7687, %v7688
    %v7690 = vsel %vm7689, %v7687, %v7688
    %v7691 = vrot.slane %v7690, 2
    %vm7692 = vcmp.gt.s32.totalorder %v7690, %v7691
    %v7693 = vsel %vm7692, %v7690, %v7691
    %v7694 = vrot.slane %v7693, 1
    %vm7695 = vcmp.gt.s32.totalorder %v7693, %v7694
    %v7696 = vsel %vm7695, %v7693, %v7694
    %s7697 = vtos %v7696
    %v7698 = vstv %s7697
    %vm7699 = vcmp.eq.s32.totalorder %v17, %v7698
    %v7700 = vsel %vm7699, 1, 0
    %v7701 = vcvt.s32.f32 %v7700
    %v7703 = vlaneseq
    %v7704 = vshrl.u32 %v7703, 7
    %v7705 = vsub.s32 2, %v7704
    %v7706 = vrot.slane %v7701, %v7705
    %v7707 = vlaneseq
    %v7708 = vshrl.u32 %v7707, 7
    %v7709 = vsub.s32 6, %v7708
    %v7710 = vrot.slane %v7701, %v7709
    %v7713 = vsel %vm647, %v7706, 0.0
    %v7714 = vsel %vm647, %v7710, 0.0
    %v7715 = vadd.f32 %v7713, %v7714
    %7716 = vadd.xlane.f32.xlu0 %v7715
    %v7717 = vpop.xlane.xlu0 %7716
    %v7718 = vrot.slane %v7717, 4
    %v7719 = vadd.f32 %v7717, %v7718
    %v7720 = vrot.slane %v7719, 2
    %v7721 = vadd.f32 %v7719, %v7720
    %v7722 = vrot.slane %v7721, 1
    %v7723 = vadd.f32 %v7721, %v7722
    %s7724 = vtos %v7723
    %s7725 = ssub.f32 256.0, %s7724
    %v7726 = vrcp.pop 255.0
    %s7727 = vtos %v7726
    %s7728 = smul.f32 %s7725, %s7727
    %s7729 = sfloor.f32 %s7728
    %s7730 = smax.f32 %s7729, 1.0
    %v7731 = vrcp.pop 2.0
    %s7732 = vtos %v7731
    %s7733 = smul.f32 %s7730, %s7732
    %s7734 = sfloor.f32 %s7733
    %v7735 = vstv %s7734
    %7736 = vmatprep.subr.mxu0 0.0
    %v7737 = vand.u32 %v7602, 4294901760
    %7738 = vmatpush1.msra.mxu0 %v7737
    %7739 = vmatprep.subr.mxu0 0.0
    %v7740 = vand.u32 %v7599, 4294901760
    %7741 = vmatpush1.msra.mxu0 %v7740
    %7742 = vmatprep.subr.mxu0 0.0
    %v7743 = vand.u32 %v7594, 4294901760
    %7744 = vmatpush1.msra.mxu0 %v7743
    %7745 = vmatprep.subr.mxu0 0.0
    %v7746 = vand.u32 %v7591, 4294901760
    %7747 = vmatpush1.msra.mxu0 %v7746
    %7748 = vmatprep.subr.mxu0 0.0
    %v7749 = vand.u32 %v7586, 4294901760
    %7750 = vmatpush1.msra.mxu0 %v7749
    %7751 = vmatprep.subr.mxu0 0.0
    %v7752 = vand.u32 %v7583, 4294901760
    %7753 = vmatpush1.msra.mxu0 %v7752
    %7754 = vmatprep.subr.mxu0 0.0
    %v7755 = vand.u32 %v7578, 4294901760
    %7756 = vmatpush1.msra.mxu0 %v7755
    %7757 = vmatprep.subr.mxu0 0.0
    %v7758 = vand.u32 %v7575, 4294901760
    %7759 = vmatpush1.msra.mxu0 %v7758
    %7760 = vmatprep.subr.mxu0 0.0
    %v7761 = vand.u32 %v7570, 4294901760
    %7762 = vmatpush1.msra.mxu0 %v7761
    %7763 = vmatprep.subr.mxu0 0.0
    %v7764 = vand.u32 %v7567, 4294901760
    %7765 = vmatpush1.msra.mxu0 %v7764
    %7766 = vmatprep.subr.mxu0 0.0
    %v7767 = vand.u32 %v7562, 4294901760
    %7768 = vmatpush1.msra.mxu0 %v7767
    %7769 = vmatprep.subr.mxu0 0.0
    %v7770 = vand.u32 %v7559, 4294901760
    %7771 = vmatpush1.msra.mxu0 %v7770
    %7772 = vmatprep.subr.mxu0 0.0
    %v7773 = vand.u32 %v7554, 4294901760
    %7774 = vmatpush1.msra.mxu0 %v7773
    %7775 = vmatprep.subr.mxu0 0.0
    %v7776 = vand.u32 %v7551, 4294901760
    %7777 = vmatpush1.msra.mxu0 %v7776
    %7778 = vmatprep.subr.mxu0 0.0
    %v7779 = vand.u32 %v7546, 4294901760
    %7780 = vmatpush1.msra.mxu0 %v7779
    %7781 = vmatprep.subr.mxu0 0.0
    %v7782 = vand.u32 %v7543, 4294901760
    %7783 = vmatpush1.msra.mxu0 %v7782
    %7784 = vmatprep.subr.mxu0 0.0
    %v7785 = vand.u32 %v7666, 4294901760
    %7786 = vmatpush2.msra.mxu0 %v7785
    %7787 = vmatprep.subr.mxu0 0.0
    %v7788 = vand.u32 %v7663, 4294901760
    %7789 = vmatpush2.msra.mxu0 %v7788
    %7790 = vmatprep.subr.mxu0 0.0
    %v7791 = vand.u32 %v7658, 4294901760
    %7792 = vmatpush2.msra.mxu0 %v7791
    %7793 = vmatprep.subr.mxu0 0.0
    %v7794 = vand.u32 %v7655, 4294901760
    %7795 = vmatpush2.msra.mxu0 %v7794
    %7796 = vmatprep.subr.mxu0 0.0
    %v7797 = vand.u32 %v7650, 4294901760
    %7798 = vmatpush2.msra.mxu0 %v7797
    %7799 = vmatprep.subr.mxu0 0.0
    %v7800 = vand.u32 %v7647, 4294901760
    %7801 = vmatpush2.msra.mxu0 %v7800
    %7802 = vmatprep.subr.mxu0 0.0
    %v7803 = vand.u32 %v7642, 4294901760
    %7804 = vmatpush2.msra.mxu0 %v7803
    %7805 = vmatprep.subr.mxu0 0.0
    %v7806 = vand.u32 %v7639, 4294901760
    %7807 = vmatpush2.msra.mxu0 %v7806
    %7808 = vmatprep.subr.mxu0 0.0
    %v7809 = vand.u32 %v7634, 4294901760
    %7810 = vmatpush2.msra.mxu0 %v7809
    %7811 = vmatprep.subr.mxu0 0.0
    %v7812 = vand.u32 %v7631, 4294901760
    %7813 = vmatpush2.msra.mxu0 %v7812
    %7814 = vmatprep.subr.mxu0 0.0
    %v7815 = vand.u32 %v7626, 4294901760
    %7816 = vmatpush2.msra.mxu0 %v7815
    %7817 = vmatprep.subr.mxu0 0.0
    %v7818 = vand.u32 %v7623, 4294901760
    %7819 = vmatpush2.msra.mxu0 %v7818
    %7820 = vmatprep.subr.mxu0 0.0
    %v7821 = vand.u32 %v7618, 4294901760
    %7822 = vmatpush2.msra.mxu0 %v7821
    %7823 = vmatprep.subr.mxu0 0.0
    %v7824 = vand.u32 %v7615, 4294901760
    %7825 = vmatpush2.msra.mxu0 %v7824
    %7826 = vmatprep.subr.mxu0 0.0
    %v7827 = vand.u32 %v7610, 4294901760
    %7828 = vmatpush2.msra.mxu0 %v7827
    %7829 = vmatprep.subr.mxu0 0.0
    %v7830 = vand.u32 %v7607, 4294901760
    %7831 = vmatpush2.msra.mxu0 %v7830
    %v7832 = vand.u32 %v183, 4294901760
    %v7833 = vsub.f32 %v183, %v7832
    %v7834 = vand.u32 %v7833, 4294901760
    %v7835 = vsub.f32 %v7833, %v7834
    %v7836 = vand.u32 %v7835, 4294901760
    %7837 = vmatprep.mubr.f32.mxu0 %v7836
    %v7838 = vand.u32 %v182, 4294901760
    %v7839 = vsub.f32 %v182, %v7838
    %v7840 = vand.u32 %v7839, 4294901760
    %v7841 = vsub.f32 %v7839, %v7840
    %v7842 = vand.u32 %v7841, 4294901760
    %7843 = vmatmul.mubr.f32.gmra.mxu0 %v7842
    %v7844 = vpop.f32.mrf.mxu0
    %v7845 = vadd.f32 %v7735, %v7844
    %v7846 = vpop.f32.mrf.mxu0
    %v7847 = vand.u32 %v185, 4294901760
    %v7848 = vsub.f32 %v185, %v7847
    %v7849 = vand.u32 %v7848, 4294901760
    %v7850 = vsub.f32 %v7848, %v7849
    %v7851 = vand.u32 %v7850, 4294901760
    %7852 = vmatprep.mubr.f32.mxu0 %v7851
    %v7853 = vand.u32 %v184, 4294901760
    %v7854 = vsub.f32 %v184, %v7853
    %v7855 = vand.u32 %v7854, 4294901760
    %v7856 = vsub.f32 %v7854, %v7855
    %v7857 = vand.u32 %v7856, 4294901760
    %7858 = vmatmul.mubr.f32.gmra.mxu0 %v7857
    %v7859 = vpop.f32.mrf.mxu0
    %v7860 = vadd.f32 %v7735, %v7859
    %v7861 = vpop.f32.mrf.mxu0
    %v7862 = vand.u32 %v187, 4294901760
    %v7863 = vsub.f32 %v187, %v7862
    %v7864 = vand.u32 %v7863, 4294901760
    %v7865 = vsub.f32 %v7863, %v7864
    %v7866 = vand.u32 %v7865, 4294901760
    %7867 = vmatprep.mubr.f32.mxu0 %v7866
    %v7868 = vand.u32 %v186, 4294901760
    %v7869 = vsub.f32 %v186, %v7868
    %v7870 = vand.u32 %v7869, 4294901760
    %v7871 = vsub.f32 %v7869, %v7870
    %v7872 = vand.u32 %v7871, 4294901760
    %7873 = vmatmul.mubr.f32.gmra.mxu0 %v7872
    %v7874 = vpop.f32.mrf.mxu0
    %v7875 = vadd.f32 %v7735, %v7874
    %v7876 = vpop.f32.mrf.mxu0
    %v7877 = vand.u32 %v189, 4294901760
    %v7878 = vsub.f32 %v189, %v7877
    %v7879 = vand.u32 %v7878, 4294901760
    %v7880 = vsub.f32 %v7878, %v7879
    %v7881 = vand.u32 %v7880, 4294901760
    %7882 = vmatprep.mubr.f32.mxu0 %v7881
    %v7883 = vand.u32 %v188, 4294901760
    %v7884 = vsub.f32 %v188, %v7883
    %v7885 = vand.u32 %v7884, 4294901760
    %v7886 = vsub.f32 %v7884, %v7885
    %v7887 = vand.u32 %v7886, 4294901760
    %7888 = vmatmul.mubr.f32.gmra.mxu0 %v7887
    %v7889 = vpop.f32.mrf.mxu0
    %v7890 = vadd.f32 %v7735, %v7889
    %v7891 = vpop.f32.mrf.mxu0
    %v7892 = vand.u32 %v191, 4294901760
    %v7893 = vsub.f32 %v191, %v7892
    %v7894 = vand.u32 %v7893, 4294901760
    %v7895 = vsub.f32 %v7893, %v7894
    %v7896 = vand.u32 %v7895, 4294901760
    %7897 = vmatprep.mubr.f32.mxu0 %v7896
    %v7898 = vand.u32 %v190, 4294901760
    %v7899 = vsub.f32 %v190, %v7898
    %v7900 = vand.u32 %v7899, 4294901760
    %v7901 = vsub.f32 %v7899, %v7900
    %v7902 = vand.u32 %v7901, 4294901760
    %7903 = vmatmul.mubr.f32.gmra.mxu0 %v7902
    %v7904 = vpop.f32.mrf.mxu0
    %v7905 = vadd.f32 %v7735, %v7904
    %v7906 = vpop.f32.mrf.mxu0
    %v7907 = vand.u32 %v193, 4294901760
    %v7908 = vsub.f32 %v193, %v7907
    %v7909 = vand.u32 %v7908, 4294901760
    %v7910 = vsub.f32 %v7908, %v7909
    %v7911 = vand.u32 %v7910, 4294901760
    %7912 = vmatprep.mubr.f32.mxu0 %v7911
    %v7913 = vand.u32 %v192, 4294901760
    %v7914 = vsub.f32 %v192, %v7913
    %v7915 = vand.u32 %v7914, 4294901760
    %v7916 = vsub.f32 %v7914, %v7915
    %v7917 = vand.u32 %v7916, 4294901760
    %7918 = vmatmul.mubr.f32.gmra.mxu0 %v7917
    %v7919 = vpop.f32.mrf.mxu0
    %v7920 = vadd.f32 %v7735, %v7919
    %v7921 = vpop.f32.mrf.mxu0
    %v7922 = vand.u32 %v195, 4294901760
    %v7923 = vsub.f32 %v195, %v7922
    %v7924 = vand.u32 %v7923, 4294901760
    %v7925 = vsub.f32 %v7923, %v7924
    %v7926 = vand.u32 %v7925, 4294901760
    %7927 = vmatprep.mubr.f32.mxu0 %v7926
    %v7928 = vand.u32 %v194, 4294901760
    %v7929 = vsub.f32 %v194, %v7928
    %v7930 = vand.u32 %v7929, 4294901760
    %v7931 = vsub.f32 %v7929, %v7930
    %v7932 = vand.u32 %v7931, 4294901760
    %7933 = vmatmul.mubr.f32.gmra.mxu0 %v7932
    %v7934 = vpop.f32.mrf.mxu0
    %v7935 = vadd.f32 %v7735, %v7934
    %v7936 = vpop.f32.mrf.mxu0
    %v7937 = vand.u32 %v197, 4294901760
    %v7938 = vsub.f32 %v197, %v7937
    %v7939 = vand.u32 %v7938, 4294901760
    %v7940 = vsub.f32 %v7938, %v7939
    %v7941 = vand.u32 %v7940, 4294901760
    %7942 = vmatprep.mubr.f32.mxu0 %v7941
    %v7943 = vand.u32 %v196, 4294901760
    %v7944 = vsub.f32 %v196, %v7943
    %v7945 = vand.u32 %v7944, 4294901760
    %v7946 = vsub.f32 %v7944, %v7945
    %v7947 = vand.u32 %v7946, 4294901760
    %7948 = vmatmul.mubr.f32.gmra.mxu0 %v7947
    %v7949 = vpop.f32.mrf.mxu0
    %v7950 = vadd.f32 %v7735, %v7949
    %v7951 = vpop.f32.mrf.mxu0
    %v7952 = vand.u32 %v199, 4294901760
    %v7953 = vsub.f32 %v199, %v7952
    %v7954 = vand.u32 %v7953, 4294901760
    %v7955 = vsub.f32 %v7953, %v7954
    %v7956 = vand.u32 %v7955, 4294901760
    %7957 = vmatprep.mubr.f32.mxu0 %v7956
    %v7958 = vand.u32 %v198, 4294901760
    %v7959 = vsub.f32 %v198, %v7958
    %v7960 = vand.u32 %v7959, 4294901760
    %v7961 = vsub.f32 %v7959, %v7960
    %v7962 = vand.u32 %v7961, 4294901760
    %7963 = vmatmul.mubr.f32.gmra.mxu0 %v7962
    %v7964 = vpop.f32.mrf.mxu0
    %v7965 = vadd.f32 %v7735, %v7964
    %v7966 = vpop.f32.mrf.mxu0
    %v7967 = vand.u32 %v201, 4294901760
    %v7968 = vsub.f32 %v201, %v7967
    %v7969 = vand.u32 %v7968, 4294901760
    %v7970 = vsub.f32 %v7968, %v7969
    %v7971 = vand.u32 %v7970, 4294901760
    %7972 = vmatprep.mubr.f32.mxu0 %v7971
    %v7973 = vand.u32 %v200, 4294901760
    %v7974 = vsub.f32 %v200, %v7973
    %v7975 = vand.u32 %v7974, 4294901760
    %v7976 = vsub.f32 %v7974, %v7975
    %v7977 = vand.u32 %v7976, 4294901760
    %7978 = vmatmul.mubr.f32.gmra.mxu0 %v7977
    %v7979 = vpop.f32.mrf.mxu0
    %v7980 = vadd.f32 %v7735, %v7979
    %v7981 = vpop.f32.mrf.mxu0
    %v7982 = vand.u32 %v203, 4294901760
    %v7983 = vsub.f32 %v203, %v7982
    %v7984 = vand.u32 %v7983, 4294901760
    %v7985 = vsub.f32 %v7983, %v7984
    %v7986 = vand.u32 %v7985, 4294901760
    %7987 = vmatprep.mubr.f32.mxu0 %v7986
    %v7988 = vand.u32 %v202, 4294901760
    %v7989 = vsub.f32 %v202, %v7988
    %v7990 = vand.u32 %v7989, 4294901760
    %v7991 = vsub.f32 %v7989, %v7990
    %v7992 = vand.u32 %v7991, 4294901760
    %7993 = vmatmul.mubr.f32.gmra.mxu0 %v7992
    %v7994 = vpop.f32.mrf.mxu0
    %v7995 = vadd.f32 %v7735, %v7994
    %v7996 = vpop.f32.mrf.mxu0
    %v7997 = vand.u32 %v205, 4294901760
    %v7998 = vsub.f32 %v205, %v7997
    %v7999 = vand.u32 %v7998, 4294901760
    %v8000 = vsub.f32 %v7998, %v7999
    %v8001 = vand.u32 %v8000, 4294901760
    %8002 = vmatprep.mubr.f32.mxu0 %v8001
    %v8003 = vand.u32 %v204, 4294901760
    %v8004 = vsub.f32 %v204, %v8003
    %v8005 = vand.u32 %v8004, 4294901760
    %v8006 = vsub.f32 %v8004, %v8005
    %v8007 = vand.u32 %v8006, 4294901760
    %8008 = vmatmul.mubr.f32.gmra.mxu0 %v8007
    %v8009 = vpop.f32.mrf.mxu0
    %v8010 = vadd.f32 %v7735, %v8009
    %v8011 = vpop.f32.mrf.mxu0
    %v8012 = vand.u32 %v207, 4294901760
    %v8013 = vsub.f32 %v207, %v8012
    %v8014 = vand.u32 %v8013, 4294901760
    %v8015 = vsub.f32 %v8013, %v8014
    %v8016 = vand.u32 %v8015, 4294901760
    %8017 = vmatprep.mubr.f32.mxu0 %v8016
    %v8018 = vand.u32 %v206, 4294901760
    %v8019 = vsub.f32 %v206, %v8018
    %v8020 = vand.u32 %v8019, 4294901760
    %v8021 = vsub.f32 %v8019, %v8020
    %v8022 = vand.u32 %v8021, 4294901760
    %8023 = vmatmul.mubr.f32.gmra.mxu0 %v8022
    %v8024 = vpop.f32.mrf.mxu0
    %v8025 = vadd.f32 %v7735, %v8024
    %v8026 = vpop.f32.mrf.mxu0
    %v8027 = vand.u32 %v209, 4294901760
    %v8028 = vsub.f32 %v209, %v8027
    %v8029 = vand.u32 %v8028, 4294901760
    %v8030 = vsub.f32 %v8028, %v8029
    %v8031 = vand.u32 %v8030, 4294901760
    %8032 = vmatprep.mubr.f32.mxu0 %v8031
    %v8033 = vand.u32 %v208, 4294901760
    %v8034 = vsub.f32 %v208, %v8033
    %v8035 = vand.u32 %v8034, 4294901760
    %v8036 = vsub.f32 %v8034, %v8035
    %v8037 = vand.u32 %v8036, 4294901760
    %8038 = vmatmul.mubr.f32.gmra.mxu0 %v8037
    %v8039 = vpop.f32.mrf.mxu0
    %v8040 = vadd.f32 %v7735, %v8039
    %v8041 = vpop.f32.mrf.mxu0
    %v8042 = vand.u32 %v211, 4294901760
    %v8043 = vsub.f32 %v211, %v8042
    %v8044 = vand.u32 %v8043, 4294901760
    %v8045 = vsub.f32 %v8043, %v8044
    %v8046 = vand.u32 %v8045, 4294901760
    %8047 = vmatprep.mubr.f32.mxu0 %v8046
    %v8048 = vand.u32 %v210, 4294901760
    %v8049 = vsub.f32 %v210, %v8048
    %v8050 = vand.u32 %v8049, 4294901760
    %v8051 = vsub.f32 %v8049, %v8050
    %v8052 = vand.u32 %v8051, 4294901760
    %8053 = vmatmul.mubr.f32.gmra.mxu0 %v8052
    %v8054 = vpop.f32.mrf.mxu0
    %v8055 = vadd.f32 %v7735, %v8054
    %v8056 = vpop.f32.mrf.mxu0
    %v8057 = vand.u32 %v213, 4294901760
    %v8058 = vsub.f32 %v213, %v8057
    %v8059 = vand.u32 %v8058, 4294901760
    %v8060 = vsub.f32 %v8058, %v8059
    %v8061 = vand.u32 %v8060, 4294901760
    %8062 = vmatprep.mubr.f32.mxu0 %v8061
    %v8063 = vand.u32 %v212, 4294901760
    %v8064 = vsub.f32 %v212, %v8063
    %v8065 = vand.u32 %v8064, 4294901760
    %v8066 = vsub.f32 %v8064, %v8065
    %v8067 = vand.u32 %v8066, 4294901760
    %8068 = vmatmul.mubr.f32.gmra.mxu0 %v8067
    %v8069 = vpop.f32.mrf.mxu0
    %v8070 = vadd.f32 %v7735, %v8069
    %v8071 = vpop.f32.mrf.mxu0
    %v8072 = vand.u32 %v215, 4294901760
    %v8073 = vsub.f32 %v215, %v8072
    %v8074 = vand.u32 %v8073, 4294901760
    %v8075 = vsub.f32 %v8073, %v8074
    %v8076 = vand.u32 %v8075, 4294901760
    %8077 = vmatprep.mubr.f32.mxu0 %v8076
    %v8078 = vand.u32 %v214, 4294901760
    %v8079 = vsub.f32 %v214, %v8078
    %v8080 = vand.u32 %v8079, 4294901760
    %v8081 = vsub.f32 %v8079, %v8080
    %v8082 = vand.u32 %v8081, 4294901760
    %8083 = vmatmul.mubr.f32.gmra.mxu0 %v8082
    %v8084 = vpop.f32.mrf.mxu0
    %v8085 = vadd.f32 %v7735, %v8084
    %v8086 = vpop.f32.mrf.mxu0
    %v8087 = vand.u32 %v217, 4294901760
    %v8088 = vsub.f32 %v217, %v8087
    %v8089 = vand.u32 %v8088, 4294901760
    %v8090 = vsub.f32 %v8088, %v8089
    %v8091 = vand.u32 %v8090, 4294901760
    %8092 = vmatprep.mubr.f32.mxu0 %v8091
    %v8093 = vand.u32 %v216, 4294901760
    %v8094 = vsub.f32 %v216, %v8093
    %v8095 = vand.u32 %v8094, 4294901760
    %v8096 = vsub.f32 %v8094, %v8095
    %v8097 = vand.u32 %v8096, 4294901760
    %8098 = vmatmul.mubr.f32.gmra.mxu0 %v8097
    %v8099 = vpop.f32.mrf.mxu0
    %v8100 = vadd.f32 %v7735, %v8099
    %v8101 = vpop.f32.mrf.mxu0
    %v8102 = vand.u32 %v219, 4294901760
    %v8103 = vsub.f32 %v219, %v8102
    %v8104 = vand.u32 %v8103, 4294901760
    %v8105 = vsub.f32 %v8103, %v8104
    %v8106 = vand.u32 %v8105, 4294901760
    %8107 = vmatprep.mubr.f32.mxu0 %v8106
    %v8108 = vand.u32 %v218, 4294901760
    %v8109 = vsub.f32 %v218, %v8108
    %v8110 = vand.u32 %v8109, 4294901760
    %v8111 = vsub.f32 %v8109, %v8110
    %v8112 = vand.u32 %v8111, 4294901760
    %8113 = vmatmul.mubr.f32.gmra.mxu0 %v8112
    %v8114 = vpop.f32.mrf.mxu0
    %v8115 = vadd.f32 %v7735, %v8114
    %v8116 = vpop.f32.mrf.mxu0
    %v8117 = vand.u32 %v221, 4294901760
    %v8118 = vsub.f32 %v221, %v8117
    %v8119 = vand.u32 %v8118, 4294901760
    %v8120 = vsub.f32 %v8118, %v8119
    %v8121 = vand.u32 %v8120, 4294901760
    %8122 = vmatprep.mubr.f32.mxu0 %v8121
    %v8123 = vand.u32 %v220, 4294901760
    %v8124 = vsub.f32 %v220, %v8123
    %v8125 = vand.u32 %v8124, 4294901760
    %v8126 = vsub.f32 %v8124, %v8125
    %v8127 = vand.u32 %v8126, 4294901760
    %8128 = vmatmul.mubr.f32.gmra.mxu0 %v8127
    %v8129 = vpop.f32.mrf.mxu0
    %v8130 = vadd.f32 %v7735, %v8129
    %v8131 = vpop.f32.mrf.mxu0
    %v8132 = vand.u32 %v223, 4294901760
    %v8133 = vsub.f32 %v223, %v8132
    %v8134 = vand.u32 %v8133, 4294901760
    %v8135 = vsub.f32 %v8133, %v8134
    %v8136 = vand.u32 %v8135, 4294901760
    %8137 = vmatprep.mubr.f32.mxu0 %v8136
    %v8138 = vand.u32 %v222, 4294901760
    %v8139 = vsub.f32 %v222, %v8138
    %v8140 = vand.u32 %v8139, 4294901760
    %v8141 = vsub.f32 %v8139, %v8140
    %v8142 = vand.u32 %v8141, 4294901760
    %8143 = vmatmul.mubr.f32.gmra.mxu0 %v8142
    %v8144 = vpop.f32.mrf.mxu0
    %v8145 = vadd.f32 %v7735, %v8144
    %v8146 = vpop.f32.mrf.mxu0
    %v8147 = vand.u32 %v225, 4294901760
    %v8148 = vsub.f32 %v225, %v8147
    %v8149 = vand.u32 %v8148, 4294901760
    %v8150 = vsub.f32 %v8148, %v8149
    %v8151 = vand.u32 %v8150, 4294901760
    %8152 = vmatprep.mubr.f32.mxu0 %v8151
    %v8153 = vand.u32 %v224, 4294901760
    %v8154 = vsub.f32 %v224, %v8153
    %v8155 = vand.u32 %v8154, 4294901760
    %v8156 = vsub.f32 %v8154, %v8155
    %v8157 = vand.u32 %v8156, 4294901760
    %8158 = vmatmul.mubr.f32.gmra.mxu0 %v8157
    %v8159 = vpop.f32.mrf.mxu0
    %v8160 = vadd.f32 %v7735, %v8159
    %v8161 = vpop.f32.mrf.mxu0
    %v8162 = vand.u32 %v227, 4294901760
    %v8163 = vsub.f32 %v227, %v8162
    %v8164 = vand.u32 %v8163, 4294901760
    %v8165 = vsub.f32 %v8163, %v8164
    %v8166 = vand.u32 %v8165, 4294901760
    %8167 = vmatprep.mubr.f32.mxu0 %v8166
    %v8168 = vand.u32 %v226, 4294901760
    %v8169 = vsub.f32 %v226, %v8168
    %v8170 = vand.u32 %v8169, 4294901760
    %v8171 = vsub.f32 %v8169, %v8170
    %v8172 = vand.u32 %v8171, 4294901760
    %8173 = vmatmul.mubr.f32.gmra.mxu0 %v8172
    %v8174 = vpop.f32.mrf.mxu0
    %v8175 = vadd.f32 %v7735, %v8174
    %v8176 = vpop.f32.mrf.mxu0
    %v8177 = vand.u32 %v229, 4294901760
    %v8178 = vsub.f32 %v229, %v8177
    %v8179 = vand.u32 %v8178, 4294901760
    %v8180 = vsub.f32 %v8178, %v8179
    %v8181 = vand.u32 %v8180, 4294901760
    %8182 = vmatprep.mubr.f32.mxu0 %v8181
    %v8183 = vand.u32 %v228, 4294901760
    %v8184 = vsub.f32 %v228, %v8183
    %v8185 = vand.u32 %v8184, 4294901760
    %v8186 = vsub.f32 %v8184, %v8185
    %v8187 = vand.u32 %v8186, 4294901760
    %8188 = vmatmul.mubr.f32.gmra.mxu0 %v8187
    %v8189 = vpop.f32.mrf.mxu0
    %v8190 = vadd.f32 %v7735, %v8189
    %v8191 = vpop.f32.mrf.mxu0
    %v8192 = vand.u32 %v231, 4294901760
    %v8193 = vsub.f32 %v231, %v8192
    %v8194 = vand.u32 %v8193, 4294901760
    %v8195 = vsub.f32 %v8193, %v8194
    %v8196 = vand.u32 %v8195, 4294901760
    %8197 = vmatprep.mubr.f32.mxu0 %v8196
    %v8198 = vand.u32 %v230, 4294901760
    %v8199 = vsub.f32 %v230, %v8198
    %v8200 = vand.u32 %v8199, 4294901760
    %v8201 = vsub.f32 %v8199, %v8200
    %v8202 = vand.u32 %v8201, 4294901760
    %8203 = vmatmul.mubr.f32.gmra.mxu0 %v8202
    %v8204 = vpop.f32.mrf.mxu0
    %v8205 = vadd.f32 %v7735, %v8204
    %v8206 = vpop.f32.mrf.mxu0
    %v8207 = vand.u32 %v233, 4294901760
    %v8208 = vsub.f32 %v233, %v8207
    %v8209 = vand.u32 %v8208, 4294901760
    %v8210 = vsub.f32 %v8208, %v8209
    %v8211 = vand.u32 %v8210, 4294901760
    %8212 = vmatprep.mubr.f32.mxu0 %v8211
    %v8213 = vand.u32 %v232, 4294901760
    %v8214 = vsub.f32 %v232, %v8213
    %v8215 = vand.u32 %v8214, 4294901760
    %v8216 = vsub.f32 %v8214, %v8215
    %v8217 = vand.u32 %v8216, 4294901760
    %8218 = vmatmul.mubr.f32.gmra.mxu0 %v8217
    %v8219 = vpop.f32.mrf.mxu0
    %v8220 = vadd.f32 %v7735, %v8219
    %v8221 = vpop.f32.mrf.mxu0
    %v8222 = vand.u32 %v235, 4294901760
    %v8223 = vsub.f32 %v235, %v8222
    %v8224 = vand.u32 %v8223, 4294901760
    %v8225 = vsub.f32 %v8223, %v8224
    %v8226 = vand.u32 %v8225, 4294901760
    %8227 = vmatprep.mubr.f32.mxu0 %v8226
    %v8228 = vand.u32 %v234, 4294901760
    %v8229 = vsub.f32 %v234, %v8228
    %v8230 = vand.u32 %v8229, 4294901760
    %v8231 = vsub.f32 %v8229, %v8230
    %v8232 = vand.u32 %v8231, 4294901760
    %8233 = vmatmul.mubr.f32.gmra.mxu0 %v8232
    %v8234 = vpop.f32.mrf.mxu0
    %v8235 = vadd.f32 %v7735, %v8234
    %v8236 = vpop.f32.mrf.mxu0
    %v8237 = vand.u32 %v237, 4294901760
    %v8238 = vsub.f32 %v237, %v8237
    %v8239 = vand.u32 %v8238, 4294901760
    %v8240 = vsub.f32 %v8238, %v8239
    %v8241 = vand.u32 %v8240, 4294901760
    %8242 = vmatprep.mubr.f32.mxu0 %v8241
    %v8243 = vand.u32 %v236, 4294901760
    %v8244 = vsub.f32 %v236, %v8243
    %v8245 = vand.u32 %v8244, 4294901760
    %v8246 = vsub.f32 %v8244, %v8245
    %v8247 = vand.u32 %v8246, 4294901760
    %8248 = vmatmul.mubr.f32.gmra.mxu0 %v8247
    %v8249 = vpop.f32.mrf.mxu0
    %v8250 = vadd.f32 %v7735, %v8249
    %v8251 = vpop.f32.mrf.mxu0
    %v8252 = vand.u32 %v239, 4294901760
    %v8253 = vsub.f32 %v239, %v8252
    %v8254 = vand.u32 %v8253, 4294901760
    %v8255 = vsub.f32 %v8253, %v8254
    %v8256 = vand.u32 %v8255, 4294901760
    %8257 = vmatprep.mubr.f32.mxu0 %v8256
    %v8258 = vand.u32 %v238, 4294901760
    %v8259 = vsub.f32 %v238, %v8258
    %v8260 = vand.u32 %v8259, 4294901760
    %v8261 = vsub.f32 %v8259, %v8260
    %v8262 = vand.u32 %v8261, 4294901760
    %8263 = vmatmul.mubr.f32.gmra.mxu0 %v8262
    %v8264 = vpop.f32.mrf.mxu0
    %v8265 = vadd.f32 %v7735, %v8264
    %v8266 = vpop.f32.mrf.mxu0
    %v8267 = vand.u32 %v241, 4294901760
    %v8268 = vsub.f32 %v241, %v8267
    %v8269 = vand.u32 %v8268, 4294901760
    %v8270 = vsub.f32 %v8268, %v8269
    %v8271 = vand.u32 %v8270, 4294901760
    %8272 = vmatprep.mubr.f32.mxu0 %v8271
    %v8273 = vand.u32 %v240, 4294901760
    %v8274 = vsub.f32 %v240, %v8273
    %v8275 = vand.u32 %v8274, 4294901760
    %v8276 = vsub.f32 %v8274, %v8275
    %v8277 = vand.u32 %v8276, 4294901760
    %8278 = vmatmul.mubr.f32.gmra.mxu0 %v8277
    %v8279 = vpop.f32.mrf.mxu0
    %v8280 = vadd.f32 %v7735, %v8279
    %v8281 = vpop.f32.mrf.mxu0
    %v8282 = vand.u32 %v243, 4294901760
    %v8283 = vsub.f32 %v243, %v8282
    %v8284 = vand.u32 %v8283, 4294901760
    %v8285 = vsub.f32 %v8283, %v8284
    %v8286 = vand.u32 %v8285, 4294901760
    %8287 = vmatprep.mubr.f32.mxu0 %v8286
    %v8288 = vand.u32 %v242, 4294901760
    %v8289 = vsub.f32 %v242, %v8288
    %v8290 = vand.u32 %v8289, 4294901760
    %v8291 = vsub.f32 %v8289, %v8290
    %v8292 = vand.u32 %v8291, 4294901760
    %8293 = vmatmul.mubr.f32.gmra.mxu0 %v8292
    %v8294 = vpop.f32.mrf.mxu0
    %v8295 = vadd.f32 %v7735, %v8294
    %v8296 = vpop.f32.mrf.mxu0
    %v8297 = vand.u32 %v245, 4294901760
    %v8298 = vsub.f32 %v245, %v8297
    %v8299 = vand.u32 %v8298, 4294901760
    %v8300 = vsub.f32 %v8298, %v8299
    %v8301 = vand.u32 %v8300, 4294901760
    %8302 = vmatprep.mubr.f32.mxu0 %v8301
    %v8303 = vand.u32 %v244, 4294901760
    %v8304 = vsub.f32 %v244, %v8303
    %v8305 = vand.u32 %v8304, 4294901760
    %v8306 = vsub.f32 %v8304, %v8305
    %v8307 = vand.u32 %v8306, 4294901760
    %8308 = vmatmul.mubr.f32.gmra.mxu0 %v8307
    %v8309 = vpop.f32.mrf.mxu0
    %v8310 = vadd.f32 %v7735, %v8309
    %v8311 = vpop.f32.mrf.mxu0
    %8312 = vdwg.mxu0
    %8313 = vmatprep.subr.mxu0 0.0
    %v8314 = vand.u32 %v7602, 4294901760
    %v8315 = vsub.f32 %v7602, %v8314
    %v8316 = vand.u32 %v8315, 4294901760
    %v8317 = vsub.f32 %v8315, %v8316
    %v8318 = vand.u32 %v8317, 4294901760
    %8319 = vmatpush1.msra.mxu0 %v8318
    %8320 = vmatprep.subr.mxu0 0.0
    %v8321 = vand.u32 %v7599, 4294901760
    %v8322 = vsub.f32 %v7599, %v8321
    %v8323 = vand.u32 %v8322, 4294901760
    %v8324 = vsub.f32 %v8322, %v8323
    %v8325 = vand.u32 %v8324, 4294901760
    %8326 = vmatpush1.msra.mxu0 %v8325
    %8327 = vmatprep.subr.mxu0 0.0
    %v8328 = vand.u32 %v7594, 4294901760
    %v8329 = vsub.f32 %v7594, %v8328
    %v8330 = vand.u32 %v8329, 4294901760
    %v8331 = vsub.f32 %v8329, %v8330
    %v8332 = vand.u32 %v8331, 4294901760
    %8333 = vmatpush1.msra.mxu0 %v8332
    %8334 = vmatprep.subr.mxu0 0.0
    %v8335 = vand.u32 %v7591, 4294901760
    %v8336 = vsub.f32 %v7591, %v8335
    %v8337 = vand.u32 %v8336, 4294901760
    %v8338 = vsub.f32 %v8336, %v8337
    %v8339 = vand.u32 %v8338, 4294901760
    %8340 = vmatpush1.msra.mxu0 %v8339
    %8341 = vmatprep.subr.mxu0 0.0
    %v8342 = vand.u32 %v7586, 4294901760
    %v8343 = vsub.f32 %v7586, %v8342
    %v8344 = vand.u32 %v8343, 4294901760
    %v8345 = vsub.f32 %v8343, %v8344
    %v8346 = vand.u32 %v8345, 4294901760
    %8347 = vmatpush1.msra.mxu0 %v8346
    %8348 = vmatprep.subr.mxu0 0.0
    %v8349 = vand.u32 %v7583, 4294901760
    %v8350 = vsub.f32 %v7583, %v8349
    %v8351 = vand.u32 %v8350, 4294901760
    %v8352 = vsub.f32 %v8350, %v8351
    %v8353 = vand.u32 %v8352, 4294901760
    %8354 = vmatpush1.msra.mxu0 %v8353
    %8355 = vmatprep.subr.mxu0 0.0
    %v8356 = vand.u32 %v7578, 4294901760
    %v8357 = vsub.f32 %v7578, %v8356
    %v8358 = vand.u32 %v8357, 4294901760
    %v8359 = vsub.f32 %v8357, %v8358
    %v8360 = vand.u32 %v8359, 4294901760
    %8361 = vmatpush1.msra.mxu0 %v8360
    %8362 = vmatprep.subr.mxu0 0.0
    %v8363 = vand.u32 %v7575, 4294901760
    %v8364 = vsub.f32 %v7575, %v8363
    %v8365 = vand.u32 %v8364, 4294901760
    %v8366 = vsub.f32 %v8364, %v8365
    %v8367 = vand.u32 %v8366, 4294901760
    %8368 = vmatpush1.msra.mxu0 %v8367
    %8369 = vmatprep.subr.mxu0 0.0
    %v8370 = vand.u32 %v7570, 4294901760
    %v8371 = vsub.f32 %v7570, %v8370
    %v8372 = vand.u32 %v8371, 4294901760
    %v8373 = vsub.f32 %v8371, %v8372
    %v8374 = vand.u32 %v8373, 4294901760
    %8375 = vmatpush1.msra.mxu0 %v8374
    %8376 = vmatprep.subr.mxu0 0.0
    %v8377 = vand.u32 %v7567, 4294901760
    %v8378 = vsub.f32 %v7567, %v8377
    %v8379 = vand.u32 %v8378, 4294901760
    %v8380 = vsub.f32 %v8378, %v8379
    %v8381 = vand.u32 %v8380, 4294901760
    %8382 = vmatpush1.msra.mxu0 %v8381
    %8383 = vmatprep.subr.mxu0 0.0
    %v8384 = vand.u32 %v7562, 4294901760
    %v8385 = vsub.f32 %v7562, %v8384
    %v8386 = vand.u32 %v8385, 4294901760
    %v8387 = vsub.f32 %v8385, %v8386
    %v8388 = vand.u32 %v8387, 4294901760
    %8389 = vmatpush1.msra.mxu0 %v8388
    %8390 = vmatprep.subr.mxu0 0.0
    %v8391 = vand.u32 %v7559, 4294901760
    %v8392 = vsub.f32 %v7559, %v8391
    %v8393 = vand.u32 %v8392, 4294901760
    %v8394 = vsub.f32 %v8392, %v8393
    %v8395 = vand.u32 %v8394, 4294901760
    %8396 = vmatpush1.msra.mxu0 %v8395
    %8397 = vmatprep.subr.mxu0 0.0
    %v8398 = vand.u32 %v7554, 4294901760
    %v8399 = vsub.f32 %v7554, %v8398
    %v8400 = vand.u32 %v8399, 4294901760
    %v8401 = vsub.f32 %v8399, %v8400
    %v8402 = vand.u32 %v8401, 4294901760
    %8403 = vmatpush1.msra.mxu0 %v8402
    %8404 = vmatprep.subr.mxu0 0.0
    %v8405 = vand.u32 %v7551, 4294901760
    %v8406 = vsub.f32 %v7551, %v8405
    %v8407 = vand.u32 %v8406, 4294901760
    %v8408 = vsub.f32 %v8406, %v8407
    %v8409 = vand.u32 %v8408, 4294901760
    %8410 = vmatpush1.msra.mxu0 %v8409
    %8411 = vmatprep.subr.mxu0 0.0
    %v8412 = vand.u32 %v7546, 4294901760
    %v8413 = vsub.f32 %v7546, %v8412
    %v8414 = vand.u32 %v8413, 4294901760
    %v8415 = vsub.f32 %v8413, %v8414
    %v8416 = vand.u32 %v8415, 4294901760
    %8417 = vmatpush1.msra.mxu0 %v8416
    %8418 = vmatprep.subr.mxu0 0.0
    %v8419 = vand.u32 %v7543, 4294901760
    %v8420 = vsub.f32 %v7543, %v8419
    %v8421 = vand.u32 %v8420, 4294901760
    %v8422 = vsub.f32 %v8420, %v8421
    %v8423 = vand.u32 %v8422, 4294901760
    %8424 = vmatpush1.msra.mxu0 %v8423
    %8425 = vmatprep.subr.mxu0 0.0
    %v8426 = vand.u32 %v7666, 4294901760
    %v8427 = vsub.f32 %v7666, %v8426
    %v8428 = vand.u32 %v8427, 4294901760
    %v8429 = vsub.f32 %v8427, %v8428
    %v8430 = vand.u32 %v8429, 4294901760
    %8431 = vmatpush2.msra.mxu0 %v8430
    %8432 = vmatprep.subr.mxu0 0.0
    %v8433 = vand.u32 %v7663, 4294901760
    %v8434 = vsub.f32 %v7663, %v8433
    %v8435 = vand.u32 %v8434, 4294901760
    %v8436 = vsub.f32 %v8434, %v8435
    %v8437 = vand.u32 %v8436, 4294901760
    %8438 = vmatpush2.msra.mxu0 %v8437
    %8439 = vmatprep.subr.mxu0 0.0
    %v8440 = vand.u32 %v7658, 4294901760
    %v8441 = vsub.f32 %v7658, %v8440
    %v8442 = vand.u32 %v8441, 4294901760
    %v8443 = vsub.f32 %v8441, %v8442
    %v8444 = vand.u32 %v8443, 4294901760
    %8445 = vmatpush2.msra.mxu0 %v8444
    %8446 = vmatprep.subr.mxu0 0.0
    %v8447 = vand.u32 %v7655, 4294901760
    %v8448 = vsub.f32 %v7655, %v8447
    %v8449 = vand.u32 %v8448, 4294901760
    %v8450 = vsub.f32 %v8448, %v8449
    %v8451 = vand.u32 %v8450, 4294901760
    %8452 = vmatpush2.msra.mxu0 %v8451
    %8453 = vmatprep.subr.mxu0 0.0
    %v8454 = vand.u32 %v7650, 4294901760
    %v8455 = vsub.f32 %v7650, %v8454
    %v8456 = vand.u32 %v8455, 4294901760
    %v8457 = vsub.f32 %v8455, %v8456
    %v8458 = vand.u32 %v8457, 4294901760
    %8459 = vmatpush2.msra.mxu0 %v8458
    %8460 = vmatprep.subr.mxu0 0.0
    %v8461 = vand.u32 %v7647, 4294901760
    %v8462 = vsub.f32 %v7647, %v8461
    %v8463 = vand.u32 %v8462, 4294901760
    %v8464 = vsub.f32 %v8462, %v8463
    %v8465 = vand.u32 %v8464, 4294901760
    %8466 = vmatpush2.msra.mxu0 %v8465
    %8467 = vmatprep.subr.mxu0 0.0
    %v8468 = vand.u32 %v7642, 4294901760
    %v8469 = vsub.f32 %v7642, %v8468
    %v8470 = vand.u32 %v8469, 4294901760
    %v8471 = vsub.f32 %v8469, %v8470
    %v8472 = vand.u32 %v8471, 4294901760
    %8473 = vmatpush2.msra.mxu0 %v8472
    %8474 = vmatprep.subr.mxu0 0.0
    %v8475 = vand.u32 %v7639, 4294901760
    %v8476 = vsub.f32 %v7639, %v8475
    %v8477 = vand.u32 %v8476, 4294901760
    %v8478 = vsub.f32 %v8476, %v8477
    %v8479 = vand.u32 %v8478, 4294901760
    %8480 = vmatpush2.msra.mxu0 %v8479
    %8481 = vmatprep.subr.mxu0 0.0
    %v8482 = vand.u32 %v7634, 4294901760
    %v8483 = vsub.f32 %v7634, %v8482
    %v8484 = vand.u32 %v8483, 4294901760
    %v8485 = vsub.f32 %v8483, %v8484
    %v8486 = vand.u32 %v8485, 4294901760
    %8487 = vmatpush2.msra.mxu0 %v8486
    %8488 = vmatprep.subr.mxu0 0.0
    %v8489 = vand.u32 %v7631, 4294901760
    %v8490 = vsub.f32 %v7631, %v8489
    %v8491 = vand.u32 %v8490, 4294901760
    %v8492 = vsub.f32 %v8490, %v8491
    %v8493 = vand.u32 %v8492, 4294901760
    %8494 = vmatpush2.msra.mxu0 %v8493
    %8495 = vmatprep.subr.mxu0 0.0
    %v8496 = vand.u32 %v7626, 4294901760
    %v8497 = vsub.f32 %v7626, %v8496
    %v8498 = vand.u32 %v8497, 4294901760
    %v8499 = vsub.f32 %v8497, %v8498
    %v8500 = vand.u32 %v8499, 4294901760
    %8501 = vmatpush2.msra.mxu0 %v8500
    %8502 = vmatprep.subr.mxu0 0.0
    %v8503 = vand.u32 %v7623, 4294901760
    %v8504 = vsub.f32 %v7623, %v8503
    %v8505 = vand.u32 %v8504, 4294901760
    %v8506 = vsub.f32 %v8504, %v8505
    %v8507 = vand.u32 %v8506, 4294901760
    %8508 = vmatpush2.msra.mxu0 %v8507
    %8509 = vmatprep.subr.mxu0 0.0
    %v8510 = vand.u32 %v7618, 4294901760
    %v8511 = vsub.f32 %v7618, %v8510
    %v8512 = vand.u32 %v8511, 4294901760
    %v8513 = vsub.f32 %v8511, %v8512
    %v8514 = vand.u32 %v8513, 4294901760
    %8515 = vmatpush2.msra.mxu0 %v8514
    %8516 = vmatprep.subr.mxu0 0.0
    %v8517 = vand.u32 %v7615, 4294901760
    %v8518 = vsub.f32 %v7615, %v8517
    %v8519 = vand.u32 %v8518, 4294901760
    %v8520 = vsub.f32 %v8518, %v8519
    %v8521 = vand.u32 %v8520, 4294901760
    %8522 = vmatpush2.msra.mxu0 %v8521
    %8523 = vmatprep.subr.mxu0 0.0
    %v8524 = vand.u32 %v7610, 4294901760
    %v8525 = vsub.f32 %v7610, %v8524
    %v8526 = vand.u32 %v8525, 4294901760
    %v8527 = vsub.f32 %v8525, %v8526
    %v8528 = vand.u32 %v8527, 4294901760
    %8529 = vmatpush2.msra.mxu0 %v8528
    %8530 = vmatprep.subr.mxu0 0.0
    %v8531 = vand.u32 %v7607, 4294901760
    %v8532 = vsub.f32 %v7607, %v8531
    %v8533 = vand.u32 %v8532, 4294901760
    %v8534 = vsub.f32 %v8532, %v8533
    %v8535 = vand.u32 %v8534, 4294901760
    %8536 = vmatpush2.msra.mxu0 %v8535
    %v8537 = vand.u32 %v183, 4294901760
    %8538 = vmatprep.mubr.f32.mxu0 %v8537
    %v8539 = vand.u32 %v182, 4294901760
    %8540 = vmatmul.mubr.f32.gmra.mxu0 %v8539
    %v8541 = vpop.f32.mrf.mxu0
    %v8542 = vadd.f32 %v7845, %v8541
    %v8543 = vpop.f32.mrf.mxu0
    %v8544 = vand.u32 %v185, 4294901760
    %8545 = vmatprep.mubr.f32.mxu0 %v8544
    %v8546 = vand.u32 %v184, 4294901760
    %8547 = vmatmul.mubr.f32.gmra.mxu0 %v8546
    %v8548 = vpop.f32.mrf.mxu0
    %v8549 = vadd.f32 %v7860, %v8548
    %v8550 = vpop.f32.mrf.mxu0
    %v8551 = vand.u32 %v187, 4294901760
    %8552 = vmatprep.mubr.f32.mxu0 %v8551
    %v8553 = vand.u32 %v186, 4294901760
    %8554 = vmatmul.mubr.f32.gmra.mxu0 %v8553
    %v8555 = vpop.f32.mrf.mxu0
    %v8556 = vadd.f32 %v7875, %v8555
    %v8557 = vpop.f32.mrf.mxu0
    %v8558 = vand.u32 %v189, 4294901760
    %8559 = vmatprep.mubr.f32.mxu0 %v8558
    %v8560 = vand.u32 %v188, 4294901760
    %8561 = vmatmul.mubr.f32.gmra.mxu0 %v8560
    %v8562 = vpop.f32.mrf.mxu0
    %v8563 = vadd.f32 %v7890, %v8562
    %v8564 = vpop.f32.mrf.mxu0
    %v8565 = vand.u32 %v191, 4294901760
    %8566 = vmatprep.mubr.f32.mxu0 %v8565
    %v8567 = vand.u32 %v190, 4294901760
    %8568 = vmatmul.mubr.f32.gmra.mxu0 %v8567
    %v8569 = vpop.f32.mrf.mxu0
    %v8570 = vadd.f32 %v7905, %v8569
    %v8571 = vpop.f32.mrf.mxu0
    %v8572 = vand.u32 %v193, 4294901760
    %8573 = vmatprep.mubr.f32.mxu0 %v8572
    %v8574 = vand.u32 %v192, 4294901760
    %8575 = vmatmul.mubr.f32.gmra.mxu0 %v8574
    %v8576 = vpop.f32.mrf.mxu0
    %v8577 = vadd.f32 %v7920, %v8576
    %v8578 = vpop.f32.mrf.mxu0
    %v8579 = vand.u32 %v195, 4294901760
    %8580 = vmatprep.mubr.f32.mxu0 %v8579
    %v8581 = vand.u32 %v194, 4294901760
    %8582 = vmatmul.mubr.f32.gmra.mxu0 %v8581
    %v8583 = vpop.f32.mrf.mxu0
    %v8584 = vadd.f32 %v7935, %v8583
    %v8585 = vpop.f32.mrf.mxu0
    %v8586 = vand.u32 %v197, 4294901760
    %8587 = vmatprep.mubr.f32.mxu0 %v8586
    %v8588 = vand.u32 %v196, 4294901760
    %8589 = vmatmul.mubr.f32.gmra.mxu0 %v8588
    %v8590 = vpop.f32.mrf.mxu0
    %v8591 = vadd.f32 %v7950, %v8590
    %v8592 = vpop.f32.mrf.mxu0
    %v8593 = vand.u32 %v199, 4294901760
    %8594 = vmatprep.mubr.f32.mxu0 %v8593
    %v8595 = vand.u32 %v198, 4294901760
    %8596 = vmatmul.mubr.f32.gmra.mxu0 %v8595
    %v8597 = vpop.f32.mrf.mxu0
    %v8598 = vadd.f32 %v7965, %v8597
    %v8599 = vpop.f32.mrf.mxu0
    %v8600 = vand.u32 %v201, 4294901760
    %8601 = vmatprep.mubr.f32.mxu0 %v8600
    %v8602 = vand.u32 %v200, 4294901760
    %8603 = vmatmul.mubr.f32.gmra.mxu0 %v8602
    %v8604 = vpop.f32.mrf.mxu0
    %v8605 = vadd.f32 %v7980, %v8604
    %v8606 = vpop.f32.mrf.mxu0
    %v8607 = vand.u32 %v203, 4294901760
    %8608 = vmatprep.mubr.f32.mxu0 %v8607
    %v8609 = vand.u32 %v202, 4294901760
    %8610 = vmatmul.mubr.f32.gmra.mxu0 %v8609
    %v8611 = vpop.f32.mrf.mxu0
    %v8612 = vadd.f32 %v7995, %v8611
    %v8613 = vpop.f32.mrf.mxu0
    %v8614 = vand.u32 %v205, 4294901760
    %8615 = vmatprep.mubr.f32.mxu0 %v8614
    %v8616 = vand.u32 %v204, 4294901760
    %8617 = vmatmul.mubr.f32.gmra.mxu0 %v8616
    %v8618 = vpop.f32.mrf.mxu0
    %v8619 = vadd.f32 %v8010, %v8618
    %v8620 = vpop.f32.mrf.mxu0
    %v8621 = vand.u32 %v207, 4294901760
    %8622 = vmatprep.mubr.f32.mxu0 %v8621
    %v8623 = vand.u32 %v206, 4294901760
    %8624 = vmatmul.mubr.f32.gmra.mxu0 %v8623
    %v8625 = vpop.f32.mrf.mxu0
    %v8626 = vadd.f32 %v8025, %v8625
    %v8627 = vpop.f32.mrf.mxu0
    %v8628 = vand.u32 %v209, 4294901760
    %8629 = vmatprep.mubr.f32.mxu0 %v8628
    %v8630 = vand.u32 %v208, 4294901760
    %8631 = vmatmul.mubr.f32.gmra.mxu0 %v8630
    %v8632 = vpop.f32.mrf.mxu0
    %v8633 = vadd.f32 %v8040, %v8632
    %v8634 = vpop.f32.mrf.mxu0
    %v8635 = vand.u32 %v211, 4294901760
    %8636 = vmatprep.mubr.f32.mxu0 %v8635
    %v8637 = vand.u32 %v210, 4294901760
    %8638 = vmatmul.mubr.f32.gmra.mxu0 %v8637
    %v8639 = vpop.f32.mrf.mxu0
    %v8640 = vadd.f32 %v8055, %v8639
    %v8641 = vpop.f32.mrf.mxu0
    %v8642 = vand.u32 %v213, 4294901760
    %8643 = vmatprep.mubr.f32.mxu0 %v8642
    %v8644 = vand.u32 %v212, 4294901760
    %8645 = vmatmul.mubr.f32.gmra.mxu0 %v8644
    %v8646 = vpop.f32.mrf.mxu0
    %v8647 = vadd.f32 %v8070, %v8646
    %v8648 = vpop.f32.mrf.mxu0
    %v8649 = vand.u32 %v215, 4294901760
    %8650 = vmatprep.mubr.f32.mxu0 %v8649
    %v8651 = vand.u32 %v214, 4294901760
    %8652 = vmatmul.mubr.f32.gmra.mxu0 %v8651
    %v8653 = vpop.f32.mrf.mxu0
    %v8654 = vadd.f32 %v8085, %v8653
    %v8655 = vpop.f32.mrf.mxu0
    %v8656 = vand.u32 %v217, 4294901760
    %8657 = vmatprep.mubr.f32.mxu0 %v8656
    %v8658 = vand.u32 %v216, 4294901760
    %8659 = vmatmul.mubr.f32.gmra.mxu0 %v8658
    %v8660 = vpop.f32.mrf.mxu0
    %v8661 = vadd.f32 %v8100, %v8660
    %v8662 = vpop.f32.mrf.mxu0
    %v8663 = vand.u32 %v219, 4294901760
    %8664 = vmatprep.mubr.f32.mxu0 %v8663
    %v8665 = vand.u32 %v218, 4294901760
    %8666 = vmatmul.mubr.f32.gmra.mxu0 %v8665
    %v8667 = vpop.f32.mrf.mxu0
    %v8668 = vadd.f32 %v8115, %v8667
    %v8669 = vpop.f32.mrf.mxu0
    %v8670 = vand.u32 %v221, 4294901760
    %8671 = vmatprep.mubr.f32.mxu0 %v8670
    %v8672 = vand.u32 %v220, 4294901760
    %8673 = vmatmul.mubr.f32.gmra.mxu0 %v8672
    %v8674 = vpop.f32.mrf.mxu0
    %v8675 = vadd.f32 %v8130, %v8674
    %v8676 = vpop.f32.mrf.mxu0
    %v8677 = vand.u32 %v223, 4294901760
    %8678 = vmatprep.mubr.f32.mxu0 %v8677
    %v8679 = vand.u32 %v222, 4294901760
    %8680 = vmatmul.mubr.f32.gmra.mxu0 %v8679
    %v8681 = vpop.f32.mrf.mxu0
    %v8682 = vadd.f32 %v8145, %v8681
    %v8683 = vpop.f32.mrf.mxu0
    %v8684 = vand.u32 %v225, 4294901760
    %8685 = vmatprep.mubr.f32.mxu0 %v8684
    %v8686 = vand.u32 %v224, 4294901760
    %8687 = vmatmul.mubr.f32.gmra.mxu0 %v8686
    %v8688 = vpop.f32.mrf.mxu0
    %v8689 = vadd.f32 %v8160, %v8688
    %v8690 = vpop.f32.mrf.mxu0
    %v8691 = vand.u32 %v227, 4294901760
    %8692 = vmatprep.mubr.f32.mxu0 %v8691
    %v8693 = vand.u32 %v226, 4294901760
    %8694 = vmatmul.mubr.f32.gmra.mxu0 %v8693
    %v8695 = vpop.f32.mrf.mxu0
    %v8696 = vadd.f32 %v8175, %v8695
    %v8697 = vpop.f32.mrf.mxu0
    %v8698 = vand.u32 %v229, 4294901760
    %8699 = vmatprep.mubr.f32.mxu0 %v8698
    %v8700 = vand.u32 %v228, 4294901760
    %8701 = vmatmul.mubr.f32.gmra.mxu0 %v8700
    %v8702 = vpop.f32.mrf.mxu0
    %v8703 = vadd.f32 %v8190, %v8702
    %v8704 = vpop.f32.mrf.mxu0
    %v8705 = vand.u32 %v231, 4294901760
    %8706 = vmatprep.mubr.f32.mxu0 %v8705
    %v8707 = vand.u32 %v230, 4294901760
    %8708 = vmatmul.mubr.f32.gmra.mxu0 %v8707
    %v8709 = vpop.f32.mrf.mxu0
    %v8710 = vadd.f32 %v8205, %v8709
    %v8711 = vpop.f32.mrf.mxu0
    %v8712 = vand.u32 %v233, 4294901760
    %8713 = vmatprep.mubr.f32.mxu0 %v8712
    %v8714 = vand.u32 %v232, 4294901760
    %8715 = vmatmul.mubr.f32.gmra.mxu0 %v8714
    %v8716 = vpop.f32.mrf.mxu0
    %v8717 = vadd.f32 %v8220, %v8716
    %v8718 = vpop.f32.mrf.mxu0
    %v8719 = vand.u32 %v235, 4294901760
    %8720 = vmatprep.mubr.f32.mxu0 %v8719
    %v8721 = vand.u32 %v234, 4294901760
    %8722 = vmatmul.mubr.f32.gmra.mxu0 %v8721
    %v8723 = vpop.f32.mrf.mxu0
    %v8724 = vadd.f32 %v8235, %v8723
    %v8725 = vpop.f32.mrf.mxu0
    %v8726 = vand.u32 %v237, 4294901760
    %8727 = vmatprep.mubr.f32.mxu0 %v8726
    %v8728 = vand.u32 %v236, 4294901760
    %8729 = vmatmul.mubr.f32.gmra.mxu0 %v8728
    %v8730 = vpop.f32.mrf.mxu0
    %v8731 = vadd.f32 %v8250, %v8730
    %v8732 = vpop.f32.mrf.mxu0
    %v8733 = vand.u32 %v239, 4294901760
    %8734 = vmatprep.mubr.f32.mxu0 %v8733
    %v8735 = vand.u32 %v238, 4294901760
    %8736 = vmatmul.mubr.f32.gmra.mxu0 %v8735
    %v8737 = vpop.f32.mrf.mxu0
    %v8738 = vadd.f32 %v8265, %v8737
    %v8739 = vpop.f32.mrf.mxu0
    %v8740 = vand.u32 %v241, 4294901760
    %8741 = vmatprep.mubr.f32.mxu0 %v8740
    %v8742 = vand.u32 %v240, 4294901760
    %8743 = vmatmul.mubr.f32.gmra.mxu0 %v8742
    %v8744 = vpop.f32.mrf.mxu0
    %v8745 = vadd.f32 %v8280, %v8744
    %v8746 = vpop.f32.mrf.mxu0
    %v8747 = vand.u32 %v243, 4294901760
    %8748 = vmatprep.mubr.f32.mxu0 %v8747
    %v8749 = vand.u32 %v242, 4294901760
    %8750 = vmatmul.mubr.f32.gmra.mxu0 %v8749
    %v8751 = vpop.f32.mrf.mxu0
    %v8752 = vadd.f32 %v8295, %v8751
    %v8753 = vpop.f32.mrf.mxu0
    %v8754 = vand.u32 %v245, 4294901760
    %8755 = vmatprep.mubr.f32.mxu0 %v8754
    %v8756 = vand.u32 %v244, 4294901760
    %8757 = vmatmul.mubr.f32.gmra.mxu0 %v8756
    %v8758 = vpop.f32.mrf.mxu0
    %v8759 = vadd.f32 %v8310, %v8758
    %v8760 = vpop.f32.mrf.mxu0
    %8761 = vdwg.mxu0
    %8762 = vmatprep.subr.mxu0 0.0
    %v8763 = vand.u32 %v7602, 4294901760
    %v8764 = vsub.f32 %v7602, %v8763
    %8765 = vmatpush1.msra.mxu0 %v8764
    %8766 = vmatprep.subr.mxu0 0.0
    %v8767 = vand.u32 %v7599, 4294901760
    %v8768 = vsub.f32 %v7599, %v8767
    %8769 = vmatpush1.msra.mxu0 %v8768
    %8770 = vmatprep.subr.mxu0 0.0
    %v8771 = vand.u32 %v7594, 4294901760
    %v8772 = vsub.f32 %v7594, %v8771
    %8773 = vmatpush1.msra.mxu0 %v8772
    %8774 = vmatprep.subr.mxu0 0.0
    %v8775 = vand.u32 %v7591, 4294901760
    %v8776 = vsub.f32 %v7591, %v8775
    %8777 = vmatpush1.msra.mxu0 %v8776
    %8778 = vmatprep.subr.mxu0 0.0
    %v8779 = vand.u32 %v7586, 4294901760
    %v8780 = vsub.f32 %v7586, %v8779
    %8781 = vmatpush1.msra.mxu0 %v8780
    %8782 = vmatprep.subr.mxu0 0.0
    %v8783 = vand.u32 %v7583, 4294901760
    %v8784 = vsub.f32 %v7583, %v8783
    %8785 = vmatpush1.msra.mxu0 %v8784
    %8786 = vmatprep.subr.mxu0 0.0
    %v8787 = vand.u32 %v7578, 4294901760
    %v8788 = vsub.f32 %v7578, %v8787
    %8789 = vmatpush1.msra.mxu0 %v8788
    %8790 = vmatprep.subr.mxu0 0.0
    %v8791 = vand.u32 %v7575, 4294901760
    %v8792 = vsub.f32 %v7575, %v8791
    %8793 = vmatpush1.msra.mxu0 %v8792
    %8794 = vmatprep.subr.mxu0 0.0
    %v8795 = vand.u32 %v7570, 4294901760
    %v8796 = vsub.f32 %v7570, %v8795
    %8797 = vmatpush1.msra.mxu0 %v8796
    %8798 = vmatprep.subr.mxu0 0.0
    %v8799 = vand.u32 %v7567, 4294901760
    %v8800 = vsub.f32 %v7567, %v8799
    %8801 = vmatpush1.msra.mxu0 %v8800
    %8802 = vmatprep.subr.mxu0 0.0
    %v8803 = vand.u32 %v7562, 4294901760
    %v8804 = vsub.f32 %v7562, %v8803
    %8805 = vmatpush1.msra.mxu0 %v8804
    %8806 = vmatprep.subr.mxu0 0.0
    %v8807 = vand.u32 %v7559, 4294901760
    %v8808 = vsub.f32 %v7559, %v8807
    %8809 = vmatpush1.msra.mxu0 %v8808
    %8810 = vmatprep.subr.mxu0 0.0
    %v8811 = vand.u32 %v7554, 4294901760
    %v8812 = vsub.f32 %v7554, %v8811
    %8813 = vmatpush1.msra.mxu0 %v8812
    %8814 = vmatprep.subr.mxu0 0.0
    %v8815 = vand.u32 %v7551, 4294901760
    %v8816 = vsub.f32 %v7551, %v8815
    %8817 = vmatpush1.msra.mxu0 %v8816
    %8818 = vmatprep.subr.mxu0 0.0
    %v8819 = vand.u32 %v7546, 4294901760
    %v8820 = vsub.f32 %v7546, %v8819
    %8821 = vmatpush1.msra.mxu0 %v8820
    %8822 = vmatprep.subr.mxu0 0.0
    %v8823 = vand.u32 %v7543, 4294901760
    %v8824 = vsub.f32 %v7543, %v8823
    %8825 = vmatpush1.msra.mxu0 %v8824
    %8826 = vmatprep.subr.mxu0 0.0
    %v8827 = vand.u32 %v7666, 4294901760
    %v8828 = vsub.f32 %v7666, %v8827
    %8829 = vmatpush2.msra.mxu0 %v8828
    %8830 = vmatprep.subr.mxu0 0.0
    %v8831 = vand.u32 %v7663, 4294901760
    %v8832 = vsub.f32 %v7663, %v8831
    %8833 = vmatpush2.msra.mxu0 %v8832
    %8834 = vmatprep.subr.mxu0 0.0
    %v8835 = vand.u32 %v7658, 4294901760
    %v8836 = vsub.f32 %v7658, %v8835
    %8837 = vmatpush2.msra.mxu0 %v8836
    %8838 = vmatprep.subr.mxu0 0.0
    %v8839 = vand.u32 %v7655, 4294901760
    %v8840 = vsub.f32 %v7655, %v8839
    %8841 = vmatpush2.msra.mxu0 %v8840
    %8842 = vmatprep.subr.mxu0 0.0
    %v8843 = vand.u32 %v7650, 4294901760
    %v8844 = vsub.f32 %v7650, %v8843
    %8845 = vmatpush2.msra.mxu0 %v8844
    %8846 = vmatprep.subr.mxu0 0.0
    %v8847 = vand.u32 %v7647, 4294901760
    %v8848 = vsub.f32 %v7647, %v8847
    %8849 = vmatpush2.msra.mxu0 %v8848
    %8850 = vmatprep.subr.mxu0 0.0
    %v8851 = vand.u32 %v7642, 4294901760
    %v8852 = vsub.f32 %v7642, %v8851
    %8853 = vmatpush2.msra.mxu0 %v8852
    %8854 = vmatprep.subr.mxu0 0.0
    %v8855 = vand.u32 %v7639, 4294901760
    %v8856 = vsub.f32 %v7639, %v8855
    %8857 = vmatpush2.msra.mxu0 %v8856
    %8858 = vmatprep.subr.mxu0 0.0
    %v8859 = vand.u32 %v7634, 4294901760
    %v8860 = vsub.f32 %v7634, %v8859
    %8861 = vmatpush2.msra.mxu0 %v8860
    %8862 = vmatprep.subr.mxu0 0.0
    %v8863 = vand.u32 %v7631, 4294901760
    %v8864 = vsub.f32 %v7631, %v8863
    %8865 = vmatpush2.msra.mxu0 %v8864
    %8866 = vmatprep.subr.mxu0 0.0
    %v8867 = vand.u32 %v7626, 4294901760
    %v8868 = vsub.f32 %v7626, %v8867
    %8869 = vmatpush2.msra.mxu0 %v8868
    %8870 = vmatprep.subr.mxu0 0.0
    %v8871 = vand.u32 %v7623, 4294901760
    %v8872 = vsub.f32 %v7623, %v8871
    %8873 = vmatpush2.msra.mxu0 %v8872
    %8874 = vmatprep.subr.mxu0 0.0
    %v8875 = vand.u32 %v7618, 4294901760
    %v8876 = vsub.f32 %v7618, %v8875
    %8877 = vmatpush2.msra.mxu0 %v8876
    %8878 = vmatprep.subr.mxu0 0.0
    %v8879 = vand.u32 %v7615, 4294901760
    %v8880 = vsub.f32 %v7615, %v8879
    %8881 = vmatpush2.msra.mxu0 %v8880
    %8882 = vmatprep.subr.mxu0 0.0
    %v8883 = vand.u32 %v7610, 4294901760
    %v8884 = vsub.f32 %v7610, %v8883
    %8885 = vmatpush2.msra.mxu0 %v8884
    %8886 = vmatprep.subr.mxu0 0.0
    %v8887 = vand.u32 %v7607, 4294901760
    %v8888 = vsub.f32 %v7607, %v8887
    %8889 = vmatpush2.msra.mxu0 %v8888
    %v8890 = vand.u32 %v183, 4294901760
    %v8891 = vsub.f32 %v183, %v8890
    %8892 = vmatprep.mubr.f32.mxu0 %v8891
    %v8893 = vand.u32 %v182, 4294901760
    %v8894 = vsub.f32 %v182, %v8893
    %8895 = vmatmul.mubr.f32.gmra.mxu0 %v8894
    %v8896 = vpop.f32.mrf.mxu0
    %v8897 = vadd.f32 %v8542, %v8896
    %v8898 = vpop.f32.mrf.mxu0
    %v8899 = vand.u32 %v185, 4294901760
    %v8900 = vsub.f32 %v185, %v8899
    %8901 = vmatprep.mubr.f32.mxu0 %v8900
    %v8902 = vand.u32 %v184, 4294901760
    %v8903 = vsub.f32 %v184, %v8902
    %8904 = vmatmul.mubr.f32.gmra.mxu0 %v8903
    %v8905 = vpop.f32.mrf.mxu0
    %v8906 = vadd.f32 %v8549, %v8905
    %v8907 = vpop.f32.mrf.mxu0
    %v8908 = vand.u32 %v187, 4294901760
    %v8909 = vsub.f32 %v187, %v8908
    %8910 = vmatprep.mubr.f32.mxu0 %v8909
    %v8911 = vand.u32 %v186, 4294901760
    %v8912 = vsub.f32 %v186, %v8911
    %8913 = vmatmul.mubr.f32.gmra.mxu0 %v8912
    %v8914 = vpop.f32.mrf.mxu0
    %v8915 = vadd.f32 %v8556, %v8914
    %v8916 = vpop.f32.mrf.mxu0
    %v8917 = vand.u32 %v189, 4294901760
    %v8918 = vsub.f32 %v189, %v8917
    %8919 = vmatprep.mubr.f32.mxu0 %v8918
    %v8920 = vand.u32 %v188, 4294901760
    %v8921 = vsub.f32 %v188, %v8920
    %8922 = vmatmul.mubr.f32.gmra.mxu0 %v8921
    %v8923 = vpop.f32.mrf.mxu0
    %v8924 = vadd.f32 %v8563, %v8923
    %v8925 = vpop.f32.mrf.mxu0
    %v8926 = vand.u32 %v191, 4294901760
    %v8927 = vsub.f32 %v191, %v8926
    %8928 = vmatprep.mubr.f32.mxu0 %v8927
    %v8929 = vand.u32 %v190, 4294901760
    %v8930 = vsub.f32 %v190, %v8929
    %8931 = vmatmul.mubr.f32.gmra.mxu0 %v8930
    %v8932 = vpop.f32.mrf.mxu0
    %v8933 = vadd.f32 %v8570, %v8932
    %v8934 = vpop.f32.mrf.mxu0
    %v8935 = vand.u32 %v193, 4294901760
    %v8936 = vsub.f32 %v193, %v8935
    %8937 = vmatprep.mubr.f32.mxu0 %v8936
    %v8938 = vand.u32 %v192, 4294901760
    %v8939 = vsub.f32 %v192, %v8938
    %8940 = vmatmul.mubr.f32.gmra.mxu0 %v8939
    %v8941 = vpop.f32.mrf.mxu0
    %v8942 = vadd.f32 %v8577, %v8941
    %v8943 = vpop.f32.mrf.mxu0
    %v8944 = vand.u32 %v195, 4294901760
    %v8945 = vsub.f32 %v195, %v8944
    %8946 = vmatprep.mubr.f32.mxu0 %v8945
    %v8947 = vand.u32 %v194, 4294901760
    %v8948 = vsub.f32 %v194, %v8947
    %8949 = vmatmul.mubr.f32.gmra.mxu0 %v8948
    %v8950 = vpop.f32.mrf.mxu0
    %v8951 = vadd.f32 %v8584, %v8950
    %v8952 = vpop.f32.mrf.mxu0
    %v8953 = vand.u32 %v197, 4294901760
    %v8954 = vsub.f32 %v197, %v8953
    %8955 = vmatprep.mubr.f32.mxu0 %v8954
    %v8956 = vand.u32 %v196, 4294901760
    %v8957 = vsub.f32 %v196, %v8956
    %8958 = vmatmul.mubr.f32.gmra.mxu0 %v8957
    %v8959 = vpop.f32.mrf.mxu0
    %v8960 = vadd.f32 %v8591, %v8959
    %v8961 = vpop.f32.mrf.mxu0
    %v8962 = vand.u32 %v199, 4294901760
    %v8963 = vsub.f32 %v199, %v8962
    %8964 = vmatprep.mubr.f32.mxu0 %v8963
    %v8965 = vand.u32 %v198, 4294901760
    %v8966 = vsub.f32 %v198, %v8965
    %8967 = vmatmul.mubr.f32.gmra.mxu0 %v8966
    %v8968 = vpop.f32.mrf.mxu0
    %v8969 = vadd.f32 %v8598, %v8968
    %v8970 = vpop.f32.mrf.mxu0
    %v8971 = vand.u32 %v201, 4294901760
    %v8972 = vsub.f32 %v201, %v8971
    %8973 = vmatprep.mubr.f32.mxu0 %v8972
    %v8974 = vand.u32 %v200, 4294901760
    %v8975 = vsub.f32 %v200, %v8974
    %8976 = vmatmul.mubr.f32.gmra.mxu0 %v8975
    %v8977 = vpop.f32.mrf.mxu0
    %v8978 = vadd.f32 %v8605, %v8977
    %v8979 = vpop.f32.mrf.mxu0
    %v8980 = vand.u32 %v203, 4294901760
    %v8981 = vsub.f32 %v203, %v8980
    %8982 = vmatprep.mubr.f32.mxu0 %v8981
    %v8983 = vand.u32 %v202, 4294901760
    %v8984 = vsub.f32 %v202, %v8983
    %8985 = vmatmul.mubr.f32.gmra.mxu0 %v8984
    %v8986 = vpop.f32.mrf.mxu0
    %v8987 = vadd.f32 %v8612, %v8986
    %v8988 = vpop.f32.mrf.mxu0
    %v8989 = vand.u32 %v205, 4294901760
    %v8990 = vsub.f32 %v205, %v8989
    %8991 = vmatprep.mubr.f32.mxu0 %v8990
    %v8992 = vand.u32 %v204, 4294901760
    %v8993 = vsub.f32 %v204, %v8992
    %8994 = vmatmul.mubr.f32.gmra.mxu0 %v8993
    %v8995 = vpop.f32.mrf.mxu0
    %v8996 = vadd.f32 %v8619, %v8995
    %v8997 = vpop.f32.mrf.mxu0
    %v8998 = vand.u32 %v207, 4294901760
    %v8999 = vsub.f32 %v207, %v8998
    %9000 = vmatprep.mubr.f32.mxu0 %v8999
    %v9001 = vand.u32 %v206, 4294901760
    %v9002 = vsub.f32 %v206, %v9001
    %9003 = vmatmul.mubr.f32.gmra.mxu0 %v9002
    %v9004 = vpop.f32.mrf.mxu0
    %v9005 = vadd.f32 %v8626, %v9004
    %v9006 = vpop.f32.mrf.mxu0
    %v9007 = vand.u32 %v209, 4294901760
    %v9008 = vsub.f32 %v209, %v9007
    %9009 = vmatprep.mubr.f32.mxu0 %v9008
    %v9010 = vand.u32 %v208, 4294901760
    %v9011 = vsub.f32 %v208, %v9010
    %9012 = vmatmul.mubr.f32.gmra.mxu0 %v9011
    %v9013 = vpop.f32.mrf.mxu0
    %v9014 = vadd.f32 %v8633, %v9013
    %v9015 = vpop.f32.mrf.mxu0
    %v9016 = vand.u32 %v211, 4294901760
    %v9017 = vsub.f32 %v211, %v9016
    %9018 = vmatprep.mubr.f32.mxu0 %v9017
    %v9019 = vand.u32 %v210, 4294901760
    %v9020 = vsub.f32 %v210, %v9019
    %9021 = vmatmul.mubr.f32.gmra.mxu0 %v9020
    %v9022 = vpop.f32.mrf.mxu0
    %v9023 = vadd.f32 %v8640, %v9022
    %v9024 = vpop.f32.mrf.mxu0
    %v9025 = vand.u32 %v213, 4294901760
    %v9026 = vsub.f32 %v213, %v9025
    %9027 = vmatprep.mubr.f32.mxu0 %v9026
    %v9028 = vand.u32 %v212, 4294901760
    %v9029 = vsub.f32 %v212, %v9028
    %9030 = vmatmul.mubr.f32.gmra.mxu0 %v9029
    %v9031 = vpop.f32.mrf.mxu0
    %v9032 = vadd.f32 %v8647, %v9031
    %v9033 = vpop.f32.mrf.mxu0
    %v9034 = vand.u32 %v215, 4294901760
    %v9035 = vsub.f32 %v215, %v9034
    %9036 = vmatprep.mubr.f32.mxu0 %v9035
    %v9037 = vand.u32 %v214, 4294901760
    %v9038 = vsub.f32 %v214, %v9037
    %9039 = vmatmul.mubr.f32.gmra.mxu0 %v9038
    %v9040 = vpop.f32.mrf.mxu0
    %v9041 = vadd.f32 %v8654, %v9040
    %v9042 = vpop.f32.mrf.mxu0
    %v9043 = vand.u32 %v217, 4294901760
    %v9044 = vsub.f32 %v217, %v9043
    %9045 = vmatprep.mubr.f32.mxu0 %v9044
    %v9046 = vand.u32 %v216, 4294901760
    %v9047 = vsub.f32 %v216, %v9046
    %9048 = vmatmul.mubr.f32.gmra.mxu0 %v9047
    %v9049 = vpop.f32.mrf.mxu0
    %v9050 = vadd.f32 %v8661, %v9049
    %v9051 = vpop.f32.mrf.mxu0
    %v9052 = vand.u32 %v219, 4294901760
    %v9053 = vsub.f32 %v219, %v9052
    %9054 = vmatprep.mubr.f32.mxu0 %v9053
    %v9055 = vand.u32 %v218, 4294901760
    %v9056 = vsub.f32 %v218, %v9055
    %9057 = vmatmul.mubr.f32.gmra.mxu0 %v9056
    %v9058 = vpop.f32.mrf.mxu0
    %v9059 = vadd.f32 %v8668, %v9058
    %v9060 = vpop.f32.mrf.mxu0
    %v9061 = vand.u32 %v221, 4294901760
    %v9062 = vsub.f32 %v221, %v9061
    %9063 = vmatprep.mubr.f32.mxu0 %v9062
    %v9064 = vand.u32 %v220, 4294901760
    %v9065 = vsub.f32 %v220, %v9064
    %9066 = vmatmul.mubr.f32.gmra.mxu0 %v9065
    %v9067 = vpop.f32.mrf.mxu0
    %v9068 = vadd.f32 %v8675, %v9067
    %v9069 = vpop.f32.mrf.mxu0
    %v9070 = vand.u32 %v223, 4294901760
    %v9071 = vsub.f32 %v223, %v9070
    %9072 = vmatprep.mubr.f32.mxu0 %v9071
    %v9073 = vand.u32 %v222, 4294901760
    %v9074 = vsub.f32 %v222, %v9073
    %9075 = vmatmul.mubr.f32.gmra.mxu0 %v9074
    %v9076 = vpop.f32.mrf.mxu0
    %v9077 = vadd.f32 %v8682, %v9076
    %v9078 = vpop.f32.mrf.mxu0
    %v9079 = vand.u32 %v225, 4294901760
    %v9080 = vsub.f32 %v225, %v9079
    %9081 = vmatprep.mubr.f32.mxu0 %v9080
    %v9082 = vand.u32 %v224, 4294901760
    %v9083 = vsub.f32 %v224, %v9082
    %9084 = vmatmul.mubr.f32.gmra.mxu0 %v9083
    %v9085 = vpop.f32.mrf.mxu0
    %v9086 = vadd.f32 %v8689, %v9085
    %v9087 = vpop.f32.mrf.mxu0
    %v9088 = vand.u32 %v227, 4294901760
    %v9089 = vsub.f32 %v227, %v9088
    %9090 = vmatprep.mubr.f32.mxu0 %v9089
    %v9091 = vand.u32 %v226, 4294901760
    %v9092 = vsub.f32 %v226, %v9091
    %9093 = vmatmul.mubr.f32.gmra.mxu0 %v9092
    %v9094 = vpop.f32.mrf.mxu0
    %v9095 = vadd.f32 %v8696, %v9094
    %v9096 = vpop.f32.mrf.mxu0
    %v9097 = vand.u32 %v229, 4294901760
    %v9098 = vsub.f32 %v229, %v9097
    %9099 = vmatprep.mubr.f32.mxu0 %v9098
    %v9100 = vand.u32 %v228, 4294901760
    %v9101 = vsub.f32 %v228, %v9100
    %9102 = vmatmul.mubr.f32.gmra.mxu0 %v9101
    %v9103 = vpop.f32.mrf.mxu0
    %v9104 = vadd.f32 %v8703, %v9103
    %v9105 = vpop.f32.mrf.mxu0
    %v9106 = vand.u32 %v231, 4294901760
    %v9107 = vsub.f32 %v231, %v9106
    %9108 = vmatprep.mubr.f32.mxu0 %v9107
    %v9109 = vand.u32 %v230, 4294901760
    %v9110 = vsub.f32 %v230, %v9109
    %9111 = vmatmul.mubr.f32.gmra.mxu0 %v9110
    %v9112 = vpop.f32.mrf.mxu0
    %v9113 = vadd.f32 %v8710, %v9112
    %v9114 = vpop.f32.mrf.mxu0
    %v9115 = vand.u32 %v233, 4294901760
    %v9116 = vsub.f32 %v233, %v9115
    %9117 = vmatprep.mubr.f32.mxu0 %v9116
    %v9118 = vand.u32 %v232, 4294901760
    %v9119 = vsub.f32 %v232, %v9118
    %9120 = vmatmul.mubr.f32.gmra.mxu0 %v9119
    %v9121 = vpop.f32.mrf.mxu0
    %v9122 = vadd.f32 %v8717, %v9121
    %v9123 = vpop.f32.mrf.mxu0
    %v9124 = vand.u32 %v235, 4294901760
    %v9125 = vsub.f32 %v235, %v9124
    %9126 = vmatprep.mubr.f32.mxu0 %v9125
    %v9127 = vand.u32 %v234, 4294901760
    %v9128 = vsub.f32 %v234, %v9127
    %9129 = vmatmul.mubr.f32.gmra.mxu0 %v9128
    %v9130 = vpop.f32.mrf.mxu0
    %v9131 = vadd.f32 %v8724, %v9130
    %v9132 = vpop.f32.mrf.mxu0
    %v9133 = vand.u32 %v237, 4294901760
    %v9134 = vsub.f32 %v237, %v9133
    %9135 = vmatprep.mubr.f32.mxu0 %v9134
    %v9136 = vand.u32 %v236, 4294901760
    %v9137 = vsub.f32 %v236, %v9136
    %9138 = vmatmul.mubr.f32.gmra.mxu0 %v9137
    %v9139 = vpop.f32.mrf.mxu0
    %v9140 = vadd.f32 %v8731, %v9139
    %v9141 = vpop.f32.mrf.mxu0
    %v9142 = vand.u32 %v239, 4294901760
    %v9143 = vsub.f32 %v239, %v9142
    %9144 = vmatprep.mubr.f32.mxu0 %v9143
    %v9145 = vand.u32 %v238, 4294901760
    %v9146 = vsub.f32 %v238, %v9145
    %9147 = vmatmul.mubr.f32.gmra.mxu0 %v9146
    %v9148 = vpop.f32.mrf.mxu0
    %v9149 = vadd.f32 %v8738, %v9148
    %v9150 = vpop.f32.mrf.mxu0
    %v9151 = vand.u32 %v241, 4294901760
    %v9152 = vsub.f32 %v241, %v9151
    %9153 = vmatprep.mubr.f32.mxu0 %v9152
    %v9154 = vand.u32 %v240, 4294901760
    %v9155 = vsub.f32 %v240, %v9154
    %9156 = vmatmul.mubr.f32.gmra.mxu0 %v9155
    %v9157 = vpop.f32.mrf.mxu0
    %v9158 = vadd.f32 %v8745, %v9157
    %v9159 = vpop.f32.mrf.mxu0
    %v9160 = vand.u32 %v243, 4294901760
    %v9161 = vsub.f32 %v243, %v9160
    %9162 = vmatprep.mubr.f32.mxu0 %v9161
    %v9163 = vand.u32 %v242, 4294901760
    %v9164 = vsub.f32 %v242, %v9163
    %9165 = vmatmul.mubr.f32.gmra.mxu0 %v9164
    %v9166 = vpop.f32.mrf.mxu0
    %v9167 = vadd.f32 %v8752, %v9166
    %v9168 = vpop.f32.mrf.mxu0
    %v9169 = vand.u32 %v245, 4294901760
    %v9170 = vsub.f32 %v245, %v9169
    %9171 = vmatprep.mubr.f32.mxu0 %v9170
    %v9172 = vand.u32 %v244, 4294901760
    %v9173 = vsub.f32 %v244, %v9172
    %9174 = vmatmul.mubr.f32.gmra.mxu0 %v9173
    %v9175 = vpop.f32.mrf.mxu0
    %v9176 = vadd.f32 %v8759, %v9175
    %v9177 = vpop.f32.mrf.mxu0
    %9178 = vdwg.mxu0
    %9179 = vmatprep.subr.mxu0 0.0
    %v9180 = vand.u32 %v7602, 4294901760
    %9181 = vmatpush1.msra.mxu0 %v9180
    %9182 = vmatprep.subr.mxu0 0.0
    %v9183 = vand.u32 %v7599, 4294901760
    %9184 = vmatpush1.msra.mxu0 %v9183
    %9185 = vmatprep.subr.mxu0 0.0
    %v9186 = vand.u32 %v7594, 4294901760
    %9187 = vmatpush1.msra.mxu0 %v9186
    %9188 = vmatprep.subr.mxu0 0.0
    %v9189 = vand.u32 %v7591, 4294901760
    %9190 = vmatpush1.msra.mxu0 %v9189
    %9191 = vmatprep.subr.mxu0 0.0
    %v9192 = vand.u32 %v7586, 4294901760
    %9193 = vmatpush1.msra.mxu0 %v9192
    %9194 = vmatprep.subr.mxu0 0.0
    %v9195 = vand.u32 %v7583, 4294901760
    %9196 = vmatpush1.msra.mxu0 %v9195
    %9197 = vmatprep.subr.mxu0 0.0
    %v9198 = vand.u32 %v7578, 4294901760
    %9199 = vmatpush1.msra.mxu0 %v9198
    %9200 = vmatprep.subr.mxu0 0.0
    %v9201 = vand.u32 %v7575, 4294901760
    %9202 = vmatpush1.msra.mxu0 %v9201
    %9203 = vmatprep.subr.mxu0 0.0
    %v9204 = vand.u32 %v7570, 4294901760
    %9205 = vmatpush1.msra.mxu0 %v9204
    %9206 = vmatprep.subr.mxu0 0.0
    %v9207 = vand.u32 %v7567, 4294901760
    %9208 = vmatpush1.msra.mxu0 %v9207
    %9209 = vmatprep.subr.mxu0 0.0
    %v9210 = vand.u32 %v7562, 4294901760
    %9211 = vmatpush1.msra.mxu0 %v9210
    %9212 = vmatprep.subr.mxu0 0.0
    %v9213 = vand.u32 %v7559, 4294901760
    %9214 = vmatpush1.msra.mxu0 %v9213
    %9215 = vmatprep.subr.mxu0 0.0
    %v9216 = vand.u32 %v7554, 4294901760
    %9217 = vmatpush1.msra.mxu0 %v9216
    %9218 = vmatprep.subr.mxu0 0.0
    %v9219 = vand.u32 %v7551, 4294901760
    %9220 = vmatpush1.msra.mxu0 %v9219
    %9221 = vmatprep.subr.mxu0 0.0
    %v9222 = vand.u32 %v7546, 4294901760
    %9223 = vmatpush1.msra.mxu0 %v9222
    %9224 = vmatprep.subr.mxu0 0.0
    %v9225 = vand.u32 %v7543, 4294901760
    %9226 = vmatpush1.msra.mxu0 %v9225
    %9227 = vmatprep.subr.mxu0 0.0
    %v9228 = vand.u32 %v7666, 4294901760
    %9229 = vmatpush2.msra.mxu0 %v9228
    %9230 = vmatprep.subr.mxu0 0.0
    %v9231 = vand.u32 %v7663, 4294901760
    %9232 = vmatpush2.msra.mxu0 %v9231
    %9233 = vmatprep.subr.mxu0 0.0
    %v9234 = vand.u32 %v7658, 4294901760
    %9235 = vmatpush2.msra.mxu0 %v9234
    %9236 = vmatprep.subr.mxu0 0.0
    %v9237 = vand.u32 %v7655, 4294901760
    %9238 = vmatpush2.msra.mxu0 %v9237
    %9239 = vmatprep.subr.mxu0 0.0
    %v9240 = vand.u32 %v7650, 4294901760
    %9241 = vmatpush2.msra.mxu0 %v9240
    %9242 = vmatprep.subr.mxu0 0.0
    %v9243 = vand.u32 %v7647, 4294901760
    %9244 = vmatpush2.msra.mxu0 %v9243
    %9245 = vmatprep.subr.mxu0 0.0
    %v9246 = vand.u32 %v7642, 4294901760
    %9247 = vmatpush2.msra.mxu0 %v9246
    %9248 = vmatprep.subr.mxu0 0.0
    %v9249 = vand.u32 %v7639, 4294901760
    %9250 = vmatpush2.msra.mxu0 %v9249
    %9251 = vmatprep.subr.mxu0 0.0
    %v9252 = vand.u32 %v7634, 4294901760
    %9253 = vmatpush2.msra.mxu0 %v9252
    %9254 = vmatprep.subr.mxu0 0.0
    %v9255 = vand.u32 %v7631, 4294901760
    %9256 = vmatpush2.msra.mxu0 %v9255
    %9257 = vmatprep.subr.mxu0 0.0
    %v9258 = vand.u32 %v7626, 4294901760
    %9259 = vmatpush2.msra.mxu0 %v9258
    %9260 = vmatprep.subr.mxu0 0.0
    %v9261 = vand.u32 %v7623, 4294901760
    %9262 = vmatpush2.msra.mxu0 %v9261
    %9263 = vmatprep.subr.mxu0 0.0
    %v9264 = vand.u32 %v7618, 4294901760
    %9265 = vmatpush2.msra.mxu0 %v9264
    %9266 = vmatprep.subr.mxu0 0.0
    %v9267 = vand.u32 %v7615, 4294901760
    %9268 = vmatpush2.msra.mxu0 %v9267
    %9269 = vmatprep.subr.mxu0 0.0
    %v9270 = vand.u32 %v7610, 4294901760
    %9271 = vmatpush2.msra.mxu0 %v9270
    %9272 = vmatprep.subr.mxu0 0.0
    %v9273 = vand.u32 %v7607, 4294901760
    %9274 = vmatpush2.msra.mxu0 %v9273
    %v9275 = vand.u32 %v183, 4294901760
    %v9276 = vsub.f32 %v183, %v9275
    %v9277 = vand.u32 %v9276, 4294901760
    %9278 = vmatprep.mubr.f32.mxu0 %v9277
    %v9279 = vand.u32 %v182, 4294901760
    %v9280 = vsub.f32 %v182, %v9279
    %v9281 = vand.u32 %v9280, 4294901760
    %9282 = vmatmul.mubr.f32.gmra.mxu0 %v9281
    %v9283 = vpop.f32.mrf.mxu0
    %v9284 = vadd.f32 %v8897, %v9283
    %v9285 = vpop.f32.mrf.mxu0
    %v9286 = vand.u32 %v185, 4294901760
    %v9287 = vsub.f32 %v185, %v9286
    %v9288 = vand.u32 %v9287, 4294901760
    %9289 = vmatprep.mubr.f32.mxu0 %v9288
    %v9290 = vand.u32 %v184, 4294901760
    %v9291 = vsub.f32 %v184, %v9290
    %v9292 = vand.u32 %v9291, 4294901760
    %9293 = vmatmul.mubr.f32.gmra.mxu0 %v9292
    %v9294 = vpop.f32.mrf.mxu0
    %v9295 = vadd.f32 %v8906, %v9294
    %v9296 = vpop.f32.mrf.mxu0
    %v9297 = vand.u32 %v187, 4294901760
    %v9298 = vsub.f32 %v187, %v9297
    %v9299 = vand.u32 %v9298, 4294901760
    %9300 = vmatprep.mubr.f32.mxu0 %v9299
    %v9301 = vand.u32 %v186, 4294901760
    %v9302 = vsub.f32 %v186, %v9301
    %v9303 = vand.u32 %v9302, 4294901760
    %9304 = vmatmul.mubr.f32.gmra.mxu0 %v9303
    %v9305 = vpop.f32.mrf.mxu0
    %v9306 = vadd.f32 %v8915, %v9305
    %v9307 = vpop.f32.mrf.mxu0
    %v9308 = vand.u32 %v189, 4294901760
    %v9309 = vsub.f32 %v189, %v9308
    %v9310 = vand.u32 %v9309, 4294901760
    %9311 = vmatprep.mubr.f32.mxu0 %v9310
    %v9312 = vand.u32 %v188, 4294901760
    %v9313 = vsub.f32 %v188, %v9312
    %v9314 = vand.u32 %v9313, 4294901760
    %9315 = vmatmul.mubr.f32.gmra.mxu0 %v9314
    %v9316 = vpop.f32.mrf.mxu0
    %v9317 = vadd.f32 %v8924, %v9316
    %v9318 = vpop.f32.mrf.mxu0
    %v9319 = vand.u32 %v191, 4294901760
    %v9320 = vsub.f32 %v191, %v9319
    %v9321 = vand.u32 %v9320, 4294901760
    %9322 = vmatprep.mubr.f32.mxu0 %v9321
    %v9323 = vand.u32 %v190, 4294901760
    %v9324 = vsub.f32 %v190, %v9323
    %v9325 = vand.u32 %v9324, 4294901760
    %9326 = vmatmul.mubr.f32.gmra.mxu0 %v9325
    %v9327 = vpop.f32.mrf.mxu0
    %v9328 = vadd.f32 %v8933, %v9327
    %v9329 = vpop.f32.mrf.mxu0
    %v9330 = vand.u32 %v193, 4294901760
    %v9331 = vsub.f32 %v193, %v9330
    %v9332 = vand.u32 %v9331, 4294901760
    %9333 = vmatprep.mubr.f32.mxu0 %v9332
    %v9334 = vand.u32 %v192, 4294901760
    %v9335 = vsub.f32 %v192, %v9334
    %v9336 = vand.u32 %v9335, 4294901760
    %9337 = vmatmul.mubr.f32.gmra.mxu0 %v9336
    %v9338 = vpop.f32.mrf.mxu0
    %v9339 = vadd.f32 %v8942, %v9338
    %v9340 = vpop.f32.mrf.mxu0
    %v9341 = vand.u32 %v195, 4294901760
    %v9342 = vsub.f32 %v195, %v9341
    %v9343 = vand.u32 %v9342, 4294901760
    %9344 = vmatprep.mubr.f32.mxu0 %v9343
    %v9345 = vand.u32 %v194, 4294901760
    %v9346 = vsub.f32 %v194, %v9345
    %v9347 = vand.u32 %v9346, 4294901760
    %9348 = vmatmul.mubr.f32.gmra.mxu0 %v9347
    %v9349 = vpop.f32.mrf.mxu0
    %v9350 = vadd.f32 %v8951, %v9349
    %v9351 = vpop.f32.mrf.mxu0
    %v9352 = vand.u32 %v197, 4294901760
    %v9353 = vsub.f32 %v197, %v9352
    %v9354 = vand.u32 %v9353, 4294901760
    %9355 = vmatprep.mubr.f32.mxu0 %v9354
    %v9356 = vand.u32 %v196, 4294901760
    %v9357 = vsub.f32 %v196, %v9356
    %v9358 = vand.u32 %v9357, 4294901760
    %9359 = vmatmul.mubr.f32.gmra.mxu0 %v9358
    %v9360 = vpop.f32.mrf.mxu0
    %v9361 = vadd.f32 %v8960, %v9360
    %v9362 = vpop.f32.mrf.mxu0
    %v9363 = vand.u32 %v199, 4294901760
    %v9364 = vsub.f32 %v199, %v9363
    %v9365 = vand.u32 %v9364, 4294901760
    %9366 = vmatprep.mubr.f32.mxu0 %v9365
    %v9367 = vand.u32 %v198, 4294901760
    %v9368 = vsub.f32 %v198, %v9367
    %v9369 = vand.u32 %v9368, 4294901760
    %9370 = vmatmul.mubr.f32.gmra.mxu0 %v9369
    %v9371 = vpop.f32.mrf.mxu0
    %v9372 = vadd.f32 %v8969, %v9371
    %v9373 = vpop.f32.mrf.mxu0
    %v9374 = vand.u32 %v201, 4294901760
    %v9375 = vsub.f32 %v201, %v9374
    %v9376 = vand.u32 %v9375, 4294901760
    %9377 = vmatprep.mubr.f32.mxu0 %v9376
    %v9378 = vand.u32 %v200, 4294901760
    %v9379 = vsub.f32 %v200, %v9378
    %v9380 = vand.u32 %v9379, 4294901760
    %9381 = vmatmul.mubr.f32.gmra.mxu0 %v9380
    %v9382 = vpop.f32.mrf.mxu0
    %v9383 = vadd.f32 %v8978, %v9382
    %v9384 = vpop.f32.mrf.mxu0
    %v9385 = vand.u32 %v203, 4294901760
    %v9386 = vsub.f32 %v203, %v9385
    %v9387 = vand.u32 %v9386, 4294901760
    %9388 = vmatprep.mubr.f32.mxu0 %v9387
    %v9389 = vand.u32 %v202, 4294901760
    %v9390 = vsub.f32 %v202, %v9389
    %v9391 = vand.u32 %v9390, 4294901760
    %9392 = vmatmul.mubr.f32.gmra.mxu0 %v9391
    %v9393 = vpop.f32.mrf.mxu0
    %v9394 = vadd.f32 %v8987, %v9393
    %v9395 = vpop.f32.mrf.mxu0
    %v9396 = vand.u32 %v205, 4294901760
    %v9397 = vsub.f32 %v205, %v9396
    %v9398 = vand.u32 %v9397, 4294901760
    %9399 = vmatprep.mubr.f32.mxu0 %v9398
    %v9400 = vand.u32 %v204, 4294901760
    %v9401 = vsub.f32 %v204, %v9400
    %v9402 = vand.u32 %v9401, 4294901760
    %9403 = vmatmul.mubr.f32.gmra.mxu0 %v9402
    %v9404 = vpop.f32.mrf.mxu0
    %v9405 = vadd.f32 %v8996, %v9404
    %v9406 = vpop.f32.mrf.mxu0
    %v9407 = vand.u32 %v207, 4294901760
    %v9408 = vsub.f32 %v207, %v9407
    %v9409 = vand.u32 %v9408, 4294901760
    %9410 = vmatprep.mubr.f32.mxu0 %v9409
    %v9411 = vand.u32 %v206, 4294901760
    %v9412 = vsub.f32 %v206, %v9411
    %v9413 = vand.u32 %v9412, 4294901760
    %9414 = vmatmul.mubr.f32.gmra.mxu0 %v9413
    %v9415 = vpop.f32.mrf.mxu0
    %v9416 = vadd.f32 %v9005, %v9415
    %v9417 = vpop.f32.mrf.mxu0
    %v9418 = vand.u32 %v209, 4294901760
    %v9419 = vsub.f32 %v209, %v9418
    %v9420 = vand.u32 %v9419, 4294901760
    %9421 = vmatprep.mubr.f32.mxu0 %v9420
    %v9422 = vand.u32 %v208, 4294901760
    %v9423 = vsub.f32 %v208, %v9422
    %v9424 = vand.u32 %v9423, 4294901760
    %9425 = vmatmul.mubr.f32.gmra.mxu0 %v9424
    %v9426 = vpop.f32.mrf.mxu0
    %v9427 = vadd.f32 %v9014, %v9426
    %v9428 = vpop.f32.mrf.mxu0
    %v9429 = vand.u32 %v211, 4294901760
    %v9430 = vsub.f32 %v211, %v9429
    %v9431 = vand.u32 %v9430, 4294901760
    %9432 = vmatprep.mubr.f32.mxu0 %v9431
    %v9433 = vand.u32 %v210, 4294901760
    %v9434 = vsub.f32 %v210, %v9433
    %v9435 = vand.u32 %v9434, 4294901760
    %9436 = vmatmul.mubr.f32.gmra.mxu0 %v9435
    %v9437 = vpop.f32.mrf.mxu0
    %v9438 = vadd.f32 %v9023, %v9437
    %v9439 = vpop.f32.mrf.mxu0
    %v9440 = vand.u32 %v213, 4294901760
    %v9441 = vsub.f32 %v213, %v9440
    %v9442 = vand.u32 %v9441, 4294901760
    %9443 = vmatprep.mubr.f32.mxu0 %v9442
    %v9444 = vand.u32 %v212, 4294901760
    %v9445 = vsub.f32 %v212, %v9444
    %v9446 = vand.u32 %v9445, 4294901760
    %9447 = vmatmul.mubr.f32.gmra.mxu0 %v9446
    %v9448 = vpop.f32.mrf.mxu0
    %v9449 = vadd.f32 %v9032, %v9448
    %v9450 = vpop.f32.mrf.mxu0
    %v9451 = vand.u32 %v215, 4294901760
    %v9452 = vsub.f32 %v215, %v9451
    %v9453 = vand.u32 %v9452, 4294901760
    %9454 = vmatprep.mubr.f32.mxu0 %v9453
    %v9455 = vand.u32 %v214, 4294901760
    %v9456 = vsub.f32 %v214, %v9455
    %v9457 = vand.u32 %v9456, 4294901760
    %9458 = vmatmul.mubr.f32.gmra.mxu0 %v9457
    %v9459 = vpop.f32.mrf.mxu0
    %v9460 = vadd.f32 %v9041, %v9459
    %v9461 = vpop.f32.mrf.mxu0
    %v9462 = vand.u32 %v217, 4294901760
    %v9463 = vsub.f32 %v217, %v9462
    %v9464 = vand.u32 %v9463, 4294901760
    %9465 = vmatprep.mubr.f32.mxu0 %v9464
    %v9466 = vand.u32 %v216, 4294901760
    %v9467 = vsub.f32 %v216, %v9466
    %v9468 = vand.u32 %v9467, 4294901760
    %9469 = vmatmul.mubr.f32.gmra.mxu0 %v9468
    %v9470 = vpop.f32.mrf.mxu0
    %v9471 = vadd.f32 %v9050, %v9470
    %v9472 = vpop.f32.mrf.mxu0
    %v9473 = vand.u32 %v219, 4294901760
    %v9474 = vsub.f32 %v219, %v9473
    %v9475 = vand.u32 %v9474, 4294901760
    %9476 = vmatprep.mubr.f32.mxu0 %v9475
    %v9477 = vand.u32 %v218, 4294901760
    %v9478 = vsub.f32 %v218, %v9477
    %v9479 = vand.u32 %v9478, 4294901760
    %9480 = vmatmul.mubr.f32.gmra.mxu0 %v9479
    %v9481 = vpop.f32.mrf.mxu0
    %v9482 = vadd.f32 %v9059, %v9481
    %v9483 = vpop.f32.mrf.mxu0
    %v9484 = vand.u32 %v221, 4294901760
    %v9485 = vsub.f32 %v221, %v9484
    %v9486 = vand.u32 %v9485, 4294901760
    %9487 = vmatprep.mubr.f32.mxu0 %v9486
    %v9488 = vand.u32 %v220, 4294901760
    %v9489 = vsub.f32 %v220, %v9488
    %v9490 = vand.u32 %v9489, 4294901760
    %9491 = vmatmul.mubr.f32.gmra.mxu0 %v9490
    %v9492 = vpop.f32.mrf.mxu0
    %v9493 = vadd.f32 %v9068, %v9492
    %v9494 = vpop.f32.mrf.mxu0
    %v9495 = vand.u32 %v223, 4294901760
    %v9496 = vsub.f32 %v223, %v9495
    %v9497 = vand.u32 %v9496, 4294901760
    %9498 = vmatprep.mubr.f32.mxu0 %v9497
    %v9499 = vand.u32 %v222, 4294901760
    %v9500 = vsub.f32 %v222, %v9499
    %v9501 = vand.u32 %v9500, 4294901760
    %9502 = vmatmul.mubr.f32.gmra.mxu0 %v9501
    %v9503 = vpop.f32.mrf.mxu0
    %v9504 = vadd.f32 %v9077, %v9503
    %v9505 = vpop.f32.mrf.mxu0
    %v9506 = vand.u32 %v225, 4294901760
    %v9507 = vsub.f32 %v225, %v9506
    %v9508 = vand.u32 %v9507, 4294901760
    %9509 = vmatprep.mubr.f32.mxu0 %v9508
    %v9510 = vand.u32 %v224, 4294901760
    %v9511 = vsub.f32 %v224, %v9510
    %v9512 = vand.u32 %v9511, 4294901760
    %9513 = vmatmul.mubr.f32.gmra.mxu0 %v9512
    %v9514 = vpop.f32.mrf.mxu0
    %v9515 = vadd.f32 %v9086, %v9514
    %v9516 = vpop.f32.mrf.mxu0
    %v9517 = vand.u32 %v227, 4294901760
    %v9518 = vsub.f32 %v227, %v9517
    %v9519 = vand.u32 %v9518, 4294901760
    %9520 = vmatprep.mubr.f32.mxu0 %v9519
    %v9521 = vand.u32 %v226, 4294901760
    %v9522 = vsub.f32 %v226, %v9521
    %v9523 = vand.u32 %v9522, 4294901760
    %9524 = vmatmul.mubr.f32.gmra.mxu0 %v9523
    %v9525 = vpop.f32.mrf.mxu0
    %v9526 = vadd.f32 %v9095, %v9525
    %v9527 = vpop.f32.mrf.mxu0
    %v9528 = vand.u32 %v229, 4294901760
    %v9529 = vsub.f32 %v229, %v9528
    %v9530 = vand.u32 %v9529, 4294901760
    %9531 = vmatprep.mubr.f32.mxu0 %v9530
    %v9532 = vand.u32 %v228, 4294901760
    %v9533 = vsub.f32 %v228, %v9532
    %v9534 = vand.u32 %v9533, 4294901760
    %9535 = vmatmul.mubr.f32.gmra.mxu0 %v9534
    %v9536 = vpop.f32.mrf.mxu0
    %v9537 = vadd.f32 %v9104, %v9536
    %v9538 = vpop.f32.mrf.mxu0
    %v9539 = vand.u32 %v231, 4294901760
    %v9540 = vsub.f32 %v231, %v9539
    %v9541 = vand.u32 %v9540, 4294901760
    %9542 = vmatprep.mubr.f32.mxu0 %v9541
    %v9543 = vand.u32 %v230, 4294901760
    %v9544 = vsub.f32 %v230, %v9543
    %v9545 = vand.u32 %v9544, 4294901760
    %9546 = vmatmul.mubr.f32.gmra.mxu0 %v9545
    %v9547 = vpop.f32.mrf.mxu0
    %v9548 = vadd.f32 %v9113, %v9547
    %v9549 = vpop.f32.mrf.mxu0
    %v9550 = vand.u32 %v233, 4294901760
    %v9551 = vsub.f32 %v233, %v9550
    %v9552 = vand.u32 %v9551, 4294901760
    %9553 = vmatprep.mubr.f32.mxu0 %v9552
    %v9554 = vand.u32 %v232, 4294901760
    %v9555 = vsub.f32 %v232, %v9554
    %v9556 = vand.u32 %v9555, 4294901760
    %9557 = vmatmul.mubr.f32.gmra.mxu0 %v9556
    %v9558 = vpop.f32.mrf.mxu0
    %v9559 = vadd.f32 %v9122, %v9558
    %v9560 = vpop.f32.mrf.mxu0
    %v9561 = vand.u32 %v235, 4294901760
    %v9562 = vsub.f32 %v235, %v9561
    %v9563 = vand.u32 %v9562, 4294901760
    %9564 = vmatprep.mubr.f32.mxu0 %v9563
    %v9565 = vand.u32 %v234, 4294901760
    %v9566 = vsub.f32 %v234, %v9565
    %v9567 = vand.u32 %v9566, 4294901760
    %9568 = vmatmul.mubr.f32.gmra.mxu0 %v9567
    %v9569 = vpop.f32.mrf.mxu0
    %v9570 = vadd.f32 %v9131, %v9569
    %v9571 = vpop.f32.mrf.mxu0
    %v9572 = vand.u32 %v237, 4294901760
    %v9573 = vsub.f32 %v237, %v9572
    %v9574 = vand.u32 %v9573, 4294901760
    %9575 = vmatprep.mubr.f32.mxu0 %v9574
    %v9576 = vand.u32 %v236, 4294901760
    %v9577 = vsub.f32 %v236, %v9576
    %v9578 = vand.u32 %v9577, 4294901760
    %9579 = vmatmul.mubr.f32.gmra.mxu0 %v9578
    %v9580 = vpop.f32.mrf.mxu0
    %v9581 = vadd.f32 %v9140, %v9580
    %v9582 = vpop.f32.mrf.mxu0
    %v9583 = vand.u32 %v239, 4294901760
    %v9584 = vsub.f32 %v239, %v9583
    %v9585 = vand.u32 %v9584, 4294901760
    %9586 = vmatprep.mubr.f32.mxu0 %v9585
    %v9587 = vand.u32 %v238, 4294901760
    %v9588 = vsub.f32 %v238, %v9587
    %v9589 = vand.u32 %v9588, 4294901760
    %9590 = vmatmul.mubr.f32.gmra.mxu0 %v9589
    %v9591 = vpop.f32.mrf.mxu0
    %v9592 = vadd.f32 %v9149, %v9591
    %v9593 = vpop.f32.mrf.mxu0
    %v9594 = vand.u32 %v241, 4294901760
    %v9595 = vsub.f32 %v241, %v9594
    %v9596 = vand.u32 %v9595, 4294901760
    %9597 = vmatprep.mubr.f32.mxu0 %v9596
    %v9598 = vand.u32 %v240, 4294901760
    %v9599 = vsub.f32 %v240, %v9598
    %v9600 = vand.u32 %v9599, 4294901760
    %9601 = vmatmul.mubr.f32.gmra.mxu0 %v9600
    %v9602 = vpop.f32.mrf.mxu0
    %v9603 = vadd.f32 %v9158, %v9602
    %v9604 = vpop.f32.mrf.mxu0
    %v9605 = vand.u32 %v243, 4294901760
    %v9606 = vsub.f32 %v243, %v9605
    %v9607 = vand.u32 %v9606, 4294901760
    %9608 = vmatprep.mubr.f32.mxu0 %v9607
    %v9609 = vand.u32 %v242, 4294901760
    %v9610 = vsub.f32 %v242, %v9609
    %v9611 = vand.u32 %v9610, 4294901760
    %9612 = vmatmul.mubr.f32.gmra.mxu0 %v9611
    %v9613 = vpop.f32.mrf.mxu0
    %v9614 = vadd.f32 %v9167, %v9613
    %v9615 = vpop.f32.mrf.mxu0
    %v9616 = vand.u32 %v245, 4294901760
    %v9617 = vsub.f32 %v245, %v9616
    %v9618 = vand.u32 %v9617, 4294901760
    %9619 = vmatprep.mubr.f32.mxu0 %v9618
    %v9620 = vand.u32 %v244, 4294901760
    %v9621 = vsub.f32 %v244, %v9620
    %v9622 = vand.u32 %v9621, 4294901760
    %9623 = vmatmul.mubr.f32.gmra.mxu0 %v9622
    %v9624 = vpop.f32.mrf.mxu0
    %v9625 = vadd.f32 %v9176, %v9624
    %v9626 = vpop.f32.mrf.mxu0
    %9627 = vdwg.mxu0
    %9628 = vmatprep.subr.mxu0 0.0
    %v9629 = vand.u32 %v7602, 4294901760
    %v9630 = vsub.f32 %v7602, %v9629
    %v9631 = vand.u32 %v9630, 4294901760
    %9632 = vmatpush1.msra.mxu0 %v9631
    %9633 = vmatprep.subr.mxu0 0.0
    %v9634 = vand.u32 %v7599, 4294901760
    %v9635 = vsub.f32 %v7599, %v9634
    %v9636 = vand.u32 %v9635, 4294901760
    %9637 = vmatpush1.msra.mxu0 %v9636
    %9638 = vmatprep.subr.mxu0 0.0
    %v9639 = vand.u32 %v7594, 4294901760
    %v9640 = vsub.f32 %v7594, %v9639
    %v9641 = vand.u32 %v9640, 4294901760
    %9642 = vmatpush1.msra.mxu0 %v9641
    %9643 = vmatprep.subr.mxu0 0.0
    %v9644 = vand.u32 %v7591, 4294901760
    %v9645 = vsub.f32 %v7591, %v9644
    %v9646 = vand.u32 %v9645, 4294901760
    %9647 = vmatpush1.msra.mxu0 %v9646
    %9648 = vmatprep.subr.mxu0 0.0
    %v9649 = vand.u32 %v7586, 4294901760
    %v9650 = vsub.f32 %v7586, %v9649
    %v9651 = vand.u32 %v9650, 4294901760
    %9652 = vmatpush1.msra.mxu0 %v9651
    %9653 = vmatprep.subr.mxu0 0.0
    %v9654 = vand.u32 %v7583, 4294901760
    %v9655 = vsub.f32 %v7583, %v9654
    %v9656 = vand.u32 %v9655, 4294901760
    %9657 = vmatpush1.msra.mxu0 %v9656
    %9658 = vmatprep.subr.mxu0 0.0
    %v9659 = vand.u32 %v7578, 4294901760
    %v9660 = vsub.f32 %v7578, %v9659
    %v9661 = vand.u32 %v9660, 4294901760
    %9662 = vmatpush1.msra.mxu0 %v9661
    %9663 = vmatprep.subr.mxu0 0.0
    %v9664 = vand.u32 %v7575, 4294901760
    %v9665 = vsub.f32 %v7575, %v9664
    %v9666 = vand.u32 %v9665, 4294901760
    %9667 = vmatpush1.msra.mxu0 %v9666
    %9668 = vmatprep.subr.mxu0 0.0
    %v9669 = vand.u32 %v7570, 4294901760
    %v9670 = vsub.f32 %v7570, %v9669
    %v9671 = vand.u32 %v9670, 4294901760
    %9672 = vmatpush1.msra.mxu0 %v9671
    %9673 = vmatprep.subr.mxu0 0.0
    %v9674 = vand.u32 %v7567, 4294901760
    %v9675 = vsub.f32 %v7567, %v9674
    %v9676 = vand.u32 %v9675, 4294901760
    %9677 = vmatpush1.msra.mxu0 %v9676
    %9678 = vmatprep.subr.mxu0 0.0
    %v9679 = vand.u32 %v7562, 4294901760
    %v9680 = vsub.f32 %v7562, %v9679
    %v9681 = vand.u32 %v9680, 4294901760
    %9682 = vmatpush1.msra.mxu0 %v9681
    %9683 = vmatprep.subr.mxu0 0.0
    %v9684 = vand.u32 %v7559, 4294901760
    %v9685 = vsub.f32 %v7559, %v9684
    %v9686 = vand.u32 %v9685, 4294901760
    %9687 = vmatpush1.msra.mxu0 %v9686
    %9688 = vmatprep.subr.mxu0 0.0
    %v9689 = vand.u32 %v7554, 4294901760
    %v9690 = vsub.f32 %v7554, %v9689
    %v9691 = vand.u32 %v9690, 4294901760
    %9692 = vmatpush1.msra.mxu0 %v9691
    %9693 = vmatprep.subr.mxu0 0.0
    %v9694 = vand.u32 %v7551, 4294901760
    %v9695 = vsub.f32 %v7551, %v9694
    %v9696 = vand.u32 %v9695, 4294901760
    %9697 = vmatpush1.msra.mxu0 %v9696
    %9698 = vmatprep.subr.mxu0 0.0
    %v9699 = vand.u32 %v7546, 4294901760
    %v9700 = vsub.f32 %v7546, %v9699
    %v9701 = vand.u32 %v9700, 4294901760
    %9702 = vmatpush1.msra.mxu0 %v9701
    %9703 = vmatprep.subr.mxu0 0.0
    %v9704 = vand.u32 %v7543, 4294901760
    %v9705 = vsub.f32 %v7543, %v9704
    %v9706 = vand.u32 %v9705, 4294901760
    %9707 = vmatpush1.msra.mxu0 %v9706
    %9708 = vmatprep.subr.mxu0 0.0
    %v9709 = vand.u32 %v7666, 4294901760
    %v9710 = vsub.f32 %v7666, %v9709
    %v9711 = vand.u32 %v9710, 4294901760
    %9712 = vmatpush2.msra.mxu0 %v9711
    %9713 = vmatprep.subr.mxu0 0.0
    %v9714 = vand.u32 %v7663, 4294901760
    %v9715 = vsub.f32 %v7663, %v9714
    %v9716 = vand.u32 %v9715, 4294901760
    %9717 = vmatpush2.msra.mxu0 %v9716
    %9718 = vmatprep.subr.mxu0 0.0
    %v9719 = vand.u32 %v7658, 4294901760
    %v9720 = vsub.f32 %v7658, %v9719
    %v9721 = vand.u32 %v9720, 4294901760
    %9722 = vmatpush2.msra.mxu0 %v9721
    %9723 = vmatprep.subr.mxu0 0.0
    %v9724 = vand.u32 %v7655, 4294901760
    %v9725 = vsub.f32 %v7655, %v9724
    %v9726 = vand.u32 %v9725, 4294901760
    %9727 = vmatpush2.msra.mxu0 %v9726
    %9728 = vmatprep.subr.mxu0 0.0
    %v9729 = vand.u32 %v7650, 4294901760
    %v9730 = vsub.f32 %v7650, %v9729
    %v9731 = vand.u32 %v9730, 4294901760
    %9732 = vmatpush2.msra.mxu0 %v9731
    %9733 = vmatprep.subr.mxu0 0.0
    %v9734 = vand.u32 %v7647, 4294901760
    %v9735 = vsub.f32 %v7647, %v9734
    %v9736 = vand.u32 %v9735, 4294901760
    %9737 = vmatpush2.msra.mxu0 %v9736
    %9738 = vmatprep.subr.mxu0 0.0
    %v9739 = vand.u32 %v7642, 4294901760
    %v9740 = vsub.f32 %v7642, %v9739
    %v9741 = vand.u32 %v9740, 4294901760
    %9742 = vmatpush2.msra.mxu0 %v9741
    %9743 = vmatprep.subr.mxu0 0.0
    %v9744 = vand.u32 %v7639, 4294901760
    %v9745 = vsub.f32 %v7639, %v9744
    %v9746 = vand.u32 %v9745, 4294901760
    %9747 = vmatpush2.msra.mxu0 %v9746
    %9748 = vmatprep.subr.mxu0 0.0
    %v9749 = vand.u32 %v7634, 4294901760
    %v9750 = vsub.f32 %v7634, %v9749
    %v9751 = vand.u32 %v9750, 4294901760
    %9752 = vmatpush2.msra.mxu0 %v9751
    %9753 = vmatprep.subr.mxu0 0.0
    %v9754 = vand.u32 %v7631, 4294901760
    %v9755 = vsub.f32 %v7631, %v9754
    %v9756 = vand.u32 %v9755, 4294901760
    %9757 = vmatpush2.msra.mxu0 %v9756
    %9758 = vmatprep.subr.mxu0 0.0
    %v9759 = vand.u32 %v7626, 4294901760
    %v9760 = vsub.f32 %v7626, %v9759
    %v9761 = vand.u32 %v9760, 4294901760
    %9762 = vmatpush2.msra.mxu0 %v9761
    %9763 = vmatprep.subr.mxu0 0.0
    %v9764 = vand.u32 %v7623, 4294901760
    %v9765 = vsub.f32 %v7623, %v9764
    %v9766 = vand.u32 %v9765, 4294901760
    %9767 = vmatpush2.msra.mxu0 %v9766
    %9768 = vmatprep.subr.mxu0 0.0
    %v9769 = vand.u32 %v7618, 4294901760
    %v9770 = vsub.f32 %v7618, %v9769
    %v9771 = vand.u32 %v9770, 4294901760
    %9772 = vmatpush2.msra.mxu0 %v9771
    %9773 = vmatprep.subr.mxu0 0.0
    %v9774 = vand.u32 %v7615, 4294901760
    %v9775 = vsub.f32 %v7615, %v9774
    %v9776 = vand.u32 %v9775, 4294901760
    %9777 = vmatpush2.msra.mxu0 %v9776
    %9778 = vmatprep.subr.mxu0 0.0
    %v9779 = vand.u32 %v7610, 4294901760
    %v9780 = vsub.f32 %v7610, %v9779
    %v9781 = vand.u32 %v9780, 4294901760
    %9782 = vmatpush2.msra.mxu0 %v9781
    %9783 = vmatprep.subr.mxu0 0.0
    %v9784 = vand.u32 %v7607, 4294901760
    %v9785 = vsub.f32 %v7607, %v9784
    %v9786 = vand.u32 %v9785, 4294901760
    %9787 = vmatpush2.msra.mxu0 %v9786
    %v9788 = vand.u32 %v183, 4294901760
    %9789 = vmatprep.mubr.f32.mxu0 %v9788
    %v9790 = vand.u32 %v182, 4294901760
    %9791 = vmatmul.mubr.f32.gmra.mxu0 %v9790
    %v9792 = vpop.f32.mrf.mxu0
    %v9793 = vadd.f32 %v9284, %v9792
    %v9794 = vpop.f32.mrf.mxu0
    %v9795 = vand.u32 %v185, 4294901760
    %9796 = vmatprep.mubr.f32.mxu0 %v9795
    %v9797 = vand.u32 %v184, 4294901760
    %9798 = vmatmul.mubr.f32.gmra.mxu0 %v9797
    %v9799 = vpop.f32.mrf.mxu0
    %v9800 = vadd.f32 %v9295, %v9799
    %v9801 = vpop.f32.mrf.mxu0
    %v9802 = vand.u32 %v187, 4294901760
    %9803 = vmatprep.mubr.f32.mxu0 %v9802
    %v9804 = vand.u32 %v186, 4294901760
    %9805 = vmatmul.mubr.f32.gmra.mxu0 %v9804
    %v9806 = vpop.f32.mrf.mxu0
    %v9807 = vadd.f32 %v9306, %v9806
    %v9808 = vpop.f32.mrf.mxu0
    %v9809 = vand.u32 %v189, 4294901760
    %9810 = vmatprep.mubr.f32.mxu0 %v9809
    %v9811 = vand.u32 %v188, 4294901760
    %9812 = vmatmul.mubr.f32.gmra.mxu0 %v9811
    %v9813 = vpop.f32.mrf.mxu0
    %v9814 = vadd.f32 %v9317, %v9813
    %v9815 = vpop.f32.mrf.mxu0
    %v9816 = vand.u32 %v191, 4294901760
    %9817 = vmatprep.mubr.f32.mxu0 %v9816
    %v9818 = vand.u32 %v190, 4294901760
    %9819 = vmatmul.mubr.f32.gmra.mxu0 %v9818
    %v9820 = vpop.f32.mrf.mxu0
    %v9821 = vadd.f32 %v9328, %v9820
    %v9822 = vpop.f32.mrf.mxu0
    %v9823 = vand.u32 %v193, 4294901760
    %9824 = vmatprep.mubr.f32.mxu0 %v9823
    %v9825 = vand.u32 %v192, 4294901760
    %9826 = vmatmul.mubr.f32.gmra.mxu0 %v9825
    %v9827 = vpop.f32.mrf.mxu0
    %v9828 = vadd.f32 %v9339, %v9827
    %v9829 = vpop.f32.mrf.mxu0
    %v9830 = vand.u32 %v195, 4294901760
    %9831 = vmatprep.mubr.f32.mxu0 %v9830
    %v9832 = vand.u32 %v194, 4294901760
    %9833 = vmatmul.mubr.f32.gmra.mxu0 %v9832
    %v9834 = vpop.f32.mrf.mxu0
    %v9835 = vadd.f32 %v9350, %v9834
    %v9836 = vpop.f32.mrf.mxu0
    %v9837 = vand.u32 %v197, 4294901760
    %9838 = vmatprep.mubr.f32.mxu0 %v9837
    %v9839 = vand.u32 %v196, 4294901760
    %9840 = vmatmul.mubr.f32.gmra.mxu0 %v9839
    %v9841 = vpop.f32.mrf.mxu0
    %v9842 = vadd.f32 %v9361, %v9841
    %v9843 = vpop.f32.mrf.mxu0
    %v9844 = vand.u32 %v199, 4294901760
    %9845 = vmatprep.mubr.f32.mxu0 %v9844
    %v9846 = vand.u32 %v198, 4294901760
    %9847 = vmatmul.mubr.f32.gmra.mxu0 %v9846
    %v9848 = vpop.f32.mrf.mxu0
    %v9849 = vadd.f32 %v9372, %v9848
    %v9850 = vpop.f32.mrf.mxu0
    %v9851 = vand.u32 %v201, 4294901760
    %9852 = vmatprep.mubr.f32.mxu0 %v9851
    %v9853 = vand.u32 %v200, 4294901760
    %9854 = vmatmul.mubr.f32.gmra.mxu0 %v9853
    %v9855 = vpop.f32.mrf.mxu0
    %v9856 = vadd.f32 %v9383, %v9855
    %v9857 = vpop.f32.mrf.mxu0
    %v9858 = vand.u32 %v203, 4294901760
    %9859 = vmatprep.mubr.f32.mxu0 %v9858
    %v9860 = vand.u32 %v202, 4294901760
    %9861 = vmatmul.mubr.f32.gmra.mxu0 %v9860
    %v9862 = vpop.f32.mrf.mxu0
    %v9863 = vadd.f32 %v9394, %v9862
    %v9864 = vpop.f32.mrf.mxu0
    %v9865 = vand.u32 %v205, 4294901760
    %9866 = vmatprep.mubr.f32.mxu0 %v9865
    %v9867 = vand.u32 %v204, 4294901760
    %9868 = vmatmul.mubr.f32.gmra.mxu0 %v9867
    %v9869 = vpop.f32.mrf.mxu0
    %v9870 = vadd.f32 %v9405, %v9869
    %v9871 = vpop.f32.mrf.mxu0
    %v9872 = vand.u32 %v207, 4294901760
    %9873 = vmatprep.mubr.f32.mxu0 %v9872
    %v9874 = vand.u32 %v206, 4294901760
    %9875 = vmatmul.mubr.f32.gmra.mxu0 %v9874
    %v9876 = vpop.f32.mrf.mxu0
    %v9877 = vadd.f32 %v9416, %v9876
    %v9878 = vpop.f32.mrf.mxu0
    %v9879 = vand.u32 %v209, 4294901760
    %9880 = vmatprep.mubr.f32.mxu0 %v9879
    %v9881 = vand.u32 %v208, 4294901760
    %9882 = vmatmul.mubr.f32.gmra.mxu0 %v9881
    %v9883 = vpop.f32.mrf.mxu0
    %v9884 = vadd.f32 %v9427, %v9883
    %v9885 = vpop.f32.mrf.mxu0
    %v9886 = vand.u32 %v211, 4294901760
    %9887 = vmatprep.mubr.f32.mxu0 %v9886
    %v9888 = vand.u32 %v210, 4294901760
    %9889 = vmatmul.mubr.f32.gmra.mxu0 %v9888
    %v9890 = vpop.f32.mrf.mxu0
    %v9891 = vadd.f32 %v9438, %v9890
    %v9892 = vpop.f32.mrf.mxu0
    %v9893 = vand.u32 %v213, 4294901760
    %9894 = vmatprep.mubr.f32.mxu0 %v9893
    %v9895 = vand.u32 %v212, 4294901760
    %9896 = vmatmul.mubr.f32.gmra.mxu0 %v9895
    %v9897 = vpop.f32.mrf.mxu0
    %v9898 = vadd.f32 %v9449, %v9897
    %v9899 = vpop.f32.mrf.mxu0
    %v9900 = vand.u32 %v215, 4294901760
    %9901 = vmatprep.mubr.f32.mxu0 %v9900
    %v9902 = vand.u32 %v214, 4294901760
    %9903 = vmatmul.mubr.f32.gmra.mxu0 %v9902
    %v9904 = vpop.f32.mrf.mxu0
    %v9905 = vadd.f32 %v9460, %v9904
    %v9906 = vpop.f32.mrf.mxu0
    %v9907 = vand.u32 %v217, 4294901760
    %9908 = vmatprep.mubr.f32.mxu0 %v9907
    %v9909 = vand.u32 %v216, 4294901760
    %9910 = vmatmul.mubr.f32.gmra.mxu0 %v9909
    %v9911 = vpop.f32.mrf.mxu0
    %v9912 = vadd.f32 %v9471, %v9911
    %v9913 = vpop.f32.mrf.mxu0
    %v9914 = vand.u32 %v219, 4294901760
    %9915 = vmatprep.mubr.f32.mxu0 %v9914
    %v9916 = vand.u32 %v218, 4294901760
    %9917 = vmatmul.mubr.f32.gmra.mxu0 %v9916
    %v9918 = vpop.f32.mrf.mxu0
    %v9919 = vadd.f32 %v9482, %v9918
    %v9920 = vpop.f32.mrf.mxu0
    %v9921 = vand.u32 %v221, 4294901760
    %9922 = vmatprep.mubr.f32.mxu0 %v9921
    %v9923 = vand.u32 %v220, 4294901760
    %9924 = vmatmul.mubr.f32.gmra.mxu0 %v9923
    %v9925 = vpop.f32.mrf.mxu0
    %v9926 = vadd.f32 %v9493, %v9925
    %v9927 = vpop.f32.mrf.mxu0
    %v9928 = vand.u32 %v223, 4294901760
    %9929 = vmatprep.mubr.f32.mxu0 %v9928
    %v9930 = vand.u32 %v222, 4294901760
    %9931 = vmatmul.mubr.f32.gmra.mxu0 %v9930
    %v9932 = vpop.f32.mrf.mxu0
    %v9933 = vadd.f32 %v9504, %v9932
    %v9934 = vpop.f32.mrf.mxu0
    %v9935 = vand.u32 %v225, 4294901760
    %9936 = vmatprep.mubr.f32.mxu0 %v9935
    %v9937 = vand.u32 %v224, 4294901760
    %9938 = vmatmul.mubr.f32.gmra.mxu0 %v9937
    %v9939 = vpop.f32.mrf.mxu0
    %v9940 = vadd.f32 %v9515, %v9939
    %v9941 = vpop.f32.mrf.mxu0
    %v9942 = vand.u32 %v227, 4294901760
    %9943 = vmatprep.mubr.f32.mxu0 %v9942
    %v9944 = vand.u32 %v226, 4294901760
    %9945 = vmatmul.mubr.f32.gmra.mxu0 %v9944
    %v9946 = vpop.f32.mrf.mxu0
    %v9947 = vadd.f32 %v9526, %v9946
    %v9948 = vpop.f32.mrf.mxu0
    %v9949 = vand.u32 %v229, 4294901760
    %9950 = vmatprep.mubr.f32.mxu0 %v9949
    %v9951 = vand.u32 %v228, 4294901760
    %9952 = vmatmul.mubr.f32.gmra.mxu0 %v9951
    %v9953 = vpop.f32.mrf.mxu0
    %v9954 = vadd.f32 %v9537, %v9953
    %v9955 = vpop.f32.mrf.mxu0
    %v9956 = vand.u32 %v231, 4294901760
    %9957 = vmatprep.mubr.f32.mxu0 %v9956
    %v9958 = vand.u32 %v230, 4294901760
    %9959 = vmatmul.mubr.f32.gmra.mxu0 %v9958
    %v9960 = vpop.f32.mrf.mxu0
    %v9961 = vadd.f32 %v9548, %v9960
    %v9962 = vpop.f32.mrf.mxu0
    %v9963 = vand.u32 %v233, 4294901760
    %9964 = vmatprep.mubr.f32.mxu0 %v9963
    %v9965 = vand.u32 %v232, 4294901760
    %9966 = vmatmul.mubr.f32.gmra.mxu0 %v9965
    %v9967 = vpop.f32.mrf.mxu0
    %v9968 = vadd.f32 %v9559, %v9967
    %v9969 = vpop.f32.mrf.mxu0
    %v9970 = vand.u32 %v235, 4294901760
    %9971 = vmatprep.mubr.f32.mxu0 %v9970
    %v9972 = vand.u32 %v234, 4294901760
    %9973 = vmatmul.mubr.f32.gmra.mxu0 %v9972
    %v9974 = vpop.f32.mrf.mxu0
    %v9975 = vadd.f32 %v9570, %v9974
    %v9976 = vpop.f32.mrf.mxu0
    %v9977 = vand.u32 %v237, 4294901760
    %9978 = vmatprep.mubr.f32.mxu0 %v9977
    %v9979 = vand.u32 %v236, 4294901760
    %9980 = vmatmul.mubr.f32.gmra.mxu0 %v9979
    %v9981 = vpop.f32.mrf.mxu0
    %v9982 = vadd.f32 %v9581, %v9981
    %v9983 = vpop.f32.mrf.mxu0
    %v9984 = vand.u32 %v239, 4294901760
    %9985 = vmatprep.mubr.f32.mxu0 %v9984
    %v9986 = vand.u32 %v238, 4294901760
    %9987 = vmatmul.mubr.f32.gmra.mxu0 %v9986
    %v9988 = vpop.f32.mrf.mxu0
    %v9989 = vadd.f32 %v9592, %v9988
    %v9990 = vpop.f32.mrf.mxu0
    %v9991 = vand.u32 %v241, 4294901760
    %9992 = vmatprep.mubr.f32.mxu0 %v9991
    %v9993 = vand.u32 %v240, 4294901760
    %9994 = vmatmul.mubr.f32.gmra.mxu0 %v9993
    %v9995 = vpop.f32.mrf.mxu0
    %v9996 = vadd.f32 %v9603, %v9995
    %v9997 = vpop.f32.mrf.mxu0
    %v9998 = vand.u32 %v243, 4294901760
    %9999 = vmatprep.mubr.f32.mxu0 %v9998
    %v10000 = vand.u32 %v242, 4294901760
    %10001 = vmatmul.mubr.f32.gmra.mxu0 %v10000
    %v10002 = vpop.f32.mrf.mxu0
    %v10003 = vadd.f32 %v9614, %v10002
    %v10004 = vpop.f32.mrf.mxu0
    %v10005 = vand.u32 %v245, 4294901760
    %10006 = vmatprep.mubr.f32.mxu0 %v10005
    %v10007 = vand.u32 %v244, 4294901760
    %10008 = vmatmul.mubr.f32.gmra.mxu0 %v10007
    %v10009 = vpop.f32.mrf.mxu0
    %v10010 = vadd.f32 %v9625, %v10009
    %v10011 = vpop.f32.mrf.mxu0
    %10012 = vdwg.mxu0
    %10013 = vmatprep.subr.mxu0 0.0
    %v10014 = vand.u32 %v7602, 4294901760
    %10015 = vmatpush1.msra.mxu0 %v10014
    %10016 = vmatprep.subr.mxu0 0.0
    %v10017 = vand.u32 %v7599, 4294901760
    %10018 = vmatpush1.msra.mxu0 %v10017
    %10019 = vmatprep.subr.mxu0 0.0
    %v10020 = vand.u32 %v7594, 4294901760
    %10021 = vmatpush1.msra.mxu0 %v10020
    %10022 = vmatprep.subr.mxu0 0.0
    %v10023 = vand.u32 %v7591, 4294901760
    %10024 = vmatpush1.msra.mxu0 %v10023
    %10025 = vmatprep.subr.mxu0 0.0
    %v10026 = vand.u32 %v7586, 4294901760
    %10027 = vmatpush1.msra.mxu0 %v10026
    %10028 = vmatprep.subr.mxu0 0.0
    %v10029 = vand.u32 %v7583, 4294901760
    %10030 = vmatpush1.msra.mxu0 %v10029
    %10031 = vmatprep.subr.mxu0 0.0
    %v10032 = vand.u32 %v7578, 4294901760
    %10033 = vmatpush1.msra.mxu0 %v10032
    %10034 = vmatprep.subr.mxu0 0.0
    %v10035 = vand.u32 %v7575, 4294901760
    %10036 = vmatpush1.msra.mxu0 %v10035
    %10037 = vmatprep.subr.mxu0 0.0
    %v10038 = vand.u32 %v7570, 4294901760
    %10039 = vmatpush1.msra.mxu0 %v10038
    %10040 = vmatprep.subr.mxu0 0.0
    %v10041 = vand.u32 %v7567, 4294901760
    %10042 = vmatpush1.msra.mxu0 %v10041
    %10043 = vmatprep.subr.mxu0 0.0
    %v10044 = vand.u32 %v7562, 4294901760
    %10045 = vmatpush1.msra.mxu0 %v10044
    %10046 = vmatprep.subr.mxu0 0.0
    %v10047 = vand.u32 %v7559, 4294901760
    %10048 = vmatpush1.msra.mxu0 %v10047
    %10049 = vmatprep.subr.mxu0 0.0
    %v10050 = vand.u32 %v7554, 4294901760
    %10051 = vmatpush1.msra.mxu0 %v10050
    %10052 = vmatprep.subr.mxu0 0.0
    %v10053 = vand.u32 %v7551, 4294901760
    %10054 = vmatpush1.msra.mxu0 %v10053
    %10055 = vmatprep.subr.mxu0 0.0
    %v10056 = vand.u32 %v7546, 4294901760
    %10057 = vmatpush1.msra.mxu0 %v10056
    %10058 = vmatprep.subr.mxu0 0.0
    %v10059 = vand.u32 %v7543, 4294901760
    %10060 = vmatpush1.msra.mxu0 %v10059
    %10061 = vmatprep.subr.mxu0 0.0
    %v10062 = vand.u32 %v7666, 4294901760
    %10063 = vmatpush2.msra.mxu0 %v10062
    %10064 = vmatprep.subr.mxu0 0.0
    %v10065 = vand.u32 %v7663, 4294901760
    %10066 = vmatpush2.msra.mxu0 %v10065
    %10067 = vmatprep.subr.mxu0 0.0
    %v10068 = vand.u32 %v7658, 4294901760
    %10069 = vmatpush2.msra.mxu0 %v10068
    %10070 = vmatprep.subr.mxu0 0.0
    %v10071 = vand.u32 %v7655, 4294901760
    %10072 = vmatpush2.msra.mxu0 %v10071
    %10073 = vmatprep.subr.mxu0 0.0
    %v10074 = vand.u32 %v7650, 4294901760
    %10075 = vmatpush2.msra.mxu0 %v10074
    %10076 = vmatprep.subr.mxu0 0.0
    %v10077 = vand.u32 %v7647, 4294901760
    %10078 = vmatpush2.msra.mxu0 %v10077
    %10079 = vmatprep.subr.mxu0 0.0
    %v10080 = vand.u32 %v7642, 4294901760
    %10081 = vmatpush2.msra.mxu0 %v10080
    %10082 = vmatprep.subr.mxu0 0.0
    %v10083 = vand.u32 %v7639, 4294901760
    %10084 = vmatpush2.msra.mxu0 %v10083
    %10085 = vmatprep.subr.mxu0 0.0
    %v10086 = vand.u32 %v7634, 4294901760
    %10087 = vmatpush2.msra.mxu0 %v10086
    %10088 = vmatprep.subr.mxu0 0.0
    %v10089 = vand.u32 %v7631, 4294901760
    %10090 = vmatpush2.msra.mxu0 %v10089
    %10091 = vmatprep.subr.mxu0 0.0
    %v10092 = vand.u32 %v7626, 4294901760
    %10093 = vmatpush2.msra.mxu0 %v10092
    %10094 = vmatprep.subr.mxu0 0.0
    %v10095 = vand.u32 %v7623, 4294901760
    %10096 = vmatpush2.msra.mxu0 %v10095
    %10097 = vmatprep.subr.mxu0 0.0
    %v10098 = vand.u32 %v7618, 4294901760
    %10099 = vmatpush2.msra.mxu0 %v10098
    %10100 = vmatprep.subr.mxu0 0.0
    %v10101 = vand.u32 %v7615, 4294901760
    %10102 = vmatpush2.msra.mxu0 %v10101
    %10103 = vmatprep.subr.mxu0 0.0
    %v10104 = vand.u32 %v7610, 4294901760
    %10105 = vmatpush2.msra.mxu0 %v10104
    %10106 = vmatprep.subr.mxu0 0.0
    %v10107 = vand.u32 %v7607, 4294901760
    %10108 = vmatpush2.msra.mxu0 %v10107
    %v10109 = vand.u32 %v183, 4294901760
    %10110 = vmatprep.mubr.f32.mxu0 %v10109
    %v10111 = vand.u32 %v182, 4294901760
    %10112 = vmatmul.mubr.f32.gmra.mxu0 %v10111
    %v10113 = vpop.f32.mrf.mxu0
    %v10114 = vadd.f32 %v9793, %v10113
    %v10115 = vpop.f32.mrf.mxu0
    %v10116 = vand.u32 %v185, 4294901760
    %10117 = vmatprep.mubr.f32.mxu0 %v10116
    %v10118 = vand.u32 %v184, 4294901760
    %10119 = vmatmul.mubr.f32.gmra.mxu0 %v10118
    %v10120 = vpop.f32.mrf.mxu0
    %v10121 = vadd.f32 %v9800, %v10120
    %v10122 = vpop.f32.mrf.mxu0
    %v10123 = vand.u32 %v187, 4294901760
    %10124 = vmatprep.mubr.f32.mxu0 %v10123
    %v10125 = vand.u32 %v186, 4294901760
    %10126 = vmatmul.mubr.f32.gmra.mxu0 %v10125
    %v10127 = vpop.f32.mrf.mxu0
    %v10128 = vadd.f32 %v9807, %v10127
    %v10129 = vpop.f32.mrf.mxu0
    %v10130 = vand.u32 %v189, 4294901760
    %10131 = vmatprep.mubr.f32.mxu0 %v10130
    %v10132 = vand.u32 %v188, 4294901760
    %10133 = vmatmul.mubr.f32.gmra.mxu0 %v10132
    %v10134 = vpop.f32.mrf.mxu0
    %v10135 = vadd.f32 %v9814, %v10134
    %v10136 = vpop.f32.mrf.mxu0
    %v10137 = vand.u32 %v191, 4294901760
    %10138 = vmatprep.mubr.f32.mxu0 %v10137
    %v10139 = vand.u32 %v190, 4294901760
    %10140 = vmatmul.mubr.f32.gmra.mxu0 %v10139
    %v10141 = vpop.f32.mrf.mxu0
    %v10142 = vadd.f32 %v9821, %v10141
    %v10143 = vpop.f32.mrf.mxu0
    %v10144 = vand.u32 %v193, 4294901760
    %10145 = vmatprep.mubr.f32.mxu0 %v10144
    %v10146 = vand.u32 %v192, 4294901760
    %10147 = vmatmul.mubr.f32.gmra.mxu0 %v10146
    %v10148 = vpop.f32.mrf.mxu0
    %v10149 = vadd.f32 %v9828, %v10148
    %v10150 = vpop.f32.mrf.mxu0
    %v10151 = vand.u32 %v195, 4294901760
    %10152 = vmatprep.mubr.f32.mxu0 %v10151
    %v10153 = vand.u32 %v194, 4294901760
    %10154 = vmatmul.mubr.f32.gmra.mxu0 %v10153
    %v10155 = vpop.f32.mrf.mxu0
    %v10156 = vadd.f32 %v9835, %v10155
    %v10157 = vpop.f32.mrf.mxu0
    %v10158 = vand.u32 %v197, 4294901760
    %10159 = vmatprep.mubr.f32.mxu0 %v10158
    %v10160 = vand.u32 %v196, 4294901760
    %10161 = vmatmul.mubr.f32.gmra.mxu0 %v10160
    %v10162 = vpop.f32.mrf.mxu0
    %v10163 = vadd.f32 %v9842, %v10162
    %v10164 = vpop.f32.mrf.mxu0
    %v10165 = vand.u32 %v199, 4294901760
    %10166 = vmatprep.mubr.f32.mxu0 %v10165
    %v10167 = vand.u32 %v198, 4294901760
    %10168 = vmatmul.mubr.f32.gmra.mxu0 %v10167
    %v10169 = vpop.f32.mrf.mxu0
    %v10170 = vadd.f32 %v9849, %v10169
    %v10171 = vpop.f32.mrf.mxu0
    %v10172 = vand.u32 %v201, 4294901760
    %10173 = vmatprep.mubr.f32.mxu0 %v10172
    %v10174 = vand.u32 %v200, 4294901760
    %10175 = vmatmul.mubr.f32.gmra.mxu0 %v10174
    %v10176 = vpop.f32.mrf.mxu0
    %v10177 = vadd.f32 %v9856, %v10176
    %v10178 = vpop.f32.mrf.mxu0
    %v10179 = vand.u32 %v203, 4294901760
    %10180 = vmatprep.mubr.f32.mxu0 %v10179
    %v10181 = vand.u32 %v202, 4294901760
    %10182 = vmatmul.mubr.f32.gmra.mxu0 %v10181
    %v10183 = vpop.f32.mrf.mxu0
    %v10184 = vadd.f32 %v9863, %v10183
    %v10185 = vpop.f32.mrf.mxu0
    %v10186 = vand.u32 %v205, 4294901760
    %10187 = vmatprep.mubr.f32.mxu0 %v10186
    %v10188 = vand.u32 %v204, 4294901760
    %10189 = vmatmul.mubr.f32.gmra.mxu0 %v10188
    %v10190 = vpop.f32.mrf.mxu0
    %v10191 = vadd.f32 %v9870, %v10190
    %v10192 = vpop.f32.mrf.mxu0
    %v10193 = vand.u32 %v207, 4294901760
    %10194 = vmatprep.mubr.f32.mxu0 %v10193
    %v10195 = vand.u32 %v206, 4294901760
    %10196 = vmatmul.mubr.f32.gmra.mxu0 %v10195
    %v10197 = vpop.f32.mrf.mxu0
    %v10198 = vadd.f32 %v9877, %v10197
    %v10199 = vpop.f32.mrf.mxu0
    %v10200 = vand.u32 %v209, 4294901760
    %10201 = vmatprep.mubr.f32.mxu0 %v10200
    %v10202 = vand.u32 %v208, 4294901760
    %10203 = vmatmul.mubr.f32.gmra.mxu0 %v10202
    %v10204 = vpop.f32.mrf.mxu0
    %v10205 = vadd.f32 %v9884, %v10204
    %v10206 = vpop.f32.mrf.mxu0
    %v10207 = vand.u32 %v211, 4294901760
    %10208 = vmatprep.mubr.f32.mxu0 %v10207
    %v10209 = vand.u32 %v210, 4294901760
    %10210 = vmatmul.mubr.f32.gmra.mxu0 %v10209
    %v10211 = vpop.f32.mrf.mxu0
    %v10212 = vadd.f32 %v9891, %v10211
    %v10213 = vpop.f32.mrf.mxu0
    %v10214 = vand.u32 %v213, 4294901760
    %10215 = vmatprep.mubr.f32.mxu0 %v10214
    %v10216 = vand.u32 %v212, 4294901760
    %10217 = vmatmul.mubr.f32.gmra.mxu0 %v10216
    %v10218 = vpop.f32.mrf.mxu0
    %v10219 = vadd.f32 %v9898, %v10218
    %v10220 = vpop.f32.mrf.mxu0
    %v10221 = vand.u32 %v215, 4294901760
    %10222 = vmatprep.mubr.f32.mxu0 %v10221
    %v10223 = vand.u32 %v214, 4294901760
    %10224 = vmatmul.mubr.f32.gmra.mxu0 %v10223
    %v10225 = vpop.f32.mrf.mxu0
    %v10226 = vadd.f32 %v9905, %v10225
    %v10227 = vpop.f32.mrf.mxu0
    %v10228 = vand.u32 %v217, 4294901760
    %10229 = vmatprep.mubr.f32.mxu0 %v10228
    %v10230 = vand.u32 %v216, 4294901760
    %10231 = vmatmul.mubr.f32.gmra.mxu0 %v10230
    %v10232 = vpop.f32.mrf.mxu0
    %v10233 = vadd.f32 %v9912, %v10232
    %v10234 = vpop.f32.mrf.mxu0
    %v10235 = vand.u32 %v219, 4294901760
    %10236 = vmatprep.mubr.f32.mxu0 %v10235
    %v10237 = vand.u32 %v218, 4294901760
    %10238 = vmatmul.mubr.f32.gmra.mxu0 %v10237
    %v10239 = vpop.f32.mrf.mxu0
    %v10240 = vadd.f32 %v9919, %v10239
    %v10241 = vpop.f32.mrf.mxu0
    %v10242 = vand.u32 %v221, 4294901760
    %10243 = vmatprep.mubr.f32.mxu0 %v10242
    %v10244 = vand.u32 %v220, 4294901760
    %10245 = vmatmul.mubr.f32.gmra.mxu0 %v10244
    %v10246 = vpop.f32.mrf.mxu0
    %v10247 = vadd.f32 %v9926, %v10246
    %v10248 = vpop.f32.mrf.mxu0
    %v10249 = vand.u32 %v223, 4294901760
    %10250 = vmatprep.mubr.f32.mxu0 %v10249
    %v10251 = vand.u32 %v222, 4294901760
    %10252 = vmatmul.mubr.f32.gmra.mxu0 %v10251
    %v10253 = vpop.f32.mrf.mxu0
    %v10254 = vadd.f32 %v9933, %v10253
    %v10255 = vpop.f32.mrf.mxu0
    %v10256 = vand.u32 %v225, 4294901760
    %10257 = vmatprep.mubr.f32.mxu0 %v10256
    %v10258 = vand.u32 %v224, 4294901760
    %10259 = vmatmul.mubr.f32.gmra.mxu0 %v10258
    %v10260 = vpop.f32.mrf.mxu0
    %v10261 = vadd.f32 %v9940, %v10260
    %v10262 = vpop.f32.mrf.mxu0
    %v10263 = vand.u32 %v227, 4294901760
    %10264 = vmatprep.mubr.f32.mxu0 %v10263
    %v10265 = vand.u32 %v226, 4294901760
    %10266 = vmatmul.mubr.f32.gmra.mxu0 %v10265
    %v10267 = vpop.f32.mrf.mxu0
    %v10268 = vadd.f32 %v9947, %v10267
    %v10269 = vpop.f32.mrf.mxu0
    %v10270 = vand.u32 %v229, 4294901760
    %10271 = vmatprep.mubr.f32.mxu0 %v10270
    %v10272 = vand.u32 %v228, 4294901760
    %10273 = vmatmul.mubr.f32.gmra.mxu0 %v10272
    %v10274 = vpop.f32.mrf.mxu0
    %v10275 = vadd.f32 %v9954, %v10274
    %v10276 = vpop.f32.mrf.mxu0
    %v10277 = vand.u32 %v231, 4294901760
    %10278 = vmatprep.mubr.f32.mxu0 %v10277
    %v10279 = vand.u32 %v230, 4294901760
    %10280 = vmatmul.mubr.f32.gmra.mxu0 %v10279
    %v10281 = vpop.f32.mrf.mxu0
    %v10282 = vadd.f32 %v9961, %v10281
    %v10283 = vpop.f32.mrf.mxu0
    %v10284 = vand.u32 %v233, 4294901760
    %10285 = vmatprep.mubr.f32.mxu0 %v10284
    %v10286 = vand.u32 %v232, 4294901760
    %10287 = vmatmul.mubr.f32.gmra.mxu0 %v10286
    %v10288 = vpop.f32.mrf.mxu0
    %v10289 = vadd.f32 %v9968, %v10288
    %v10290 = vpop.f32.mrf.mxu0
    %v10291 = vand.u32 %v235, 4294901760
    %10292 = vmatprep.mubr.f32.mxu0 %v10291
    %v10293 = vand.u32 %v234, 4294901760
    %10294 = vmatmul.mubr.f32.gmra.mxu0 %v10293
    %v10295 = vpop.f32.mrf.mxu0
    %v10296 = vadd.f32 %v9975, %v10295
    %v10297 = vpop.f32.mrf.mxu0
    %v10298 = vand.u32 %v237, 4294901760
    %10299 = vmatprep.mubr.f32.mxu0 %v10298
    %v10300 = vand.u32 %v236, 4294901760
    %10301 = vmatmul.mubr.f32.gmra.mxu0 %v10300
    %v10302 = vpop.f32.mrf.mxu0
    %v10303 = vadd.f32 %v9982, %v10302
    %v10304 = vpop.f32.mrf.mxu0
    %v10305 = vand.u32 %v239, 4294901760
    %10306 = vmatprep.mubr.f32.mxu0 %v10305
    %v10307 = vand.u32 %v238, 4294901760
    %10308 = vmatmul.mubr.f32.gmra.mxu0 %v10307
    %v10309 = vpop.f32.mrf.mxu0
    %v10310 = vadd.f32 %v9989, %v10309
    %v10311 = vpop.f32.mrf.mxu0
    %v10312 = vand.u32 %v241, 4294901760
    %10313 = vmatprep.mubr.f32.mxu0 %v10312
    %v10314 = vand.u32 %v240, 4294901760
    %10315 = vmatmul.mubr.f32.gmra.mxu0 %v10314
    %v10316 = vpop.f32.mrf.mxu0
    %v10317 = vadd.f32 %v9996, %v10316
    %v10318 = vpop.f32.mrf.mxu0
    %v10319 = vand.u32 %v243, 4294901760
    %10320 = vmatprep.mubr.f32.mxu0 %v10319
    %v10321 = vand.u32 %v242, 4294901760
    %10322 = vmatmul.mubr.f32.gmra.mxu0 %v10321
    %v10323 = vpop.f32.mrf.mxu0
    %v10324 = vadd.f32 %v10003, %v10323
    %v10325 = vpop.f32.mrf.mxu0
    %v10326 = vand.u32 %v245, 4294901760
    %10327 = vmatprep.mubr.f32.mxu0 %v10326
    %v10328 = vand.u32 %v244, 4294901760
    %10329 = vmatmul.mubr.f32.gmra.mxu0 %v10328
    %v10330 = vpop.f32.mrf.mxu0
    %v10331 = vadd.f32 %v10010, %v10330
    %v10332 = vpop.f32.mrf.mxu0
    %10333 = vdwg.mxu0
    %v10334 = vstv %s7730
    %v10335 = vrcp.pop %v10334
    %v10336 = vmul.f32 %v10114, %v10335
    %v10337 = vmul.f32 %v10121, %v10335
    %v10338 = vmul.f32 %v10128, %v10335
    %v10339 = vmul.f32 %v10135, %v10335
    %v10340 = vmul.f32 %v10142, %v10335
    %v10341 = vmul.f32 %v10149, %v10335
    %v10342 = vmul.f32 %v10156, %v10335
    %v10343 = vmul.f32 %v10163, %v10335
    %v10344 = vmul.f32 %v10170, %v10335
    %v10345 = vmul.f32 %v10177, %v10335
    %v10346 = vmul.f32 %v10184, %v10335
    %v10347 = vmul.f32 %v10191, %v10335
    %v10348 = vmul.f32 %v10198, %v10335
    %v10349 = vmul.f32 %v10205, %v10335
    %v10350 = vmul.f32 %v10212, %v10335
    %v10351 = vmul.f32 %v10219, %v10335
    %v10352 = vmul.f32 %v10226, %v10335
    %v10353 = vmul.f32 %v10233, %v10335
    %v10354 = vmul.f32 %v10240, %v10335
    %v10355 = vmul.f32 %v10247, %v10335
    %v10356 = vmul.f32 %v10254, %v10335
    %v10357 = vmul.f32 %v10261, %v10335
    %v10358 = vmul.f32 %v10268, %v10335
    %v10359 = vmul.f32 %v10275, %v10335
    %v10360 = vmul.f32 %v10282, %v10335
    %v10361 = vmul.f32 %v10289, %v10335
    %v10362 = vmul.f32 %v10296, %v10335
    %v10363 = vmul.f32 %v10303, %v10335
    %v10364 = vmul.f32 %v10310, %v10335
    %v10365 = vmul.f32 %v10317, %v10335
    %v10366 = vmul.f32 %v10324, %v10335
    %v10367 = vmul.f32 %v10331, %v10335
    %v10368 = vfloor.f32 %v10336
    %v10369 = vfloor.f32 %v10337
    %v10370 = vfloor.f32 %v10338
    %v10371 = vfloor.f32 %v10339
    %v10372 = vfloor.f32 %v10340
    %v10373 = vfloor.f32 %v10341
    %v10374 = vfloor.f32 %v10342
    %v10375 = vfloor.f32 %v10343
    %v10376 = vfloor.f32 %v10344
    %v10377 = vfloor.f32 %v10345
    %v10378 = vfloor.f32 %v10346
    %v10379 = vfloor.f32 %v10347
    %v10380 = vfloor.f32 %v10348
    %v10381 = vfloor.f32 %v10349
    %v10382 = vfloor.f32 %v10350
    %v10383 = vfloor.f32 %v10351
    %v10384 = vfloor.f32 %v10352
    %v10385 = vfloor.f32 %v10353
    %v10386 = vfloor.f32 %v10354
    %v10387 = vfloor.f32 %v10355
    %v10388 = vfloor.f32 %v10356
    %v10389 = vfloor.f32 %v10357
    %v10390 = vfloor.f32 %v10358
    %v10391 = vfloor.f32 %v10359
    %v10392 = vfloor.f32 %v10360
    %v10393 = vfloor.f32 %v10361
    %v10394 = vfloor.f32 %v10362
    %v10395 = vfloor.f32 %v10363
    %v10396 = vfloor.f32 %v10364
    %v10397 = vfloor.f32 %v10365
    %v10398 = vfloor.f32 %v10366
    %v10399 = vfloor.f32 %v10367
    %v10400 = vmax.f32 %v10368, 0.0
    %v10401 = vmax.f32 %v10369, 0.0
    %v10402 = vmax.f32 %v10370, 0.0
    %v10403 = vmax.f32 %v10371, 0.0
    %v10404 = vmax.f32 %v10372, 0.0
    %v10405 = vmax.f32 %v10373, 0.0
    %v10406 = vmax.f32 %v10374, 0.0
    %v10407 = vmax.f32 %v10375, 0.0
    %v10408 = vmax.f32 %v10376, 0.0
    %v10409 = vmax.f32 %v10377, 0.0
    %v10410 = vmax.f32 %v10378, 0.0
    %v10411 = vmax.f32 %v10379, 0.0
    %v10412 = vmax.f32 %v10380, 0.0
    %v10413 = vmax.f32 %v10381, 0.0
    %v10414 = vmax.f32 %v10382, 0.0
    %v10415 = vmax.f32 %v10383, 0.0
    %v10416 = vmax.f32 %v10384, 0.0
    %v10417 = vmax.f32 %v10385, 0.0
    %v10418 = vmax.f32 %v10386, 0.0
    %v10419 = vmax.f32 %v10387, 0.0
    %v10420 = vmax.f32 %v10388, 0.0
    %v10421 = vmax.f32 %v10389, 0.0
    %v10422 = vmax.f32 %v10390, 0.0
    %v10423 = vmax.f32 %v10391, 0.0
    %v10424 = vmax.f32 %v10392, 0.0
    %v10425 = vmax.f32 %v10393, 0.0
    %v10426 = vmax.f32 %v10394, 0.0
    %v10427 = vmax.f32 %v10395, 0.0
    %v10428 = vmax.f32 %v10396, 0.0
    %v10429 = vmax.f32 %v10397, 0.0
    %v10430 = vmax.f32 %v10398, 0.0
    %v10431 = vmax.f32 %v10399, 0.0
    %v10432 = vmin.f32 %v10400, 255.0
    %v10433 = vmin.f32 %v10401, 255.0
    %v10434 = vmin.f32 %v10402, 255.0
    %v10435 = vmin.f32 %v10403, 255.0
    %v10436 = vmin.f32 %v10404, 255.0
    %v10437 = vmin.f32 %v10405, 255.0
    %v10438 = vmin.f32 %v10406, 255.0
    %v10439 = vmin.f32 %v10407, 255.0
    %v10440 = vmin.f32 %v10408, 255.0
    %v10441 = vmin.f32 %v10409, 255.0
    %v10442 = vmin.f32 %v10410, 255.0
    %v10443 = vmin.f32 %v10411, 255.0
    %v10444 = vmin.f32 %v10412, 255.0
    %v10445 = vmin.f32 %v10413, 255.0
    %v10446 = vmin.f32 %v10414, 255.0
    %v10447 = vmin.f32 %v10415, 255.0
    %v10448 = vmin.f32 %v10416, 255.0
    %v10449 = vmin.f32 %v10417, 255.0
    %v10450 = vmin.f32 %v10418, 255.0
    %v10451 = vmin.f32 %v10419, 255.0
    %v10452 = vmin.f32 %v10420, 255.0
    %v10453 = vmin.f32 %v10421, 255.0
    %v10454 = vmin.f32 %v10422, 255.0
    %v10455 = vmin.f32 %v10423, 255.0
    %v10456 = vmin.f32 %v10424, 255.0
    %v10457 = vmin.f32 %v10425, 255.0
    %v10458 = vmin.f32 %v10426, 255.0
    %v10459 = vmin.f32 %v10427, 255.0
    %v10460 = vmin.f32 %v10428, 255.0
    %v10461 = vmin.f32 %v10429, 255.0
    %v10462 = vmin.f32 %v10430, 255.0
    %v10463 = vmin.f32 %v10431, 255.0
    %10465 = vset.pattern.permute.xlu0 0
    %10466 = vperm.xlu0 %10465, %v10432
    %v10467 = vpop.permute.xlu0 %10466
    %10470 = vset.pattern.permute.xlu0 0
    %10471 = vperm.xlu0 %10470, %v10433
    %v10472 = vpop.permute.xlu0 %10471
    %10475 = vset.pattern.permute.xlu0 0
    %10476 = vperm.xlu0 %10475, %v10434
    %v10477 = vpop.permute.xlu0 %10476
    %10480 = vset.pattern.permute.xlu0 0
    %10481 = vperm.xlu0 %10480, %v10435
    %v10482 = vpop.permute.xlu0 %10481
    %10485 = vset.pattern.permute.xlu0 0
    %10486 = vperm.xlu0 %10485, %v10436
    %v10487 = vpop.permute.xlu0 %10486
    %10490 = vset.pattern.permute.xlu0 0
    %10491 = vperm.xlu0 %10490, %v10437
    %v10492 = vpop.permute.xlu0 %10491
    %10495 = vset.pattern.permute.xlu0 0
    %10496 = vperm.xlu0 %10495, %v10438
    %v10497 = vpop.permute.xlu0 %10496
    %10500 = vset.pattern.permute.xlu0 0
    %10501 = vperm.xlu0 %10500, %v10439
    %v10502 = vpop.permute.xlu0 %10501
    %10505 = vset.pattern.permute.xlu0 0
    %10506 = vperm.xlu0 %10505, %v10440
    %v10507 = vpop.permute.xlu0 %10506
    %10510 = vset.pattern.permute.xlu0 0
    %10511 = vperm.xlu0 %10510, %v10441
    %v10512 = vpop.permute.xlu0 %10511
    %10515 = vset.pattern.permute.xlu0 0
    %10516 = vperm.xlu0 %10515, %v10442
    %v10517 = vpop.permute.xlu0 %10516
    %10520 = vset.pattern.permute.xlu0 0
    %10521 = vperm.xlu0 %10520, %v10443
    %v10522 = vpop.permute.xlu0 %10521
    %10525 = vset.pattern.permute.xlu0 0
    %10526 = vperm.xlu0 %10525, %v10444
    %v10527 = vpop.permute.xlu0 %10526
    %10530 = vset.pattern.permute.xlu0 0
    %10531 = vperm.xlu0 %10530, %v10445
    %v10532 = vpop.permute.xlu0 %10531
    %10535 = vset.pattern.permute.xlu0 0
    %10536 = vperm.xlu0 %10535, %v10446
    %v10537 = vpop.permute.xlu0 %10536
    %10540 = vset.pattern.permute.xlu0 0
    %10541 = vperm.xlu0 %10540, %v10447
    %v10542 = vpop.permute.xlu0 %10541
    %10545 = vset.pattern.permute.xlu0 0
    %10546 = vperm.xlu0 %10545, %v10448
    %v10547 = vpop.permute.xlu0 %10546
    %10550 = vset.pattern.permute.xlu0 0
    %10551 = vperm.xlu0 %10550, %v10449
    %v10552 = vpop.permute.xlu0 %10551
    %10555 = vset.pattern.permute.xlu0 0
    %10556 = vperm.xlu0 %10555, %v10450
    %v10557 = vpop.permute.xlu0 %10556
    %10560 = vset.pattern.permute.xlu0 0
    %10561 = vperm.xlu0 %10560, %v10451
    %v10562 = vpop.permute.xlu0 %10561
    %10565 = vset.pattern.permute.xlu0 0
    %10566 = vperm.xlu0 %10565, %v10452
    %v10567 = vpop.permute.xlu0 %10566
    %10570 = vset.pattern.permute.xlu0 0
    %10571 = vperm.xlu0 %10570, %v10453
    %v10572 = vpop.permute.xlu0 %10571
    %10575 = vset.pattern.permute.xlu0 0
    %10576 = vperm.xlu0 %10575, %v10454
    %v10577 = vpop.permute.xlu0 %10576
    %10580 = vset.pattern.permute.xlu0 0
    %10581 = vperm.xlu0 %10580, %v10455
    %v10582 = vpop.permute.xlu0 %10581
    %10585 = vset.pattern.permute.xlu0 0
    %10586 = vperm.xlu0 %10585, %v10456
    %v10587 = vpop.permute.xlu0 %10586
    %10590 = vset.pattern.permute.xlu0 0
    %10591 = vperm.xlu0 %10590, %v10457
    %v10592 = vpop.permute.xlu0 %10591
    %10595 = vset.pattern.permute.xlu0 0
    %10596 = vperm.xlu0 %10595, %v10458
    %v10597 = vpop.permute.xlu0 %10596
    %10600 = vset.pattern.permute.xlu0 0
    %10601 = vperm.xlu0 %10600, %v10459
    %v10602 = vpop.permute.xlu0 %10601
    %10605 = vset.pattern.permute.xlu0 0
    %10606 = vperm.xlu0 %10605, %v10460
    %v10607 = vpop.permute.xlu0 %10606
    %10610 = vset.pattern.permute.xlu0 0
    %10611 = vperm.xlu0 %10610, %v10461
    %v10612 = vpop.permute.xlu0 %10611
    %10615 = vset.pattern.permute.xlu0 0
    %10616 = vperm.xlu0 %10615, %v10462
    %v10617 = vpop.permute.xlu0 %10616
    %10620 = vset.pattern.permute.xlu0 0
    %10621 = vperm.xlu0 %10620, %v10463
    %v10622 = vpop.permute.xlu0 %10621
    %v10624 = vsel %vm7284, %v10467, 0.0
    %v10625 = vsel %vm7285, %v10467, 0.0
    %v10626 = vsel %vm7286, %v10472, 0.0
    %v10627 = vsel %vm7287, %v10472, 0.0
    %v10628 = vsel %vm7288, %v10477, 0.0
    %v10629 = vsel %vm7289, %v10477, 0.0
    %v10630 = vsel %vm7290, %v10482, 0.0
    %v10631 = vsel %vm7291, %v10482, 0.0
    %v10632 = vsel %vm7292, %v10487, 0.0
    %v10633 = vsel %vm7293, %v10487, 0.0
    %v10634 = vsel %vm7294, %v10492, 0.0
    %v10635 = vsel %vm7295, %v10492, 0.0
    %v10636 = vsel %vm7296, %v10497, 0.0
    %v10637 = vsel %vm7297, %v10497, 0.0
    %v10638 = vsel %vm7298, %v10502, 0.0
    %v10639 = vsel %vm7299, %v10502, 0.0
    %v10640 = vsel %vm7300, %v10507, 0.0
    %v10641 = vsel %vm7301, %v10507, 0.0
    %v10642 = vsel %vm7302, %v10512, 0.0
    %v10643 = vsel %vm7303, %v10512, 0.0
    %v10644 = vsel %vm7304, %v10517, 0.0
    %v10645 = vsel %vm7305, %v10517, 0.0
    %v10646 = vsel %vm7306, %v10522, 0.0
    %v10647 = vsel %vm7307, %v10522, 0.0
    %v10648 = vsel %vm7308, %v10527, 0.0
    %v10649 = vsel %vm7309, %v10527, 0.0
    %v10650 = vsel %vm7310, %v10532, 0.0
    %v10651 = vsel %vm7311, %v10532, 0.0
    %v10652 = vsel %vm7312, %v10537, 0.0
    %v10653 = vsel %vm7313, %v10537, 0.0
    %v10654 = vsel %vm7314, %v10542, 0.0
    %v10655 = vsel %vm7315, %v10542, 0.0
    %v10656 = vsel %vm7316, %v10547, 0.0
    %v10657 = vsel %vm7317, %v10547, 0.0
    %v10658 = vsel %vm7318, %v10552, 0.0
    %v10659 = vsel %vm7319, %v10552, 0.0
    %v10660 = vsel %vm7320, %v10557, 0.0
    %v10661 = vsel %vm7321, %v10557, 0.0
    %v10662 = vsel %vm7322, %v10562, 0.0
    %v10663 = vsel %vm7323, %v10562, 0.0
    %v10664 = vsel %vm7324, %v10567, 0.0
    %v10665 = vsel %vm7325, %v10567, 0.0
    %v10666 = vsel %vm7326, %v10572, 0.0
    %v10667 = vsel %vm7327, %v10572, 0.0
    %v10668 = vsel %vm7328, %v10577, 0.0
    %v10669 = vsel %vm7329, %v10577, 0.0
    %v10670 = vsel %vm7330, %v10582, 0.0
    %v10671 = vsel %vm7331, %v10582, 0.0
    %v10672 = vsel %vm7332, %v10587, 0.0
    %v10673 = vsel %vm7333, %v10587, 0.0
    %v10674 = vsel %vm7334, %v10592, 0.0
    %v10675 = vsel %vm7335, %v10592, 0.0
    %v10676 = vsel %vm7336, %v10597, 0.0
    %v10677 = vsel %vm7337, %v10597, 0.0
    %v10678 = vsel %vm7338, %v10602, 0.0
    %v10679 = vsel %vm7339, %v10602, 0.0
    %v10680 = vsel %vm7340, %v10607, 0.0
    %v10681 = vsel %vm7341, %v10607, 0.0
    %v10682 = vsel %vm7342, %v10612, 0.0
    %v10683 = vsel %vm7343, %v10612, 0.0
    %v10684 = vsel %vm7344, %v10617, 0.0
    %v10685 = vsel %vm7345, %v10617, 0.0
    %v10686 = vsel %vm7346, %v10622, 0.0
    %v10687 = vsel %vm7347, %v10622, 0.0
    %v10688 = vadd.f32 %v10624, %v10626
    %v10689 = vadd.f32 %v10688, %v10628
    %v10690 = vadd.f32 %v10689, %v10630
    %v10691 = vadd.f32 %v10690, %v10632
    %v10692 = vadd.f32 %v10691, %v10634
    %v10693 = vadd.f32 %v10692, %v10636
    %v10694 = vadd.f32 %v10693, %v10638
    %v10695 = vadd.f32 %v10694, %v10640
    %v10696 = vadd.f32 %v10695, %v10642
    %v10697 = vadd.f32 %v10696, %v10644
    %v10698 = vadd.f32 %v10697, %v10646
    %v10699 = vadd.f32 %v10698, %v10648
    %v10700 = vadd.f32 %v10699, %v10650
    %v10701 = vadd.f32 %v10700, %v10652
    %v10702 = vadd.f32 %v10701, %v10654
    %v10703 = vadd.f32 %v10702, %v10656
    %v10704 = vadd.f32 %v10703, %v10658
    %v10705 = vadd.f32 %v10704, %v10660
    %v10706 = vadd.f32 %v10705, %v10662
    %v10707 = vadd.f32 %v10706, %v10664
    %v10708 = vadd.f32 %v10707, %v10666
    %v10709 = vadd.f32 %v10708, %v10668
    %v10710 = vadd.f32 %v10709, %v10670
    %v10711 = vadd.f32 %v10710, %v10672
    %v10712 = vadd.f32 %v10711, %v10674
    %v10713 = vadd.f32 %v10712, %v10676
    %v10714 = vadd.f32 %v10713, %v10678
    %v10715 = vadd.f32 %v10714, %v10680
    %v10716 = vadd.f32 %v10715, %v10682
    %v10717 = vadd.f32 %v10716, %v10684
    %v10718 = vadd.f32 %v10717, %v10686
    %v10719 = vrot.slane %v10718, 4
    %v10720 = vadd.f32 %v10718, %v10719
    %v10721 = vrot.slane %v10720, 2
    %v10722 = vadd.f32 %v10720, %v10721
    %v10723 = vrot.slane %v10722, 1
    %v10724 = vadd.f32 %v10722, %v10723
    %v10725 = vadd.f32 %v10625, %v10627
    %v10726 = vadd.f32 %v10725, %v10629
    %v10727 = vadd.f32 %v10726, %v10631
    %v10728 = vadd.f32 %v10727, %v10633
    %v10729 = vadd.f32 %v10728, %v10635
    %v10730 = vadd.f32 %v10729, %v10637
    %v10731 = vadd.f32 %v10730, %v10639
    %v10732 = vadd.f32 %v10731, %v10641
    %v10733 = vadd.f32 %v10732, %v10643
    %v10734 = vadd.f32 %v10733, %v10645
    %v10735 = vadd.f32 %v10734, %v10647
    %v10736 = vadd.f32 %v10735, %v10649
    %v10737 = vadd.f32 %v10736, %v10651
    %v10738 = vadd.f32 %v10737, %v10653
    %v10739 = vadd.f32 %v10738, %v10655
    %v10740 = vadd.f32 %v10739, %v10657
    %v10741 = vadd.f32 %v10740, %v10659
    %v10742 = vadd.f32 %v10741, %v10661
    %v10743 = vadd.f32 %v10742, %v10663
    %v10744 = vadd.f32 %v10743, %v10665
    %v10745 = vadd.f32 %v10744, %v10667
    %v10746 = vadd.f32 %v10745, %v10669
    %v10747 = vadd.f32 %v10746, %v10671
    %v10748 = vadd.f32 %v10747, %v10673
    %v10749 = vadd.f32 %v10748, %v10675
    %v10750 = vadd.f32 %v10749, %v10677
    %v10751 = vadd.f32 %v10750, %v10679
    %v10752 = vadd.f32 %v10751, %v10681
    %v10753 = vadd.f32 %v10752, %v10683
    %v10754 = vadd.f32 %v10753, %v10685
    %v10755 = vadd.f32 %v10754, %v10687
    %v10756 = vrot.slane %v10755, 4
    %v10757 = vadd.f32 %v10755, %v10756
    %v10758 = vrot.slane %v10757, 2
    %v10759 = vadd.f32 %v10757, %v10758
    %v10760 = vrot.slane %v10759, 1
    %v10761 = vadd.f32 %v10759, %v10760
    %p10762 = scmp.gt.f32.partialorder %s7729, 0.0
    %s10763 = scalar_select %p10762, 1, 0
    %v10764 = vstv %s10763
    %vm10765 = vcmp.eq.s32.totalorder %v10764, 1
    %v10766 = vlaneseq
    %v10767 = vshrl.u32 %v10766, 7
    %v10768 = vsub.s32 2, %v10767
    %v10769 = vrot.slane %v3741, %v10768
    %v10770 = vlaneseq
    %v10771 = vshrl.u32 %v10770, 7
    %v10772 = vsub.s32 6, %v10771
    %v10773 = vrot.slane %v3741, %v10772
    %v10776 = vsel %vm10765, %v10724, %v10769
    %v10777 = vsel %vm10765, %v10761, %v10773
    %v10780 = vrot.slane %v7266, 7
    %v10781 = vrot.slane %v7267, 7
    %v10786 = vrot.slane %v10776, 6
    %v10787 = vrot.slane %v10777, 6
    %v10790 = vsel %vm647, %v3756, %v10780
    %v10791 = vsel %vm647, %v3757, %v10781
    %vm10792 = vcmask 1041408
    %v10793 = vsel %vm10792, %v10790, %v10786
    %v10794 = vsel %vm10792, %v10791, %v10787
    %v10795 = vcvt.f32.s32.to.zero.pseudo %v10793
    %v10796 = vcvt.f32.s32.to.zero.pseudo %v10794
    %v10797 = vpack.c.b16 %v10795, %v10795
    %v10798 = vpack.c.b8 %v10797, %v10797
    %v10799 = vpack.c.b16 %v10796, %v10796
    %v10800 = vpack.c.b8 %v10799, %v10799
    %v10801 = vcombine.low %v10798, %v10800
    %v10803 = vunpack.c.l.s4 1966171168
    %v10804 = vunpack.c.0.s8 %v10803
    %v10805 = vlaneseq
    %v10806 = vshrl.u32 %v10805, 7
    %v10807 = vsub.s32 %v10804, %v10806
    %v10808 = vrot.slane %v10801, %v10807
    %v10810 = vunpack.c.l.s4 1966171168
    %v10811 = vunpack.c.0.s8 %v10810
    %v10812 = vlaneseq
    %v10813 = vshrl.u32 %v10812, 7
    %v10814 = vsub.s32 %v10811, %v10813
    %v10815 = vrot.slane %v10808, %v10814
    %vm10816 = vcmask 1040384
    %vm10817 = vsmask.f32 512
    %vm10818 = vmand %vm10816, %vm10817
    %vm10819 = vcmask 1041409
    %vm10820 = vsmask.f32 1536
    %vm10821 = vmand %vm10819, %vm10820
    %vm10822 = vmor %vm10821, %vm10818
    %v10823 = vld [vmem:[#allocation3] sm:$0x3]
    %v10824 = vsel %vm10822, %v10815, %v10823
    %10825 = vst [vmem:[#allocation3] sm:$0x3] %v10824
    // Predicated region
    $region10: #{tpu_custom_call.1} parent=1 // pred_check
      _
    $region11: #{tpu_custom_call.1} parent=1 // pred_check_branch
      %10827 = sbr.rel (0) target = $region13
    $region12: #{tpu_custom_call.1} parent=1 // pred_region
      %s10829 = ssub.s32 32, 32
      %10830 = vsyncadd [#allocation4], %s10829
      %s10832 = sshll.u32 [#allocation3], 4
      %s10833 = int_to_ptr.vmem [resolvable:$true] %s10832
      %10835 = dma.vmem_to_hbm [thread:$0]  %s10833, 32, %s2, [#allocation4]
    $region13: #{tpu_custom_call.1} parent=1 // pred_fallthru
      _
    // Predicated region
    $region14: #{tpu_custom_call.1} parent=1 // pred_check
      _
    $region15: #{tpu_custom_call.1} parent=1 // pred_check_branch
      %10837 = sbr.rel (0) target = $region17
    $region16: #{tpu_custom_call.1} parent=1 // pred_region
      %10838 = dma.done [#allocation4], 32
    $region17: #{tpu_custom_call.1} parent=1 // pred_fallthru
      _
    %10839 = vsyncpa [#allocation4], 1

</llo_original>
